<compile_context>
chip_gen: v6e
topology: v6e:2x2x1
jax: 0.10.0
libtpu: 0.0.40
codegen_flags: <defaults>
</compile_context>

<pallas_src>
import functools

import jax
import jax.numpy as jnp
from jax.experimental import pallas as pl
from jax.experimental.pallas import tpu as pltpu

BN_EPS = 1e-3  # nn.BatchNorm2d(..., eps=0.001) in the Conv block of the spec.


# --------------------------------------------------------------------------------------
# Fused Bottleneck kernel
# --------------------------------------------------------------------------------------

def _silu(y, approx):
    # y is float32. approx path: divide -> EUP approx reciprocal (VALU stays free).
    if approx:
        return y * pl.reciprocal(1.0 + jnp.exp(-y), approx=True)
    return y * (1.0 / (1.0 + jnp.exp(-y)))


def _bottleneck_kernel(H, W, add, approx_silu,
                       xpad_ref, w1_ref, b1_ref, w2_ref, b2_ref,
                       o_ref, slab1_ref, ypad_ref, slab2_ref):
    """One grid step = one batch element.

    Each 3x3 conv = im2col slab build (9 shifted VMEM copies) + ONE (H*W, 9*Cin) @ (9*Cin, Cout)
    MXU matmul with f32 accumulation.  BN scale is pre-folded into the weights.
    """
    C1 = xpad_ref.shape[-1]
    Cm = w1_ref.shape[-1]
    C2 = w2_ref.shape[-1]
    dt = slab1_ref.dtype

    # ---- cv1: build im2col slab directly from the pre-padded input block ---------------
    for ky in range(3):
        for kx in range(3):
            t = ky * 3 + kx
            slab1_ref[:, :, t * C1:(t + 1) * C1] = (
                xpad_ref[ky:ky + H, kx:kx + W, :].astype(dt))

    acc1 = jnp.dot(slab1_ref[...].reshape(H * W, 9 * C1), w1_ref[...],
                   preferred_element_type=jnp.float32)          # (H*W, Cm), f32 accumulate
    y1 = _silu(acc1 + b1_ref[...], approx_silu)                  # BN bias + SiLU (f32)

    # ---- zero-pad the cv1 activation in VMEM (intermediate never touches HBM) ----------
    # Only the 1-pixel halo ring is zeroed; the interior is fully overwritten every step.
    zrow = jnp.zeros((1, W + 2, Cm), dt)
    zcol = jnp.zeros((H + 2, 1, Cm), dt)
    ypad_ref[0:1, :, :] = zrow
    ypad_ref[H + 1:H + 2, :, :] = zrow
    ypad_ref[:, 0:1, :] = zcol
    ypad_ref[:, W + 1:W + 2, :] = zcol
    ypad_ref[1:1 + H, 1:1 + W, :] = y1.reshape(H, W, Cm).astype(dt)

    # ---- cv2: im2col slab + one matmul --------------------------------------------------
    for ky in range(3):
        for kx in range(3):
            t = ky * 3 + kx
            slab2_ref[:, :, t * Cm:(t + 1) * Cm] = ypad_ref[ky:ky + H, kx:kx + W, :]

    acc2 = jnp.dot(slab2_ref[...].reshape(H * W, 9 * Cm), w2_ref[...],
                   preferred_element_type=jnp.float32)
    y2 = _silu(acc2 + b2_ref[...], approx_silu)

    out = y2.reshape(H, W, C2)
    if add:                                                      # shortcut and c1 == c2 (static)
        out = out + xpad_ref[1:1 + H, 1:1 + W, :].astype(jnp.float32)
    o_ref[...] = out.astype(o_ref.dtype)


def _fold_bn(gamma, beta, mean, var, eps=BN_EPS):
    scale = gamma / jnp.sqrt(var + eps)
    return scale, beta - mean * scale


def bottleneck_forward(x_nchw, params, *, shortcut=True, g=1, use_bf16_mxu=True):
    """Pallas TPU forward of the PyTorch Bottleneck module.

    x_nchw : (B, C1, H, W) float32, like the nn.Module.
    params : PyTorch-layout conv weights + BatchNorm (eval) stats, see init_params().
    """
    assert g == 1, "TODO(synk): grouped conv (g>1) not implemented"
    w1_pt = params["cv1_w"]                     # (Cm, C1, 3, 3)
    w2_pt = params["cv2_w"]                     # (C2, Cm, 3, 3)
    Cm, C1 = w1_pt.shape[0], w1_pt.shape[1]
    C2 = w2_pt.shape[0]
    assert w1_pt.shape[2:] == (3, 3) and w2_pt.shape[2:] == (3, 3)
    B, _, H, W = x_nchw.shape
    add = bool(shortcut) and (C1 == C2)

    s1, b1 = _fold_bn(params["bn1_g"], params["bn1_b"], params["bn1_mean"], params["bn1_var"])
    s2, b2 = _fold_bn(params["bn2_g"], params["bn2_b"], params["bn2_mean"], params["bn2_var"])

    # bf16 into the MXU (no native f32 MXU path on v5e/v6e/v7x); accumulation & elementwise f32.
    mxu_dt = jnp.bfloat16 if use_bf16_mxu else jnp.float32

    # (Cout, Cin, 3, 3) -> (ky, kx, Cin, Cout) -> (9*Cin, Cout).  Row index = tap*Cin + cin,
    # matching the slab layout.  BN scale folded into the weights (bias handled in-kernel).
    w1_mat = (jnp.transpose(w1_pt, (2, 3, 1, 0)).reshape(9 * C1, Cm) * s1[None, :]).astype(mxu_dt)
    w2_mat = (jnp.transpose(w2_pt, (2, 3, 1, 0)).reshape(9 * Cm, C2) * s2[None, :]).astype(mxu_dt)

    x = jnp.transpose(x_nchw, (0, 2, 3, 1))                   # NHWC: channels on the lane dim
    xpad = jnp.pad(x, ((0, 0), (1, 1), (1, 1), (0, 0)))       # 1-pixel zero halo (stride 1, "same")

    kernel = functools.partial(_bottleneck_kernel, H, W, add, bool(use_bf16_mxu))
    out = pl.pallas_call(
        kernel,
        out_shape=jax.ShapeDtypeStruct((B, H, W, C2), x.dtype),
        grid=(B,),
        in_specs=[
            pl.BlockSpec((None, H + 2, W + 2, C1), lambda b: (b, 0, 0, 0)),
            pl.BlockSpec((9 * C1, Cm), lambda b: (0, 0)),      # constant maps: weights/biases
            pl.BlockSpec((1, Cm), lambda b: (0, 0)),           # stay resident across the grid
            pl.BlockSpec((9 * Cm, C2), lambda b: (0, 0)),
            pl.BlockSpec((1, C2), lambda b: (0, 0)),
        ],
        out_specs=pl.BlockSpec((None, H, W, C2), lambda b: (b, 0, 0, 0)),
        scratch_shapes=[
            pltpu.VMEM((H, W, 9 * C1), mxu_dt),        # im2col slab for cv1
            pltpu.VMEM((H + 2, W + 2, Cm), mxu_dt),    # zero-padded cv1 activation
            pltpu.VMEM((H, W, 9 * Cm), mxu_dt),        # im2col slab for cv2
        ],
        compiler_params=pltpu.CompilerParams(
            dimension_semantics=("parallel",),         # batch steps independent (megacore OK)
            vmem_limit_bytes=48 * 1024 * 1024,         # stays under v7x's 64 MiB/TC
        ),
    )(xpad, w1_mat, b1.reshape(1, Cm), w2_mat, b2.reshape(1, C2))

    return jnp.transpose(out, (0, 3, 1, 2))     # back to NCHW


# --------------------------------------------------------------------------------------
# Parameter init (PyTorch layout) and a plain-JAX reference for verification
# --------------------------------------------------------------------------------------

def init_params(key, c1, c2, e=0.5):
    c_ = int(c2 * e)
    ks = jax.random.split(key, 10)

    def conv_w(k, cout, cin):
        bound = 1.0 / float((cin * 9) ** 0.5)
        return jax.random.uniform(k, (cout, cin, 3, 3), jnp.float32, -bound, bound)

    return {
        "cv1_w": conv_w(ks[0], c_, c1),
        "bn1_g": 1.0 + 0.1 * jax.random.normal(ks[1], (c_,), jnp.float32),
        "bn1_b": 0.1 * jax.random.normal(ks[2], (c_,), jnp.float32),
        "bn1_mean": 0.1 * jax.random.normal(ks[3], (c_,), jnp.float32),
        "bn1_var": jax.random.uniform(ks[4], (c_,), jnp.float32, 0.5, 1.5),
        "cv2_w": conv_w(ks[5], c2, c_),
        "bn2_g": 1.0 + 0.1 * jax.random.normal(ks[6], (c2,), jnp.float32),
        "bn2_b": 0.1 * jax.random.normal(ks[7], (c2,), jnp.float32),
        "bn2_mean": 0.1 * jax.random.normal(ks[8], (c2,), jnp.float32),
        "bn2_var": jax.random.uniform(ks[9], (c2,), jnp.float32, 0.5, 1.5),
    }


def bottleneck_reference(x_nchw, params, *, shortcut=True):
    x = jnp.transpose(x_nchw, (0, 2, 3, 1))

    def conv_bn_silu(h, w_pt, g, b, m, v):
        y = jax.lax.conv_general_dilated(
            h, jnp.transpose(w_pt, (2, 3, 1, 0)), (1, 1), "SAME",
            dimension_numbers=("NHWC", "HWIO", "NHWC"),
            precision=jax.lax.Precision.HIGHEST)
        y = (y - m) / jnp.sqrt(v + BN_EPS) * g + b
        return y * jax.nn.sigmoid(y)

    y1 = conv_bn_silu(x, params["cv1_w"], params["bn1_g"], params["bn1_b"],
                      params["bn1_mean"], params["bn1_var"])
    y2 = conv_bn_silu(y1, params["cv2_w"], params["bn2_g"], params["bn2_b"],
                      params["bn2_mean"], params["bn2_var"])
    out = x + y2 if (shortcut and x.shape[-1] == y2.shape[-1]) else y2
    return jnp.transpose(out, (0, 3, 1, 2))


# --------------------------------------------------------------------------------------
# Main
# --------------------------------------------------------------------------------------

if __name__ == "__main__":
    # Bottleneck(c1=128, c2=128, shortcut=True, g=1, k=(3,3), e=0.5)  ->  c_ = 64
    # B=4 so the batch-parallel grid has enough steps to reach pipeline steady state.
    B, C, H, W = 4, 128, 16, 16   # 128 channels => lane-dense (128-lane) input/output tiles

    key = jax.random.PRNGKey(0)
    kx, kp = jax.random.split(key)
    x = jax.random.normal(kx, (B, C, H, W), jnp.float32)          # NCHW, like PyTorch
    params = init_params(kp, C, C, e=0.5)

    fwd = jax.jit(functools.partial(bottleneck_forward, shortcut=True, g=1, use_bf16_mxu=True))
    out = fwd(x, params)
    jax.block_until_ready(out)

    assert out.shape == (B, C, H, W)
    assert bool(jnp.all(jnp.isfinite(out)))

    # Numerical check against a plain-JAX (XLA conv) reference of the same module.
    # Tolerance covers the bf16 MXU-input quantization (~1e-2 relative worst case).
    ref = bottleneck_reference(x, params, shortcut=True)
    max_err = float(jnp.max(jnp.abs(out - ref)))
    assert bool(jnp.allclose(out, ref, atol=2e-2, rtol=2e-2)), max_err

    print("KERNEL_OK")
</pallas_src>

<mosaic_0001>
module attributes {stable_mosaic.version = 11 : i64} {
  func.func @_bottleneck_kernel(%arg0: i32, %arg1: memref<1x18x18x128xf32, #tpu.memory_space<vmem>>, %arg2: memref<1152x64xbf16, #tpu.memory_space<vmem>>, %arg3: memref<1x64xf32, #tpu.memory_space<vmem>>, %arg4: memref<576x128xbf16, #tpu.memory_space<vmem>>, %arg5: memref<1x128xf32, #tpu.memory_space<vmem>>, %arg6: memref<1x16x16x128xf32, #tpu.memory_space<vmem>>, %arg7: memref<16x16x1152xbf16, #tpu.memory_space<vmem>>, %arg8: memref<18x18x64xbf16, #tpu.memory_space<vmem>>, %arg9: memref<16x16x576xbf16, #tpu.memory_space<vmem>>) attributes {dimension_semantics = [#tpu.dimension_semantics<parallel>], iteration_bounds = array<i64: 4>, scalar_prefetch = 0 : i64, scratch_operands = 3 : i64, tpu.core_type = #tpu.core_type<tc>, window_params = [{transform_indices = @transform_0, window_bounds = array<i64: 1, 18, 18, 128>}, {pipeline_mode = #tpu.pipeline_mode<synchronous>, transform_indices = @transform_1, window_bounds = array<i64: 1152, 64>}, {pipeline_mode = #tpu.pipeline_mode<synchronous>, transform_indices = @transform_2, window_bounds = array<i64: 1, 64>}, {pipeline_mode = #tpu.pipeline_mode<synchronous>, transform_indices = @transform_3, window_bounds = array<i64: 576, 128>}, {pipeline_mode = #tpu.pipeline_mode<synchronous>, transform_indices = @transform_4, window_bounds = array<i64: 1, 128>}, {transform_indices = @transform_5, window_bounds = array<i64: 1, 16, 16, 128>}]} {
    %c0 = arith.constant 0 : index
    %c0_0 = arith.constant 0 : index
    %c0_1 = arith.constant 0 : index
    %c0_2 = arith.constant 0 : index
    %0 = vector.load %arg1[%c0, %c0_0, %c0_1, %c0_2] : memref<1x18x18x128xf32, #tpu.memory_space<vmem>>, vector<1x16x16x128xf32>
    %1 = vector.shape_cast %0 : vector<1x16x16x128xf32> to vector<16x16x128xf32>
    %2 = arith.truncf %1 : vector<16x16x128xf32> to vector<16x16x128xbf16>
    %c0_3 = arith.constant 0 : index
    %c0_4 = arith.constant 0 : index
    %c0_5 = arith.constant 0 : index
    %3 = vector.load %arg7[%c0_3, %c0_4, %c0_5] : memref<16x16x1152xbf16, #tpu.memory_space<vmem>>, vector<16x16x128xbf16>
    tpu.vector_store %arg7[%c0_3, %c0_4, %c0_5], %2 {strides = array<i32>} : memref<16x16x1152xbf16, #tpu.memory_space<vmem>>, vector<16x16x128xbf16>,
    %c0_6 = arith.constant 0 : index
    %c0_7 = arith.constant 0 : index
    %c1 = arith.constant 1 : index
    %c0_8 = arith.constant 0 : index
    %4 = vector.load %arg1[%c0_6, %c0_7, %c1, %c0_8] : memref<1x18x18x128xf32, #tpu.memory_space<vmem>>, vector<1x16x16x128xf32>
    %5 = vector.shape_cast %4 : vector<1x16x16x128xf32> to vector<16x16x128xf32>
    %6 = arith.truncf %5 : vector<16x16x128xf32> to vector<16x16x128xbf16>
    %c0_9 = arith.constant 0 : index
    %c0_10 = arith.constant 0 : index
    %c128 = arith.constant 128 : index
    %7 = vector.load %arg7[%c0_9, %c0_10, %c128] : memref<16x16x1152xbf16, #tpu.memory_space<vmem>>, vector<16x16x128xbf16>
    tpu.vector_store %arg7[%c0_9, %c0_10, %c128], %6 {strides = array<i32>} : memref<16x16x1152xbf16, #tpu.memory_space<vmem>>, vector<16x16x128xbf16>,
    %c0_11 = arith.constant 0 : index
    %c0_12 = arith.constant 0 : index
    %c2 = arith.constant 2 : index
    %c0_13 = arith.constant 0 : index
    %8 = vector.load %arg1[%c0_11, %c0_12, %c2, %c0_13] : memref<1x18x18x128xf32, #tpu.memory_space<vmem>>, vector<1x16x16x128xf32>
    %9 = vector.shape_cast %8 : vector<1x16x16x128xf32> to vector<16x16x128xf32>
    %10 = arith.truncf %9 : vector<16x16x128xf32> to vector<16x16x128xbf16>
    %c0_14 = arith.constant 0 : index
    %c0_15 = arith.constant 0 : index
    %c256 = arith.constant 256 : index
    %11 = vector.load %arg7[%c0_14, %c0_15, %c256] : memref<16x16x1152xbf16, #tpu.memory_space<vmem>>, vector<16x16x128xbf16>
    tpu.vector_store %arg7[%c0_14, %c0_15, %c256], %10 {strides = array<i32>} : memref<16x16x1152xbf16, #tpu.memory_space<vmem>>, vector<16x16x128xbf16>,
    %c0_16 = arith.constant 0 : index
    %c1_17 = arith.constant 1 : index
    %c0_18 = arith.constant 0 : index
    %c0_19 = arith.constant 0 : index
    %12 = vector.load %arg1[%c0_16, %c1_17, %c0_18, %c0_19] : memref<1x18x18x128xf32, #tpu.memory_space<vmem>>, vector<1x16x16x128xf32>
    %13 = vector.shape_cast %12 : vector<1x16x16x128xf32> to vector<16x16x128xf32>
    %14 = arith.truncf %13 : vector<16x16x128xf32> to vector<16x16x128xbf16>
    %c0_20 = arith.constant 0 : index
    %c0_21 = arith.constant 0 : index
    %c384 = arith.constant 384 : index
    %15 = vector.load %arg7[%c0_20, %c0_21, %c384] : memref<16x16x1152xbf16, #tpu.memory_space<vmem>>, vector<16x16x128xbf16>
    tpu.vector_store %arg7[%c0_20, %c0_21, %c384], %14 {strides = array<i32>} : memref<16x16x1152xbf16, #tpu.memory_space<vmem>>, vector<16x16x128xbf16>,
    %c0_22 = arith.constant 0 : index
    %c1_23 = arith.constant 1 : index
    %c1_24 = arith.constant 1 : index
    %c0_25 = arith.constant 0 : index
    %16 = vector.load %arg1[%c0_22, %c1_23, %c1_24, %c0_25] : memref<1x18x18x128xf32, #tpu.memory_space<vmem>>, vector<1x16x16x128xf32>
    %17 = vector.shape_cast %16 : vector<1x16x16x128xf32> to vector<16x16x128xf32>
    %18 = arith.truncf %17 : vector<16x16x128xf32> to vector<16x16x128xbf16>
    %c0_26 = arith.constant 0 : index
    %c0_27 = arith.constant 0 : index
    %c512 = arith.constant 512 : index
    %19 = vector.load %arg7[%c0_26, %c0_27, %c512] : memref<16x16x1152xbf16, #tpu.memory_space<vmem>>, vector<16x16x128xbf16>
    tpu.vector_store %arg7[%c0_26, %c0_27, %c512], %18 {strides = array<i32>} : memref<16x16x1152xbf16, #tpu.memory_space<vmem>>, vector<16x16x128xbf16>,
    %c0_28 = arith.constant 0 : index
    %c1_29 = arith.constant 1 : index
    %c2_30 = arith.constant 2 : index
    %c0_31 = arith.constant 0 : index
    %20 = vector.load %arg1[%c0_28, %c1_29, %c2_30, %c0_31] : memref<1x18x18x128xf32, #tpu.memory_space<vmem>>, vector<1x16x16x128xf32>
    %21 = vector.shape_cast %20 : vector<1x16x16x128xf32> to vector<16x16x128xf32>
    %22 = arith.truncf %21 : vector<16x16x128xf32> to vector<16x16x128xbf16>
    %c0_32 = arith.constant 0 : index
    %c0_33 = arith.constant 0 : index
    %c640 = arith.constant 640 : index
    %23 = vector.load %arg7[%c0_32, %c0_33, %c640] : memref<16x16x1152xbf16, #tpu.memory_space<vmem>>, vector<16x16x128xbf16>
    tpu.vector_store %arg7[%c0_32, %c0_33, %c640], %22 {strides = array<i32>} : memref<16x16x1152xbf16, #tpu.memory_space<vmem>>, vector<16x16x128xbf16>,
    %c0_34 = arith.constant 0 : index
    %c2_35 = arith.constant 2 : index
    %c0_36 = arith.constant 0 : index
    %c0_37 = arith.constant 0 : index
    %24 = vector.load %arg1[%c0_34, %c2_35, %c0_36, %c0_37] : memref<1x18x18x128xf32, #tpu.memory_space<vmem>>, vector<1x16x16x128xf32>
    %25 = vector.shape_cast %24 : vector<1x16x16x128xf32> to vector<16x16x128xf32>
    %26 = arith.truncf %25 : vector<16x16x128xf32> to vector<16x16x128xbf16>
    %c0_38 = arith.constant 0 : index
    %c0_39 = arith.constant 0 : index
    %c768 = arith.constant 768 : index
    %27 = vector.load %arg7[%c0_38, %c0_39, %c768] : memref<16x16x1152xbf16, #tpu.memory_space<vmem>>, vector<16x16x128xbf16>
    tpu.vector_store %arg7[%c0_38, %c0_39, %c768], %26 {strides = array<i32>} : memref<16x16x1152xbf16, #tpu.memory_space<vmem>>, vector<16x16x128xbf16>,
    %c0_40 = arith.constant 0 : index
    %c2_41 = arith.constant 2 : index
    %c1_42 = arith.constant 1 : index
    %c0_43 = arith.constant 0 : index
    %28 = vector.load %arg1[%c0_40, %c2_41, %c1_42, %c0_43] : memref<1x18x18x128xf32, #tpu.memory_space<vmem>>, vector<1x16x16x128xf32>
    %29 = vector.shape_cast %28 : vector<1x16x16x128xf32> to vector<16x16x128xf32>
    %30 = arith.truncf %29 : vector<16x16x128xf32> to vector<16x16x128xbf16>
    %c0_44 = arith.constant 0 : index
    %c0_45 = arith.constant 0 : index
    %c896 = arith.constant 896 : index
    %31 = vector.load %arg7[%c0_44, %c0_45, %c896] : memref<16x16x1152xbf16, #tpu.memory_space<vmem>>, vector<16x16x128xbf16>
    tpu.vector_store %arg7[%c0_44, %c0_45, %c896], %30 {strides = array<i32>} : memref<16x16x1152xbf16, #tpu.memory_space<vmem>>, vector<16x16x128xbf16>,
    %c0_46 = arith.constant 0 : index
    %c2_47 = arith.constant 2 : index
    %c2_48 = arith.constant 2 : index
    %c0_49 = arith.constant 0 : index
    %32 = vector.load %arg1[%c0_46, %c2_47, %c2_48, %c0_49] : memref<1x18x18x128xf32, #tpu.memory_space<vmem>>, vector<1x16x16x128xf32>
    %33 = vector.shape_cast %32 : vector<1x16x16x128xf32> to vector<16x16x128xf32>
    %34 = arith.truncf %33 : vector<16x16x128xf32> to vector<16x16x128xbf16>
    %c0_50 = arith.constant 0 : index
    %c0_51 = arith.constant 0 : index
    %c1024 = arith.constant 1024 : index
    %35 = vector.load %arg7[%c0_50, %c0_51, %c1024] : memref<16x16x1152xbf16, #tpu.memory_space<vmem>>, vector<16x16x128xbf16>
    tpu.vector_store %arg7[%c0_50, %c0_51, %c1024], %34 {strides = array<i32>} : memref<16x16x1152xbf16, #tpu.memory_space<vmem>>, vector<16x16x128xbf16>,
    %c0_52 = arith.constant 0 : index
    %c0_53 = arith.constant 0 : index
    %c0_54 = arith.constant 0 : index
    %36 = vector.load %arg7[%c0_52, %c0_53, %c0_54] : memref<16x16x1152xbf16, #tpu.memory_space<vmem>>, vector<16x16x1152xbf16>
    %37 = vector.shape_cast %36 : vector<16x16x1152xbf16> to vector<256x1152xbf16>
    %c0_55 = arith.constant 0 : index
    %c0_56 = arith.constant 0 : index
    %38 = vector.load %arg2[%c0_55, %c0_56] : memref<1152x64xbf16, #tpu.memory_space<vmem>>, vector<1152x64xbf16>
    %cst = arith.constant dense<0.000000e+00> : vector<256x64xf32>
    %39 = tpu.matmul %37, %38, %cst {dimension_numbers = #tpu.dot_dimension_numbers<[1], [0], [0], [1], [0, 0, 1, 1], [], []>} : vector<256x1152xbf16>, vector<1152x64xbf16>, vector<256x64xf32> -> vector<256x64xf32>
    %c0_57 = arith.constant 0 : index
    %c0_58 = arith.constant 0 : index
    %40 = vector.load %arg3[%c0_57, %c0_58] : memref<1x64xf32, #tpu.memory_space<vmem>>, vector<1x64xf32>
    %41 = vector.broadcast %40 : vector<1x64xf32> to vector<256x64xf32>
    %42 = arith.addf %39, %41 : vector<256x64xf32>
    %cst_59 = arith.constant 0.000000e+00 : f32
    %43 = vector.broadcast %cst_59 : f32 to vector<256x64xf32>
    %44 = arith.subf %43, %42 : vector<256x64xf32>
    %45 = math.exp %44 : vector<256x64xf32>
    %cst_60 = arith.constant 1.000000e+00 : f32
    %46 = vector.broadcast %cst_60 : f32 to vector<256x64xf32>
    %47 = arith.addf %46, %45 : vector<256x64xf32>
    %48 = tpu.reciprocal %47 {approx = true} : vector<256x64xf32> -> vector<256x64xf32>
    %49 = arith.mulf %42, %48 : vector<256x64xf32>
    %cst_61 = arith.constant 0.000000e+00 : bf16
    %50 = vector.broadcast %cst_61 : bf16 to vector<1x18x64xbf16>
    %cst_62 = arith.constant 0.000000e+00 : bf16
    %51 = vector.broadcast %cst_62 : bf16 to vector<18x1x64xbf16>
    %c0_63 = arith.constant 0 : index
    %c0_64 = arith.constant 0 : index
    %c0_65 = arith.constant 0 : index
    %52 = vector.load %arg8[%c0_63, %c0_64, %c0_65] : memref<18x18x64xbf16, #tpu.memory_space<vmem>>, vector<1x18x64xbf16>
    tpu.vector_store %arg8[%c0_63, %c0_64, %c0_65], %50 {strides = array<i32>} : memref<18x18x64xbf16, #tpu.memory_space<vmem>>, vector<1x18x64xbf16>,
    %c17 = arith.constant 17 : index
    %c0_66 = arith.constant 0 : index
    %c0_67 = arith.constant 0 : index
    %53 = vector.load %arg8[%c17, %c0_66, %c0_67] : memref<18x18x64xbf16, #tpu.memory_space<vmem>>, vector<1x18x64xbf16>
    tpu.vector_store %arg8[%c17, %c0_66, %c0_67], %50 {strides = array<i32>} : memref<18x18x64xbf16, #tpu.memory_space<vmem>>, vector<1x18x64xbf16>,
    %c0_68 = arith.constant 0 : index
    %c0_69 = arith.constant 0 : index
    %c0_70 = arith.constant 0 : index
    %54 = vector.load %arg8[%c0_68, %c0_69, %c0_70] : memref<18x18x64xbf16, #tpu.memory_space<vmem>>, vector<18x1x64xbf16>
    tpu.vector_store %arg8[%c0_68, %c0_69, %c0_70], %51 {strides = array<i32>} : memref<18x18x64xbf16, #tpu.memory_space<vmem>>, vector<18x1x64xbf16>,
    %c0_71 = arith.constant 0 : index
    %c17_72 = arith.constant 17 : index
    %c0_73 = arith.constant 0 : index
    %55 = vector.load %arg8[%c0_71, %c17_72, %c0_73] : memref<18x18x64xbf16, #tpu.memory_space<vmem>>, vector<18x1x64xbf16>
    tpu.vector_store %arg8[%c0_71, %c17_72, %c0_73], %51 {strides = array<i32>} : memref<18x18x64xbf16, #tpu.memory_space<vmem>>, vector<18x1x64xbf16>,
    %56 = vector.shape_cast %49 : vector<256x64xf32> to vector<16x16x64xf32>
    %57 = arith.truncf %56 : vector<16x16x64xf32> to vector<16x16x64xbf16>
    %c1_74 = arith.constant 1 : index
    %c1_75 = arith.constant 1 : index
    %c0_76 = arith.constant 0 : index
    %58 = vector.load %arg8[%c1_74, %c1_75, %c0_76] : memref<18x18x64xbf16, #tpu.memory_space<vmem>>, vector<16x16x64xbf16>
    tpu.vector_store %arg8[%c1_74, %c1_75, %c0_76], %57 {strides = array<i32>} : memref<18x18x64xbf16, #tpu.memory_space<vmem>>, vector<16x16x64xbf16>,
    %c0_77 = arith.constant 0 : index
    %c0_78 = arith.constant 0 : index
    %c0_79 = arith.constant 0 : index
    %59 = vector.load %arg8[%c0_77, %c0_78, %c0_79] : memref<18x18x64xbf16, #tpu.memory_space<vmem>>, vector<16x16x64xbf16>
    %c0_80 = arith.constant 0 : index
    %c0_81 = arith.constant 0 : index
    %c0_82 = arith.constant 0 : index
    %60 = vector.load %arg9[%c0_80, %c0_81, %c0_82] : memref<16x16x576xbf16, #tpu.memory_space<vmem>>, vector<16x16x64xbf16>
    tpu.vector_store %arg9[%c0_80, %c0_81, %c0_82], %59 {strides = array<i32>} : memref<16x16x576xbf16, #tpu.memory_space<vmem>>, vector<16x16x64xbf16>,
    %c0_83 = arith.constant 0 : index
    %c1_84 = arith.constant 1 : index
    %c0_85 = arith.constant 0 : index
    %61 = vector.load %arg8[%c0_83, %c1_84, %c0_85] : memref<18x18x64xbf16, #tpu.memory_space<vmem>>, vector<16x16x64xbf16>
    %c0_86 = arith.constant 0 : index
    %c0_87 = arith.constant 0 : index
    %c64 = arith.constant 64 : index
    %62 = vector.load %arg9[%c0_86, %c0_87, %c64] : memref<16x16x576xbf16, #tpu.memory_space<vmem>>, vector<16x16x64xbf16>
    tpu.vector_store %arg9[%c0_86, %c0_87, %c64], %61 {strides = array<i32>} : memref<16x16x576xbf16, #tpu.memory_space<vmem>>, vector<16x16x64xbf16>,
    %c0_88 = arith.constant 0 : index
    %c2_89 = arith.constant 2 : index
    %c0_90 = arith.constant 0 : index
    %63 = vector.load %arg8[%c0_88, %c2_89, %c0_90] : memref<18x18x64xbf16, #tpu.memory_space<vmem>>, vector<16x16x64xbf16>
    %c0_91 = arith.constant 0 : index
    %c0_92 = arith.constant 0 : index
    %c128_93 = arith.constant 128 : index
    %64 = vector.load %arg9[%c0_91, %c0_92, %c128_93] : memref<16x16x576xbf16, #tpu.memory_space<vmem>>, vector<16x16x64xbf16>
    tpu.vector_store %arg9[%c0_91, %c0_92, %c128_93], %63 {strides = array<i32>} : memref<16x16x576xbf16, #tpu.memory_space<vmem>>, vector<16x16x64xbf16>,
    %c1_94 = arith.constant 1 : index
    %c0_95 = arith.constant 0 : index
    %c0_96 = arith.constant 0 : index
    %65 = vector.load %arg8[%c1_94, %c0_95, %c0_96] : memref<18x18x64xbf16, #tpu.memory_space<vmem>>, vector<16x16x64xbf16>
    %c0_97 = arith.constant 0 : index
    %c0_98 = arith.constant 0 : index
    %c192 = arith.constant 192 : index
    %66 = vector.load %arg9[%c0_97, %c0_98, %c192] : memref<16x16x576xbf16, #tpu.memory_space<vmem>>, vector<16x16x64xbf16>
    tpu.vector_store %arg9[%c0_97, %c0_98, %c192], %65 {strides = array<i32>} : memref<16x16x576xbf16, #tpu.memory_space<vmem>>, vector<16x16x64xbf16>,
    %c1_99 = arith.constant 1 : index
    %c1_100 = arith.constant 1 : index
    %c0_101 = arith.constant 0 : index
    %67 = vector.load %arg8[%c1_99, %c1_100, %c0_101] : memref<18x18x64xbf16, #tpu.memory_space<vmem>>, vector<16x16x64xbf16>
    %c0_102 = arith.constant 0 : index
    %c0_103 = arith.constant 0 : index
    %c256_104 = arith.constant 256 : index
    %68 = vector.load %arg9[%c0_102, %c0_103, %c256_104] : memref<16x16x576xbf16, #tpu.memory_space<vmem>>, vector<16x16x64xbf16>
    tpu.vector_store %arg9[%c0_102, %c0_103, %c256_104], %67 {strides = array<i32>} : memref<16x16x576xbf16, #tpu.memory_space<vmem>>, vector<16x16x64xbf16>,
    %c1_105 = arith.constant 1 : index
    %c2_106 = arith.constant 2 : index
    %c0_107 = arith.constant 0 : index
    %69 = vector.load %arg8[%c1_105, %c2_106, %c0_107] : memref<18x18x64xbf16, #tpu.memory_space<vmem>>, vector<16x16x64xbf16>
    %c0_108 = arith.constant 0 : index
    %c0_109 = arith.constant 0 : index
    %c320 = arith.constant 320 : index
    %70 = vector.load %arg9[%c0_108, %c0_109, %c320] : memref<16x16x576xbf16, #tpu.memory_space<vmem>>, vector<16x16x64xbf16>
    tpu.vector_store %arg9[%c0_108, %c0_109, %c320], %69 {strides = array<i32>} : memref<16x16x576xbf16, #tpu.memory_space<vmem>>, vector<16x16x64xbf16>,
    %c2_110 = arith.constant 2 : index
    %c0_111 = arith.constant 0 : index
    %c0_112 = arith.constant 0 : index
    %71 = vector.load %arg8[%c2_110, %c0_111, %c0_112] : memref<18x18x64xbf16, #tpu.memory_space<vmem>>, vector<16x16x64xbf16>
    %c0_113 = arith.constant 0 : index
    %c0_114 = arith.constant 0 : index
    %c384_115 = arith.constant 384 : index
    %72 = vector.load %arg9[%c0_113, %c0_114, %c384_115] : memref<16x16x576xbf16, #tpu.memory_space<vmem>>, vector<16x16x64xbf16>
    tpu.vector_store %arg9[%c0_113, %c0_114, %c384_115], %71 {strides = array<i32>} : memref<16x16x576xbf16, #tpu.memory_space<vmem>>, vector<16x16x64xbf16>,
    %c2_116 = arith.constant 2 : index
    %c1_117 = arith.constant 1 : index
    %c0_118 = arith.constant 0 : index
    %73 = vector.load %arg8[%c2_116, %c1_117, %c0_118] : memref<18x18x64xbf16, #tpu.memory_space<vmem>>, vector<16x16x64xbf16>
    %c0_119 = arith.constant 0 : index
    %c0_120 = arith.constant 0 : index
    %c448 = arith.constant 448 : index
    %74 = vector.load %arg9[%c0_119, %c0_120, %c448] : memref<16x16x576xbf16, #tpu.memory_space<vmem>>, vector<16x16x64xbf16>
    tpu.vector_store %arg9[%c0_119, %c0_120, %c448], %73 {strides = array<i32>} : memref<16x16x576xbf16, #tpu.memory_space<vmem>>, vector<16x16x64xbf16>,
    %c2_121 = arith.constant 2 : index
    %c2_122 = arith.constant 2 : index
    %c0_123 = arith.constant 0 : index
    %75 = vector.load %arg8[%c2_121, %c2_122, %c0_123] : memref<18x18x64xbf16, #tpu.memory_space<vmem>>, vector<16x16x64xbf16>
    %c0_124 = arith.constant 0 : index
    %c0_125 = arith.constant 0 : index
    %c512_126 = arith.constant 512 : index
    %76 = vector.load %arg9[%c0_124, %c0_125, %c512_126] : memref<16x16x576xbf16, #tpu.memory_space<vmem>>, vector<16x16x64xbf16>
    tpu.vector_store %arg9[%c0_124, %c0_125, %c512_126], %75 {strides = array<i32>} : memref<16x16x576xbf16, #tpu.memory_space<vmem>>, vector<16x16x64xbf16>,
    %c0_127 = arith.constant 0 : index
    %c0_128 = arith.constant 0 : index
    %c0_129 = arith.constant 0 : index
    %77 = vector.load %arg9[%c0_127, %c0_128, %c0_129] : memref<16x16x576xbf16, #tpu.memory_space<vmem>>, vector<16x16x576xbf16>
    %78 = vector.shape_cast %77 : vector<16x16x576xbf16> to vector<256x576xbf16>
    %c0_130 = arith.constant 0 : index
    %c0_131 = arith.constant 0 : index
    %79 = vector.load %arg4[%c0_130, %c0_131] : memref<576x128xbf16, #tpu.memory_space<vmem>>, vector<576x128xbf16>
    %cst_132 = arith.constant dense<0.000000e+00> : vector<256x128xf32>
    %80 = tpu.matmul %78, %79, %cst_132 {dimension_numbers = #tpu.dot_dimension_numbers<[1], [0], [0], [1], [0, 0, 1, 1], [], []>} : vector<256x576xbf16>, vector<576x128xbf16>, vector<256x128xf32> -> vector<256x128xf32>
    %c0_133 = arith.constant 0 : index
    %c0_134 = arith.constant 0 : index
    %81 = vector.load %arg5[%c0_133, %c0_134] : memref<1x128xf32, #tpu.memory_space<vmem>>, vector<1x128xf32>
    %82 = vector.broadcast %81 : vector<1x128xf32> to vector<256x128xf32>
    %83 = arith.addf %80, %82 : vector<256x128xf32>
    %cst_135 = arith.constant 0.000000e+00 : f32
    %84 = vector.broadcast %cst_135 : f32 to vector<256x128xf32>
    %85 = arith.subf %84, %83 : vector<256x128xf32>
    %86 = math.exp %85 : vector<256x128xf32>
    %cst_136 = arith.constant 1.000000e+00 : f32
    %87 = vector.broadcast %cst_136 : f32 to vector<256x128xf32>
    %88 = arith.addf %87, %86 : vector<256x128xf32>
    %89 = tpu.reciprocal %88 {approx = true} : vector<256x128xf32> -> vector<256x128xf32>
    %90 = arith.mulf %83, %89 : vector<256x128xf32>
    %91 = vector.shape_cast %90 : vector<256x128xf32> to vector<16x16x128xf32>
    %c0_137 = arith.constant 0 : index
    %c1_138 = arith.constant 1 : index
    %c1_139 = arith.constant 1 : index
    %c0_140 = arith.constant 0 : index
    %92 = vector.load %arg1[%c0_137, %c1_138, %c1_139, %c0_140] : memref<1x18x18x128xf32, #tpu.memory_space<vmem>>, vector<1x16x16x128xf32>
    %93 = vector.shape_cast %92 : vector<1x16x16x128xf32> to vector<16x16x128xf32>
    %94 = arith.addf %91, %93 : vector<16x16x128xf32>
    %c0_141 = arith.constant 0 : index
    %c0_142 = arith.constant 0 : index
    %c0_143 = arith.constant 0 : index
    %c0_144 = arith.constant 0 : index
    %95 = vector.load %arg6[%c0_141, %c0_142, %c0_143, %c0_144] : memref<1x16x16x128xf32, #tpu.memory_space<vmem>>, vector<1x16x16x128xf32>
    %96 = vector.shape_cast %95 : vector<1x16x16x128xf32> to vector<16x16x128xf32>
    %97 = vector.shape_cast %94 : vector<16x16x128xf32> to vector<1x16x16x128xf32>
    tpu.vector_store %arg6[%c0_141, %c0_142, %c0_143, %c0_144], %97 {strides = array<i32>} : memref<1x16x16x128xf32, #tpu.memory_space<vmem>>, vector<1x16x16x128xf32>,
    return
  }
  func.func @transform_0(%arg0: i32) -> (i32, i32, i32, i32) {
    %c0_i32 = arith.constant 0 : i32
    %c0_i32_0 = arith.constant 0 : i32
    %c0_i32_1 = arith.constant 0 : i32
    %c0_i32_2 = arith.constant 0 : i32
    return %arg0, %c0_i32, %c0_i32_0, %c0_i32_1 : i32, i32, i32, i32
  }
  func.func @transform_1(%arg0: i32) -> (i32, i32) {
    %c0_i32 = arith.constant 0 : i32
    %c0_i32_0 = arith.constant 0 : i32
    %c0_i32_1 = arith.constant 0 : i32
    return %c0_i32, %c0_i32_0 : i32, i32
  }
  func.func @transform_2(%arg0: i32) -> (i32, i32) {
    %c0_i32 = arith.constant 0 : i32
    %c0_i32_0 = arith.constant 0 : i32
    %c0_i32_1 = arith.constant 0 : i32
    return %c0_i32, %c0_i32_0 : i32, i32
  }
  func.func @transform_3(%arg0: i32) -> (i32, i32) {
    %c0_i32 = arith.constant 0 : i32
    %c0_i32_0 = arith.constant 0 : i32
    %c0_i32_1 = arith.constant 0 : i32
    return %c0_i32, %c0_i32_0 : i32, i32
  }
  func.func @transform_4(%arg0: i32) -> (i32, i32) {
    %c0_i32 = arith.constant 0 : i32
    %c0_i32_0 = arith.constant 0 : i32
    %c0_i32_1 = arith.constant 0 : i32
    return %c0_i32, %c0_i32_0 : i32, i32
  }
  func.func @transform_5(%arg0: i32) -> (i32, i32, i32, i32) {
    %c0_i32 = arith.constant 0 : i32
    %c0_i32_0 = arith.constant 0 : i32
    %c0_i32_1 = arith.constant 0 : i32
    %c0_i32_2 = arith.constant 0 : i32
    return %arg0, %c0_i32, %c0_i32_0, %c0_i32_1 : i32, i32, i32, i32
  }
}

</mosaic_0001>

<llo_original>
// kernel: bottleneck_forward.1
$region0: #{bottleneck_forward.1}
  #allocation0 [shape = 'u32[]', space=smem, size = 0x4, offset = 0x4, fixed_abs, tag = 'smem constant byte address 0x4 - core index']
  #allocation1 [shape = 'u32[144,128]{1,0:T(1,128)}', space=vmem, size = 0x12000, scoped, tag = 'internal scratch']
  #allocation2 [shape = 'bf16[16,16,1152]{2,1,0:T(8,128)(2,1)}', space=vmem, size = 0x90000, scoped, tag = 'scratch operand']
  #allocation3 [shape = 'bf16[18,18,64]{2,1,0:T(8,128)(2,1)}', space=vmem, size = 0x1b000, scoped, tag = 'scratch operand']
  #allocation4 [shape = 'bf16[16,16,576]{2,1,0:T(8,128)(2,1)}', space=vmem, size = 0x50000, scoped, tag = 'scratch operand']
  %s0 = inlined_call_operand.vmem [shape: f32[4,18,18,128], index: 0, kind: input, shape index: {}]
  %s1 = inlined_call_operand.vmem [shape: bf16[1152,64], index: 1, kind: input, shape index: {}]
  %s2 = inlined_call_operand.vmem [shape: f32[1,64], index: 2, kind: input, shape index: {}]
  %s3 = inlined_call_operand.vmem [shape: bf16[576,128], index: 3, kind: input, shape index: {}]
  %s4 = inlined_call_operand.vmem [shape: f32[1,128], index: 4, kind: input, shape index: {}]
  %s5 = inlined_call_operand.hbm [shape: f32[4,16,16,128], index: 5, kind: output, shape index: {}]
  %s6 = sld [smem:[#allocation0]]
  $region53: #{bottleneck_forward.1} parent=0
    _
  %s8 = ssub.s32 1, %s6
  %s9 = scalar_select 0, %s8, %s6
  $region1: #{bottleneck_forward.1} parent=0
    #allocation5 [shape = 'u8[262144]{0}', space=vmem, size = 0x40000, scoped, tag = 'output window, operand 0']
    #allocation6 [shape = 's32[2]{0}', space=sflag, size = 0x8, scoped, tag = 'scoped memory for bottleneck_forward.1']
    %10 = vsyncpa [#allocation6], 0
    %s11 = scalar_lea.sflag [#allocation6], 1
    %12 = vsyncpa %s11, 0
    loop: start=0, step=1, limit=6
    $region2: #{bottleneck_forward.1} parent=1 // loop_pre_header
      _
    $region3: #{bottleneck_forward.1} parent=1 // loop_header
      %s14 = sphi 0, %s18
      %p15 = scmp.ge.s32.totalorder %s14, 6
      %s24 = sphi 0, %s26
      %s27 = sphi 0, %s24
      %s28 = sphi 0, %s27
      %s44 = sphi 0, %s28
      %s48 = sphi 0, %s48
      %s50 = sphi 0, %s48
      %s51 = sphi 0, %s50
      %s65 = sphi 0, %s51
      %s69 = sphi 0, %s69
      %s71 = sphi 0, %s69
      %s72 = sphi 0, %s71
      %s86 = sphi 0, %s72
      %s90 = sphi 0, %s90
      %s92 = sphi 0, %s90
      %s93 = sphi 0, %s92
      %s107 = sphi 0, %s93
      %s111 = sphi 0, %s111
      %s113 = sphi 0, %s111
      %s114 = sphi 0, %s113
      %s128 = sphi 0, %s114
      %s134 = sphi 0, %s136
      %s137 = sphi 0, %s134
      %s138 = sphi 0, %s137
      %s154 = sphi 0, %s138
    $region4: #{bottleneck_forward.1} parent=1 // loop_header_branch
      %17 = sbr.rel (%p15) target = $region8
    $region5: #{bottleneck_forward.1} parent=1 // loop_body
      %s19 = ssub.s32 %s14, 1
      %s20 = ssub.s32 %s14, 2
      %s21 = sadd.s32 %s14, 1
      %s22 = ssub.s32 %s14, %s21
      %p23 = scmp.eq.s32.totalorder %s22, 0
      %s25 = sadd.s32 %s24, 1
      %s26 = scalar_select %p23, %s24, %s25
      %p29 = pneg %p23
      %p30 = scmp.eq.s32.totalorder %s14, 3
      %p31 = por %p29, %p30
      %p32 = scmp.ne.s32.totalorder %s24, %s27
      %p33 = scmp.eq.s32.totalorder %s14, 0
      %p34 = por %p32, %p33
      %p35 = scmp.ne.s32.totalorder %s24, %s27
      %p36 = scmp.eq.s32.totalorder %s19, 3
      %p37 = por %p35, %p36
      %p38 = scmp.ne.s32.totalorder %s27, %s28
      %p39 = scmp.eq.s32.totalorder %s19, 0
      %p40 = por %p38, %p39
      %p41 = scmp.ne.s32.totalorder %s27, %s28
      %p42 = scmp.eq.s32.totalorder %s20, 3
      %p43 = por %p41, %p42
      %p45 = scmp.ne.s32.totalorder %s28, %s44
      %p46 = scmp.eq.s32.totalorder %s20, 0
      %p47 = por %p45, %p46
      %s49 = sadd.s32 %s48, 1
      %p52 = scmp.eq.s32.totalorder %s14, 3
      %p53 = scmp.ne.s32.totalorder %s48, %s50
      %p54 = scmp.eq.s32.totalorder %s14, 0
      %p55 = por %p53, %p54
      %p56 = scmp.ne.s32.totalorder %s48, %s50
      %p57 = scmp.eq.s32.totalorder %s19, 3
      %p58 = por %p56, %p57
      %p59 = scmp.ne.s32.totalorder %s50, %s51
      %p60 = scmp.eq.s32.totalorder %s19, 0
      %p61 = por %p59, %p60
      %p62 = scmp.ne.s32.totalorder %s50, %s51
      %p63 = scmp.eq.s32.totalorder %s20, 3
      %p64 = por %p62, %p63
      %p66 = scmp.ne.s32.totalorder %s51, %s65
      %p67 = scmp.eq.s32.totalorder %s20, 0
      %p68 = por %p66, %p67
      %s70 = sadd.s32 %s69, 1
      %p73 = scmp.eq.s32.totalorder %s14, 3
      %p74 = scmp.ne.s32.totalorder %s69, %s71
      %p75 = scmp.eq.s32.totalorder %s14, 0
      %p76 = por %p74, %p75
      %p77 = scmp.ne.s32.totalorder %s69, %s71
      %p78 = scmp.eq.s32.totalorder %s19, 3
      %p79 = por %p77, %p78
      %p80 = scmp.ne.s32.totalorder %s71, %s72
      %p81 = scmp.eq.s32.totalorder %s19, 0
      %p82 = por %p80, %p81
      %p83 = scmp.ne.s32.totalorder %s71, %s72
      %p84 = scmp.eq.s32.totalorder %s20, 3
      %p85 = por %p83, %p84
      %p87 = scmp.ne.s32.totalorder %s72, %s86
      %p88 = scmp.eq.s32.totalorder %s20, 0
      %p89 = por %p87, %p88
      %s91 = sadd.s32 %s90, 1
      %p94 = scmp.eq.s32.totalorder %s14, 3
      %p95 = scmp.ne.s32.totalorder %s90, %s92
      %p96 = scmp.eq.s32.totalorder %s14, 0
      %p97 = por %p95, %p96
      %p98 = scmp.ne.s32.totalorder %s90, %s92
      %p99 = scmp.eq.s32.totalorder %s19, 3
      %p100 = por %p98, %p99
      %p101 = scmp.ne.s32.totalorder %s92, %s93
      %p102 = scmp.eq.s32.totalorder %s19, 0
      %p103 = por %p101, %p102
      %p104 = scmp.ne.s32.totalorder %s92, %s93
      %p105 = scmp.eq.s32.totalorder %s20, 3
      %p106 = por %p104, %p105
      %p108 = scmp.ne.s32.totalorder %s93, %s107
      %p109 = scmp.eq.s32.totalorder %s20, 0
      %p110 = por %p108, %p109
      %s112 = sadd.s32 %s111, 1
      %p115 = scmp.eq.s32.totalorder %s14, 3
      %p116 = scmp.ne.s32.totalorder %s111, %s113
      %p117 = scmp.eq.s32.totalorder %s14, 0
      %p118 = por %p116, %p117
      %p119 = scmp.ne.s32.totalorder %s111, %s113
      %p120 = scmp.eq.s32.totalorder %s19, 3
      %p121 = por %p119, %p120
      %p122 = scmp.ne.s32.totalorder %s113, %s114
      %p123 = scmp.eq.s32.totalorder %s19, 0
      %p124 = por %p122, %p123
      %p125 = scmp.ne.s32.totalorder %s113, %s114
      %p126 = scmp.eq.s32.totalorder %s20, 3
      %p127 = por %p125, %p126
      %p129 = scmp.ne.s32.totalorder %s114, %s128
      %p130 = scmp.eq.s32.totalorder %s20, 0
      %p131 = por %p129, %p130
      %s132 = ssub.s32 %s14, %s21
      %p133 = scmp.eq.s32.totalorder %s132, 0
      %s135 = sadd.s32 %s134, 1
      %s136 = scalar_select %p133, %s134, %s135
      %p139 = pneg %p133
      %p140 = scmp.eq.s32.totalorder %s14, 3
      %p141 = por %p139, %p140
      %p142 = scmp.ne.s32.totalorder %s134, %s137
      %p143 = scmp.eq.s32.totalorder %s14, 0
      %p144 = por %p142, %p143
      %p145 = scmp.ne.s32.totalorder %s134, %s137
      %p146 = scmp.eq.s32.totalorder %s19, 3
      %p147 = por %p145, %p146
      %p148 = scmp.ne.s32.totalorder %s137, %s138
      %p149 = scmp.eq.s32.totalorder %s19, 0
      %p150 = por %p148, %p149
      %p151 = scmp.ne.s32.totalorder %s137, %s138
      %p152 = scmp.eq.s32.totalorder %s20, 3
      %p153 = por %p151, %p152
      %p155 = scmp.ne.s32.totalorder %s138, %s154
      %p156 = scmp.eq.s32.totalorder %s20, 0
      %p157 = por %p155, %p156
      %p158 = scmp.le.s32.totalorder 1, %s14
      %p159 = scmp.lt.s32.totalorder %s14, 5
      %p160 = pnand %p158, %p159
      %p161 = pneg %p160
      // Predicated region
      $region9: #{bottleneck_forward.1} parent=5 // pred_check
        _
      $region10: #{bottleneck_forward.1} parent=5 // pred_check_branch
        %163 = sbr.rel (%p160) target = $region12
      $region11: #{bottleneck_forward.1} parent=5 // pred_region
        %s164 = ssub.s32 %s14, 1
        // Predicated region
        $region13: #{bottleneck_forward.1} parent=11 // pred_check
          %p165 = pneg %p61
        $region14: #{bottleneck_forward.1} parent=11 // pred_check_branch
          %167 = sbr.rel (%p165) target = $region16
        $region15: #{bottleneck_forward.1} parent=11 // pred_region
          _
        $region16: #{bottleneck_forward.1} parent=11 // pred_fallthru
          _
        // Predicated region
        $region17: #{bottleneck_forward.1} parent=11 // pred_check
          %p168 = pneg %p82
        $region18: #{bottleneck_forward.1} parent=11 // pred_check_branch
          %170 = sbr.rel (%p168) target = $region20
        $region19: #{bottleneck_forward.1} parent=11 // pred_region
          _
        $region20: #{bottleneck_forward.1} parent=11 // pred_fallthru
          _
        // Predicated region
        $region21: #{bottleneck_forward.1} parent=11 // pred_check
          %p171 = pneg %p103
        $region22: #{bottleneck_forward.1} parent=11 // pred_check_branch
          %173 = sbr.rel (%p171) target = $region24
        $region23: #{bottleneck_forward.1} parent=11 // pred_region
          _
        $region24: #{bottleneck_forward.1} parent=11 // pred_fallthru
          _
        // Predicated region
        $region25: #{bottleneck_forward.1} parent=11 // pred_check
          %p174 = pneg %p124
        $region26: #{bottleneck_forward.1} parent=11 // pred_check_branch
          %176 = sbr.rel (%p174) target = $region28
        $region27: #{bottleneck_forward.1} parent=11 // pred_region
          _
        $region28: #{bottleneck_forward.1} parent=11 // pred_fallthru
          _
      $region12: #{bottleneck_forward.1} parent=5 // pred_fallthru
        _
      %p177 = scmp.lt.s32.totalorder %s14, 4
      // Predicated region
      $region29: #{bottleneck_forward.1} parent=5 // pred_check
        %p178 = pneg %p177
      $region30: #{bottleneck_forward.1} parent=5 // pred_check_branch
        %180 = sbr.rel (%p178) target = $region32
      $region31: #{bottleneck_forward.1} parent=5 // pred_region
        // Predicated region
        $region33: #{bottleneck_forward.1} parent=31 // pred_check
          %p181 = pneg %p34
        $region34: #{bottleneck_forward.1} parent=31 // pred_check_branch
          %183 = sbr.rel (%p181) target = $region36
        $region35: #{bottleneck_forward.1} parent=31 // pred_region
          %p184 = scmp.lt.s32.totalorder %s14, 3
          %s185 = scalar_select %p184, %s14, 3
          %s186 = smul.addr %s185, 54
          %s187 = smul.addr %s186, 8
          %s188 = scalar_lea.vmem %s0, %s187
        $region36: #{bottleneck_forward.1} parent=31 // pred_fallthru
          _
      $region32: #{bottleneck_forward.1} parent=5 // pred_fallthru
        _
      %p189 = scmp.le.s32.totalorder 1, %s14
      %p190 = scmp.lt.s32.totalorder %s14, 5
      %p191 = pnand %p189, %p190
      %p192 = pneg %p191
      // Predicated region
      $region37: #{bottleneck_forward.1} parent=5 // pred_check
        _
      $region38: #{bottleneck_forward.1} parent=5 // pred_check_branch
        %194 = sbr.rel (%p191) target = $region40
      $region39: #{bottleneck_forward.1} parent=5 // pred_region
        %s195 = ssub.s32 %s14, 1
        %p196 = scmp.lt.s32.totalorder %s19, 3
        %s197 = scalar_select %p196, %s19, 3
        %s198 = smul.addr %s197, 54
        %s199 = smul.addr %s198, 8
        %s200 = scalar_lea.vmem %s0, %s199
        %p201 = pneg %p40
        %p202 = pneg %p37
        %p203 = pneg %p61
        %p204 = pneg %p58
        %p205 = pneg %p82
        %p206 = pneg %p79
        %p207 = pneg %p103
        %p208 = pneg %p100
        %p209 = pneg %p124
        %p210 = pneg %p121
        %p211 = pneg %p150
        %p212 = pneg %p147
        %s213 = sand.u32 %s137, 1
        %s214 = scalar_lea.sflag [#allocation6], %s213
        %s215 = sand.u32 %s137, 1
        %s216 = smul.addr %s215, 256
        %s217 = scalar_lea.vmem [#allocation5], %s216
        %p218 = scmp.lt.s32.totalorder %s19, 3
        %s219 = scalar_select %p218, %s19, 3
        %s220 = smul.addr %s219, 54
        %s221 = smul.addr %s220, 8
        %s222 = scalar_lea.vmem %s0, %s221
        %v224 = vld [vmem:[%s222] sm:$0xff]
        %v225 = vld [vmem:[%s222 + $0x8] sm:$0xff]
        %v226 = vld [vmem:[%s222 + $0x18] sm:$0xff]
        %v227 = vld [vmem:[%s222 + $0x20] sm:$0xff]
        %v228 = vld [vmem:[%s222 + $0x30] sm:$0xff]
        %v229 = vld [vmem:[%s222 + $0x38] sm:$0xff]
        %v230 = vld [vmem:[%s222 + $0x48] sm:$0xff]
        %v231 = vld [vmem:[%s222 + $0x50] sm:$0xff]
        %v232 = vld [vmem:[%s222 + $0x60] sm:$0xff]
        %v233 = vld [vmem:[%s222 + $0x68] sm:$0xff]
        %v234 = vld [vmem:[%s222 + $0x78] sm:$0xff]
        %v235 = vld [vmem:[%s222 + $0x80] sm:$0xff]
        %v236 = vld [vmem:[%s222 + $0x90] sm:$0xff]
        %v237 = vld [vmem:[%s222 + $0x98] sm:$0xff]
        %v238 = vld [vmem:[%s222 + $0xa8] sm:$0xff]
        %v239 = vld [vmem:[%s222 + $0xb0] sm:$0xff]
        %v240 = vld [vmem:[%s222 + $0xc0] sm:$0xff]
        %v241 = vld [vmem:[%s222 + $0xc8] sm:$0xff]
        %v242 = vld [vmem:[%s222 + $0xd8] sm:$0xff]
        %v243 = vld [vmem:[%s222 + $0xe0] sm:$0xff]
        %v244 = vld [vmem:[%s222 + $0xf0] sm:$0xff]
        %v245 = vld [vmem:[%s222 + $0xf8] sm:$0xff]
        %v246 = vld [vmem:[%s222 + $0x108] sm:$0xff]
        %v247 = vld [vmem:[%s222 + $0x110] sm:$0xff]
        %v248 = vld [vmem:[%s222 + $0x120] sm:$0xff]
        %v249 = vld [vmem:[%s222 + $0x128] sm:$0xff]
        %v250 = vld [vmem:[%s222 + $0x138] sm:$0xff]
        %v251 = vld [vmem:[%s222 + $0x140] sm:$0xff]
        %v252 = vld [vmem:[%s222 + $0x150] sm:$0xff]
        %v253 = vld [vmem:[%s222 + $0x158] sm:$0xff]
        %v254 = vld [vmem:[%s222 + $0x168] sm:$0xff]
        %v255 = vld [vmem:[%s222 + $0x170] sm:$0xff]
        %v256 = vpack.c.bf16 %v225, %v224
        %v257 = vpack.c.bf16 %v227, %v226
        %v258 = vpack.c.bf16 %v229, %v228
        %v259 = vpack.c.bf16 %v231, %v230
        %v260 = vpack.c.bf16 %v233, %v232
        %v261 = vpack.c.bf16 %v235, %v234
        %v262 = vpack.c.bf16 %v237, %v236
        %v263 = vpack.c.bf16 %v239, %v238
        %v264 = vpack.c.bf16 %v241, %v240
        %v265 = vpack.c.bf16 %v243, %v242
        %v266 = vpack.c.bf16 %v245, %v244
        %v267 = vpack.c.bf16 %v247, %v246
        %v268 = vpack.c.bf16 %v249, %v248
        %v269 = vpack.c.bf16 %v251, %v250
        %v270 = vpack.c.bf16 %v253, %v252
        %v271 = vpack.c.bf16 %v255, %v254
        %v288 = vunpack.c.l.b16 %v256
        %v289 = vunpack.c.h.b16 %v256
        %v290 = vunpack.c.l.b16 %v257
        %v291 = vunpack.c.h.b16 %v257
        %v292 = vunpack.c.l.b16 %v258
        %v293 = vunpack.c.h.b16 %v258
        %v294 = vunpack.c.l.b16 %v259
        %v295 = vunpack.c.h.b16 %v259
        %v296 = vunpack.c.l.b16 %v260
        %v297 = vunpack.c.h.b16 %v260
        %v298 = vunpack.c.l.b16 %v261
        %v299 = vunpack.c.h.b16 %v261
        %v300 = vunpack.c.l.b16 %v262
        %v301 = vunpack.c.h.b16 %v262
        %v302 = vunpack.c.l.b16 %v263
        %v303 = vunpack.c.h.b16 %v263
        %v304 = vunpack.c.l.b16 %v264
        %v305 = vunpack.c.h.b16 %v264
        %v306 = vunpack.c.l.b16 %v265
        %v307 = vunpack.c.h.b16 %v265
        %v308 = vunpack.c.l.b16 %v266
        %v309 = vunpack.c.h.b16 %v266
        %v310 = vunpack.c.l.b16 %v267
        %v311 = vunpack.c.h.b16 %v267
        %v312 = vunpack.c.l.b16 %v268
        %v313 = vunpack.c.h.b16 %v268
        %v314 = vunpack.c.l.b16 %v269
        %v315 = vunpack.c.h.b16 %v269
        %v316 = vunpack.c.l.b16 %v270
        %v317 = vunpack.c.h.b16 %v270
        %v318 = vunpack.c.l.b16 %v271
        %v319 = vunpack.c.h.b16 %v271
        %v320 = vpack.c.b16 %v288, %v288
        %v321 = vpack.c.b16 %v289, %v289
        %v322 = vpack.c.b16 %v290, %v290
        %v323 = vpack.c.b16 %v291, %v291
        %v324 = vpack.c.b16 %v292, %v292
        %v325 = vpack.c.b16 %v293, %v293
        %v326 = vpack.c.b16 %v294, %v294
        %v327 = vpack.c.b16 %v295, %v295
        %v328 = vpack.c.b16 %v296, %v296
        %v329 = vpack.c.b16 %v297, %v297
        %v330 = vpack.c.b16 %v298, %v298
        %v331 = vpack.c.b16 %v299, %v299
        %v332 = vpack.c.b16 %v300, %v300
        %v333 = vpack.c.b16 %v301, %v301
        %v334 = vpack.c.b16 %v302, %v302
        %v335 = vpack.c.b16 %v303, %v303
        %v336 = vpack.c.b16 %v304, %v304
        %v337 = vpack.c.b16 %v305, %v305
        %v338 = vpack.c.b16 %v306, %v306
        %v339 = vpack.c.b16 %v307, %v307
        %v340 = vpack.c.b16 %v308, %v308
        %v341 = vpack.c.b16 %v309, %v309
        %v342 = vpack.c.b16 %v310, %v310
        %v343 = vpack.c.b16 %v311, %v311
        %v344 = vpack.c.b16 %v312, %v312
        %v345 = vpack.c.b16 %v313, %v313
        %v346 = vpack.c.b16 %v314, %v314
        %v347 = vpack.c.b16 %v315, %v315
        %v348 = vpack.c.b16 %v316, %v316
        %v349 = vpack.c.b16 %v317, %v317
        %v350 = vpack.c.b16 %v318, %v318
        %v351 = vpack.c.b16 %v319, %v319
        %384 = vst [vmem:[#allocation2] sm:$0xf] %v320
        %385 = vst [vmem:[#allocation2 + $0x24] sm:$0xf] %v321
        %386 = vst [vmem:[#allocation2 + $0x48] sm:$0xf] %v322
        %387 = vst [vmem:[#allocation2 + $0x6c] sm:$0xf] %v323
        %388 = vst [vmem:[#allocation2 + $0x90] sm:$0xf] %v324
        %389 = vst [vmem:[#allocation2 + $0xb4] sm:$0xf] %v325
        %390 = vst [vmem:[#allocation2 + $0xd8] sm:$0xf] %v326
        %391 = vst [vmem:[#allocation2 + $0xfc] sm:$0xf] %v327
        %392 = vst [vmem:[#allocation2 + $0x120] sm:$0xf] %v328
        %393 = vst [vmem:[#allocation2 + $0x144] sm:$0xf] %v329
        %394 = vst [vmem:[#allocation2 + $0x168] sm:$0xf] %v330
        %395 = vst [vmem:[#allocation2 + $0x18c] sm:$0xf] %v331
        %396 = vst [vmem:[#allocation2 + $0x1b0] sm:$0xf] %v332
        %397 = vst [vmem:[#allocation2 + $0x1d4] sm:$0xf] %v333
        %398 = vst [vmem:[#allocation2 + $0x1f8] sm:$0xf] %v334
        %399 = vst [vmem:[#allocation2 + $0x21c] sm:$0xf] %v335
        %400 = vst [vmem:[#allocation2 + $0x240] sm:$0xf] %v336
        %401 = vst [vmem:[#allocation2 + $0x264] sm:$0xf] %v337
        %402 = vst [vmem:[#allocation2 + $0x288] sm:$0xf] %v338
        %403 = vst [vmem:[#allocation2 + $0x2ac] sm:$0xf] %v339
        %404 = vst [vmem:[#allocation2 + $0x2d0] sm:$0xf] %v340
        %405 = vst [vmem:[#allocation2 + $0x2f4] sm:$0xf] %v341
        %406 = vst [vmem:[#allocation2 + $0x318] sm:$0xf] %v342
        %407 = vst [vmem:[#allocation2 + $0x33c] sm:$0xf] %v343
        %408 = vst [vmem:[#allocation2 + $0x360] sm:$0xf] %v344
        %409 = vst [vmem:[#allocation2 + $0x384] sm:$0xf] %v345
        %410 = vst [vmem:[#allocation2 + $0x3a8] sm:$0xf] %v346
        %411 = vst [vmem:[#allocation2 + $0x3cc] sm:$0xf] %v347
        %412 = vst [vmem:[#allocation2 + $0x3f0] sm:$0xf] %v348
        %413 = vst [vmem:[#allocation2 + $0x414] sm:$0xf] %v349
        %414 = vst [vmem:[#allocation2 + $0x438] sm:$0xf] %v350
        %415 = vst [vmem:[#allocation2 + $0x45c] sm:$0xf] %v351
        %v416 = vld [vmem:[%s222 + $0x1] sm:$0xff]
        %v417 = vld [vmem:[%s222 + $0x9] sm:$0xff]
        %v418 = vld [vmem:[%s222 + $0x19] sm:$0xff]
        %v419 = vld [vmem:[%s222 + $0x21] sm:$0xff]
        %v420 = vld [vmem:[%s222 + $0x31] sm:$0xff]
        %v421 = vld [vmem:[%s222 + $0x39] sm:$0xff]
        %v422 = vld [vmem:[%s222 + $0x49] sm:$0xff]
        %v423 = vld [vmem:[%s222 + $0x51] sm:$0xff]
        %v424 = vld [vmem:[%s222 + $0x61] sm:$0xff]
        %v425 = vld [vmem:[%s222 + $0x69] sm:$0xff]
        %v426 = vld [vmem:[%s222 + $0x79] sm:$0xff]
        %v427 = vld [vmem:[%s222 + $0x81] sm:$0xff]
        %v428 = vld [vmem:[%s222 + $0x91] sm:$0xff]
        %v429 = vld [vmem:[%s222 + $0x99] sm:$0xff]
        %v430 = vld [vmem:[%s222 + $0xa9] sm:$0xff]
        %v431 = vld [vmem:[%s222 + $0xb1] sm:$0xff]
        %v432 = vld [vmem:[%s222 + $0xc1] sm:$0xff]
        %v433 = vld [vmem:[%s222 + $0xc9] sm:$0xff]
        %v434 = vld [vmem:[%s222 + $0xd9] sm:$0xff]
        %v435 = vld [vmem:[%s222 + $0xe1] sm:$0xff]
        %v436 = vld [vmem:[%s222 + $0xf1] sm:$0xff]
        %v437 = vld [vmem:[%s222 + $0xf9] sm:$0xff]
        %v438 = vld [vmem:[%s222 + $0x109] sm:$0xff]
        %v439 = vld [vmem:[%s222 + $0x111] sm:$0xff]
        %v440 = vld [vmem:[%s222 + $0x121] sm:$0xff]
        %v441 = vld [vmem:[%s222 + $0x129] sm:$0xff]
        %v442 = vld [vmem:[%s222 + $0x139] sm:$0xff]
        %v443 = vld [vmem:[%s222 + $0x141] sm:$0xff]
        %v444 = vld [vmem:[%s222 + $0x151] sm:$0xff]
        %v445 = vld [vmem:[%s222 + $0x159] sm:$0xff]
        %v446 = vld [vmem:[%s222 + $0x169] sm:$0xff]
        %v447 = vld [vmem:[%s222 + $0x171] sm:$0xff]
        %v448 = vpack.c.bf16 %v417, %v416
        %v449 = vpack.c.bf16 %v419, %v418
        %v450 = vpack.c.bf16 %v421, %v420
        %v451 = vpack.c.bf16 %v423, %v422
        %v452 = vpack.c.bf16 %v425, %v424
        %v453 = vpack.c.bf16 %v427, %v426
        %v454 = vpack.c.bf16 %v429, %v428
        %v455 = vpack.c.bf16 %v431, %v430
        %v456 = vpack.c.bf16 %v433, %v432
        %v457 = vpack.c.bf16 %v435, %v434
        %v458 = vpack.c.bf16 %v437, %v436
        %v459 = vpack.c.bf16 %v439, %v438
        %v460 = vpack.c.bf16 %v441, %v440
        %v461 = vpack.c.bf16 %v443, %v442
        %v462 = vpack.c.bf16 %v445, %v444
        %v463 = vpack.c.bf16 %v447, %v446
        %v480 = vunpack.c.l.b16 %v448
        %v481 = vunpack.c.h.b16 %v448
        %v482 = vunpack.c.l.b16 %v449
        %v483 = vunpack.c.h.b16 %v449
        %v484 = vunpack.c.l.b16 %v450
        %v485 = vunpack.c.h.b16 %v450
        %v486 = vunpack.c.l.b16 %v451
        %v487 = vunpack.c.h.b16 %v451
        %v488 = vunpack.c.l.b16 %v452
        %v489 = vunpack.c.h.b16 %v452
        %v490 = vunpack.c.l.b16 %v453
        %v491 = vunpack.c.h.b16 %v453
        %v492 = vunpack.c.l.b16 %v454
        %v493 = vunpack.c.h.b16 %v454
        %v494 = vunpack.c.l.b16 %v455
        %v495 = vunpack.c.h.b16 %v455
        %v496 = vunpack.c.l.b16 %v456
        %v497 = vunpack.c.h.b16 %v456
        %v498 = vunpack.c.l.b16 %v457
        %v499 = vunpack.c.h.b16 %v457
        %v500 = vunpack.c.l.b16 %v458
        %v501 = vunpack.c.h.b16 %v458
        %v502 = vunpack.c.l.b16 %v459
        %v503 = vunpack.c.h.b16 %v459
        %v504 = vunpack.c.l.b16 %v460
        %v505 = vunpack.c.h.b16 %v460
        %v506 = vunpack.c.l.b16 %v461
        %v507 = vunpack.c.h.b16 %v461
        %v508 = vunpack.c.l.b16 %v462
        %v509 = vunpack.c.h.b16 %v462
        %v510 = vunpack.c.l.b16 %v463
        %v511 = vunpack.c.h.b16 %v463
        %v512 = vpack.c.b16 %v480, %v480
        %v513 = vpack.c.b16 %v481, %v481
        %v514 = vpack.c.b16 %v482, %v482
        %v515 = vpack.c.b16 %v483, %v483
        %v516 = vpack.c.b16 %v484, %v484
        %v517 = vpack.c.b16 %v485, %v485
        %v518 = vpack.c.b16 %v486, %v486
        %v519 = vpack.c.b16 %v487, %v487
        %v520 = vpack.c.b16 %v488, %v488
        %v521 = vpack.c.b16 %v489, %v489
        %v522 = vpack.c.b16 %v490, %v490
        %v523 = vpack.c.b16 %v491, %v491
        %v524 = vpack.c.b16 %v492, %v492
        %v525 = vpack.c.b16 %v493, %v493
        %v526 = vpack.c.b16 %v494, %v494
        %v527 = vpack.c.b16 %v495, %v495
        %v528 = vpack.c.b16 %v496, %v496
        %v529 = vpack.c.b16 %v497, %v497
        %v530 = vpack.c.b16 %v498, %v498
        %v531 = vpack.c.b16 %v499, %v499
        %v532 = vpack.c.b16 %v500, %v500
        %v533 = vpack.c.b16 %v501, %v501
        %v534 = vpack.c.b16 %v502, %v502
        %v535 = vpack.c.b16 %v503, %v503
        %v536 = vpack.c.b16 %v504, %v504
        %v537 = vpack.c.b16 %v505, %v505
        %v538 = vpack.c.b16 %v506, %v506
        %v539 = vpack.c.b16 %v507, %v507
        %v540 = vpack.c.b16 %v508, %v508
        %v541 = vpack.c.b16 %v509, %v509
        %v542 = vpack.c.b16 %v510, %v510
        %v543 = vpack.c.b16 %v511, %v511
        %576 = vst [vmem:[#allocation2 + $0x4] sm:$0xf] %v512
        %577 = vst [vmem:[#allocation2 + $0x28] sm:$0xf] %v513
        %578 = vst [vmem:[#allocation2 + $0x4c] sm:$0xf] %v514
        %579 = vst [vmem:[#allocation2 + $0x70] sm:$0xf] %v515
        %580 = vst [vmem:[#allocation2 + $0x94] sm:$0xf] %v516
        %581 = vst [vmem:[#allocation2 + $0xb8] sm:$0xf] %v517
        %582 = vst [vmem:[#allocation2 + $0xdc] sm:$0xf] %v518
        %583 = vst [vmem:[#allocation2 + $0x100] sm:$0xf] %v519
        %584 = vst [vmem:[#allocation2 + $0x124] sm:$0xf] %v520
        %585 = vst [vmem:[#allocation2 + $0x148] sm:$0xf] %v521
        %586 = vst [vmem:[#allocation2 + $0x16c] sm:$0xf] %v522
        %587 = vst [vmem:[#allocation2 + $0x190] sm:$0xf] %v523
        %588 = vst [vmem:[#allocation2 + $0x1b4] sm:$0xf] %v524
        %589 = vst [vmem:[#allocation2 + $0x1d8] sm:$0xf] %v525
        %590 = vst [vmem:[#allocation2 + $0x1fc] sm:$0xf] %v526
        %591 = vst [vmem:[#allocation2 + $0x220] sm:$0xf] %v527
        %592 = vst [vmem:[#allocation2 + $0x244] sm:$0xf] %v528
        %593 = vst [vmem:[#allocation2 + $0x268] sm:$0xf] %v529
        %594 = vst [vmem:[#allocation2 + $0x28c] sm:$0xf] %v530
        %595 = vst [vmem:[#allocation2 + $0x2b0] sm:$0xf] %v531
        %596 = vst [vmem:[#allocation2 + $0x2d4] sm:$0xf] %v532
        %597 = vst [vmem:[#allocation2 + $0x2f8] sm:$0xf] %v533
        %598 = vst [vmem:[#allocation2 + $0x31c] sm:$0xf] %v534
        %599 = vst [vmem:[#allocation2 + $0x340] sm:$0xf] %v535
        %600 = vst [vmem:[#allocation2 + $0x364] sm:$0xf] %v536
        %601 = vst [vmem:[#allocation2 + $0x388] sm:$0xf] %v537
        %602 = vst [vmem:[#allocation2 + $0x3ac] sm:$0xf] %v538
        %603 = vst [vmem:[#allocation2 + $0x3d0] sm:$0xf] %v539
        %604 = vst [vmem:[#allocation2 + $0x3f4] sm:$0xf] %v540
        %605 = vst [vmem:[#allocation2 + $0x418] sm:$0xf] %v541
        %606 = vst [vmem:[#allocation2 + $0x43c] sm:$0xf] %v542
        %607 = vst [vmem:[#allocation2 + $0x460] sm:$0xf] %v543
        %v608 = vld [vmem:[%s222 + $0x2] sm:$0xff]
        %v609 = vld [vmem:[%s222 + $0xa] sm:$0xff]
        %v610 = vld [vmem:[%s222 + $0x1a] sm:$0xff]
        %v611 = vld [vmem:[%s222 + $0x22] sm:$0xff]
        %v612 = vld [vmem:[%s222 + $0x32] sm:$0xff]
        %v613 = vld [vmem:[%s222 + $0x3a] sm:$0xff]
        %v614 = vld [vmem:[%s222 + $0x4a] sm:$0xff]
        %v615 = vld [vmem:[%s222 + $0x52] sm:$0xff]
        %v616 = vld [vmem:[%s222 + $0x62] sm:$0xff]
        %v617 = vld [vmem:[%s222 + $0x6a] sm:$0xff]
        %v618 = vld [vmem:[%s222 + $0x7a] sm:$0xff]
        %v619 = vld [vmem:[%s222 + $0x82] sm:$0xff]
        %v620 = vld [vmem:[%s222 + $0x92] sm:$0xff]
        %v621 = vld [vmem:[%s222 + $0x9a] sm:$0xff]
        %v622 = vld [vmem:[%s222 + $0xaa] sm:$0xff]
        %v623 = vld [vmem:[%s222 + $0xb2] sm:$0xff]
        %v624 = vld [vmem:[%s222 + $0xc2] sm:$0xff]
        %v625 = vld [vmem:[%s222 + $0xca] sm:$0xff]
        %v626 = vld [vmem:[%s222 + $0xda] sm:$0xff]
        %v627 = vld [vmem:[%s222 + $0xe2] sm:$0xff]
        %v628 = vld [vmem:[%s222 + $0xf2] sm:$0xff]
        %v629 = vld [vmem:[%s222 + $0xfa] sm:$0xff]
        %v630 = vld [vmem:[%s222 + $0x10a] sm:$0xff]
        %v631 = vld [vmem:[%s222 + $0x112] sm:$0xff]
        %v632 = vld [vmem:[%s222 + $0x122] sm:$0xff]
        %v633 = vld [vmem:[%s222 + $0x12a] sm:$0xff]
        %v634 = vld [vmem:[%s222 + $0x13a] sm:$0xff]
        %v635 = vld [vmem:[%s222 + $0x142] sm:$0xff]
        %v636 = vld [vmem:[%s222 + $0x152] sm:$0xff]
        %v637 = vld [vmem:[%s222 + $0x15a] sm:$0xff]
        %v638 = vld [vmem:[%s222 + $0x16a] sm:$0xff]
        %v639 = vld [vmem:[%s222 + $0x172] sm:$0xff]
        %v640 = vpack.c.bf16 %v609, %v608
        %v641 = vpack.c.bf16 %v611, %v610
        %v642 = vpack.c.bf16 %v613, %v612
        %v643 = vpack.c.bf16 %v615, %v614
        %v644 = vpack.c.bf16 %v617, %v616
        %v645 = vpack.c.bf16 %v619, %v618
        %v646 = vpack.c.bf16 %v621, %v620
        %v647 = vpack.c.bf16 %v623, %v622
        %v648 = vpack.c.bf16 %v625, %v624
        %v649 = vpack.c.bf16 %v627, %v626
        %v650 = vpack.c.bf16 %v629, %v628
        %v651 = vpack.c.bf16 %v631, %v630
        %v652 = vpack.c.bf16 %v633, %v632
        %v653 = vpack.c.bf16 %v635, %v634
        %v654 = vpack.c.bf16 %v637, %v636
        %v655 = vpack.c.bf16 %v639, %v638
        %v672 = vunpack.c.l.b16 %v640
        %v673 = vunpack.c.h.b16 %v640
        %v674 = vunpack.c.l.b16 %v641
        %v675 = vunpack.c.h.b16 %v641
        %v676 = vunpack.c.l.b16 %v642
        %v677 = vunpack.c.h.b16 %v642
        %v678 = vunpack.c.l.b16 %v643
        %v679 = vunpack.c.h.b16 %v643
        %v680 = vunpack.c.l.b16 %v644
        %v681 = vunpack.c.h.b16 %v644
        %v682 = vunpack.c.l.b16 %v645
        %v683 = vunpack.c.h.b16 %v645
        %v684 = vunpack.c.l.b16 %v646
        %v685 = vunpack.c.h.b16 %v646
        %v686 = vunpack.c.l.b16 %v647
        %v687 = vunpack.c.h.b16 %v647
        %v688 = vunpack.c.l.b16 %v648
        %v689 = vunpack.c.h.b16 %v648
        %v690 = vunpack.c.l.b16 %v649
        %v691 = vunpack.c.h.b16 %v649
        %v692 = vunpack.c.l.b16 %v650
        %v693 = vunpack.c.h.b16 %v650
        %v694 = vunpack.c.l.b16 %v651
        %v695 = vunpack.c.h.b16 %v651
        %v696 = vunpack.c.l.b16 %v652
        %v697 = vunpack.c.h.b16 %v652
        %v698 = vunpack.c.l.b16 %v653
        %v699 = vunpack.c.h.b16 %v653
        %v700 = vunpack.c.l.b16 %v654
        %v701 = vunpack.c.h.b16 %v654
        %v702 = vunpack.c.l.b16 %v655
        %v703 = vunpack.c.h.b16 %v655
        %v704 = vpack.c.b16 %v672, %v672
        %v705 = vpack.c.b16 %v673, %v673
        %v706 = vpack.c.b16 %v674, %v674
        %v707 = vpack.c.b16 %v675, %v675
        %v708 = vpack.c.b16 %v676, %v676
        %v709 = vpack.c.b16 %v677, %v677
        %v710 = vpack.c.b16 %v678, %v678
        %v711 = vpack.c.b16 %v679, %v679
        %v712 = vpack.c.b16 %v680, %v680
        %v713 = vpack.c.b16 %v681, %v681
        %v714 = vpack.c.b16 %v682, %v682
        %v715 = vpack.c.b16 %v683, %v683
        %v716 = vpack.c.b16 %v684, %v684
        %v717 = vpack.c.b16 %v685, %v685
        %v718 = vpack.c.b16 %v686, %v686
        %v719 = vpack.c.b16 %v687, %v687
        %v720 = vpack.c.b16 %v688, %v688
        %v721 = vpack.c.b16 %v689, %v689
        %v722 = vpack.c.b16 %v690, %v690
        %v723 = vpack.c.b16 %v691, %v691
        %v724 = vpack.c.b16 %v692, %v692
        %v725 = vpack.c.b16 %v693, %v693
        %v726 = vpack.c.b16 %v694, %v694
        %v727 = vpack.c.b16 %v695, %v695
        %v728 = vpack.c.b16 %v696, %v696
        %v729 = vpack.c.b16 %v697, %v697
        %v730 = vpack.c.b16 %v698, %v698
        %v731 = vpack.c.b16 %v699, %v699
        %v732 = vpack.c.b16 %v700, %v700
        %v733 = vpack.c.b16 %v701, %v701
        %v734 = vpack.c.b16 %v702, %v702
        %v735 = vpack.c.b16 %v703, %v703
        %768 = vst [vmem:[#allocation2 + $0x8] sm:$0xf] %v704
        %769 = vst [vmem:[#allocation2 + $0x2c] sm:$0xf] %v705
        %770 = vst [vmem:[#allocation2 + $0x50] sm:$0xf] %v706
        %771 = vst [vmem:[#allocation2 + $0x74] sm:$0xf] %v707
        %772 = vst [vmem:[#allocation2 + $0x98] sm:$0xf] %v708
        %773 = vst [vmem:[#allocation2 + $0xbc] sm:$0xf] %v709
        %774 = vst [vmem:[#allocation2 + $0xe0] sm:$0xf] %v710
        %775 = vst [vmem:[#allocation2 + $0x104] sm:$0xf] %v711
        %776 = vst [vmem:[#allocation2 + $0x128] sm:$0xf] %v712
        %777 = vst [vmem:[#allocation2 + $0x14c] sm:$0xf] %v713
        %778 = vst [vmem:[#allocation2 + $0x170] sm:$0xf] %v714
        %779 = vst [vmem:[#allocation2 + $0x194] sm:$0xf] %v715
        %780 = vst [vmem:[#allocation2 + $0x1b8] sm:$0xf] %v716
        %781 = vst [vmem:[#allocation2 + $0x1dc] sm:$0xf] %v717
        %782 = vst [vmem:[#allocation2 + $0x200] sm:$0xf] %v718
        %783 = vst [vmem:[#allocation2 + $0x224] sm:$0xf] %v719
        %784 = vst [vmem:[#allocation2 + $0x248] sm:$0xf] %v720
        %785 = vst [vmem:[#allocation2 + $0x26c] sm:$0xf] %v721
        %786 = vst [vmem:[#allocation2 + $0x290] sm:$0xf] %v722
        %787 = vst [vmem:[#allocation2 + $0x2b4] sm:$0xf] %v723
        %788 = vst [vmem:[#allocation2 + $0x2d8] sm:$0xf] %v724
        %789 = vst [vmem:[#allocation2 + $0x2fc] sm:$0xf] %v725
        %790 = vst [vmem:[#allocation2 + $0x320] sm:$0xf] %v726
        %791 = vst [vmem:[#allocation2 + $0x344] sm:$0xf] %v727
        %792 = vst [vmem:[#allocation2 + $0x368] sm:$0xf] %v728
        %793 = vst [vmem:[#allocation2 + $0x38c] sm:$0xf] %v729
        %794 = vst [vmem:[#allocation2 + $0x3b0] sm:$0xf] %v730
        %795 = vst [vmem:[#allocation2 + $0x3d4] sm:$0xf] %v731
        %796 = vst [vmem:[#allocation2 + $0x3f8] sm:$0xf] %v732
        %797 = vst [vmem:[#allocation2 + $0x41c] sm:$0xf] %v733
        %798 = vst [vmem:[#allocation2 + $0x440] sm:$0xf] %v734
        %799 = vst [vmem:[#allocation2 + $0x464] sm:$0xf] %v735
        %s800 = scalar_lea.vmem %s222, 24
        %v801 = vld [vmem:[%s800] sm:$0xff]
        %v802 = vld [vmem:[%s800 + $0x8] sm:$0xff]
        %v803 = vld [vmem:[%s800 + $0x18] sm:$0xff]
        %v804 = vld [vmem:[%s800 + $0x20] sm:$0xff]
        %v805 = vld [vmem:[%s800 + $0x30] sm:$0xff]
        %v806 = vld [vmem:[%s800 + $0x38] sm:$0xff]
        %v807 = vld [vmem:[%s800 + $0x48] sm:$0xff]
        %v808 = vld [vmem:[%s800 + $0x50] sm:$0xff]
        %v809 = vld [vmem:[%s800 + $0x60] sm:$0xff]
        %v810 = vld [vmem:[%s800 + $0x68] sm:$0xff]
        %v811 = vld [vmem:[%s800 + $0x78] sm:$0xff]
        %v812 = vld [vmem:[%s800 + $0x80] sm:$0xff]
        %v813 = vld [vmem:[%s800 + $0x90] sm:$0xff]
        %v814 = vld [vmem:[%s800 + $0x98] sm:$0xff]
        %v815 = vld [vmem:[%s800 + $0xa8] sm:$0xff]
        %v816 = vld [vmem:[%s800 + $0xb0] sm:$0xff]
        %v817 = vld [vmem:[%s800 + $0xc0] sm:$0xff]
        %v818 = vld [vmem:[%s800 + $0xc8] sm:$0xff]
        %v819 = vld [vmem:[%s800 + $0xd8] sm:$0xff]
        %v820 = vld [vmem:[%s800 + $0xe0] sm:$0xff]
        %v821 = vld [vmem:[%s800 + $0xf0] sm:$0xff]
        %v822 = vld [vmem:[%s800 + $0xf8] sm:$0xff]
        %v823 = vld [vmem:[%s800 + $0x108] sm:$0xff]
        %v824 = vld [vmem:[%s800 + $0x110] sm:$0xff]
        %v825 = vld [vmem:[%s800 + $0x120] sm:$0xff]
        %v826 = vld [vmem:[%s800 + $0x128] sm:$0xff]
        %v827 = vld [vmem:[%s800 + $0x138] sm:$0xff]
        %v828 = vld [vmem:[%s800 + $0x140] sm:$0xff]
        %v829 = vld [vmem:[%s800 + $0x150] sm:$0xff]
        %v830 = vld [vmem:[%s800 + $0x158] sm:$0xff]
        %v831 = vld [vmem:[%s800 + $0x168] sm:$0xff]
        %v832 = vld [vmem:[%s800 + $0x170] sm:$0xff]
        %v833 = vpack.c.bf16 %v802, %v801
        %v834 = vpack.c.bf16 %v804, %v803
        %v835 = vpack.c.bf16 %v806, %v805
        %v836 = vpack.c.bf16 %v808, %v807
        %v837 = vpack.c.bf16 %v810, %v809
        %v838 = vpack.c.bf16 %v812, %v811
        %v839 = vpack.c.bf16 %v814, %v813
        %v840 = vpack.c.bf16 %v816, %v815
        %v841 = vpack.c.bf16 %v818, %v817
        %v842 = vpack.c.bf16 %v820, %v819
        %v843 = vpack.c.bf16 %v822, %v821
        %v844 = vpack.c.bf16 %v824, %v823
        %v845 = vpack.c.bf16 %v826, %v825
        %v846 = vpack.c.bf16 %v828, %v827
        %v847 = vpack.c.bf16 %v830, %v829
        %v848 = vpack.c.bf16 %v832, %v831
        %v865 = vunpack.c.l.b16 %v833
        %v866 = vunpack.c.h.b16 %v833
        %v867 = vunpack.c.l.b16 %v834
        %v868 = vunpack.c.h.b16 %v834
        %v869 = vunpack.c.l.b16 %v835
        %v870 = vunpack.c.h.b16 %v835
        %v871 = vunpack.c.l.b16 %v836
        %v872 = vunpack.c.h.b16 %v836
        %v873 = vunpack.c.l.b16 %v837
        %v874 = vunpack.c.h.b16 %v837
        %v875 = vunpack.c.l.b16 %v838
        %v876 = vunpack.c.h.b16 %v838
        %v877 = vunpack.c.l.b16 %v839
        %v878 = vunpack.c.h.b16 %v839
        %v879 = vunpack.c.l.b16 %v840
        %v880 = vunpack.c.h.b16 %v840
        %v881 = vunpack.c.l.b16 %v841
        %v882 = vunpack.c.h.b16 %v841
        %v883 = vunpack.c.l.b16 %v842
        %v884 = vunpack.c.h.b16 %v842
        %v885 = vunpack.c.l.b16 %v843
        %v886 = vunpack.c.h.b16 %v843
        %v887 = vunpack.c.l.b16 %v844
        %v888 = vunpack.c.h.b16 %v844
        %v889 = vunpack.c.l.b16 %v845
        %v890 = vunpack.c.h.b16 %v845
        %v891 = vunpack.c.l.b16 %v846
        %v892 = vunpack.c.h.b16 %v846
        %v893 = vunpack.c.l.b16 %v847
        %v894 = vunpack.c.h.b16 %v847
        %v895 = vunpack.c.l.b16 %v848
        %v896 = vunpack.c.h.b16 %v848
        %v897 = vpack.c.b16 %v865, %v865
        %v898 = vpack.c.b16 %v866, %v866
        %v899 = vpack.c.b16 %v867, %v867
        %v900 = vpack.c.b16 %v868, %v868
        %v901 = vpack.c.b16 %v869, %v869
        %v902 = vpack.c.b16 %v870, %v870
        %v903 = vpack.c.b16 %v871, %v871
        %v904 = vpack.c.b16 %v872, %v872
        %v905 = vpack.c.b16 %v873, %v873
        %v906 = vpack.c.b16 %v874, %v874
        %v907 = vpack.c.b16 %v875, %v875
        %v908 = vpack.c.b16 %v876, %v876
        %v909 = vpack.c.b16 %v877, %v877
        %v910 = vpack.c.b16 %v878, %v878
        %v911 = vpack.c.b16 %v879, %v879
        %v912 = vpack.c.b16 %v880, %v880
        %v913 = vpack.c.b16 %v881, %v881
        %v914 = vpack.c.b16 %v882, %v882
        %v915 = vpack.c.b16 %v883, %v883
        %v916 = vpack.c.b16 %v884, %v884
        %v917 = vpack.c.b16 %v885, %v885
        %v918 = vpack.c.b16 %v886, %v886
        %v919 = vpack.c.b16 %v887, %v887
        %v920 = vpack.c.b16 %v888, %v888
        %v921 = vpack.c.b16 %v889, %v889
        %v922 = vpack.c.b16 %v890, %v890
        %v923 = vpack.c.b16 %v891, %v891
        %v924 = vpack.c.b16 %v892, %v892
        %v925 = vpack.c.b16 %v893, %v893
        %v926 = vpack.c.b16 %v894, %v894
        %v927 = vpack.c.b16 %v895, %v895
        %v928 = vpack.c.b16 %v896, %v896
        %961 = vst [vmem:[#allocation2 + $0xc] sm:$0xf] %v897
        %962 = vst [vmem:[#allocation2 + $0x30] sm:$0xf] %v898
        %963 = vst [vmem:[#allocation2 + $0x54] sm:$0xf] %v899
        %964 = vst [vmem:[#allocation2 + $0x78] sm:$0xf] %v900
        %965 = vst [vmem:[#allocation2 + $0x9c] sm:$0xf] %v901
        %966 = vst [vmem:[#allocation2 + $0xc0] sm:$0xf] %v902
        %967 = vst [vmem:[#allocation2 + $0xe4] sm:$0xf] %v903
        %968 = vst [vmem:[#allocation2 + $0x108] sm:$0xf] %v904
        %969 = vst [vmem:[#allocation2 + $0x12c] sm:$0xf] %v905
        %970 = vst [vmem:[#allocation2 + $0x150] sm:$0xf] %v906
        %971 = vst [vmem:[#allocation2 + $0x174] sm:$0xf] %v907
        %972 = vst [vmem:[#allocation2 + $0x198] sm:$0xf] %v908
        %973 = vst [vmem:[#allocation2 + $0x1bc] sm:$0xf] %v909
        %974 = vst [vmem:[#allocation2 + $0x1e0] sm:$0xf] %v910
        %975 = vst [vmem:[#allocation2 + $0x204] sm:$0xf] %v911
        %976 = vst [vmem:[#allocation2 + $0x228] sm:$0xf] %v912
        %977 = vst [vmem:[#allocation2 + $0x24c] sm:$0xf] %v913
        %978 = vst [vmem:[#allocation2 + $0x270] sm:$0xf] %v914
        %979 = vst [vmem:[#allocation2 + $0x294] sm:$0xf] %v915
        %980 = vst [vmem:[#allocation2 + $0x2b8] sm:$0xf] %v916
        %981 = vst [vmem:[#allocation2 + $0x2dc] sm:$0xf] %v917
        %982 = vst [vmem:[#allocation2 + $0x300] sm:$0xf] %v918
        %983 = vst [vmem:[#allocation2 + $0x324] sm:$0xf] %v919
        %984 = vst [vmem:[#allocation2 + $0x348] sm:$0xf] %v920
        %985 = vst [vmem:[#allocation2 + $0x36c] sm:$0xf] %v921
        %986 = vst [vmem:[#allocation2 + $0x390] sm:$0xf] %v922
        %987 = vst [vmem:[#allocation2 + $0x3b4] sm:$0xf] %v923
        %988 = vst [vmem:[#allocation2 + $0x3d8] sm:$0xf] %v924
        %989 = vst [vmem:[#allocation2 + $0x3fc] sm:$0xf] %v925
        %990 = vst [vmem:[#allocation2 + $0x420] sm:$0xf] %v926
        %991 = vst [vmem:[#allocation2 + $0x444] sm:$0xf] %v927
        %992 = vst [vmem:[#allocation2 + $0x468] sm:$0xf] %v928
        %v993 = vld [vmem:[%s800 + $0x1] sm:$0xff]
        %v994 = vld [vmem:[%s800 + $0x9] sm:$0xff]
        %v995 = vld [vmem:[%s800 + $0x19] sm:$0xff]
        %v996 = vld [vmem:[%s800 + $0x21] sm:$0xff]
        %v997 = vld [vmem:[%s800 + $0x31] sm:$0xff]
        %v998 = vld [vmem:[%s800 + $0x39] sm:$0xff]
        %v999 = vld [vmem:[%s800 + $0x49] sm:$0xff]
        %v1000 = vld [vmem:[%s800 + $0x51] sm:$0xff]
        %v1001 = vld [vmem:[%s800 + $0x61] sm:$0xff]
        %v1002 = vld [vmem:[%s800 + $0x69] sm:$0xff]
        %v1003 = vld [vmem:[%s800 + $0x79] sm:$0xff]
        %v1004 = vld [vmem:[%s800 + $0x81] sm:$0xff]
        %v1005 = vld [vmem:[%s800 + $0x91] sm:$0xff]
        %v1006 = vld [vmem:[%s800 + $0x99] sm:$0xff]
        %v1007 = vld [vmem:[%s800 + $0xa9] sm:$0xff]
        %v1008 = vld [vmem:[%s800 + $0xb1] sm:$0xff]
        %v1009 = vld [vmem:[%s800 + $0xc1] sm:$0xff]
        %v1010 = vld [vmem:[%s800 + $0xc9] sm:$0xff]
        %v1011 = vld [vmem:[%s800 + $0xd9] sm:$0xff]
        %v1012 = vld [vmem:[%s800 + $0xe1] sm:$0xff]
        %v1013 = vld [vmem:[%s800 + $0xf1] sm:$0xff]
        %v1014 = vld [vmem:[%s800 + $0xf9] sm:$0xff]
        %v1015 = vld [vmem:[%s800 + $0x109] sm:$0xff]
        %v1016 = vld [vmem:[%s800 + $0x111] sm:$0xff]
        %v1017 = vld [vmem:[%s800 + $0x121] sm:$0xff]
        %v1018 = vld [vmem:[%s800 + $0x129] sm:$0xff]
        %v1019 = vld [vmem:[%s800 + $0x139] sm:$0xff]
        %v1020 = vld [vmem:[%s800 + $0x141] sm:$0xff]
        %v1021 = vld [vmem:[%s800 + $0x151] sm:$0xff]
        %v1022 = vld [vmem:[%s800 + $0x159] sm:$0xff]
        %v1023 = vld [vmem:[%s800 + $0x169] sm:$0xff]
        %v1024 = vld [vmem:[%s800 + $0x171] sm:$0xff]
        %v1025 = vpack.c.bf16 %v994, %v993
        %v1026 = vpack.c.bf16 %v996, %v995
        %v1027 = vpack.c.bf16 %v998, %v997
        %v1028 = vpack.c.bf16 %v1000, %v999
        %v1029 = vpack.c.bf16 %v1002, %v1001
        %v1030 = vpack.c.bf16 %v1004, %v1003
        %v1031 = vpack.c.bf16 %v1006, %v1005
        %v1032 = vpack.c.bf16 %v1008, %v1007
        %v1033 = vpack.c.bf16 %v1010, %v1009
        %v1034 = vpack.c.bf16 %v1012, %v1011
        %v1035 = vpack.c.bf16 %v1014, %v1013
        %v1036 = vpack.c.bf16 %v1016, %v1015
        %v1037 = vpack.c.bf16 %v1018, %v1017
        %v1038 = vpack.c.bf16 %v1020, %v1019
        %v1039 = vpack.c.bf16 %v1022, %v1021
        %v1040 = vpack.c.bf16 %v1024, %v1023
        %v1057 = vunpack.c.l.b16 %v1025
        %v1058 = vunpack.c.h.b16 %v1025
        %v1059 = vunpack.c.l.b16 %v1026
        %v1060 = vunpack.c.h.b16 %v1026
        %v1061 = vunpack.c.l.b16 %v1027
        %v1062 = vunpack.c.h.b16 %v1027
        %v1063 = vunpack.c.l.b16 %v1028
        %v1064 = vunpack.c.h.b16 %v1028
        %v1065 = vunpack.c.l.b16 %v1029
        %v1066 = vunpack.c.h.b16 %v1029
        %v1067 = vunpack.c.l.b16 %v1030
        %v1068 = vunpack.c.h.b16 %v1030
        %v1069 = vunpack.c.l.b16 %v1031
        %v1070 = vunpack.c.h.b16 %v1031
        %v1071 = vunpack.c.l.b16 %v1032
        %v1072 = vunpack.c.h.b16 %v1032
        %v1073 = vunpack.c.l.b16 %v1033
        %v1074 = vunpack.c.h.b16 %v1033
        %v1075 = vunpack.c.l.b16 %v1034
        %v1076 = vunpack.c.h.b16 %v1034
        %v1077 = vunpack.c.l.b16 %v1035
        %v1078 = vunpack.c.h.b16 %v1035
        %v1079 = vunpack.c.l.b16 %v1036
        %v1080 = vunpack.c.h.b16 %v1036
        %v1081 = vunpack.c.l.b16 %v1037
        %v1082 = vunpack.c.h.b16 %v1037
        %v1083 = vunpack.c.l.b16 %v1038
        %v1084 = vunpack.c.h.b16 %v1038
        %v1085 = vunpack.c.l.b16 %v1039
        %v1086 = vunpack.c.h.b16 %v1039
        %v1087 = vunpack.c.l.b16 %v1040
        %v1088 = vunpack.c.h.b16 %v1040
        %v1089 = vpack.c.b16 %v1057, %v1057
        %v1090 = vpack.c.b16 %v1058, %v1058
        %v1091 = vpack.c.b16 %v1059, %v1059
        %v1092 = vpack.c.b16 %v1060, %v1060
        %v1093 = vpack.c.b16 %v1061, %v1061
        %v1094 = vpack.c.b16 %v1062, %v1062
        %v1095 = vpack.c.b16 %v1063, %v1063
        %v1096 = vpack.c.b16 %v1064, %v1064
        %v1097 = vpack.c.b16 %v1065, %v1065
        %v1098 = vpack.c.b16 %v1066, %v1066
        %v1099 = vpack.c.b16 %v1067, %v1067
        %v1100 = vpack.c.b16 %v1068, %v1068
        %v1101 = vpack.c.b16 %v1069, %v1069
        %v1102 = vpack.c.b16 %v1070, %v1070
        %v1103 = vpack.c.b16 %v1071, %v1071
        %v1104 = vpack.c.b16 %v1072, %v1072
        %v1105 = vpack.c.b16 %v1073, %v1073
        %v1106 = vpack.c.b16 %v1074, %v1074
        %v1107 = vpack.c.b16 %v1075, %v1075
        %v1108 = vpack.c.b16 %v1076, %v1076
        %v1109 = vpack.c.b16 %v1077, %v1077
        %v1110 = vpack.c.b16 %v1078, %v1078
        %v1111 = vpack.c.b16 %v1079, %v1079
        %v1112 = vpack.c.b16 %v1080, %v1080
        %v1113 = vpack.c.b16 %v1081, %v1081
        %v1114 = vpack.c.b16 %v1082, %v1082
        %v1115 = vpack.c.b16 %v1083, %v1083
        %v1116 = vpack.c.b16 %v1084, %v1084
        %v1117 = vpack.c.b16 %v1085, %v1085
        %v1118 = vpack.c.b16 %v1086, %v1086
        %v1119 = vpack.c.b16 %v1087, %v1087
        %v1120 = vpack.c.b16 %v1088, %v1088
        %1153 = vst [vmem:[#allocation2 + $0x10] sm:$0xf] %v1089
        %1154 = vst [vmem:[#allocation2 + $0x34] sm:$0xf] %v1090
        %1155 = vst [vmem:[#allocation2 + $0x58] sm:$0xf] %v1091
        %1156 = vst [vmem:[#allocation2 + $0x7c] sm:$0xf] %v1092
        %1157 = vst [vmem:[#allocation2 + $0xa0] sm:$0xf] %v1093
        %1158 = vst [vmem:[#allocation2 + $0xc4] sm:$0xf] %v1094
        %1159 = vst [vmem:[#allocation2 + $0xe8] sm:$0xf] %v1095
        %1160 = vst [vmem:[#allocation2 + $0x10c] sm:$0xf] %v1096
        %1161 = vst [vmem:[#allocation2 + $0x130] sm:$0xf] %v1097
        %1162 = vst [vmem:[#allocation2 + $0x154] sm:$0xf] %v1098
        %1163 = vst [vmem:[#allocation2 + $0x178] sm:$0xf] %v1099
        %1164 = vst [vmem:[#allocation2 + $0x19c] sm:$0xf] %v1100
        %1165 = vst [vmem:[#allocation2 + $0x1c0] sm:$0xf] %v1101
        %1166 = vst [vmem:[#allocation2 + $0x1e4] sm:$0xf] %v1102
        %1167 = vst [vmem:[#allocation2 + $0x208] sm:$0xf] %v1103
        %1168 = vst [vmem:[#allocation2 + $0x22c] sm:$0xf] %v1104
        %1169 = vst [vmem:[#allocation2 + $0x250] sm:$0xf] %v1105
        %1170 = vst [vmem:[#allocation2 + $0x274] sm:$0xf] %v1106
        %1171 = vst [vmem:[#allocation2 + $0x298] sm:$0xf] %v1107
        %1172 = vst [vmem:[#allocation2 + $0x2bc] sm:$0xf] %v1108
        %1173 = vst [vmem:[#allocation2 + $0x2e0] sm:$0xf] %v1109
        %1174 = vst [vmem:[#allocation2 + $0x304] sm:$0xf] %v1110
        %1175 = vst [vmem:[#allocation2 + $0x328] sm:$0xf] %v1111
        %1176 = vst [vmem:[#allocation2 + $0x34c] sm:$0xf] %v1112
        %1177 = vst [vmem:[#allocation2 + $0x370] sm:$0xf] %v1113
        %1178 = vst [vmem:[#allocation2 + $0x394] sm:$0xf] %v1114
        %1179 = vst [vmem:[#allocation2 + $0x3b8] sm:$0xf] %v1115
        %1180 = vst [vmem:[#allocation2 + $0x3dc] sm:$0xf] %v1116
        %1181 = vst [vmem:[#allocation2 + $0x400] sm:$0xf] %v1117
        %1182 = vst [vmem:[#allocation2 + $0x424] sm:$0xf] %v1118
        %1183 = vst [vmem:[#allocation2 + $0x448] sm:$0xf] %v1119
        %1184 = vst [vmem:[#allocation2 + $0x46c] sm:$0xf] %v1120
        %v1185 = vld [vmem:[%s800 + $0x2] sm:$0xff]
        %v1186 = vld [vmem:[%s800 + $0xa] sm:$0xff]
        %v1187 = vld [vmem:[%s800 + $0x1a] sm:$0xff]
        %v1188 = vld [vmem:[%s800 + $0x22] sm:$0xff]
        %v1189 = vld [vmem:[%s800 + $0x32] sm:$0xff]
        %v1190 = vld [vmem:[%s800 + $0x3a] sm:$0xff]
        %v1191 = vld [vmem:[%s800 + $0x4a] sm:$0xff]
        %v1192 = vld [vmem:[%s800 + $0x52] sm:$0xff]
        %v1193 = vld [vmem:[%s800 + $0x62] sm:$0xff]
        %v1194 = vld [vmem:[%s800 + $0x6a] sm:$0xff]
        %v1195 = vld [vmem:[%s800 + $0x7a] sm:$0xff]
        %v1196 = vld [vmem:[%s800 + $0x82] sm:$0xff]
        %v1197 = vld [vmem:[%s800 + $0x92] sm:$0xff]
        %v1198 = vld [vmem:[%s800 + $0x9a] sm:$0xff]
        %v1199 = vld [vmem:[%s800 + $0xaa] sm:$0xff]
        %v1200 = vld [vmem:[%s800 + $0xb2] sm:$0xff]
        %v1201 = vld [vmem:[%s800 + $0xc2] sm:$0xff]
        %v1202 = vld [vmem:[%s800 + $0xca] sm:$0xff]
        %v1203 = vld [vmem:[%s800 + $0xda] sm:$0xff]
        %v1204 = vld [vmem:[%s800 + $0xe2] sm:$0xff]
        %v1205 = vld [vmem:[%s800 + $0xf2] sm:$0xff]
        %v1206 = vld [vmem:[%s800 + $0xfa] sm:$0xff]
        %v1207 = vld [vmem:[%s800 + $0x10a] sm:$0xff]
        %v1208 = vld [vmem:[%s800 + $0x112] sm:$0xff]
        %v1209 = vld [vmem:[%s800 + $0x122] sm:$0xff]
        %v1210 = vld [vmem:[%s800 + $0x12a] sm:$0xff]
        %v1211 = vld [vmem:[%s800 + $0x13a] sm:$0xff]
        %v1212 = vld [vmem:[%s800 + $0x142] sm:$0xff]
        %v1213 = vld [vmem:[%s800 + $0x152] sm:$0xff]
        %v1214 = vld [vmem:[%s800 + $0x15a] sm:$0xff]
        %v1215 = vld [vmem:[%s800 + $0x16a] sm:$0xff]
        %v1216 = vld [vmem:[%s800 + $0x172] sm:$0xff]
        %v1217 = vpack.c.bf16 %v1186, %v1185
        %v1218 = vpack.c.bf16 %v1188, %v1187
        %v1219 = vpack.c.bf16 %v1190, %v1189
        %v1220 = vpack.c.bf16 %v1192, %v1191
        %v1221 = vpack.c.bf16 %v1194, %v1193
        %v1222 = vpack.c.bf16 %v1196, %v1195
        %v1223 = vpack.c.bf16 %v1198, %v1197
        %v1224 = vpack.c.bf16 %v1200, %v1199
        %v1225 = vpack.c.bf16 %v1202, %v1201
        %v1226 = vpack.c.bf16 %v1204, %v1203
        %v1227 = vpack.c.bf16 %v1206, %v1205
        %v1228 = vpack.c.bf16 %v1208, %v1207
        %v1229 = vpack.c.bf16 %v1210, %v1209
        %v1230 = vpack.c.bf16 %v1212, %v1211
        %v1231 = vpack.c.bf16 %v1214, %v1213
        %v1232 = vpack.c.bf16 %v1216, %v1215
        %v1249 = vunpack.c.l.b16 %v1217
        %v1250 = vunpack.c.h.b16 %v1217
        %v1251 = vunpack.c.l.b16 %v1218
        %v1252 = vunpack.c.h.b16 %v1218
        %v1253 = vunpack.c.l.b16 %v1219
        %v1254 = vunpack.c.h.b16 %v1219
        %v1255 = vunpack.c.l.b16 %v1220
        %v1256 = vunpack.c.h.b16 %v1220
        %v1257 = vunpack.c.l.b16 %v1221
        %v1258 = vunpack.c.h.b16 %v1221
        %v1259 = vunpack.c.l.b16 %v1222
        %v1260 = vunpack.c.h.b16 %v1222
        %v1261 = vunpack.c.l.b16 %v1223
        %v1262 = vunpack.c.h.b16 %v1223
        %v1263 = vunpack.c.l.b16 %v1224
        %v1264 = vunpack.c.h.b16 %v1224
        %v1265 = vunpack.c.l.b16 %v1225
        %v1266 = vunpack.c.h.b16 %v1225
        %v1267 = vunpack.c.l.b16 %v1226
        %v1268 = vunpack.c.h.b16 %v1226
        %v1269 = vunpack.c.l.b16 %v1227
        %v1270 = vunpack.c.h.b16 %v1227
        %v1271 = vunpack.c.l.b16 %v1228
        %v1272 = vunpack.c.h.b16 %v1228
        %v1273 = vunpack.c.l.b16 %v1229
        %v1274 = vunpack.c.h.b16 %v1229
        %v1275 = vunpack.c.l.b16 %v1230
        %v1276 = vunpack.c.h.b16 %v1230
        %v1277 = vunpack.c.l.b16 %v1231
        %v1278 = vunpack.c.h.b16 %v1231
        %v1279 = vunpack.c.l.b16 %v1232
        %v1280 = vunpack.c.h.b16 %v1232
        %v1281 = vpack.c.b16 %v1249, %v1249
        %v1282 = vpack.c.b16 %v1250, %v1250
        %v1283 = vpack.c.b16 %v1251, %v1251
        %v1284 = vpack.c.b16 %v1252, %v1252
        %v1285 = vpack.c.b16 %v1253, %v1253
        %v1286 = vpack.c.b16 %v1254, %v1254
        %v1287 = vpack.c.b16 %v1255, %v1255
        %v1288 = vpack.c.b16 %v1256, %v1256
        %v1289 = vpack.c.b16 %v1257, %v1257
        %v1290 = vpack.c.b16 %v1258, %v1258
        %v1291 = vpack.c.b16 %v1259, %v1259
        %v1292 = vpack.c.b16 %v1260, %v1260
        %v1293 = vpack.c.b16 %v1261, %v1261
        %v1294 = vpack.c.b16 %v1262, %v1262
        %v1295 = vpack.c.b16 %v1263, %v1263
        %v1296 = vpack.c.b16 %v1264, %v1264
        %v1297 = vpack.c.b16 %v1265, %v1265
        %v1298 = vpack.c.b16 %v1266, %v1266
        %v1299 = vpack.c.b16 %v1267, %v1267
        %v1300 = vpack.c.b16 %v1268, %v1268
        %v1301 = vpack.c.b16 %v1269, %v1269
        %v1302 = vpack.c.b16 %v1270, %v1270
        %v1303 = vpack.c.b16 %v1271, %v1271
        %v1304 = vpack.c.b16 %v1272, %v1272
        %v1305 = vpack.c.b16 %v1273, %v1273
        %v1306 = vpack.c.b16 %v1274, %v1274
        %v1307 = vpack.c.b16 %v1275, %v1275
        %v1308 = vpack.c.b16 %v1276, %v1276
        %v1309 = vpack.c.b16 %v1277, %v1277
        %v1310 = vpack.c.b16 %v1278, %v1278
        %v1311 = vpack.c.b16 %v1279, %v1279
        %v1312 = vpack.c.b16 %v1280, %v1280
        %1345 = vst [vmem:[#allocation2 + $0x14] sm:$0xf] %v1281
        %1346 = vst [vmem:[#allocation2 + $0x38] sm:$0xf] %v1282
        %1347 = vst [vmem:[#allocation2 + $0x5c] sm:$0xf] %v1283
        %1348 = vst [vmem:[#allocation2 + $0x80] sm:$0xf] %v1284
        %1349 = vst [vmem:[#allocation2 + $0xa4] sm:$0xf] %v1285
        %1350 = vst [vmem:[#allocation2 + $0xc8] sm:$0xf] %v1286
        %1351 = vst [vmem:[#allocation2 + $0xec] sm:$0xf] %v1287
        %1352 = vst [vmem:[#allocation2 + $0x110] sm:$0xf] %v1288
        %1353 = vst [vmem:[#allocation2 + $0x134] sm:$0xf] %v1289
        %1354 = vst [vmem:[#allocation2 + $0x158] sm:$0xf] %v1290
        %1355 = vst [vmem:[#allocation2 + $0x17c] sm:$0xf] %v1291
        %1356 = vst [vmem:[#allocation2 + $0x1a0] sm:$0xf] %v1292
        %1357 = vst [vmem:[#allocation2 + $0x1c4] sm:$0xf] %v1293
        %1358 = vst [vmem:[#allocation2 + $0x1e8] sm:$0xf] %v1294
        %1359 = vst [vmem:[#allocation2 + $0x20c] sm:$0xf] %v1295
        %1360 = vst [vmem:[#allocation2 + $0x230] sm:$0xf] %v1296
        %1361 = vst [vmem:[#allocation2 + $0x254] sm:$0xf] %v1297
        %1362 = vst [vmem:[#allocation2 + $0x278] sm:$0xf] %v1298
        %1363 = vst [vmem:[#allocation2 + $0x29c] sm:$0xf] %v1299
        %1364 = vst [vmem:[#allocation2 + $0x2c0] sm:$0xf] %v1300
        %1365 = vst [vmem:[#allocation2 + $0x2e4] sm:$0xf] %v1301
        %1366 = vst [vmem:[#allocation2 + $0x308] sm:$0xf] %v1302
        %1367 = vst [vmem:[#allocation2 + $0x32c] sm:$0xf] %v1303
        %1368 = vst [vmem:[#allocation2 + $0x350] sm:$0xf] %v1304
        %1369 = vst [vmem:[#allocation2 + $0x374] sm:$0xf] %v1305
        %1370 = vst [vmem:[#allocation2 + $0x398] sm:$0xf] %v1306
        %1371 = vst [vmem:[#allocation2 + $0x3bc] sm:$0xf] %v1307
        %1372 = vst [vmem:[#allocation2 + $0x3e0] sm:$0xf] %v1308
        %1373 = vst [vmem:[#allocation2 + $0x404] sm:$0xf] %v1309
        %1374 = vst [vmem:[#allocation2 + $0x428] sm:$0xf] %v1310
        %1375 = vst [vmem:[#allocation2 + $0x44c] sm:$0xf] %v1311
        %1376 = vst [vmem:[#allocation2 + $0x470] sm:$0xf] %v1312
        %s1377 = scalar_lea.vmem %s222, 48
        %v1378 = vld [vmem:[%s1377] sm:$0xff]
        %v1379 = vld [vmem:[%s1377 + $0x8] sm:$0xff]
        %v1380 = vld [vmem:[%s1377 + $0x18] sm:$0xff]
        %v1381 = vld [vmem:[%s1377 + $0x20] sm:$0xff]
        %v1382 = vld [vmem:[%s1377 + $0x30] sm:$0xff]
        %v1383 = vld [vmem:[%s1377 + $0x38] sm:$0xff]
        %v1384 = vld [vmem:[%s1377 + $0x48] sm:$0xff]
        %v1385 = vld [vmem:[%s1377 + $0x50] sm:$0xff]
        %v1386 = vld [vmem:[%s1377 + $0x60] sm:$0xff]
        %v1387 = vld [vmem:[%s1377 + $0x68] sm:$0xff]
        %v1388 = vld [vmem:[%s1377 + $0x78] sm:$0xff]
        %v1389 = vld [vmem:[%s1377 + $0x80] sm:$0xff]
        %v1390 = vld [vmem:[%s1377 + $0x90] sm:$0xff]
        %v1391 = vld [vmem:[%s1377 + $0x98] sm:$0xff]
        %v1392 = vld [vmem:[%s1377 + $0xa8] sm:$0xff]
        %v1393 = vld [vmem:[%s1377 + $0xb0] sm:$0xff]
        %v1394 = vld [vmem:[%s1377 + $0xc0] sm:$0xff]
        %v1395 = vld [vmem:[%s1377 + $0xc8] sm:$0xff]
        %v1396 = vld [vmem:[%s1377 + $0xd8] sm:$0xff]
        %v1397 = vld [vmem:[%s1377 + $0xe0] sm:$0xff]
        %v1398 = vld [vmem:[%s1377 + $0xf0] sm:$0xff]
        %v1399 = vld [vmem:[%s1377 + $0xf8] sm:$0xff]
        %v1400 = vld [vmem:[%s1377 + $0x108] sm:$0xff]
        %v1401 = vld [vmem:[%s1377 + $0x110] sm:$0xff]
        %v1402 = vld [vmem:[%s1377 + $0x120] sm:$0xff]
        %v1403 = vld [vmem:[%s1377 + $0x128] sm:$0xff]
        %v1404 = vld [vmem:[%s1377 + $0x138] sm:$0xff]
        %v1405 = vld [vmem:[%s1377 + $0x140] sm:$0xff]
        %v1406 = vld [vmem:[%s1377 + $0x150] sm:$0xff]
        %v1407 = vld [vmem:[%s1377 + $0x158] sm:$0xff]
        %v1408 = vld [vmem:[%s1377 + $0x168] sm:$0xff]
        %v1409 = vld [vmem:[%s1377 + $0x170] sm:$0xff]
        %v1410 = vpack.c.bf16 %v1379, %v1378
        %v1411 = vpack.c.bf16 %v1381, %v1380
        %v1412 = vpack.c.bf16 %v1383, %v1382
        %v1413 = vpack.c.bf16 %v1385, %v1384
        %v1414 = vpack.c.bf16 %v1387, %v1386
        %v1415 = vpack.c.bf16 %v1389, %v1388
        %v1416 = vpack.c.bf16 %v1391, %v1390
        %v1417 = vpack.c.bf16 %v1393, %v1392
        %v1418 = vpack.c.bf16 %v1395, %v1394
        %v1419 = vpack.c.bf16 %v1397, %v1396
        %v1420 = vpack.c.bf16 %v1399, %v1398
        %v1421 = vpack.c.bf16 %v1401, %v1400
        %v1422 = vpack.c.bf16 %v1403, %v1402
        %v1423 = vpack.c.bf16 %v1405, %v1404
        %v1424 = vpack.c.bf16 %v1407, %v1406
        %v1425 = vpack.c.bf16 %v1409, %v1408
        %v1442 = vunpack.c.l.b16 %v1410
        %v1443 = vunpack.c.h.b16 %v1410
        %v1444 = vunpack.c.l.b16 %v1411
        %v1445 = vunpack.c.h.b16 %v1411
        %v1446 = vunpack.c.l.b16 %v1412
        %v1447 = vunpack.c.h.b16 %v1412
        %v1448 = vunpack.c.l.b16 %v1413
        %v1449 = vunpack.c.h.b16 %v1413
        %v1450 = vunpack.c.l.b16 %v1414
        %v1451 = vunpack.c.h.b16 %v1414
        %v1452 = vunpack.c.l.b16 %v1415
        %v1453 = vunpack.c.h.b16 %v1415
        %v1454 = vunpack.c.l.b16 %v1416
        %v1455 = vunpack.c.h.b16 %v1416
        %v1456 = vunpack.c.l.b16 %v1417
        %v1457 = vunpack.c.h.b16 %v1417
        %v1458 = vunpack.c.l.b16 %v1418
        %v1459 = vunpack.c.h.b16 %v1418
        %v1460 = vunpack.c.l.b16 %v1419
        %v1461 = vunpack.c.h.b16 %v1419
        %v1462 = vunpack.c.l.b16 %v1420
        %v1463 = vunpack.c.h.b16 %v1420
        %v1464 = vunpack.c.l.b16 %v1421
        %v1465 = vunpack.c.h.b16 %v1421
        %v1466 = vunpack.c.l.b16 %v1422
        %v1467 = vunpack.c.h.b16 %v1422
        %v1468 = vunpack.c.l.b16 %v1423
        %v1469 = vunpack.c.h.b16 %v1423
        %v1470 = vunpack.c.l.b16 %v1424
        %v1471 = vunpack.c.h.b16 %v1424
        %v1472 = vunpack.c.l.b16 %v1425
        %v1473 = vunpack.c.h.b16 %v1425
        %v1474 = vpack.c.b16 %v1442, %v1442
        %v1475 = vpack.c.b16 %v1443, %v1443
        %v1476 = vpack.c.b16 %v1444, %v1444
        %v1477 = vpack.c.b16 %v1445, %v1445
        %v1478 = vpack.c.b16 %v1446, %v1446
        %v1479 = vpack.c.b16 %v1447, %v1447
        %v1480 = vpack.c.b16 %v1448, %v1448
        %v1481 = vpack.c.b16 %v1449, %v1449
        %v1482 = vpack.c.b16 %v1450, %v1450
        %v1483 = vpack.c.b16 %v1451, %v1451
        %v1484 = vpack.c.b16 %v1452, %v1452
        %v1485 = vpack.c.b16 %v1453, %v1453
        %v1486 = vpack.c.b16 %v1454, %v1454
        %v1487 = vpack.c.b16 %v1455, %v1455
        %v1488 = vpack.c.b16 %v1456, %v1456
        %v1489 = vpack.c.b16 %v1457, %v1457
        %v1490 = vpack.c.b16 %v1458, %v1458
        %v1491 = vpack.c.b16 %v1459, %v1459
        %v1492 = vpack.c.b16 %v1460, %v1460
        %v1493 = vpack.c.b16 %v1461, %v1461
        %v1494 = vpack.c.b16 %v1462, %v1462
        %v1495 = vpack.c.b16 %v1463, %v1463
        %v1496 = vpack.c.b16 %v1464, %v1464
        %v1497 = vpack.c.b16 %v1465, %v1465
        %v1498 = vpack.c.b16 %v1466, %v1466
        %v1499 = vpack.c.b16 %v1467, %v1467
        %v1500 = vpack.c.b16 %v1468, %v1468
        %v1501 = vpack.c.b16 %v1469, %v1469
        %v1502 = vpack.c.b16 %v1470, %v1470
        %v1503 = vpack.c.b16 %v1471, %v1471
        %v1504 = vpack.c.b16 %v1472, %v1472
        %v1505 = vpack.c.b16 %v1473, %v1473
        %1538 = vst [vmem:[#allocation2 + $0x18] sm:$0xf] %v1474
        %1539 = vst [vmem:[#allocation2 + $0x3c] sm:$0xf] %v1475
        %1540 = vst [vmem:[#allocation2 + $0x60] sm:$0xf] %v1476
        %1541 = vst [vmem:[#allocation2 + $0x84] sm:$0xf] %v1477
        %1542 = vst [vmem:[#allocation2 + $0xa8] sm:$0xf] %v1478
        %1543 = vst [vmem:[#allocation2 + $0xcc] sm:$0xf] %v1479
        %1544 = vst [vmem:[#allocation2 + $0xf0] sm:$0xf] %v1480
        %1545 = vst [vmem:[#allocation2 + $0x114] sm:$0xf] %v1481
        %1546 = vst [vmem:[#allocation2 + $0x138] sm:$0xf] %v1482
        %1547 = vst [vmem:[#allocation2 + $0x15c] sm:$0xf] %v1483
        %1548 = vst [vmem:[#allocation2 + $0x180] sm:$0xf] %v1484
        %1549 = vst [vmem:[#allocation2 + $0x1a4] sm:$0xf] %v1485
        %1550 = vst [vmem:[#allocation2 + $0x1c8] sm:$0xf] %v1486
        %1551 = vst [vmem:[#allocation2 + $0x1ec] sm:$0xf] %v1487
        %1552 = vst [vmem:[#allocation2 + $0x210] sm:$0xf] %v1488
        %1553 = vst [vmem:[#allocation2 + $0x234] sm:$0xf] %v1489
        %1554 = vst [vmem:[#allocation2 + $0x258] sm:$0xf] %v1490
        %1555 = vst [vmem:[#allocation2 + $0x27c] sm:$0xf] %v1491
        %1556 = vst [vmem:[#allocation2 + $0x2a0] sm:$0xf] %v1492
        %1557 = vst [vmem:[#allocation2 + $0x2c4] sm:$0xf] %v1493
        %1558 = vst [vmem:[#allocation2 + $0x2e8] sm:$0xf] %v1494
        %1559 = vst [vmem:[#allocation2 + $0x30c] sm:$0xf] %v1495
        %1560 = vst [vmem:[#allocation2 + $0x330] sm:$0xf] %v1496
        %1561 = vst [vmem:[#allocation2 + $0x354] sm:$0xf] %v1497
        %1562 = vst [vmem:[#allocation2 + $0x378] sm:$0xf] %v1498
        %1563 = vst [vmem:[#allocation2 + $0x39c] sm:$0xf] %v1499
        %1564 = vst [vmem:[#allocation2 + $0x3c0] sm:$0xf] %v1500
        %1565 = vst [vmem:[#allocation2 + $0x3e4] sm:$0xf] %v1501
        %1566 = vst [vmem:[#allocation2 + $0x408] sm:$0xf] %v1502
        %1567 = vst [vmem:[#allocation2 + $0x42c] sm:$0xf] %v1503
        %1568 = vst [vmem:[#allocation2 + $0x450] sm:$0xf] %v1504
        %1569 = vst [vmem:[#allocation2 + $0x474] sm:$0xf] %v1505
        %v1570 = vld [vmem:[%s1377 + $0x1] sm:$0xff]
        %v1571 = vld [vmem:[%s1377 + $0x9] sm:$0xff]
        %v1572 = vld [vmem:[%s1377 + $0x19] sm:$0xff]
        %v1573 = vld [vmem:[%s1377 + $0x21] sm:$0xff]
        %v1574 = vld [vmem:[%s1377 + $0x31] sm:$0xff]
        %v1575 = vld [vmem:[%s1377 + $0x39] sm:$0xff]
        %v1576 = vld [vmem:[%s1377 + $0x49] sm:$0xff]
        %v1577 = vld [vmem:[%s1377 + $0x51] sm:$0xff]
        %v1578 = vld [vmem:[%s1377 + $0x61] sm:$0xff]
        %v1579 = vld [vmem:[%s1377 + $0x69] sm:$0xff]
        %v1580 = vld [vmem:[%s1377 + $0x79] sm:$0xff]
        %v1581 = vld [vmem:[%s1377 + $0x81] sm:$0xff]
        %v1582 = vld [vmem:[%s1377 + $0x91] sm:$0xff]
        %v1583 = vld [vmem:[%s1377 + $0x99] sm:$0xff]
        %v1584 = vld [vmem:[%s1377 + $0xa9] sm:$0xff]
        %v1585 = vld [vmem:[%s1377 + $0xb1] sm:$0xff]
        %v1586 = vld [vmem:[%s1377 + $0xc1] sm:$0xff]
        %v1587 = vld [vmem:[%s1377 + $0xc9] sm:$0xff]
        %v1588 = vld [vmem:[%s1377 + $0xd9] sm:$0xff]
        %v1589 = vld [vmem:[%s1377 + $0xe1] sm:$0xff]
        %v1590 = vld [vmem:[%s1377 + $0xf1] sm:$0xff]
        %v1591 = vld [vmem:[%s1377 + $0xf9] sm:$0xff]
        %v1592 = vld [vmem:[%s1377 + $0x109] sm:$0xff]
        %v1593 = vld [vmem:[%s1377 + $0x111] sm:$0xff]
        %v1594 = vld [vmem:[%s1377 + $0x121] sm:$0xff]
        %v1595 = vld [vmem:[%s1377 + $0x129] sm:$0xff]
        %v1596 = vld [vmem:[%s1377 + $0x139] sm:$0xff]
        %v1597 = vld [vmem:[%s1377 + $0x141] sm:$0xff]
        %v1598 = vld [vmem:[%s1377 + $0x151] sm:$0xff]
        %v1599 = vld [vmem:[%s1377 + $0x159] sm:$0xff]
        %v1600 = vld [vmem:[%s1377 + $0x169] sm:$0xff]
        %v1601 = vld [vmem:[%s1377 + $0x171] sm:$0xff]
        %v1602 = vpack.c.bf16 %v1571, %v1570
        %v1603 = vpack.c.bf16 %v1573, %v1572
        %v1604 = vpack.c.bf16 %v1575, %v1574
        %v1605 = vpack.c.bf16 %v1577, %v1576
        %v1606 = vpack.c.bf16 %v1579, %v1578
        %v1607 = vpack.c.bf16 %v1581, %v1580
        %v1608 = vpack.c.bf16 %v1583, %v1582
        %v1609 = vpack.c.bf16 %v1585, %v1584
        %v1610 = vpack.c.bf16 %v1587, %v1586
        %v1611 = vpack.c.bf16 %v1589, %v1588
        %v1612 = vpack.c.bf16 %v1591, %v1590
        %v1613 = vpack.c.bf16 %v1593, %v1592
        %v1614 = vpack.c.bf16 %v1595, %v1594
        %v1615 = vpack.c.bf16 %v1597, %v1596
        %v1616 = vpack.c.bf16 %v1599, %v1598
        %v1617 = vpack.c.bf16 %v1601, %v1600
        %v1634 = vunpack.c.l.b16 %v1602
        %v1635 = vunpack.c.h.b16 %v1602
        %v1636 = vunpack.c.l.b16 %v1603
        %v1637 = vunpack.c.h.b16 %v1603
        %v1638 = vunpack.c.l.b16 %v1604
        %v1639 = vunpack.c.h.b16 %v1604
        %v1640 = vunpack.c.l.b16 %v1605
        %v1641 = vunpack.c.h.b16 %v1605
        %v1642 = vunpack.c.l.b16 %v1606
        %v1643 = vunpack.c.h.b16 %v1606
        %v1644 = vunpack.c.l.b16 %v1607
        %v1645 = vunpack.c.h.b16 %v1607
        %v1646 = vunpack.c.l.b16 %v1608
        %v1647 = vunpack.c.h.b16 %v1608
        %v1648 = vunpack.c.l.b16 %v1609
        %v1649 = vunpack.c.h.b16 %v1609
        %v1650 = vunpack.c.l.b16 %v1610
        %v1651 = vunpack.c.h.b16 %v1610
        %v1652 = vunpack.c.l.b16 %v1611
        %v1653 = vunpack.c.h.b16 %v1611
        %v1654 = vunpack.c.l.b16 %v1612
        %v1655 = vunpack.c.h.b16 %v1612
        %v1656 = vunpack.c.l.b16 %v1613
        %v1657 = vunpack.c.h.b16 %v1613
        %v1658 = vunpack.c.l.b16 %v1614
        %v1659 = vunpack.c.h.b16 %v1614
        %v1660 = vunpack.c.l.b16 %v1615
        %v1661 = vunpack.c.h.b16 %v1615
        %v1662 = vunpack.c.l.b16 %v1616
        %v1663 = vunpack.c.h.b16 %v1616
        %v1664 = vunpack.c.l.b16 %v1617
        %v1665 = vunpack.c.h.b16 %v1617
        %v1666 = vpack.c.b16 %v1634, %v1634
        %v1667 = vpack.c.b16 %v1635, %v1635
        %v1668 = vpack.c.b16 %v1636, %v1636
        %v1669 = vpack.c.b16 %v1637, %v1637
        %v1670 = vpack.c.b16 %v1638, %v1638
        %v1671 = vpack.c.b16 %v1639, %v1639
        %v1672 = vpack.c.b16 %v1640, %v1640
        %v1673 = vpack.c.b16 %v1641, %v1641
        %v1674 = vpack.c.b16 %v1642, %v1642
        %v1675 = vpack.c.b16 %v1643, %v1643
        %v1676 = vpack.c.b16 %v1644, %v1644
        %v1677 = vpack.c.b16 %v1645, %v1645
        %v1678 = vpack.c.b16 %v1646, %v1646
        %v1679 = vpack.c.b16 %v1647, %v1647
        %v1680 = vpack.c.b16 %v1648, %v1648
        %v1681 = vpack.c.b16 %v1649, %v1649
        %v1682 = vpack.c.b16 %v1650, %v1650
        %v1683 = vpack.c.b16 %v1651, %v1651
        %v1684 = vpack.c.b16 %v1652, %v1652
        %v1685 = vpack.c.b16 %v1653, %v1653
        %v1686 = vpack.c.b16 %v1654, %v1654
        %v1687 = vpack.c.b16 %v1655, %v1655
        %v1688 = vpack.c.b16 %v1656, %v1656
        %v1689 = vpack.c.b16 %v1657, %v1657
        %v1690 = vpack.c.b16 %v1658, %v1658
        %v1691 = vpack.c.b16 %v1659, %v1659
        %v1692 = vpack.c.b16 %v1660, %v1660
        %v1693 = vpack.c.b16 %v1661, %v1661
        %v1694 = vpack.c.b16 %v1662, %v1662
        %v1695 = vpack.c.b16 %v1663, %v1663
        %v1696 = vpack.c.b16 %v1664, %v1664
        %v1697 = vpack.c.b16 %v1665, %v1665
        %1730 = vst [vmem:[#allocation2 + $0x1c] sm:$0xf] %v1666
        %1731 = vst [vmem:[#allocation2 + $0x40] sm:$0xf] %v1667
        %1732 = vst [vmem:[#allocation2 + $0x64] sm:$0xf] %v1668
        %1733 = vst [vmem:[#allocation2 + $0x88] sm:$0xf] %v1669
        %1734 = vst [vmem:[#allocation2 + $0xac] sm:$0xf] %v1670
        %1735 = vst [vmem:[#allocation2 + $0xd0] sm:$0xf] %v1671
        %1736 = vst [vmem:[#allocation2 + $0xf4] sm:$0xf] %v1672
        %1737 = vst [vmem:[#allocation2 + $0x118] sm:$0xf] %v1673
        %1738 = vst [vmem:[#allocation2 + $0x13c] sm:$0xf] %v1674
        %1739 = vst [vmem:[#allocation2 + $0x160] sm:$0xf] %v1675
        %1740 = vst [vmem:[#allocation2 + $0x184] sm:$0xf] %v1676
        %1741 = vst [vmem:[#allocation2 + $0x1a8] sm:$0xf] %v1677
        %1742 = vst [vmem:[#allocation2 + $0x1cc] sm:$0xf] %v1678
        %1743 = vst [vmem:[#allocation2 + $0x1f0] sm:$0xf] %v1679
        %1744 = vst [vmem:[#allocation2 + $0x214] sm:$0xf] %v1680
        %1745 = vst [vmem:[#allocation2 + $0x238] sm:$0xf] %v1681
        %1746 = vst [vmem:[#allocation2 + $0x25c] sm:$0xf] %v1682
        %1747 = vst [vmem:[#allocation2 + $0x280] sm:$0xf] %v1683
        %1748 = vst [vmem:[#allocation2 + $0x2a4] sm:$0xf] %v1684
        %1749 = vst [vmem:[#allocation2 + $0x2c8] sm:$0xf] %v1685
        %1750 = vst [vmem:[#allocation2 + $0x2ec] sm:$0xf] %v1686
        %1751 = vst [vmem:[#allocation2 + $0x310] sm:$0xf] %v1687
        %1752 = vst [vmem:[#allocation2 + $0x334] sm:$0xf] %v1688
        %1753 = vst [vmem:[#allocation2 + $0x358] sm:$0xf] %v1689
        %1754 = vst [vmem:[#allocation2 + $0x37c] sm:$0xf] %v1690
        %1755 = vst [vmem:[#allocation2 + $0x3a0] sm:$0xf] %v1691
        %1756 = vst [vmem:[#allocation2 + $0x3c4] sm:$0xf] %v1692
        %1757 = vst [vmem:[#allocation2 + $0x3e8] sm:$0xf] %v1693
        %1758 = vst [vmem:[#allocation2 + $0x40c] sm:$0xf] %v1694
        %1759 = vst [vmem:[#allocation2 + $0x430] sm:$0xf] %v1695
        %1760 = vst [vmem:[#allocation2 + $0x454] sm:$0xf] %v1696
        %1761 = vst [vmem:[#allocation2 + $0x478] sm:$0xf] %v1697
        %v1762 = vld [vmem:[%s1377 + $0x2] sm:$0xff]
        %v1763 = vld [vmem:[%s1377 + $0xa] sm:$0xff]
        %v1764 = vld [vmem:[%s1377 + $0x1a] sm:$0xff]
        %v1765 = vld [vmem:[%s1377 + $0x22] sm:$0xff]
        %v1766 = vld [vmem:[%s1377 + $0x32] sm:$0xff]
        %v1767 = vld [vmem:[%s1377 + $0x3a] sm:$0xff]
        %v1768 = vld [vmem:[%s1377 + $0x4a] sm:$0xff]
        %v1769 = vld [vmem:[%s1377 + $0x52] sm:$0xff]
        %v1770 = vld [vmem:[%s1377 + $0x62] sm:$0xff]
        %v1771 = vld [vmem:[%s1377 + $0x6a] sm:$0xff]
        %v1772 = vld [vmem:[%s1377 + $0x7a] sm:$0xff]
        %v1773 = vld [vmem:[%s1377 + $0x82] sm:$0xff]
        %v1774 = vld [vmem:[%s1377 + $0x92] sm:$0xff]
        %v1775 = vld [vmem:[%s1377 + $0x9a] sm:$0xff]
        %v1776 = vld [vmem:[%s1377 + $0xaa] sm:$0xff]
        %v1777 = vld [vmem:[%s1377 + $0xb2] sm:$0xff]
        %v1778 = vld [vmem:[%s1377 + $0xc2] sm:$0xff]
        %v1779 = vld [vmem:[%s1377 + $0xca] sm:$0xff]
        %v1780 = vld [vmem:[%s1377 + $0xda] sm:$0xff]
        %v1781 = vld [vmem:[%s1377 + $0xe2] sm:$0xff]
        %v1782 = vld [vmem:[%s1377 + $0xf2] sm:$0xff]
        %v1783 = vld [vmem:[%s1377 + $0xfa] sm:$0xff]
        %v1784 = vld [vmem:[%s1377 + $0x10a] sm:$0xff]
        %v1785 = vld [vmem:[%s1377 + $0x112] sm:$0xff]
        %v1786 = vld [vmem:[%s1377 + $0x122] sm:$0xff]
        %v1787 = vld [vmem:[%s1377 + $0x12a] sm:$0xff]
        %v1788 = vld [vmem:[%s1377 + $0x13a] sm:$0xff]
        %v1789 = vld [vmem:[%s1377 + $0x142] sm:$0xff]
        %v1790 = vld [vmem:[%s1377 + $0x152] sm:$0xff]
        %v1791 = vld [vmem:[%s1377 + $0x15a] sm:$0xff]
        %v1792 = vld [vmem:[%s1377 + $0x16a] sm:$0xff]
        %v1793 = vld [vmem:[%s1377 + $0x172] sm:$0xff]
        %v1794 = vpack.c.bf16 %v1763, %v1762
        %v1795 = vpack.c.bf16 %v1765, %v1764
        %v1796 = vpack.c.bf16 %v1767, %v1766
        %v1797 = vpack.c.bf16 %v1769, %v1768
        %v1798 = vpack.c.bf16 %v1771, %v1770
        %v1799 = vpack.c.bf16 %v1773, %v1772
        %v1800 = vpack.c.bf16 %v1775, %v1774
        %v1801 = vpack.c.bf16 %v1777, %v1776
        %v1802 = vpack.c.bf16 %v1779, %v1778
        %v1803 = vpack.c.bf16 %v1781, %v1780
        %v1804 = vpack.c.bf16 %v1783, %v1782
        %v1805 = vpack.c.bf16 %v1785, %v1784
        %v1806 = vpack.c.bf16 %v1787, %v1786
        %v1807 = vpack.c.bf16 %v1789, %v1788
        %v1808 = vpack.c.bf16 %v1791, %v1790
        %v1809 = vpack.c.bf16 %v1793, %v1792
        %v1826 = vunpack.c.l.b16 %v1794
        %v1827 = vunpack.c.h.b16 %v1794
        %v1828 = vunpack.c.l.b16 %v1795
        %v1829 = vunpack.c.h.b16 %v1795
        %v1830 = vunpack.c.l.b16 %v1796
        %v1831 = vunpack.c.h.b16 %v1796
        %v1832 = vunpack.c.l.b16 %v1797
        %v1833 = vunpack.c.h.b16 %v1797
        %v1834 = vunpack.c.l.b16 %v1798
        %v1835 = vunpack.c.h.b16 %v1798
        %v1836 = vunpack.c.l.b16 %v1799
        %v1837 = vunpack.c.h.b16 %v1799
        %v1838 = vunpack.c.l.b16 %v1800
        %v1839 = vunpack.c.h.b16 %v1800
        %v1840 = vunpack.c.l.b16 %v1801
        %v1841 = vunpack.c.h.b16 %v1801
        %v1842 = vunpack.c.l.b16 %v1802
        %v1843 = vunpack.c.h.b16 %v1802
        %v1844 = vunpack.c.l.b16 %v1803
        %v1845 = vunpack.c.h.b16 %v1803
        %v1846 = vunpack.c.l.b16 %v1804
        %v1847 = vunpack.c.h.b16 %v1804
        %v1848 = vunpack.c.l.b16 %v1805
        %v1849 = vunpack.c.h.b16 %v1805
        %v1850 = vunpack.c.l.b16 %v1806
        %v1851 = vunpack.c.h.b16 %v1806
        %v1852 = vunpack.c.l.b16 %v1807
        %v1853 = vunpack.c.h.b16 %v1807
        %v1854 = vunpack.c.l.b16 %v1808
        %v1855 = vunpack.c.h.b16 %v1808
        %v1856 = vunpack.c.l.b16 %v1809
        %v1857 = vunpack.c.h.b16 %v1809
        %v1858 = vpack.c.b16 %v1826, %v1826
        %v1859 = vpack.c.b16 %v1827, %v1827
        %v1860 = vpack.c.b16 %v1828, %v1828
        %v1861 = vpack.c.b16 %v1829, %v1829
        %v1862 = vpack.c.b16 %v1830, %v1830
        %v1863 = vpack.c.b16 %v1831, %v1831
        %v1864 = vpack.c.b16 %v1832, %v1832
        %v1865 = vpack.c.b16 %v1833, %v1833
        %v1866 = vpack.c.b16 %v1834, %v1834
        %v1867 = vpack.c.b16 %v1835, %v1835
        %v1868 = vpack.c.b16 %v1836, %v1836
        %v1869 = vpack.c.b16 %v1837, %v1837
        %v1870 = vpack.c.b16 %v1838, %v1838
        %v1871 = vpack.c.b16 %v1839, %v1839
        %v1872 = vpack.c.b16 %v1840, %v1840
        %v1873 = vpack.c.b16 %v1841, %v1841
        %v1874 = vpack.c.b16 %v1842, %v1842
        %v1875 = vpack.c.b16 %v1843, %v1843
        %v1876 = vpack.c.b16 %v1844, %v1844
        %v1877 = vpack.c.b16 %v1845, %v1845
        %v1878 = vpack.c.b16 %v1846, %v1846
        %v1879 = vpack.c.b16 %v1847, %v1847
        %v1880 = vpack.c.b16 %v1848, %v1848
        %v1881 = vpack.c.b16 %v1849, %v1849
        %v1882 = vpack.c.b16 %v1850, %v1850
        %v1883 = vpack.c.b16 %v1851, %v1851
        %v1884 = vpack.c.b16 %v1852, %v1852
        %v1885 = vpack.c.b16 %v1853, %v1853
        %v1886 = vpack.c.b16 %v1854, %v1854
        %v1887 = vpack.c.b16 %v1855, %v1855
        %v1888 = vpack.c.b16 %v1856, %v1856
        %v1889 = vpack.c.b16 %v1857, %v1857
        %1922 = vst [vmem:[#allocation2 + $0x20] sm:$0xf] %v1858
        %1923 = vst [vmem:[#allocation2 + $0x44] sm:$0xf] %v1859
        %1924 = vst [vmem:[#allocation2 + $0x68] sm:$0xf] %v1860
        %1925 = vst [vmem:[#allocation2 + $0x8c] sm:$0xf] %v1861
        %1926 = vst [vmem:[#allocation2 + $0xb0] sm:$0xf] %v1862
        %1927 = vst [vmem:[#allocation2 + $0xd4] sm:$0xf] %v1863
        %1928 = vst [vmem:[#allocation2 + $0xf8] sm:$0xf] %v1864
        %1929 = vst [vmem:[#allocation2 + $0x11c] sm:$0xf] %v1865
        %1930 = vst [vmem:[#allocation2 + $0x140] sm:$0xf] %v1866
        %1931 = vst [vmem:[#allocation2 + $0x164] sm:$0xf] %v1867
        %1932 = vst [vmem:[#allocation2 + $0x188] sm:$0xf] %v1868
        %1933 = vst [vmem:[#allocation2 + $0x1ac] sm:$0xf] %v1869
        %1934 = vst [vmem:[#allocation2 + $0x1d0] sm:$0xf] %v1870
        %1935 = vst [vmem:[#allocation2 + $0x1f4] sm:$0xf] %v1871
        %1936 = vst [vmem:[#allocation2 + $0x218] sm:$0xf] %v1872
        %1937 = vst [vmem:[#allocation2 + $0x23c] sm:$0xf] %v1873
        %1938 = vst [vmem:[#allocation2 + $0x260] sm:$0xf] %v1874
        %1939 = vst [vmem:[#allocation2 + $0x284] sm:$0xf] %v1875
        %1940 = vst [vmem:[#allocation2 + $0x2a8] sm:$0xf] %v1876
        %1941 = vst [vmem:[#allocation2 + $0x2cc] sm:$0xf] %v1877
        %1942 = vst [vmem:[#allocation2 + $0x2f0] sm:$0xf] %v1878
        %1943 = vst [vmem:[#allocation2 + $0x314] sm:$0xf] %v1879
        %1944 = vst [vmem:[#allocation2 + $0x338] sm:$0xf] %v1880
        %1945 = vst [vmem:[#allocation2 + $0x35c] sm:$0xf] %v1881
        %1946 = vst [vmem:[#allocation2 + $0x380] sm:$0xf] %v1882
        %1947 = vst [vmem:[#allocation2 + $0x3a4] sm:$0xf] %v1883
        %1948 = vst [vmem:[#allocation2 + $0x3c8] sm:$0xf] %v1884
        %1949 = vst [vmem:[#allocation2 + $0x3ec] sm:$0xf] %v1885
        %1950 = vst [vmem:[#allocation2 + $0x410] sm:$0xf] %v1886
        %1951 = vst [vmem:[#allocation2 + $0x434] sm:$0xf] %v1887
        %1952 = vst [vmem:[#allocation2 + $0x458] sm:$0xf] %v1888
        %1953 = vst [vmem:[#allocation2 + $0x47c] sm:$0xf] %v1889
        %v1954 = vld [vmem:[#allocation2] sm:$0xff]
        %v1955 = vld [vmem:[#allocation2 + $0x8] sm:$0xff]
        %v1956 = vld [vmem:[#allocation2 + $0x10] sm:$0xff]
        %v1957 = vld [vmem:[#allocation2 + $0x18] sm:$0xff]
        %v1958 = vld [vmem:[#allocation2 + $0x20] sm:$0xf]
        %v1959 = vld [vmem:[#allocation2 + $0x24] sm:$0xff]
        %v1960 = vld [vmem:[#allocation2 + $0x2c] sm:$0xff]
        %v1961 = vld [vmem:[#allocation2 + $0x34] sm:$0xff]
        %v1962 = vld [vmem:[#allocation2 + $0x3c] sm:$0xff]
        %v1963 = vld [vmem:[#allocation2 + $0x44] sm:$0xf]
        %v1964 = vld [vmem:[#allocation2 + $0x48] sm:$0xff]
        %v1965 = vld [vmem:[#allocation2 + $0x50] sm:$0xff]
        %v1966 = vld [vmem:[#allocation2 + $0x58] sm:$0xff]
        %v1967 = vld [vmem:[#allocation2 + $0x60] sm:$0xff]
        %v1968 = vld [vmem:[#allocation2 + $0x68] sm:$0xf]
        %v1969 = vld [vmem:[#allocation2 + $0x6c] sm:$0xff]
        %v1970 = vld [vmem:[#allocation2 + $0x74] sm:$0xff]
        %v1971 = vld [vmem:[#allocation2 + $0x7c] sm:$0xff]
        %v1972 = vld [vmem:[#allocation2 + $0x84] sm:$0xff]
        %v1973 = vld [vmem:[#allocation2 + $0x8c] sm:$0xf]
        %v1974 = vld [vmem:[#allocation2 + $0x90] sm:$0xff]
        %v1975 = vld [vmem:[#allocation2 + $0x98] sm:$0xff]
        %v1976 = vld [vmem:[#allocation2 + $0xa0] sm:$0xff]
        %v1977 = vld [vmem:[#allocation2 + $0xa8] sm:$0xff]
        %v1978 = vld [vmem:[#allocation2 + $0xb0] sm:$0xf]
        %v1979 = vld [vmem:[#allocation2 + $0xb4] sm:$0xff]
        %v1980 = vld [vmem:[#allocation2 + $0xbc] sm:$0xff]
        %v1981 = vld [vmem:[#allocation2 + $0xc4] sm:$0xff]
        %v1982 = vld [vmem:[#allocation2 + $0xcc] sm:$0xff]
        %v1983 = vld [vmem:[#allocation2 + $0xd4] sm:$0xf]
        %v1984 = vld [vmem:[#allocation2 + $0xd8] sm:$0xff]
        %v1985 = vld [vmem:[#allocation2 + $0xe0] sm:$0xff]
        %v1986 = vld [vmem:[#allocation2 + $0xe8] sm:$0xff]
        %v1987 = vld [vmem:[#allocation2 + $0xf0] sm:$0xff]
        %v1988 = vld [vmem:[#allocation2 + $0xf8] sm:$0xf]
        %v1989 = vld [vmem:[#allocation2 + $0xfc] sm:$0xff]
        %v1990 = vld [vmem:[#allocation2 + $0x104] sm:$0xff]
        %v1991 = vld [vmem:[#allocation2 + $0x10c] sm:$0xff]
        %v1992 = vld [vmem:[#allocation2 + $0x114] sm:$0xff]
        %v1993 = vld [vmem:[#allocation2 + $0x11c] sm:$0xf]
        %v1994 = vld [vmem:[#allocation2 + $0x120] sm:$0xff]
        %v1995 = vld [vmem:[#allocation2 + $0x128] sm:$0xff]
        %v1996 = vld [vmem:[#allocation2 + $0x130] sm:$0xff]
        %v1997 = vld [vmem:[#allocation2 + $0x138] sm:$0xff]
        %v1998 = vld [vmem:[#allocation2 + $0x140] sm:$0xf]
        %v1999 = vld [vmem:[#allocation2 + $0x144] sm:$0xff]
        %v2000 = vld [vmem:[#allocation2 + $0x14c] sm:$0xff]
        %v2001 = vld [vmem:[#allocation2 + $0x154] sm:$0xff]
        %v2002 = vld [vmem:[#allocation2 + $0x15c] sm:$0xff]
        %v2003 = vld [vmem:[#allocation2 + $0x164] sm:$0xf]
        %v2004 = vld [vmem:[#allocation2 + $0x168] sm:$0xff]
        %v2005 = vld [vmem:[#allocation2 + $0x170] sm:$0xff]
        %v2006 = vld [vmem:[#allocation2 + $0x178] sm:$0xff]
        %v2007 = vld [vmem:[#allocation2 + $0x180] sm:$0xff]
        %v2008 = vld [vmem:[#allocation2 + $0x188] sm:$0xf]
        %v2009 = vld [vmem:[#allocation2 + $0x18c] sm:$0xff]
        %v2010 = vld [vmem:[#allocation2 + $0x194] sm:$0xff]
        %v2011 = vld [vmem:[#allocation2 + $0x19c] sm:$0xff]
        %v2012 = vld [vmem:[#allocation2 + $0x1a4] sm:$0xff]
        %v2013 = vld [vmem:[#allocation2 + $0x1ac] sm:$0xf]
        %v2014 = vld [vmem:[#allocation2 + $0x1b0] sm:$0xff]
        %v2015 = vld [vmem:[#allocation2 + $0x1b8] sm:$0xff]
        %v2016 = vld [vmem:[#allocation2 + $0x1c0] sm:$0xff]
        %v2017 = vld [vmem:[#allocation2 + $0x1c8] sm:$0xff]
        %v2018 = vld [vmem:[#allocation2 + $0x1d0] sm:$0xf]
        %v2019 = vld [vmem:[#allocation2 + $0x1d4] sm:$0xff]
        %v2020 = vld [vmem:[#allocation2 + $0x1dc] sm:$0xff]
        %v2021 = vld [vmem:[#allocation2 + $0x1e4] sm:$0xff]
        %v2022 = vld [vmem:[#allocation2 + $0x1ec] sm:$0xff]
        %v2023 = vld [vmem:[#allocation2 + $0x1f4] sm:$0xf]
        %v2024 = vld [vmem:[#allocation2 + $0x1f8] sm:$0xff]
        %v2025 = vld [vmem:[#allocation2 + $0x200] sm:$0xff]
        %v2026 = vld [vmem:[#allocation2 + $0x208] sm:$0xff]
        %v2027 = vld [vmem:[#allocation2 + $0x210] sm:$0xff]
        %v2028 = vld [vmem:[#allocation2 + $0x218] sm:$0xf]
        %v2029 = vld [vmem:[#allocation2 + $0x21c] sm:$0xff]
        %v2030 = vld [vmem:[#allocation2 + $0x224] sm:$0xff]
        %v2031 = vld [vmem:[#allocation2 + $0x22c] sm:$0xff]
        %v2032 = vld [vmem:[#allocation2 + $0x234] sm:$0xff]
        %v2033 = vld [vmem:[#allocation2 + $0x23c] sm:$0xf]
        %v2034 = vld [vmem:[#allocation2 + $0x240] sm:$0xff]
        %v2035 = vld [vmem:[#allocation2 + $0x248] sm:$0xff]
        %v2036 = vld [vmem:[#allocation2 + $0x250] sm:$0xff]
        %v2037 = vld [vmem:[#allocation2 + $0x258] sm:$0xff]
        %v2038 = vld [vmem:[#allocation2 + $0x260] sm:$0xf]
        %v2039 = vld [vmem:[#allocation2 + $0x264] sm:$0xff]
        %v2040 = vld [vmem:[#allocation2 + $0x26c] sm:$0xff]
        %v2041 = vld [vmem:[#allocation2 + $0x274] sm:$0xff]
        %v2042 = vld [vmem:[#allocation2 + $0x27c] sm:$0xff]
        %v2043 = vld [vmem:[#allocation2 + $0x284] sm:$0xf]
        %v2044 = vld [vmem:[#allocation2 + $0x288] sm:$0xff]
        %v2045 = vld [vmem:[#allocation2 + $0x290] sm:$0xff]
        %v2046 = vld [vmem:[#allocation2 + $0x298] sm:$0xff]
        %v2047 = vld [vmem:[#allocation2 + $0x2a0] sm:$0xff]
        %v2048 = vld [vmem:[#allocation2 + $0x2a8] sm:$0xf]
        %v2049 = vld [vmem:[#allocation2 + $0x2ac] sm:$0xff]
        %v2050 = vld [vmem:[#allocation2 + $0x2b4] sm:$0xff]
        %v2051 = vld [vmem:[#allocation2 + $0x2bc] sm:$0xff]
        %v2052 = vld [vmem:[#allocation2 + $0x2c4] sm:$0xff]
        %v2053 = vld [vmem:[#allocation2 + $0x2cc] sm:$0xf]
        %v2054 = vld [vmem:[#allocation2 + $0x2d0] sm:$0xff]
        %v2055 = vld [vmem:[#allocation2 + $0x2d8] sm:$0xff]
        %v2056 = vld [vmem:[#allocation2 + $0x2e0] sm:$0xff]
        %v2057 = vld [vmem:[#allocation2 + $0x2e8] sm:$0xff]
        %v2058 = vld [vmem:[#allocation2 + $0x2f0] sm:$0xf]
        %v2059 = vld [vmem:[#allocation2 + $0x2f4] sm:$0xff]
        %v2060 = vld [vmem:[#allocation2 + $0x2fc] sm:$0xff]
        %v2061 = vld [vmem:[#allocation2 + $0x304] sm:$0xff]
        %v2062 = vld [vmem:[#allocation2 + $0x30c] sm:$0xff]
        %v2063 = vld [vmem:[#allocation2 + $0x314] sm:$0xf]
        %v2064 = vld [vmem:[#allocation2 + $0x318] sm:$0xff]
        %v2065 = vld [vmem:[#allocation2 + $0x320] sm:$0xff]
        %v2066 = vld [vmem:[#allocation2 + $0x328] sm:$0xff]
        %v2067 = vld [vmem:[#allocation2 + $0x330] sm:$0xff]
        %v2068 = vld [vmem:[#allocation2 + $0x338] sm:$0xf]
        %v2069 = vld [vmem:[#allocation2 + $0x33c] sm:$0xff]
        %v2070 = vld [vmem:[#allocation2 + $0x344] sm:$0xff]
        %v2071 = vld [vmem:[#allocation2 + $0x34c] sm:$0xff]
        %v2072 = vld [vmem:[#allocation2 + $0x354] sm:$0xff]
        %v2073 = vld [vmem:[#allocation2 + $0x35c] sm:$0xf]
        %v2074 = vld [vmem:[#allocation2 + $0x360] sm:$0xff]
        %v2075 = vld [vmem:[#allocation2 + $0x368] sm:$0xff]
        %v2076 = vld [vmem:[#allocation2 + $0x370] sm:$0xff]
        %v2077 = vld [vmem:[#allocation2 + $0x378] sm:$0xff]
        %v2078 = vld [vmem:[#allocation2 + $0x380] sm:$0xf]
        %v2079 = vld [vmem:[#allocation2 + $0x384] sm:$0xff]
        %v2080 = vld [vmem:[#allocation2 + $0x38c] sm:$0xff]
        %v2081 = vld [vmem:[#allocation2 + $0x394] sm:$0xff]
        %v2082 = vld [vmem:[#allocation2 + $0x39c] sm:$0xff]
        %v2083 = vld [vmem:[#allocation2 + $0x3a4] sm:$0xf]
        %v2084 = vld [vmem:[#allocation2 + $0x3a8] sm:$0xff]
        %v2085 = vld [vmem:[#allocation2 + $0x3b0] sm:$0xff]
        %v2086 = vld [vmem:[#allocation2 + $0x3b8] sm:$0xff]
        %v2087 = vld [vmem:[#allocation2 + $0x3c0] sm:$0xff]
        %v2088 = vld [vmem:[#allocation2 + $0x3c8] sm:$0xf]
        %v2089 = vld [vmem:[#allocation2 + $0x3cc] sm:$0xff]
        %v2090 = vld [vmem:[#allocation2 + $0x3d4] sm:$0xff]
        %v2091 = vld [vmem:[#allocation2 + $0x3dc] sm:$0xff]
        %v2092 = vld [vmem:[#allocation2 + $0x3e4] sm:$0xff]
        %v2093 = vld [vmem:[#allocation2 + $0x3ec] sm:$0xf]
        %v2094 = vld [vmem:[#allocation2 + $0x3f0] sm:$0xff]
        %v2095 = vld [vmem:[#allocation2 + $0x3f8] sm:$0xff]
        %v2096 = vld [vmem:[#allocation2 + $0x400] sm:$0xff]
        %v2097 = vld [vmem:[#allocation2 + $0x408] sm:$0xff]
        %v2098 = vld [vmem:[#allocation2 + $0x410] sm:$0xf]
        %v2099 = vld [vmem:[#allocation2 + $0x414] sm:$0xff]
        %v2100 = vld [vmem:[#allocation2 + $0x41c] sm:$0xff]
        %v2101 = vld [vmem:[#allocation2 + $0x424] sm:$0xff]
        %v2102 = vld [vmem:[#allocation2 + $0x42c] sm:$0xff]
        %v2103 = vld [vmem:[#allocation2 + $0x434] sm:$0xf]
        %v2104 = vld [vmem:[#allocation2 + $0x438] sm:$0xff]
        %v2105 = vld [vmem:[#allocation2 + $0x440] sm:$0xff]
        %v2106 = vld [vmem:[#allocation2 + $0x448] sm:$0xff]
        %v2107 = vld [vmem:[#allocation2 + $0x450] sm:$0xff]
        %v2108 = vld [vmem:[#allocation2 + $0x458] sm:$0xf]
        %v2109 = vld [vmem:[#allocation2 + $0x45c] sm:$0xff]
        %v2110 = vld [vmem:[#allocation2 + $0x464] sm:$0xff]
        %v2111 = vld [vmem:[#allocation2 + $0x46c] sm:$0xff]
        %v2112 = vld [vmem:[#allocation2 + $0x474] sm:$0xff]
        %v2113 = vld [vmem:[#allocation2 + $0x47c] sm:$0xf]
        %v2114 = vld [vmem:[%s1] sm:$0xf]
        %v2115 = vld [vmem:[%s1 + $0x4] sm:$0xf]
        %v2116 = vld [vmem:[%s1 + $0x8] sm:$0xf]
        %v2117 = vld [vmem:[%s1 + $0xc] sm:$0xf]
        %v2118 = vld [vmem:[%s1 + $0x10] sm:$0xf]
        %v2119 = vld [vmem:[%s1 + $0x14] sm:$0xf]
        %v2120 = vld [vmem:[%s1 + $0x18] sm:$0xf]
        %v2121 = vld [vmem:[%s1 + $0x1c] sm:$0xf]
        %v2122 = vld [vmem:[%s1 + $0x20] sm:$0xf]
        %v2123 = vld [vmem:[%s1 + $0x24] sm:$0xf]
        %v2124 = vld [vmem:[%s1 + $0x28] sm:$0xf]
        %v2125 = vld [vmem:[%s1 + $0x2c] sm:$0xf]
        %v2126 = vld [vmem:[%s1 + $0x30] sm:$0xf]
        %v2127 = vld [vmem:[%s1 + $0x34] sm:$0xf]
        %v2128 = vld [vmem:[%s1 + $0x38] sm:$0xf]
        %v2129 = vld [vmem:[%s1 + $0x3c] sm:$0xf]
        %v2130 = vld [vmem:[%s1 + $0x40] sm:$0xf]
        %v2131 = vld [vmem:[%s1 + $0x44] sm:$0xf]
        %v2132 = vld [vmem:[%s1 + $0x48] sm:$0xf]
        %v2133 = vld [vmem:[%s1 + $0x4c] sm:$0xf]
        %v2134 = vld [vmem:[%s1 + $0x50] sm:$0xf]
        %v2135 = vld [vmem:[%s1 + $0x54] sm:$0xf]
        %v2136 = vld [vmem:[%s1 + $0x58] sm:$0xf]
        %v2137 = vld [vmem:[%s1 + $0x5c] sm:$0xf]
        %v2138 = vld [vmem:[%s1 + $0x60] sm:$0xf]
        %v2139 = vld [vmem:[%s1 + $0x64] sm:$0xf]
        %v2140 = vld [vmem:[%s1 + $0x68] sm:$0xf]
        %v2141 = vld [vmem:[%s1 + $0x6c] sm:$0xf]
        %v2142 = vld [vmem:[%s1 + $0x70] sm:$0xf]
        %v2143 = vld [vmem:[%s1 + $0x74] sm:$0xf]
        %v2144 = vld [vmem:[%s1 + $0x78] sm:$0xf]
        %v2145 = vld [vmem:[%s1 + $0x7c] sm:$0xf]
        %v2146 = vld [vmem:[%s1 + $0x80] sm:$0xf]
        %v2147 = vld [vmem:[%s1 + $0x84] sm:$0xf]
        %v2148 = vld [vmem:[%s1 + $0x88] sm:$0xf]
        %v2149 = vld [vmem:[%s1 + $0x8c] sm:$0xf]
        %v2150 = vld [vmem:[%s1 + $0x90] sm:$0xf]
        %v2151 = vld [vmem:[%s1 + $0x94] sm:$0xf]
        %v2152 = vld [vmem:[%s1 + $0x98] sm:$0xf]
        %v2153 = vld [vmem:[%s1 + $0x9c] sm:$0xf]
        %v2154 = vld [vmem:[%s1 + $0xa0] sm:$0xf]
        %v2155 = vld [vmem:[%s1 + $0xa4] sm:$0xf]
        %v2156 = vld [vmem:[%s1 + $0xa8] sm:$0xf]
        %v2157 = vld [vmem:[%s1 + $0xac] sm:$0xf]
        %v2158 = vld [vmem:[%s1 + $0xb0] sm:$0xf]
        %v2159 = vld [vmem:[%s1 + $0xb4] sm:$0xf]
        %v2160 = vld [vmem:[%s1 + $0xb8] sm:$0xf]
        %v2161 = vld [vmem:[%s1 + $0xbc] sm:$0xf]
        %v2162 = vld [vmem:[%s1 + $0xc0] sm:$0xf]
        %v2163 = vld [vmem:[%s1 + $0xc4] sm:$0xf]
        %v2164 = vld [vmem:[%s1 + $0xc8] sm:$0xf]
        %v2165 = vld [vmem:[%s1 + $0xcc] sm:$0xf]
        %v2166 = vld [vmem:[%s1 + $0xd0] sm:$0xf]
        %v2167 = vld [vmem:[%s1 + $0xd4] sm:$0xf]
        %v2168 = vld [vmem:[%s1 + $0xd8] sm:$0xf]
        %v2169 = vld [vmem:[%s1 + $0xdc] sm:$0xf]
        %v2170 = vld [vmem:[%s1 + $0xe0] sm:$0xf]
        %v2171 = vld [vmem:[%s1 + $0xe4] sm:$0xf]
        %v2172 = vld [vmem:[%s1 + $0xe8] sm:$0xf]
        %v2173 = vld [vmem:[%s1 + $0xec] sm:$0xf]
        %v2174 = vld [vmem:[%s1 + $0xf0] sm:$0xf]
        %v2175 = vld [vmem:[%s1 + $0xf4] sm:$0xf]
        %v2176 = vld [vmem:[%s1 + $0xf8] sm:$0xf]
        %v2177 = vld [vmem:[%s1 + $0xfc] sm:$0xf]
        %v2178 = vld [vmem:[%s1 + $0x100] sm:$0xf]
        %v2179 = vld [vmem:[%s1 + $0x104] sm:$0xf]
        %v2180 = vld [vmem:[%s1 + $0x108] sm:$0xf]
        %v2181 = vld [vmem:[%s1 + $0x10c] sm:$0xf]
        %v2182 = vld [vmem:[%s1 + $0x110] sm:$0xf]
        %v2183 = vld [vmem:[%s1 + $0x114] sm:$0xf]
        %v2184 = vld [vmem:[%s1 + $0x118] sm:$0xf]
        %v2185 = vld [vmem:[%s1 + $0x11c] sm:$0xf]
        %v2186 = vld [vmem:[%s1 + $0x120] sm:$0xf]
        %v2187 = vld [vmem:[%s1 + $0x124] sm:$0xf]
        %v2188 = vld [vmem:[%s1 + $0x128] sm:$0xf]
        %v2189 = vld [vmem:[%s1 + $0x12c] sm:$0xf]
        %v2190 = vld [vmem:[%s1 + $0x130] sm:$0xf]
        %v2191 = vld [vmem:[%s1 + $0x134] sm:$0xf]
        %v2192 = vld [vmem:[%s1 + $0x138] sm:$0xf]
        %v2193 = vld [vmem:[%s1 + $0x13c] sm:$0xf]
        %v2194 = vld [vmem:[%s1 + $0x140] sm:$0xf]
        %v2195 = vld [vmem:[%s1 + $0x144] sm:$0xf]
        %v2196 = vld [vmem:[%s1 + $0x148] sm:$0xf]
        %v2197 = vld [vmem:[%s1 + $0x14c] sm:$0xf]
        %v2198 = vld [vmem:[%s1 + $0x150] sm:$0xf]
        %v2199 = vld [vmem:[%s1 + $0x154] sm:$0xf]
        %v2200 = vld [vmem:[%s1 + $0x158] sm:$0xf]
        %v2201 = vld [vmem:[%s1 + $0x15c] sm:$0xf]
        %v2202 = vld [vmem:[%s1 + $0x160] sm:$0xf]
        %v2203 = vld [vmem:[%s1 + $0x164] sm:$0xf]
        %v2204 = vld [vmem:[%s1 + $0x168] sm:$0xf]
        %v2205 = vld [vmem:[%s1 + $0x16c] sm:$0xf]
        %v2206 = vld [vmem:[%s1 + $0x170] sm:$0xf]
        %v2207 = vld [vmem:[%s1 + $0x174] sm:$0xf]
        %v2208 = vld [vmem:[%s1 + $0x178] sm:$0xf]
        %v2209 = vld [vmem:[%s1 + $0x17c] sm:$0xf]
        %v2210 = vld [vmem:[%s1 + $0x180] sm:$0xf]
        %v2211 = vld [vmem:[%s1 + $0x184] sm:$0xf]
        %v2212 = vld [vmem:[%s1 + $0x188] sm:$0xf]
        %v2213 = vld [vmem:[%s1 + $0x18c] sm:$0xf]
        %v2214 = vld [vmem:[%s1 + $0x190] sm:$0xf]
        %v2215 = vld [vmem:[%s1 + $0x194] sm:$0xf]
        %v2216 = vld [vmem:[%s1 + $0x198] sm:$0xf]
        %v2217 = vld [vmem:[%s1 + $0x19c] sm:$0xf]
        %v2218 = vld [vmem:[%s1 + $0x1a0] sm:$0xf]
        %v2219 = vld [vmem:[%s1 + $0x1a4] sm:$0xf]
        %v2220 = vld [vmem:[%s1 + $0x1a8] sm:$0xf]
        %v2221 = vld [vmem:[%s1 + $0x1ac] sm:$0xf]
        %v2222 = vld [vmem:[%s1 + $0x1b0] sm:$0xf]
        %v2223 = vld [vmem:[%s1 + $0x1b4] sm:$0xf]
        %v2224 = vld [vmem:[%s1 + $0x1b8] sm:$0xf]
        %v2225 = vld [vmem:[%s1 + $0x1bc] sm:$0xf]
        %v2226 = vld [vmem:[%s1 + $0x1c0] sm:$0xf]
        %v2227 = vld [vmem:[%s1 + $0x1c4] sm:$0xf]
        %v2228 = vld [vmem:[%s1 + $0x1c8] sm:$0xf]
        %v2229 = vld [vmem:[%s1 + $0x1cc] sm:$0xf]
        %v2230 = vld [vmem:[%s1 + $0x1d0] sm:$0xf]
        %v2231 = vld [vmem:[%s1 + $0x1d4] sm:$0xf]
        %v2232 = vld [vmem:[%s1 + $0x1d8] sm:$0xf]
        %v2233 = vld [vmem:[%s1 + $0x1dc] sm:$0xf]
        %v2234 = vld [vmem:[%s1 + $0x1e0] sm:$0xf]
        %v2235 = vld [vmem:[%s1 + $0x1e4] sm:$0xf]
        %v2236 = vld [vmem:[%s1 + $0x1e8] sm:$0xf]
        %v2237 = vld [vmem:[%s1 + $0x1ec] sm:$0xf]
        %v2238 = vld [vmem:[%s1 + $0x1f0] sm:$0xf]
        %v2239 = vld [vmem:[%s1 + $0x1f4] sm:$0xf]
        %v2240 = vld [vmem:[%s1 + $0x1f8] sm:$0xf]
        %v2241 = vld [vmem:[%s1 + $0x1fc] sm:$0xf]
        %v2242 = vld [vmem:[%s1 + $0x200] sm:$0xf]
        %v2243 = vld [vmem:[%s1 + $0x204] sm:$0xf]
        %v2244 = vld [vmem:[%s1 + $0x208] sm:$0xf]
        %v2245 = vld [vmem:[%s1 + $0x20c] sm:$0xf]
        %v2246 = vld [vmem:[%s1 + $0x210] sm:$0xf]
        %v2247 = vld [vmem:[%s1 + $0x214] sm:$0xf]
        %v2248 = vld [vmem:[%s1 + $0x218] sm:$0xf]
        %v2249 = vld [vmem:[%s1 + $0x21c] sm:$0xf]
        %v2250 = vld [vmem:[%s1 + $0x220] sm:$0xf]
        %v2251 = vld [vmem:[%s1 + $0x224] sm:$0xf]
        %v2252 = vld [vmem:[%s1 + $0x228] sm:$0xf]
        %v2253 = vld [vmem:[%s1 + $0x22c] sm:$0xf]
        %v2254 = vld [vmem:[%s1 + $0x230] sm:$0xf]
        %v2255 = vld [vmem:[%s1 + $0x234] sm:$0xf]
        %v2256 = vld [vmem:[%s1 + $0x238] sm:$0xf]
        %v2257 = vld [vmem:[%s1 + $0x23c] sm:$0xf]
        %v2258 = vld [vmem:[%s2] sm:$0x1]
        %v2260 = vlaneseq
        %v2261 = vshrl.u32 %v2260, 7
        %v2262 = vsub.s32 0, %v2261
        %v2263 = vrot.slane %v2258, %v2262
        %v2425 = vunpack.c.l.b16 %v1954
        %v2426 = vunpack.c.h.b16 %v1954
        %v2427 = vunpack.c.l.b16 %v1955
        %v2428 = vunpack.c.h.b16 %v1955
        %v2429 = vunpack.c.l.b16 %v1956
        %v2430 = vunpack.c.h.b16 %v1956
        %v2431 = vunpack.c.l.b16 %v1957
        %v2432 = vunpack.c.h.b16 %v1957
        %v2433 = vunpack.c.l.b16 %v1958
        %v2434 = vunpack.c.l.b16 %v1959
        %v2435 = vunpack.c.h.b16 %v1959
        %v2436 = vunpack.c.l.b16 %v1960
        %v2437 = vunpack.c.h.b16 %v1960
        %v2438 = vunpack.c.l.b16 %v1961
        %v2439 = vunpack.c.h.b16 %v1961
        %v2440 = vunpack.c.l.b16 %v1962
        %v2441 = vunpack.c.h.b16 %v1962
        %v2442 = vunpack.c.l.b16 %v1963
        %v2443 = vunpack.c.l.b16 %v1964
        %v2444 = vunpack.c.h.b16 %v1964
        %v2445 = vunpack.c.l.b16 %v1965
        %v2446 = vunpack.c.h.b16 %v1965
        %v2447 = vunpack.c.l.b16 %v1966
        %v2448 = vunpack.c.h.b16 %v1966
        %v2449 = vunpack.c.l.b16 %v1967
        %v2450 = vunpack.c.h.b16 %v1967
        %v2451 = vunpack.c.l.b16 %v1968
        %v2452 = vunpack.c.l.b16 %v1969
        %v2453 = vunpack.c.h.b16 %v1969
        %v2454 = vunpack.c.l.b16 %v1970
        %v2455 = vunpack.c.h.b16 %v1970
        %v2456 = vunpack.c.l.b16 %v1971
        %v2457 = vunpack.c.h.b16 %v1971
        %v2458 = vunpack.c.l.b16 %v1972
        %v2459 = vunpack.c.h.b16 %v1972
        %v2460 = vunpack.c.l.b16 %v1973
        %v2461 = vunpack.c.l.b16 %v1974
        %v2462 = vunpack.c.h.b16 %v1974
        %v2463 = vunpack.c.l.b16 %v1975
        %v2464 = vunpack.c.h.b16 %v1975
        %v2465 = vunpack.c.l.b16 %v1976
        %v2466 = vunpack.c.h.b16 %v1976
        %v2467 = vunpack.c.l.b16 %v1977
        %v2468 = vunpack.c.h.b16 %v1977
        %v2469 = vunpack.c.l.b16 %v1978
        %v2470 = vunpack.c.l.b16 %v1979
        %v2471 = vunpack.c.h.b16 %v1979
        %v2472 = vunpack.c.l.b16 %v1980
        %v2473 = vunpack.c.h.b16 %v1980
        %v2474 = vunpack.c.l.b16 %v1981
        %v2475 = vunpack.c.h.b16 %v1981
        %v2476 = vunpack.c.l.b16 %v1982
        %v2477 = vunpack.c.h.b16 %v1982
        %v2478 = vunpack.c.l.b16 %v1983
        %v2479 = vunpack.c.l.b16 %v1984
        %v2480 = vunpack.c.h.b16 %v1984
        %v2481 = vunpack.c.l.b16 %v1985
        %v2482 = vunpack.c.h.b16 %v1985
        %v2483 = vunpack.c.l.b16 %v1986
        %v2484 = vunpack.c.h.b16 %v1986
        %v2485 = vunpack.c.l.b16 %v1987
        %v2486 = vunpack.c.h.b16 %v1987
        %v2487 = vunpack.c.l.b16 %v1988
        %v2488 = vunpack.c.l.b16 %v1989
        %v2489 = vunpack.c.h.b16 %v1989
        %v2490 = vunpack.c.l.b16 %v1990
        %v2491 = vunpack.c.h.b16 %v1990
        %v2492 = vunpack.c.l.b16 %v1991
        %v2493 = vunpack.c.h.b16 %v1991
        %v2494 = vunpack.c.l.b16 %v1992
        %v2495 = vunpack.c.h.b16 %v1992
        %v2496 = vunpack.c.l.b16 %v1993
        %v2497 = vunpack.c.l.b16 %v1994
        %v2498 = vunpack.c.h.b16 %v1994
        %v2499 = vunpack.c.l.b16 %v1995
        %v2500 = vunpack.c.h.b16 %v1995
        %v2501 = vunpack.c.l.b16 %v1996
        %v2502 = vunpack.c.h.b16 %v1996
        %v2503 = vunpack.c.l.b16 %v1997
        %v2504 = vunpack.c.h.b16 %v1997
        %v2505 = vunpack.c.l.b16 %v1998
        %v2506 = vunpack.c.l.b16 %v1999
        %v2507 = vunpack.c.h.b16 %v1999
        %v2508 = vunpack.c.l.b16 %v2000
        %v2509 = vunpack.c.h.b16 %v2000
        %v2510 = vunpack.c.l.b16 %v2001
        %v2511 = vunpack.c.h.b16 %v2001
        %v2512 = vunpack.c.l.b16 %v2002
        %v2513 = vunpack.c.h.b16 %v2002
        %v2514 = vunpack.c.l.b16 %v2003
        %v2515 = vunpack.c.l.b16 %v2004
        %v2516 = vunpack.c.h.b16 %v2004
        %v2517 = vunpack.c.l.b16 %v2005
        %v2518 = vunpack.c.h.b16 %v2005
        %v2519 = vunpack.c.l.b16 %v2006
        %v2520 = vunpack.c.h.b16 %v2006
        %v2521 = vunpack.c.l.b16 %v2007
        %v2522 = vunpack.c.h.b16 %v2007
        %v2523 = vunpack.c.l.b16 %v2008
        %v2524 = vunpack.c.l.b16 %v2009
        %v2525 = vunpack.c.h.b16 %v2009
        %v2526 = vunpack.c.l.b16 %v2010
        %v2527 = vunpack.c.h.b16 %v2010
        %v2528 = vunpack.c.l.b16 %v2011
        %v2529 = vunpack.c.h.b16 %v2011
        %v2530 = vunpack.c.l.b16 %v2012
        %v2531 = vunpack.c.h.b16 %v2012
        %v2532 = vunpack.c.l.b16 %v2013
        %v2533 = vunpack.c.l.b16 %v2014
        %v2534 = vunpack.c.h.b16 %v2014
        %v2535 = vunpack.c.l.b16 %v2015
        %v2536 = vunpack.c.h.b16 %v2015
        %v2537 = vunpack.c.l.b16 %v2016
        %v2538 = vunpack.c.h.b16 %v2016
        %v2539 = vunpack.c.l.b16 %v2017
        %v2540 = vunpack.c.h.b16 %v2017
        %v2541 = vunpack.c.l.b16 %v2018
        %v2542 = vunpack.c.l.b16 %v2019
        %v2543 = vunpack.c.h.b16 %v2019
        %v2544 = vunpack.c.l.b16 %v2020
        %v2545 = vunpack.c.h.b16 %v2020
        %v2546 = vunpack.c.l.b16 %v2021
        %v2547 = vunpack.c.h.b16 %v2021
        %v2548 = vunpack.c.l.b16 %v2022
        %v2549 = vunpack.c.h.b16 %v2022
        %v2550 = vunpack.c.l.b16 %v2023
        %v2551 = vunpack.c.l.b16 %v2024
        %v2552 = vunpack.c.h.b16 %v2024
        %v2553 = vunpack.c.l.b16 %v2025
        %v2554 = vunpack.c.h.b16 %v2025
        %v2555 = vunpack.c.l.b16 %v2026
        %v2556 = vunpack.c.h.b16 %v2026
        %v2557 = vunpack.c.l.b16 %v2027
        %v2558 = vunpack.c.h.b16 %v2027
        %v2559 = vunpack.c.l.b16 %v2028
        %v2560 = vunpack.c.l.b16 %v2029
        %v2561 = vunpack.c.h.b16 %v2029
        %v2562 = vunpack.c.l.b16 %v2030
        %v2563 = vunpack.c.h.b16 %v2030
        %v2564 = vunpack.c.l.b16 %v2031
        %v2565 = vunpack.c.h.b16 %v2031
        %v2566 = vunpack.c.l.b16 %v2032
        %v2567 = vunpack.c.h.b16 %v2032
        %v2568 = vunpack.c.l.b16 %v2033
        %v2569 = vunpack.c.l.b16 %v2034
        %v2570 = vunpack.c.h.b16 %v2034
        %v2571 = vunpack.c.l.b16 %v2035
        %v2572 = vunpack.c.h.b16 %v2035
        %v2573 = vunpack.c.l.b16 %v2036
        %v2574 = vunpack.c.h.b16 %v2036
        %v2575 = vunpack.c.l.b16 %v2037
        %v2576 = vunpack.c.h.b16 %v2037
        %v2577 = vunpack.c.l.b16 %v2038
        %v2578 = vunpack.c.l.b16 %v2039
        %v2579 = vunpack.c.h.b16 %v2039
        %v2580 = vunpack.c.l.b16 %v2040
        %v2581 = vunpack.c.h.b16 %v2040
        %v2582 = vunpack.c.l.b16 %v2041
        %v2583 = vunpack.c.h.b16 %v2041
        %v2584 = vunpack.c.l.b16 %v2042
        %v2585 = vunpack.c.h.b16 %v2042
        %v2586 = vunpack.c.l.b16 %v2043
        %v2587 = vunpack.c.l.b16 %v2044
        %v2588 = vunpack.c.h.b16 %v2044
        %v2589 = vunpack.c.l.b16 %v2045
        %v2590 = vunpack.c.h.b16 %v2045
        %v2591 = vunpack.c.l.b16 %v2046
        %v2592 = vunpack.c.h.b16 %v2046
        %v2593 = vunpack.c.l.b16 %v2047
        %v2594 = vunpack.c.h.b16 %v2047
        %v2595 = vunpack.c.l.b16 %v2048
        %v2596 = vunpack.c.l.b16 %v2049
        %v2597 = vunpack.c.h.b16 %v2049
        %v2598 = vunpack.c.l.b16 %v2050
        %v2599 = vunpack.c.h.b16 %v2050
        %v2600 = vunpack.c.l.b16 %v2051
        %v2601 = vunpack.c.h.b16 %v2051
        %v2602 = vunpack.c.l.b16 %v2052
        %v2603 = vunpack.c.h.b16 %v2052
        %v2604 = vunpack.c.l.b16 %v2053
        %v2605 = vunpack.c.l.b16 %v2054
        %v2606 = vunpack.c.h.b16 %v2054
        %v2607 = vunpack.c.l.b16 %v2055
        %v2608 = vunpack.c.h.b16 %v2055
        %v2609 = vunpack.c.l.b16 %v2056
        %v2610 = vunpack.c.h.b16 %v2056
        %v2611 = vunpack.c.l.b16 %v2057
        %v2612 = vunpack.c.h.b16 %v2057
        %v2613 = vunpack.c.l.b16 %v2058
        %v2614 = vunpack.c.l.b16 %v2059
        %v2615 = vunpack.c.h.b16 %v2059
        %v2616 = vunpack.c.l.b16 %v2060
        %v2617 = vunpack.c.h.b16 %v2060
        %v2618 = vunpack.c.l.b16 %v2061
        %v2619 = vunpack.c.h.b16 %v2061
        %v2620 = vunpack.c.l.b16 %v2062
        %v2621 = vunpack.c.h.b16 %v2062
        %v2622 = vunpack.c.l.b16 %v2063
        %v2623 = vunpack.c.l.b16 %v2064
        %v2624 = vunpack.c.h.b16 %v2064
        %v2625 = vunpack.c.l.b16 %v2065
        %v2626 = vunpack.c.h.b16 %v2065
        %v2627 = vunpack.c.l.b16 %v2066
        %v2628 = vunpack.c.h.b16 %v2066
        %v2629 = vunpack.c.l.b16 %v2067
        %v2630 = vunpack.c.h.b16 %v2067
        %v2631 = vunpack.c.l.b16 %v2068
        %v2632 = vunpack.c.l.b16 %v2069
        %v2633 = vunpack.c.h.b16 %v2069
        %v2634 = vunpack.c.l.b16 %v2070
        %v2635 = vunpack.c.h.b16 %v2070
        %v2636 = vunpack.c.l.b16 %v2071
        %v2637 = vunpack.c.h.b16 %v2071
        %v2638 = vunpack.c.l.b16 %v2072
        %v2639 = vunpack.c.h.b16 %v2072
        %v2640 = vunpack.c.l.b16 %v2073
        %v2641 = vunpack.c.l.b16 %v2074
        %v2642 = vunpack.c.h.b16 %v2074
        %v2643 = vunpack.c.l.b16 %v2075
        %v2644 = vunpack.c.h.b16 %v2075
        %v2645 = vunpack.c.l.b16 %v2076
        %v2646 = vunpack.c.h.b16 %v2076
        %v2647 = vunpack.c.l.b16 %v2077
        %v2648 = vunpack.c.h.b16 %v2077
        %v2649 = vunpack.c.l.b16 %v2078
        %v2650 = vunpack.c.l.b16 %v2079
        %v2651 = vunpack.c.h.b16 %v2079
        %v2652 = vunpack.c.l.b16 %v2080
        %v2653 = vunpack.c.h.b16 %v2080
        %v2654 = vunpack.c.l.b16 %v2081
        %v2655 = vunpack.c.h.b16 %v2081
        %v2656 = vunpack.c.l.b16 %v2082
        %v2657 = vunpack.c.h.b16 %v2082
        %v2658 = vunpack.c.l.b16 %v2083
        %v2659 = vunpack.c.l.b16 %v2084
        %v2660 = vunpack.c.h.b16 %v2084
        %v2661 = vunpack.c.l.b16 %v2085
        %v2662 = vunpack.c.h.b16 %v2085
        %v2663 = vunpack.c.l.b16 %v2086
        %v2664 = vunpack.c.h.b16 %v2086
        %v2665 = vunpack.c.l.b16 %v2087
        %v2666 = vunpack.c.h.b16 %v2087
        %v2667 = vunpack.c.l.b16 %v2088
        %v2668 = vunpack.c.l.b16 %v2089
        %v2669 = vunpack.c.h.b16 %v2089
        %v2670 = vunpack.c.l.b16 %v2090
        %v2671 = vunpack.c.h.b16 %v2090
        %v2672 = vunpack.c.l.b16 %v2091
        %v2673 = vunpack.c.h.b16 %v2091
        %v2674 = vunpack.c.l.b16 %v2092
        %v2675 = vunpack.c.h.b16 %v2092
        %v2676 = vunpack.c.l.b16 %v2093
        %v2677 = vunpack.c.l.b16 %v2094
        %v2678 = vunpack.c.h.b16 %v2094
        %v2679 = vunpack.c.l.b16 %v2095
        %v2680 = vunpack.c.h.b16 %v2095
        %v2681 = vunpack.c.l.b16 %v2096
        %v2682 = vunpack.c.h.b16 %v2096
        %v2683 = vunpack.c.l.b16 %v2097
        %v2684 = vunpack.c.h.b16 %v2097
        %v2685 = vunpack.c.l.b16 %v2098
        %v2686 = vunpack.c.l.b16 %v2099
        %v2687 = vunpack.c.h.b16 %v2099
        %v2688 = vunpack.c.l.b16 %v2100
        %v2689 = vunpack.c.h.b16 %v2100
        %v2690 = vunpack.c.l.b16 %v2101
        %v2691 = vunpack.c.h.b16 %v2101
        %v2692 = vunpack.c.l.b16 %v2102
        %v2693 = vunpack.c.h.b16 %v2102
        %v2694 = vunpack.c.l.b16 %v2103
        %v2695 = vunpack.c.l.b16 %v2104
        %v2696 = vunpack.c.h.b16 %v2104
        %v2697 = vunpack.c.l.b16 %v2105
        %v2698 = vunpack.c.h.b16 %v2105
        %v2699 = vunpack.c.l.b16 %v2106
        %v2700 = vunpack.c.h.b16 %v2106
        %v2701 = vunpack.c.l.b16 %v2107
        %v2702 = vunpack.c.h.b16 %v2107
        %v2703 = vunpack.c.l.b16 %v2108
        %v2704 = vunpack.c.l.b16 %v2109
        %v2705 = vunpack.c.h.b16 %v2109
        %v2706 = vunpack.c.l.b16 %v2110
        %v2707 = vunpack.c.h.b16 %v2110
        %v2708 = vunpack.c.l.b16 %v2111
        %v2709 = vunpack.c.h.b16 %v2111
        %v2710 = vunpack.c.l.b16 %v2112
        %v2711 = vunpack.c.h.b16 %v2112
        %v2712 = vunpack.c.l.b16 %v2113
        %v2713 = vpack.c.b16 %v2434, %v2425
        %v2714 = vpack.c.b16 %v2435, %v2426
        %v2715 = vpack.c.b16 %v2436, %v2427
        %v2716 = vpack.c.b16 %v2437, %v2428
        %v2717 = vpack.c.b16 %v2438, %v2429
        %v2718 = vpack.c.b16 %v2439, %v2430
        %v2719 = vpack.c.b16 %v2440, %v2431
        %v2720 = vpack.c.b16 %v2441, %v2432
        %v2721 = vpack.c.b16 %v2442, %v2433
        %v2722 = vpack.c.b16 %v2452, %v2443
        %v2723 = vpack.c.b16 %v2453, %v2444
        %v2724 = vpack.c.b16 %v2454, %v2445
        %v2725 = vpack.c.b16 %v2455, %v2446
        %v2726 = vpack.c.b16 %v2456, %v2447
        %v2727 = vpack.c.b16 %v2457, %v2448
        %v2728 = vpack.c.b16 %v2458, %v2449
        %v2729 = vpack.c.b16 %v2459, %v2450
        %v2730 = vpack.c.b16 %v2460, %v2451
        %v2731 = vpack.c.b16 %v2470, %v2461
        %v2732 = vpack.c.b16 %v2471, %v2462
        %v2733 = vpack.c.b16 %v2472, %v2463
        %v2734 = vpack.c.b16 %v2473, %v2464
        %v2735 = vpack.c.b16 %v2474, %v2465
        %v2736 = vpack.c.b16 %v2475, %v2466
        %v2737 = vpack.c.b16 %v2476, %v2467
        %v2738 = vpack.c.b16 %v2477, %v2468
        %v2739 = vpack.c.b16 %v2478, %v2469
        %v2740 = vpack.c.b16 %v2488, %v2479
        %v2741 = vpack.c.b16 %v2489, %v2480
        %v2742 = vpack.c.b16 %v2490, %v2481
        %v2743 = vpack.c.b16 %v2491, %v2482
        %v2744 = vpack.c.b16 %v2492, %v2483
        %v2745 = vpack.c.b16 %v2493, %v2484
        %v2746 = vpack.c.b16 %v2494, %v2485
        %v2747 = vpack.c.b16 %v2495, %v2486
        %v2748 = vpack.c.b16 %v2496, %v2487
        %v2749 = vpack.c.b16 %v2506, %v2497
        %v2750 = vpack.c.b16 %v2507, %v2498
        %v2751 = vpack.c.b16 %v2508, %v2499
        %v2752 = vpack.c.b16 %v2509, %v2500
        %v2753 = vpack.c.b16 %v2510, %v2501
        %v2754 = vpack.c.b16 %v2511, %v2502
        %v2755 = vpack.c.b16 %v2512, %v2503
        %v2756 = vpack.c.b16 %v2513, %v2504
        %v2757 = vpack.c.b16 %v2514, %v2505
        %v2758 = vpack.c.b16 %v2524, %v2515
        %v2759 = vpack.c.b16 %v2525, %v2516
        %v2760 = vpack.c.b16 %v2526, %v2517
        %v2761 = vpack.c.b16 %v2527, %v2518
        %v2762 = vpack.c.b16 %v2528, %v2519
        %v2763 = vpack.c.b16 %v2529, %v2520
        %v2764 = vpack.c.b16 %v2530, %v2521
        %v2765 = vpack.c.b16 %v2531, %v2522
        %v2766 = vpack.c.b16 %v2532, %v2523
        %v2767 = vpack.c.b16 %v2542, %v2533
        %v2768 = vpack.c.b16 %v2543, %v2534
        %v2769 = vpack.c.b16 %v2544, %v2535
        %v2770 = vpack.c.b16 %v2545, %v2536
        %v2771 = vpack.c.b16 %v2546, %v2537
        %v2772 = vpack.c.b16 %v2547, %v2538
        %v2773 = vpack.c.b16 %v2548, %v2539
        %v2774 = vpack.c.b16 %v2549, %v2540
        %v2775 = vpack.c.b16 %v2550, %v2541
        %v2776 = vpack.c.b16 %v2560, %v2551
        %v2777 = vpack.c.b16 %v2561, %v2552
        %v2778 = vpack.c.b16 %v2562, %v2553
        %v2779 = vpack.c.b16 %v2563, %v2554
        %v2780 = vpack.c.b16 %v2564, %v2555
        %v2781 = vpack.c.b16 %v2565, %v2556
        %v2782 = vpack.c.b16 %v2566, %v2557
        %v2783 = vpack.c.b16 %v2567, %v2558
        %v2784 = vpack.c.b16 %v2568, %v2559
        %v2785 = vpack.c.b16 %v2578, %v2569
        %v2786 = vpack.c.b16 %v2579, %v2570
        %v2787 = vpack.c.b16 %v2580, %v2571
        %v2788 = vpack.c.b16 %v2581, %v2572
        %v2789 = vpack.c.b16 %v2582, %v2573
        %v2790 = vpack.c.b16 %v2583, %v2574
        %v2791 = vpack.c.b16 %v2584, %v2575
        %v2792 = vpack.c.b16 %v2585, %v2576
        %v2793 = vpack.c.b16 %v2586, %v2577
        %v2794 = vpack.c.b16 %v2596, %v2587
        %v2795 = vpack.c.b16 %v2597, %v2588
        %v2796 = vpack.c.b16 %v2598, %v2589
        %v2797 = vpack.c.b16 %v2599, %v2590
        %v2798 = vpack.c.b16 %v2600, %v2591
        %v2799 = vpack.c.b16 %v2601, %v2592
        %v2800 = vpack.c.b16 %v2602, %v2593
        %v2801 = vpack.c.b16 %v2603, %v2594
        %v2802 = vpack.c.b16 %v2604, %v2595
        %v2803 = vpack.c.b16 %v2614, %v2605
        %v2804 = vpack.c.b16 %v2615, %v2606
        %v2805 = vpack.c.b16 %v2616, %v2607
        %v2806 = vpack.c.b16 %v2617, %v2608
        %v2807 = vpack.c.b16 %v2618, %v2609
        %v2808 = vpack.c.b16 %v2619, %v2610
        %v2809 = vpack.c.b16 %v2620, %v2611
        %v2810 = vpack.c.b16 %v2621, %v2612
        %v2811 = vpack.c.b16 %v2622, %v2613
        %v2812 = vpack.c.b16 %v2632, %v2623
        %v2813 = vpack.c.b16 %v2633, %v2624
        %v2814 = vpack.c.b16 %v2634, %v2625
        %v2815 = vpack.c.b16 %v2635, %v2626
        %v2816 = vpack.c.b16 %v2636, %v2627
        %v2817 = vpack.c.b16 %v2637, %v2628
        %v2818 = vpack.c.b16 %v2638, %v2629
        %v2819 = vpack.c.b16 %v2639, %v2630
        %v2820 = vpack.c.b16 %v2640, %v2631
        %v2821 = vpack.c.b16 %v2650, %v2641
        %v2822 = vpack.c.b16 %v2651, %v2642
        %v2823 = vpack.c.b16 %v2652, %v2643
        %v2824 = vpack.c.b16 %v2653, %v2644
        %v2825 = vpack.c.b16 %v2654, %v2645
        %v2826 = vpack.c.b16 %v2655, %v2646
        %v2827 = vpack.c.b16 %v2656, %v2647
        %v2828 = vpack.c.b16 %v2657, %v2648
        %v2829 = vpack.c.b16 %v2658, %v2649
        %v2830 = vpack.c.b16 %v2668, %v2659
        %v2831 = vpack.c.b16 %v2669, %v2660
        %v2832 = vpack.c.b16 %v2670, %v2661
        %v2833 = vpack.c.b16 %v2671, %v2662
        %v2834 = vpack.c.b16 %v2672, %v2663
        %v2835 = vpack.c.b16 %v2673, %v2664
        %v2836 = vpack.c.b16 %v2674, %v2665
        %v2837 = vpack.c.b16 %v2675, %v2666
        %v2838 = vpack.c.b16 %v2676, %v2667
        %v2839 = vpack.c.b16 %v2686, %v2677
        %v2840 = vpack.c.b16 %v2687, %v2678
        %v2841 = vpack.c.b16 %v2688, %v2679
        %v2842 = vpack.c.b16 %v2689, %v2680
        %v2843 = vpack.c.b16 %v2690, %v2681
        %v2844 = vpack.c.b16 %v2691, %v2682
        %v2845 = vpack.c.b16 %v2692, %v2683
        %v2846 = vpack.c.b16 %v2693, %v2684
        %v2847 = vpack.c.b16 %v2694, %v2685
        %v2848 = vpack.c.b16 %v2704, %v2695
        %v2849 = vpack.c.b16 %v2705, %v2696
        %v2850 = vpack.c.b16 %v2706, %v2697
        %v2851 = vpack.c.b16 %v2707, %v2698
        %v2852 = vpack.c.b16 %v2708, %v2699
        %v2853 = vpack.c.b16 %v2709, %v2700
        %v2854 = vpack.c.b16 %v2710, %v2701
        %v2855 = vpack.c.b16 %v2711, %v2702
        %v2856 = vpack.c.b16 %v2712, %v2703
        %v3145 = vunpack.c.l.b16 %v2114
        %v3146 = vunpack.c.l.b16 %v2115
        %v3147 = vunpack.c.l.b16 %v2116
        %v3148 = vunpack.c.l.b16 %v2117
        %v3149 = vunpack.c.l.b16 %v2118
        %v3150 = vunpack.c.l.b16 %v2119
        %v3151 = vunpack.c.l.b16 %v2120
        %v3152 = vunpack.c.l.b16 %v2121
        %v3153 = vunpack.c.l.b16 %v2122
        %v3154 = vunpack.c.l.b16 %v2123
        %v3155 = vunpack.c.l.b16 %v2124
        %v3156 = vunpack.c.l.b16 %v2125
        %v3157 = vunpack.c.l.b16 %v2126
        %v3158 = vunpack.c.l.b16 %v2127
        %v3159 = vunpack.c.l.b16 %v2128
        %v3160 = vunpack.c.l.b16 %v2129
        %v3161 = vunpack.c.l.b16 %v2130
        %v3162 = vunpack.c.l.b16 %v2131
        %v3163 = vunpack.c.l.b16 %v2132
        %v3164 = vunpack.c.l.b16 %v2133
        %v3165 = vunpack.c.l.b16 %v2134
        %v3166 = vunpack.c.l.b16 %v2135
        %v3167 = vunpack.c.l.b16 %v2136
        %v3168 = vunpack.c.l.b16 %v2137
        %v3169 = vunpack.c.l.b16 %v2138
        %v3170 = vunpack.c.l.b16 %v2139
        %v3171 = vunpack.c.l.b16 %v2140
        %v3172 = vunpack.c.l.b16 %v2141
        %v3173 = vunpack.c.l.b16 %v2142
        %v3174 = vunpack.c.l.b16 %v2143
        %v3175 = vunpack.c.l.b16 %v2144
        %v3176 = vunpack.c.l.b16 %v2145
        %v3177 = vunpack.c.l.b16 %v2146
        %v3178 = vunpack.c.l.b16 %v2147
        %v3179 = vunpack.c.l.b16 %v2148
        %v3180 = vunpack.c.l.b16 %v2149
        %v3181 = vunpack.c.l.b16 %v2150
        %v3182 = vunpack.c.l.b16 %v2151
        %v3183 = vunpack.c.l.b16 %v2152
        %v3184 = vunpack.c.l.b16 %v2153
        %v3185 = vunpack.c.l.b16 %v2154
        %v3186 = vunpack.c.l.b16 %v2155
        %v3187 = vunpack.c.l.b16 %v2156
        %v3188 = vunpack.c.l.b16 %v2157
        %v3189 = vunpack.c.l.b16 %v2158
        %v3190 = vunpack.c.l.b16 %v2159
        %v3191 = vunpack.c.l.b16 %v2160
        %v3192 = vunpack.c.l.b16 %v2161
        %v3193 = vunpack.c.l.b16 %v2162
        %v3194 = vunpack.c.l.b16 %v2163
        %v3195 = vunpack.c.l.b16 %v2164
        %v3196 = vunpack.c.l.b16 %v2165
        %v3197 = vunpack.c.l.b16 %v2166
        %v3198 = vunpack.c.l.b16 %v2167
        %v3199 = vunpack.c.l.b16 %v2168
        %v3200 = vunpack.c.l.b16 %v2169
        %v3201 = vunpack.c.l.b16 %v2170
        %v3202 = vunpack.c.l.b16 %v2171
        %v3203 = vunpack.c.l.b16 %v2172
        %v3204 = vunpack.c.l.b16 %v2173
        %v3205 = vunpack.c.l.b16 %v2174
        %v3206 = vunpack.c.l.b16 %v2175
        %v3207 = vunpack.c.l.b16 %v2176
        %v3208 = vunpack.c.l.b16 %v2177
        %v3209 = vunpack.c.l.b16 %v2178
        %v3210 = vunpack.c.l.b16 %v2179
        %v3211 = vunpack.c.l.b16 %v2180
        %v3212 = vunpack.c.l.b16 %v2181
        %v3213 = vunpack.c.l.b16 %v2182
        %v3214 = vunpack.c.l.b16 %v2183
        %v3215 = vunpack.c.l.b16 %v2184
        %v3216 = vunpack.c.l.b16 %v2185
        %v3217 = vunpack.c.l.b16 %v2186
        %v3218 = vunpack.c.l.b16 %v2187
        %v3219 = vunpack.c.l.b16 %v2188
        %v3220 = vunpack.c.l.b16 %v2189
        %v3221 = vunpack.c.l.b16 %v2190
        %v3222 = vunpack.c.l.b16 %v2191
        %v3223 = vunpack.c.l.b16 %v2192
        %v3224 = vunpack.c.l.b16 %v2193
        %v3225 = vunpack.c.l.b16 %v2194
        %v3226 = vunpack.c.l.b16 %v2195
        %v3227 = vunpack.c.l.b16 %v2196
        %v3228 = vunpack.c.l.b16 %v2197
        %v3229 = vunpack.c.l.b16 %v2198
        %v3230 = vunpack.c.l.b16 %v2199
        %v3231 = vunpack.c.l.b16 %v2200
        %v3232 = vunpack.c.l.b16 %v2201
        %v3233 = vunpack.c.l.b16 %v2202
        %v3234 = vunpack.c.l.b16 %v2203
        %v3235 = vunpack.c.l.b16 %v2204
        %v3236 = vunpack.c.l.b16 %v2205
        %v3237 = vunpack.c.l.b16 %v2206
        %v3238 = vunpack.c.l.b16 %v2207
        %v3239 = vunpack.c.l.b16 %v2208
        %v3240 = vunpack.c.l.b16 %v2209
        %v3241 = vunpack.c.l.b16 %v2210
        %v3242 = vunpack.c.l.b16 %v2211
        %v3243 = vunpack.c.l.b16 %v2212
        %v3244 = vunpack.c.l.b16 %v2213
        %v3245 = vunpack.c.l.b16 %v2214
        %v3246 = vunpack.c.l.b16 %v2215
        %v3247 = vunpack.c.l.b16 %v2216
        %v3248 = vunpack.c.l.b16 %v2217
        %v3249 = vunpack.c.l.b16 %v2218
        %v3250 = vunpack.c.l.b16 %v2219
        %v3251 = vunpack.c.l.b16 %v2220
        %v3252 = vunpack.c.l.b16 %v2221
        %v3253 = vunpack.c.l.b16 %v2222
        %v3254 = vunpack.c.l.b16 %v2223
        %v3255 = vunpack.c.l.b16 %v2224
        %v3256 = vunpack.c.l.b16 %v2225
        %v3257 = vunpack.c.l.b16 %v2226
        %v3258 = vunpack.c.l.b16 %v2227
        %v3259 = vunpack.c.l.b16 %v2228
        %v3260 = vunpack.c.l.b16 %v2229
        %v3261 = vunpack.c.l.b16 %v2230
        %v3262 = vunpack.c.l.b16 %v2231
        %v3263 = vunpack.c.l.b16 %v2232
        %v3264 = vunpack.c.l.b16 %v2233
        %v3265 = vunpack.c.l.b16 %v2234
        %v3266 = vunpack.c.l.b16 %v2235
        %v3267 = vunpack.c.l.b16 %v2236
        %v3268 = vunpack.c.l.b16 %v2237
        %v3269 = vunpack.c.l.b16 %v2238
        %v3270 = vunpack.c.l.b16 %v2239
        %v3271 = vunpack.c.l.b16 %v2240
        %v3272 = vunpack.c.l.b16 %v2241
        %v3273 = vunpack.c.l.b16 %v2242
        %v3274 = vunpack.c.l.b16 %v2243
        %v3275 = vunpack.c.l.b16 %v2244
        %v3276 = vunpack.c.l.b16 %v2245
        %v3277 = vunpack.c.l.b16 %v2246
        %v3278 = vunpack.c.l.b16 %v2247
        %v3279 = vunpack.c.l.b16 %v2248
        %v3280 = vunpack.c.l.b16 %v2249
        %v3281 = vunpack.c.l.b16 %v2250
        %v3282 = vunpack.c.l.b16 %v2251
        %v3283 = vunpack.c.l.b16 %v2252
        %v3284 = vunpack.c.l.b16 %v2253
        %v3285 = vunpack.c.l.b16 %v2254
        %v3286 = vunpack.c.l.b16 %v2255
        %v3287 = vunpack.c.l.b16 %v2256
        %v3288 = vunpack.c.l.b16 %v2257
        %v3289 = vpack.c.b16 %v3146, %v3145
        %v3290 = vpack.c.b16 %v3148, %v3147
        %v3291 = vpack.c.b16 %v3150, %v3149
        %v3292 = vpack.c.b16 %v3152, %v3151
        %v3293 = vpack.c.b16 %v3154, %v3153
        %v3294 = vpack.c.b16 %v3156, %v3155
        %v3295 = vpack.c.b16 %v3158, %v3157
        %v3296 = vpack.c.b16 %v3160, %v3159
        %v3297 = vpack.c.b16 %v3162, %v3161
        %v3298 = vpack.c.b16 %v3164, %v3163
        %v3299 = vpack.c.b16 %v3166, %v3165
        %v3300 = vpack.c.b16 %v3168, %v3167
        %v3301 = vpack.c.b16 %v3170, %v3169
        %v3302 = vpack.c.b16 %v3172, %v3171
        %v3303 = vpack.c.b16 %v3174, %v3173
        %v3304 = vpack.c.b16 %v3176, %v3175
        %v3305 = vpack.c.b16 %v3178, %v3177
        %v3306 = vpack.c.b16 %v3180, %v3179
        %v3307 = vpack.c.b16 %v3182, %v3181
        %v3308 = vpack.c.b16 %v3184, %v3183
        %v3309 = vpack.c.b16 %v3186, %v3185
        %v3310 = vpack.c.b16 %v3188, %v3187
        %v3311 = vpack.c.b16 %v3190, %v3189
        %v3312 = vpack.c.b16 %v3192, %v3191
        %v3313 = vpack.c.b16 %v3194, %v3193
        %v3314 = vpack.c.b16 %v3196, %v3195
        %v3315 = vpack.c.b16 %v3198, %v3197
        %v3316 = vpack.c.b16 %v3200, %v3199
        %v3317 = vpack.c.b16 %v3202, %v3201
        %v3318 = vpack.c.b16 %v3204, %v3203
        %v3319 = vpack.c.b16 %v3206, %v3205
        %v3320 = vpack.c.b16 %v3208, %v3207
        %v3321 = vpack.c.b16 %v3210, %v3209
        %v3322 = vpack.c.b16 %v3212, %v3211
        %v3323 = vpack.c.b16 %v3214, %v3213
        %v3324 = vpack.c.b16 %v3216, %v3215
        %v3325 = vpack.c.b16 %v3218, %v3217
        %v3326 = vpack.c.b16 %v3220, %v3219
        %v3327 = vpack.c.b16 %v3222, %v3221
        %v3328 = vpack.c.b16 %v3224, %v3223
        %v3329 = vpack.c.b16 %v3226, %v3225
        %v3330 = vpack.c.b16 %v3228, %v3227
        %v3331 = vpack.c.b16 %v3230, %v3229
        %v3332 = vpack.c.b16 %v3232, %v3231
        %v3333 = vpack.c.b16 %v3234, %v3233
        %v3334 = vpack.c.b16 %v3236, %v3235
        %v3335 = vpack.c.b16 %v3238, %v3237
        %v3336 = vpack.c.b16 %v3240, %v3239
        %v3337 = vpack.c.b16 %v3242, %v3241
        %v3338 = vpack.c.b16 %v3244, %v3243
        %v3339 = vpack.c.b16 %v3246, %v3245
        %v3340 = vpack.c.b16 %v3248, %v3247
        %v3341 = vpack.c.b16 %v3250, %v3249
        %v3342 = vpack.c.b16 %v3252, %v3251
        %v3343 = vpack.c.b16 %v3254, %v3253
        %v3344 = vpack.c.b16 %v3256, %v3255
        %v3345 = vpack.c.b16 %v3258, %v3257
        %v3346 = vpack.c.b16 %v3260, %v3259
        %v3347 = vpack.c.b16 %v3262, %v3261
        %v3348 = vpack.c.b16 %v3264, %v3263
        %v3349 = vpack.c.b16 %v3266, %v3265
        %v3350 = vpack.c.b16 %v3268, %v3267
        %v3351 = vpack.c.b16 %v3270, %v3269
        %v3352 = vpack.c.b16 %v3272, %v3271
        %v3353 = vpack.c.b16 %v3274, %v3273
        %v3354 = vpack.c.b16 %v3276, %v3275
        %v3355 = vpack.c.b16 %v3278, %v3277
        %v3356 = vpack.c.b16 %v3280, %v3279
        %v3357 = vpack.c.b16 %v3282, %v3281
        %v3358 = vpack.c.b16 %v3284, %v3283
        %v3359 = vpack.c.b16 %v3286, %v3285
        %v3360 = vpack.c.b16 %v3288, %v3287
        %3433 = vmatprep.subr.bf16.mxu0 0
        %3434 = vmatpush1.bf16.msra.mxu0 %v3296
        %3435 = vmatprep.subr.bf16.mxu0 0
        %3436 = vmatpush1.bf16.msra.mxu0 %v3295
        %3437 = vmatprep.subr.bf16.mxu0 0
        %3438 = vmatpush1.bf16.msra.mxu0 %v3294
        %3439 = vmatprep.subr.bf16.mxu0 0
        %3440 = vmatpush1.bf16.msra.mxu0 %v3293
        %3441 = vmatprep.subr.bf16.mxu0 0
        %3442 = vmatpush1.bf16.msra.mxu0 %v3292
        %3443 = vmatprep.subr.bf16.mxu0 0
        %3444 = vmatpush1.bf16.msra.mxu0 %v3291
        %3445 = vmatprep.subr.bf16.mxu0 0
        %3446 = vmatpush1.bf16.msra.mxu0 %v3290
        %3447 = vmatprep.subr.bf16.mxu0 0
        %3448 = vmatpush1.bf16.msra.mxu0 %v3289
        %3449 = vmatprep.subr.bf16.mxu0 0
        %3450 = vmatpush2.bf16.msra.mxu0 %v3304
        %3451 = vmatprep.subr.bf16.mxu0 0
        %3452 = vmatpush2.bf16.msra.mxu0 %v3303
        %3453 = vmatprep.subr.bf16.mxu0 0
        %3454 = vmatpush2.bf16.msra.mxu0 %v3302
        %3455 = vmatprep.subr.bf16.mxu0 0
        %3456 = vmatpush2.bf16.msra.mxu0 %v3301
        %3457 = vmatprep.subr.bf16.mxu0 0
        %3458 = vmatpush2.bf16.msra.mxu0 %v3300
        %3459 = vmatprep.subr.bf16.mxu0 0
        %3460 = vmatpush2.bf16.msra.mxu0 %v3299
        %3461 = vmatprep.subr.bf16.mxu0 0
        %3462 = vmatpush2.bf16.msra.mxu0 %v3298
        %3463 = vmatprep.subr.bf16.mxu0 0
        %3464 = vmatpush2.bf16.msra.mxu0 %v3297
        %3465 = vmatprep.mubr.bf16.mxu0 %v2714
        %3466 = vmatmul.mubr.bf16.gmra.mxu0 %v2713
        %v3467 = vpop.f32.mrf.mxu0
        %v3468 = vadd.f32 %v2263, %v3467
        %v3469 = vpop.f32.mrf.mxu0
        %v3470 = vpop.f32.mrf.mxu0
        %v3471 = vadd.f32 %v2263, %v3470
        %v3472 = vpop.f32.mrf.mxu0
        %3473 = vmatprep.mubr.bf16.mxu0 %v2723
        %3474 = vmatmul.mubr.bf16.gmra.mxu0 %v2722
        %v3475 = vpop.f32.mrf.mxu0
        %v3476 = vadd.f32 %v2263, %v3475
        %v3477 = vpop.f32.mrf.mxu0
        %v3478 = vpop.f32.mrf.mxu0
        %v3479 = vadd.f32 %v2263, %v3478
        %v3480 = vpop.f32.mrf.mxu0
        %3481 = vmatprep.mubr.bf16.mxu0 %v2732
        %3482 = vmatmul.mubr.bf16.gmra.mxu0 %v2731
        %v3483 = vpop.f32.mrf.mxu0
        %v3484 = vadd.f32 %v2263, %v3483
        %v3485 = vpop.f32.mrf.mxu0
        %v3486 = vpop.f32.mrf.mxu0
        %v3487 = vadd.f32 %v2263, %v3486
        %v3488 = vpop.f32.mrf.mxu0
        %3489 = vmatprep.mubr.bf16.mxu0 %v2741
        %3490 = vmatmul.mubr.bf16.gmra.mxu0 %v2740
        %v3491 = vpop.f32.mrf.mxu0
        %v3492 = vadd.f32 %v2263, %v3491
        %v3493 = vpop.f32.mrf.mxu0
        %v3494 = vpop.f32.mrf.mxu0
        %v3495 = vadd.f32 %v2263, %v3494
        %v3496 = vpop.f32.mrf.mxu0
        %3497 = vmatprep.mubr.bf16.mxu0 %v2750
        %3498 = vmatmul.mubr.bf16.gmra.mxu0 %v2749
        %v3499 = vpop.f32.mrf.mxu0
        %v3500 = vadd.f32 %v2263, %v3499
        %v3501 = vpop.f32.mrf.mxu0
        %v3502 = vpop.f32.mrf.mxu0
        %v3503 = vadd.f32 %v2263, %v3502
        %v3504 = vpop.f32.mrf.mxu0
        %3505 = vmatprep.mubr.bf16.mxu0 %v2759
        %3506 = vmatmul.mubr.bf16.gmra.mxu0 %v2758
        %v3507 = vpop.f32.mrf.mxu0
        %v3508 = vadd.f32 %v2263, %v3507
        %v3509 = vpop.f32.mrf.mxu0
        %v3510 = vpop.f32.mrf.mxu0
        %v3511 = vadd.f32 %v2263, %v3510
        %v3512 = vpop.f32.mrf.mxu0
        %3513 = vmatprep.mubr.bf16.mxu0 %v2768
        %3514 = vmatmul.mubr.bf16.gmra.mxu0 %v2767
        %v3515 = vpop.f32.mrf.mxu0
        %v3516 = vadd.f32 %v2263, %v3515
        %v3517 = vpop.f32.mrf.mxu0
        %v3518 = vpop.f32.mrf.mxu0
        %v3519 = vadd.f32 %v2263, %v3518
        %v3520 = vpop.f32.mrf.mxu0
        %3521 = vmatprep.mubr.bf16.mxu0 %v2777
        %3522 = vmatmul.mubr.bf16.gmra.mxu0 %v2776
        %v3523 = vpop.f32.mrf.mxu0
        %v3524 = vadd.f32 %v2263, %v3523
        %v3525 = vpop.f32.mrf.mxu0
        %v3526 = vpop.f32.mrf.mxu0
        %v3527 = vadd.f32 %v2263, %v3526
        %v3528 = vpop.f32.mrf.mxu0
        %3529 = vmatprep.mubr.bf16.mxu0 %v2786
        %3530 = vmatmul.mubr.bf16.gmra.mxu0 %v2785
        %v3531 = vpop.f32.mrf.mxu0
        %v3532 = vadd.f32 %v2263, %v3531
        %v3533 = vpop.f32.mrf.mxu0
        %v3534 = vpop.f32.mrf.mxu0
        %v3535 = vadd.f32 %v2263, %v3534
        %v3536 = vpop.f32.mrf.mxu0
        %3537 = vmatprep.mubr.bf16.mxu0 %v2795
        %3538 = vmatmul.mubr.bf16.gmra.mxu0 %v2794
        %v3539 = vpop.f32.mrf.mxu0
        %v3540 = vadd.f32 %v2263, %v3539
        %v3541 = vpop.f32.mrf.mxu0
        %v3542 = vpop.f32.mrf.mxu0
        %v3543 = vadd.f32 %v2263, %v3542
        %v3544 = vpop.f32.mrf.mxu0
        %3545 = vmatprep.mubr.bf16.mxu0 %v2804
        %3546 = vmatmul.mubr.bf16.gmra.mxu0 %v2803
        %v3547 = vpop.f32.mrf.mxu0
        %v3548 = vadd.f32 %v2263, %v3547
        %v3549 = vpop.f32.mrf.mxu0
        %v3550 = vpop.f32.mrf.mxu0
        %v3551 = vadd.f32 %v2263, %v3550
        %v3552 = vpop.f32.mrf.mxu0
        %3553 = vmatprep.mubr.bf16.mxu0 %v2813
        %3554 = vmatmul.mubr.bf16.gmra.mxu0 %v2812
        %v3555 = vpop.f32.mrf.mxu0
        %v3556 = vadd.f32 %v2263, %v3555
        %v3557 = vpop.f32.mrf.mxu0
        %v3558 = vpop.f32.mrf.mxu0
        %v3559 = vadd.f32 %v2263, %v3558
        %v3560 = vpop.f32.mrf.mxu0
        %3561 = vmatprep.mubr.bf16.mxu0 %v2822
        %3562 = vmatmul.mubr.bf16.gmra.mxu0 %v2821
        %v3563 = vpop.f32.mrf.mxu0
        %v3564 = vadd.f32 %v2263, %v3563
        %v3565 = vpop.f32.mrf.mxu0
        %v3566 = vpop.f32.mrf.mxu0
        %v3567 = vadd.f32 %v2263, %v3566
        %v3568 = vpop.f32.mrf.mxu0
        %3569 = vmatprep.mubr.bf16.mxu0 %v2831
        %3570 = vmatmul.mubr.bf16.gmra.mxu0 %v2830
        %v3571 = vpop.f32.mrf.mxu0
        %v3572 = vadd.f32 %v2263, %v3571
        %v3573 = vpop.f32.mrf.mxu0
        %v3574 = vpop.f32.mrf.mxu0
        %v3575 = vadd.f32 %v2263, %v3574
        %v3576 = vpop.f32.mrf.mxu0
        %3577 = vmatprep.mubr.bf16.mxu0 %v2840
        %3578 = vmatmul.mubr.bf16.gmra.mxu0 %v2839
        %v3579 = vpop.f32.mrf.mxu0
        %v3580 = vadd.f32 %v2263, %v3579
        %v3581 = vpop.f32.mrf.mxu0
        %v3582 = vpop.f32.mrf.mxu0
        %v3583 = vadd.f32 %v2263, %v3582
        %v3584 = vpop.f32.mrf.mxu0
        %3585 = vmatprep.mubr.bf16.mxu0 %v2849
        %3586 = vmatmul.mubr.bf16.gmra.mxu0 %v2848
        %v3587 = vpop.f32.mrf.mxu0
        %v3588 = vadd.f32 %v2263, %v3587
        %v3589 = vpop.f32.mrf.mxu0
        %v3590 = vpop.f32.mrf.mxu0
        %v3591 = vadd.f32 %v2263, %v3590
        %v3592 = vpop.f32.mrf.mxu0
        %3593 = vdwg.mxu0
        %3594 = vmatprep.subr.bf16.mxu0 0
        %3595 = vmatpush1.bf16.msra.mxu0 %v3312
        %3596 = vmatprep.subr.bf16.mxu0 0
        %3597 = vmatpush1.bf16.msra.mxu0 %v3311
        %3598 = vmatprep.subr.bf16.mxu0 0
        %3599 = vmatpush1.bf16.msra.mxu0 %v3310
        %3600 = vmatprep.subr.bf16.mxu0 0
        %3601 = vmatpush1.bf16.msra.mxu0 %v3309
        %3602 = vmatprep.subr.bf16.mxu0 0
        %3603 = vmatpush1.bf16.msra.mxu0 %v3308
        %3604 = vmatprep.subr.bf16.mxu0 0
        %3605 = vmatpush1.bf16.msra.mxu0 %v3307
        %3606 = vmatprep.subr.bf16.mxu0 0
        %3607 = vmatpush1.bf16.msra.mxu0 %v3306
        %3608 = vmatprep.subr.bf16.mxu0 0
        %3609 = vmatpush1.bf16.msra.mxu0 %v3305
        %3610 = vmatprep.subr.bf16.mxu0 0
        %3611 = vmatpush2.bf16.msra.mxu0 %v3320
        %3612 = vmatprep.subr.bf16.mxu0 0
        %3613 = vmatpush2.bf16.msra.mxu0 %v3319
        %3614 = vmatprep.subr.bf16.mxu0 0
        %3615 = vmatpush2.bf16.msra.mxu0 %v3318
        %3616 = vmatprep.subr.bf16.mxu0 0
        %3617 = vmatpush2.bf16.msra.mxu0 %v3317
        %3618 = vmatprep.subr.bf16.mxu0 0
        %3619 = vmatpush2.bf16.msra.mxu0 %v3316
        %3620 = vmatprep.subr.bf16.mxu0 0
        %3621 = vmatpush2.bf16.msra.mxu0 %v3315
        %3622 = vmatprep.subr.bf16.mxu0 0
        %3623 = vmatpush2.bf16.msra.mxu0 %v3314
        %3624 = vmatprep.subr.bf16.mxu0 0
        %3625 = vmatpush2.bf16.msra.mxu0 %v3313
        %3626 = vmatprep.mubr.bf16.mxu0 %v2716
        %3627 = vmatmul.mubr.bf16.gmra.mxu0 %v2715
        %v3628 = vpop.f32.mrf.mxu0
        %v3629 = vadd.f32 %v3468, %v3628
        %v3630 = vpop.f32.mrf.mxu0
        %v3631 = vpop.f32.mrf.mxu0
        %v3632 = vadd.f32 %v3471, %v3631
        %v3633 = vpop.f32.mrf.mxu0
        %3634 = vmatprep.mubr.bf16.mxu0 %v2725
        %3635 = vmatmul.mubr.bf16.gmra.mxu0 %v2724
        %v3636 = vpop.f32.mrf.mxu0
        %v3637 = vadd.f32 %v3476, %v3636
        %v3638 = vpop.f32.mrf.mxu0
        %v3639 = vpop.f32.mrf.mxu0
        %v3640 = vadd.f32 %v3479, %v3639
        %v3641 = vpop.f32.mrf.mxu0
        %3642 = vmatprep.mubr.bf16.mxu0 %v2734
        %3643 = vmatmul.mubr.bf16.gmra.mxu0 %v2733
        %v3644 = vpop.f32.mrf.mxu0
        %v3645 = vadd.f32 %v3484, %v3644
        %v3646 = vpop.f32.mrf.mxu0
        %v3647 = vpop.f32.mrf.mxu0
        %v3648 = vadd.f32 %v3487, %v3647
        %v3649 = vpop.f32.mrf.mxu0
        %3650 = vmatprep.mubr.bf16.mxu0 %v2743
        %3651 = vmatmul.mubr.bf16.gmra.mxu0 %v2742
        %v3652 = vpop.f32.mrf.mxu0
        %v3653 = vadd.f32 %v3492, %v3652
        %v3654 = vpop.f32.mrf.mxu0
        %v3655 = vpop.f32.mrf.mxu0
        %v3656 = vadd.f32 %v3495, %v3655
        %v3657 = vpop.f32.mrf.mxu0
        %3658 = vmatprep.mubr.bf16.mxu0 %v2752
        %3659 = vmatmul.mubr.bf16.gmra.mxu0 %v2751
        %v3660 = vpop.f32.mrf.mxu0
        %v3661 = vadd.f32 %v3500, %v3660
        %v3662 = vpop.f32.mrf.mxu0
        %v3663 = vpop.f32.mrf.mxu0
        %v3664 = vadd.f32 %v3503, %v3663
        %v3665 = vpop.f32.mrf.mxu0
        %3666 = vmatprep.mubr.bf16.mxu0 %v2761
        %3667 = vmatmul.mubr.bf16.gmra.mxu0 %v2760
        %v3668 = vpop.f32.mrf.mxu0
        %v3669 = vadd.f32 %v3508, %v3668
        %v3670 = vpop.f32.mrf.mxu0
        %v3671 = vpop.f32.mrf.mxu0
        %v3672 = vadd.f32 %v3511, %v3671
        %v3673 = vpop.f32.mrf.mxu0
        %3674 = vmatprep.mubr.bf16.mxu0 %v2770
        %3675 = vmatmul.mubr.bf16.gmra.mxu0 %v2769
        %v3676 = vpop.f32.mrf.mxu0
        %v3677 = vadd.f32 %v3516, %v3676
        %v3678 = vpop.f32.mrf.mxu0
        %v3679 = vpop.f32.mrf.mxu0
        %v3680 = vadd.f32 %v3519, %v3679
        %v3681 = vpop.f32.mrf.mxu0
        %3682 = vmatprep.mubr.bf16.mxu0 %v2779
        %3683 = vmatmul.mubr.bf16.gmra.mxu0 %v2778
        %v3684 = vpop.f32.mrf.mxu0
        %v3685 = vadd.f32 %v3524, %v3684
        %v3686 = vpop.f32.mrf.mxu0
        %v3687 = vpop.f32.mrf.mxu0
        %v3688 = vadd.f32 %v3527, %v3687
        %v3689 = vpop.f32.mrf.mxu0
        %3690 = vmatprep.mubr.bf16.mxu0 %v2788
        %3691 = vmatmul.mubr.bf16.gmra.mxu0 %v2787
        %v3692 = vpop.f32.mrf.mxu0
        %v3693 = vadd.f32 %v3532, %v3692
        %v3694 = vpop.f32.mrf.mxu0
        %v3695 = vpop.f32.mrf.mxu0
        %v3696 = vadd.f32 %v3535, %v3695
        %v3697 = vpop.f32.mrf.mxu0
        %3698 = vmatprep.mubr.bf16.mxu0 %v2797
        %3699 = vmatmul.mubr.bf16.gmra.mxu0 %v2796
        %v3700 = vpop.f32.mrf.mxu0
        %v3701 = vadd.f32 %v3540, %v3700
        %v3702 = vpop.f32.mrf.mxu0
        %v3703 = vpop.f32.mrf.mxu0
        %v3704 = vadd.f32 %v3543, %v3703
        %v3705 = vpop.f32.mrf.mxu0
        %3706 = vmatprep.mubr.bf16.mxu0 %v2806
        %3707 = vmatmul.mubr.bf16.gmra.mxu0 %v2805
        %v3708 = vpop.f32.mrf.mxu0
        %v3709 = vadd.f32 %v3548, %v3708
        %v3710 = vpop.f32.mrf.mxu0
        %v3711 = vpop.f32.mrf.mxu0
        %v3712 = vadd.f32 %v3551, %v3711
        %v3713 = vpop.f32.mrf.mxu0
        %3714 = vmatprep.mubr.bf16.mxu0 %v2815
        %3715 = vmatmul.mubr.bf16.gmra.mxu0 %v2814
        %v3716 = vpop.f32.mrf.mxu0
        %v3717 = vadd.f32 %v3556, %v3716
        %v3718 = vpop.f32.mrf.mxu0
        %v3719 = vpop.f32.mrf.mxu0
        %v3720 = vadd.f32 %v3559, %v3719
        %v3721 = vpop.f32.mrf.mxu0
        %3722 = vmatprep.mubr.bf16.mxu0 %v2824
        %3723 = vmatmul.mubr.bf16.gmra.mxu0 %v2823
        %v3724 = vpop.f32.mrf.mxu0
        %v3725 = vadd.f32 %v3564, %v3724
        %v3726 = vpop.f32.mrf.mxu0
        %v3727 = vpop.f32.mrf.mxu0
        %v3728 = vadd.f32 %v3567, %v3727
        %v3729 = vpop.f32.mrf.mxu0
        %3730 = vmatprep.mubr.bf16.mxu0 %v2833
        %3731 = vmatmul.mubr.bf16.gmra.mxu0 %v2832
        %v3732 = vpop.f32.mrf.mxu0
        %v3733 = vadd.f32 %v3572, %v3732
        %v3734 = vpop.f32.mrf.mxu0
        %v3735 = vpop.f32.mrf.mxu0
        %v3736 = vadd.f32 %v3575, %v3735
        %v3737 = vpop.f32.mrf.mxu0
        %3738 = vmatprep.mubr.bf16.mxu0 %v2842
        %3739 = vmatmul.mubr.bf16.gmra.mxu0 %v2841
        %v3740 = vpop.f32.mrf.mxu0
        %v3741 = vadd.f32 %v3580, %v3740
        %v3742 = vpop.f32.mrf.mxu0
        %v3743 = vpop.f32.mrf.mxu0
        %v3744 = vadd.f32 %v3583, %v3743
        %v3745 = vpop.f32.mrf.mxu0
        %3746 = vmatprep.mubr.bf16.mxu0 %v2851
        %3747 = vmatmul.mubr.bf16.gmra.mxu0 %v2850
        %v3748 = vpop.f32.mrf.mxu0
        %v3749 = vadd.f32 %v3588, %v3748
        %v3750 = vpop.f32.mrf.mxu0
        %v3751 = vpop.f32.mrf.mxu0
        %v3752 = vadd.f32 %v3591, %v3751
        %v3753 = vpop.f32.mrf.mxu0
        %3754 = vdwg.mxu0
        %3755 = vmatprep.subr.bf16.mxu0 0
        %3756 = vmatpush1.bf16.msra.mxu0 %v3328
        %3757 = vmatprep.subr.bf16.mxu0 0
        %3758 = vmatpush1.bf16.msra.mxu0 %v3327
        %3759 = vmatprep.subr.bf16.mxu0 0
        %3760 = vmatpush1.bf16.msra.mxu0 %v3326
        %3761 = vmatprep.subr.bf16.mxu0 0
        %3762 = vmatpush1.bf16.msra.mxu0 %v3325
        %3763 = vmatprep.subr.bf16.mxu0 0
        %3764 = vmatpush1.bf16.msra.mxu0 %v3324
        %3765 = vmatprep.subr.bf16.mxu0 0
        %3766 = vmatpush1.bf16.msra.mxu0 %v3323
        %3767 = vmatprep.subr.bf16.mxu0 0
        %3768 = vmatpush1.bf16.msra.mxu0 %v3322
        %3769 = vmatprep.subr.bf16.mxu0 0
        %3770 = vmatpush1.bf16.msra.mxu0 %v3321
        %3771 = vmatprep.subr.bf16.mxu0 0
        %3772 = vmatpush2.bf16.msra.mxu0 %v3336
        %3773 = vmatprep.subr.bf16.mxu0 0
        %3774 = vmatpush2.bf16.msra.mxu0 %v3335
        %3775 = vmatprep.subr.bf16.mxu0 0
        %3776 = vmatpush2.bf16.msra.mxu0 %v3334
        %3777 = vmatprep.subr.bf16.mxu0 0
        %3778 = vmatpush2.bf16.msra.mxu0 %v3333
        %3779 = vmatprep.subr.bf16.mxu0 0
        %3780 = vmatpush2.bf16.msra.mxu0 %v3332
        %3781 = vmatprep.subr.bf16.mxu0 0
        %3782 = vmatpush2.bf16.msra.mxu0 %v3331
        %3783 = vmatprep.subr.bf16.mxu0 0
        %3784 = vmatpush2.bf16.msra.mxu0 %v3330
        %3785 = vmatprep.subr.bf16.mxu0 0
        %3786 = vmatpush2.bf16.msra.mxu0 %v3329
        %3787 = vmatprep.mubr.bf16.mxu0 %v2718
        %3788 = vmatmul.mubr.bf16.gmra.mxu0 %v2717
        %v3789 = vpop.f32.mrf.mxu0
        %v3790 = vadd.f32 %v3629, %v3789
        %v3791 = vpop.f32.mrf.mxu0
        %v3792 = vpop.f32.mrf.mxu0
        %v3793 = vadd.f32 %v3632, %v3792
        %v3794 = vpop.f32.mrf.mxu0
        %3795 = vmatprep.mubr.bf16.mxu0 %v2727
        %3796 = vmatmul.mubr.bf16.gmra.mxu0 %v2726
        %v3797 = vpop.f32.mrf.mxu0
        %v3798 = vadd.f32 %v3637, %v3797
        %v3799 = vpop.f32.mrf.mxu0
        %v3800 = vpop.f32.mrf.mxu0
        %v3801 = vadd.f32 %v3640, %v3800
        %v3802 = vpop.f32.mrf.mxu0
        %3803 = vmatprep.mubr.bf16.mxu0 %v2736
        %3804 = vmatmul.mubr.bf16.gmra.mxu0 %v2735
        %v3805 = vpop.f32.mrf.mxu0
        %v3806 = vadd.f32 %v3645, %v3805
        %v3807 = vpop.f32.mrf.mxu0
        %v3808 = vpop.f32.mrf.mxu0
        %v3809 = vadd.f32 %v3648, %v3808
        %v3810 = vpop.f32.mrf.mxu0
        %3811 = vmatprep.mubr.bf16.mxu0 %v2745
        %3812 = vmatmul.mubr.bf16.gmra.mxu0 %v2744
        %v3813 = vpop.f32.mrf.mxu0
        %v3814 = vadd.f32 %v3653, %v3813
        %v3815 = vpop.f32.mrf.mxu0
        %v3816 = vpop.f32.mrf.mxu0
        %v3817 = vadd.f32 %v3656, %v3816
        %v3818 = vpop.f32.mrf.mxu0
        %3819 = vmatprep.mubr.bf16.mxu0 %v2754
        %3820 = vmatmul.mubr.bf16.gmra.mxu0 %v2753
        %v3821 = vpop.f32.mrf.mxu0
        %v3822 = vadd.f32 %v3661, %v3821
        %v3823 = vpop.f32.mrf.mxu0
        %v3824 = vpop.f32.mrf.mxu0
        %v3825 = vadd.f32 %v3664, %v3824
        %v3826 = vpop.f32.mrf.mxu0
        %3827 = vmatprep.mubr.bf16.mxu0 %v2763
        %3828 = vmatmul.mubr.bf16.gmra.mxu0 %v2762
        %v3829 = vpop.f32.mrf.mxu0
        %v3830 = vadd.f32 %v3669, %v3829
        %v3831 = vpop.f32.mrf.mxu0
        %v3832 = vpop.f32.mrf.mxu0
        %v3833 = vadd.f32 %v3672, %v3832
        %v3834 = vpop.f32.mrf.mxu0
        %3835 = vmatprep.mubr.bf16.mxu0 %v2772
        %3836 = vmatmul.mubr.bf16.gmra.mxu0 %v2771
        %v3837 = vpop.f32.mrf.mxu0
        %v3838 = vadd.f32 %v3677, %v3837
        %v3839 = vpop.f32.mrf.mxu0
        %v3840 = vpop.f32.mrf.mxu0
        %v3841 = vadd.f32 %v3680, %v3840
        %v3842 = vpop.f32.mrf.mxu0
        %3843 = vmatprep.mubr.bf16.mxu0 %v2781
        %3844 = vmatmul.mubr.bf16.gmra.mxu0 %v2780
        %v3845 = vpop.f32.mrf.mxu0
        %v3846 = vadd.f32 %v3685, %v3845
        %v3847 = vpop.f32.mrf.mxu0
        %v3848 = vpop.f32.mrf.mxu0
        %v3849 = vadd.f32 %v3688, %v3848
        %v3850 = vpop.f32.mrf.mxu0
        %3851 = vmatprep.mubr.bf16.mxu0 %v2790
        %3852 = vmatmul.mubr.bf16.gmra.mxu0 %v2789
        %v3853 = vpop.f32.mrf.mxu0
        %v3854 = vadd.f32 %v3693, %v3853
        %v3855 = vpop.f32.mrf.mxu0
        %v3856 = vpop.f32.mrf.mxu0
        %v3857 = vadd.f32 %v3696, %v3856
        %v3858 = vpop.f32.mrf.mxu0
        %3859 = vmatprep.mubr.bf16.mxu0 %v2799
        %3860 = vmatmul.mubr.bf16.gmra.mxu0 %v2798
        %v3861 = vpop.f32.mrf.mxu0
        %v3862 = vadd.f32 %v3701, %v3861
        %v3863 = vpop.f32.mrf.mxu0
        %v3864 = vpop.f32.mrf.mxu0
        %v3865 = vadd.f32 %v3704, %v3864
        %v3866 = vpop.f32.mrf.mxu0
        %3867 = vmatprep.mubr.bf16.mxu0 %v2808
        %3868 = vmatmul.mubr.bf16.gmra.mxu0 %v2807
        %v3869 = vpop.f32.mrf.mxu0
        %v3870 = vadd.f32 %v3709, %v3869
        %v3871 = vpop.f32.mrf.mxu0
        %v3872 = vpop.f32.mrf.mxu0
        %v3873 = vadd.f32 %v3712, %v3872
        %v3874 = vpop.f32.mrf.mxu0
        %3875 = vmatprep.mubr.bf16.mxu0 %v2817
        %3876 = vmatmul.mubr.bf16.gmra.mxu0 %v2816
        %v3877 = vpop.f32.mrf.mxu0
        %v3878 = vadd.f32 %v3717, %v3877
        %v3879 = vpop.f32.mrf.mxu0
        %v3880 = vpop.f32.mrf.mxu0
        %v3881 = vadd.f32 %v3720, %v3880
        %v3882 = vpop.f32.mrf.mxu0
        %3883 = vmatprep.mubr.bf16.mxu0 %v2826
        %3884 = vmatmul.mubr.bf16.gmra.mxu0 %v2825
        %v3885 = vpop.f32.mrf.mxu0
        %v3886 = vadd.f32 %v3725, %v3885
        %v3887 = vpop.f32.mrf.mxu0
        %v3888 = vpop.f32.mrf.mxu0
        %v3889 = vadd.f32 %v3728, %v3888
        %v3890 = vpop.f32.mrf.mxu0
        %3891 = vmatprep.mubr.bf16.mxu0 %v2835
        %3892 = vmatmul.mubr.bf16.gmra.mxu0 %v2834
        %v3893 = vpop.f32.mrf.mxu0
        %v3894 = vadd.f32 %v3733, %v3893
        %v3895 = vpop.f32.mrf.mxu0
        %v3896 = vpop.f32.mrf.mxu0
        %v3897 = vadd.f32 %v3736, %v3896
        %v3898 = vpop.f32.mrf.mxu0
        %3899 = vmatprep.mubr.bf16.mxu0 %v2844
        %3900 = vmatmul.mubr.bf16.gmra.mxu0 %v2843
        %v3901 = vpop.f32.mrf.mxu0
        %v3902 = vadd.f32 %v3741, %v3901
        %v3903 = vpop.f32.mrf.mxu0
        %v3904 = vpop.f32.mrf.mxu0
        %v3905 = vadd.f32 %v3744, %v3904
        %v3906 = vpop.f32.mrf.mxu0
        %3907 = vmatprep.mubr.bf16.mxu0 %v2853
        %3908 = vmatmul.mubr.bf16.gmra.mxu0 %v2852
        %v3909 = vpop.f32.mrf.mxu0
        %v3910 = vadd.f32 %v3749, %v3909
        %v3911 = vpop.f32.mrf.mxu0
        %v3912 = vpop.f32.mrf.mxu0
        %v3913 = vadd.f32 %v3752, %v3912
        %v3914 = vpop.f32.mrf.mxu0
        %3915 = vdwg.mxu0
        %3916 = vmatprep.subr.bf16.mxu0 0
        %3917 = vmatpush1.bf16.msra.mxu0 %v3344
        %3918 = vmatprep.subr.bf16.mxu0 0
        %3919 = vmatpush1.bf16.msra.mxu0 %v3343
        %3920 = vmatprep.subr.bf16.mxu0 0
        %3921 = vmatpush1.bf16.msra.mxu0 %v3342
        %3922 = vmatprep.subr.bf16.mxu0 0
        %3923 = vmatpush1.bf16.msra.mxu0 %v3341
        %3924 = vmatprep.subr.bf16.mxu0 0
        %3925 = vmatpush1.bf16.msra.mxu0 %v3340
        %3926 = vmatprep.subr.bf16.mxu0 0
        %3927 = vmatpush1.bf16.msra.mxu0 %v3339
        %3928 = vmatprep.subr.bf16.mxu0 0
        %3929 = vmatpush1.bf16.msra.mxu0 %v3338
        %3930 = vmatprep.subr.bf16.mxu0 0
        %3931 = vmatpush1.bf16.msra.mxu0 %v3337
        %3932 = vmatprep.subr.bf16.mxu0 0
        %3933 = vmatpush2.bf16.msra.mxu0 %v3352
        %3934 = vmatprep.subr.bf16.mxu0 0
        %3935 = vmatpush2.bf16.msra.mxu0 %v3351
        %3936 = vmatprep.subr.bf16.mxu0 0
        %3937 = vmatpush2.bf16.msra.mxu0 %v3350
        %3938 = vmatprep.subr.bf16.mxu0 0
        %3939 = vmatpush2.bf16.msra.mxu0 %v3349
        %3940 = vmatprep.subr.bf16.mxu0 0
        %3941 = vmatpush2.bf16.msra.mxu0 %v3348
        %3942 = vmatprep.subr.bf16.mxu0 0
        %3943 = vmatpush2.bf16.msra.mxu0 %v3347
        %3944 = vmatprep.subr.bf16.mxu0 0
        %3945 = vmatpush2.bf16.msra.mxu0 %v3346
        %3946 = vmatprep.subr.bf16.mxu0 0
        %3947 = vmatpush2.bf16.msra.mxu0 %v3345
        %3948 = vmatprep.mubr.bf16.mxu0 %v2720
        %3949 = vmatmul.mubr.bf16.gmra.mxu0 %v2719
        %v3950 = vpop.f32.mrf.mxu0
        %v3951 = vadd.f32 %v3790, %v3950
        %v3952 = vpop.f32.mrf.mxu0
        %v3953 = vpop.f32.mrf.mxu0
        %v3954 = vadd.f32 %v3793, %v3953
        %v3955 = vpop.f32.mrf.mxu0
        %3956 = vmatprep.mubr.bf16.mxu0 %v2729
        %3957 = vmatmul.mubr.bf16.gmra.mxu0 %v2728
        %v3958 = vpop.f32.mrf.mxu0
        %v3959 = vadd.f32 %v3798, %v3958
        %v3960 = vpop.f32.mrf.mxu0
        %v3961 = vpop.f32.mrf.mxu0
        %v3962 = vadd.f32 %v3801, %v3961
        %v3963 = vpop.f32.mrf.mxu0
        %3964 = vmatprep.mubr.bf16.mxu0 %v2738
        %3965 = vmatmul.mubr.bf16.gmra.mxu0 %v2737
        %v3966 = vpop.f32.mrf.mxu0
        %v3967 = vadd.f32 %v3806, %v3966
        %v3968 = vpop.f32.mrf.mxu0
        %v3969 = vpop.f32.mrf.mxu0
        %v3970 = vadd.f32 %v3809, %v3969
        %v3971 = vpop.f32.mrf.mxu0
        %3972 = vmatprep.mubr.bf16.mxu0 %v2747
        %3973 = vmatmul.mubr.bf16.gmra.mxu0 %v2746
        %v3974 = vpop.f32.mrf.mxu0
        %v3975 = vadd.f32 %v3814, %v3974
        %v3976 = vpop.f32.mrf.mxu0
        %v3977 = vpop.f32.mrf.mxu0
        %v3978 = vadd.f32 %v3817, %v3977
        %v3979 = vpop.f32.mrf.mxu0
        %3980 = vmatprep.mubr.bf16.mxu0 %v2756
        %3981 = vmatmul.mubr.bf16.gmra.mxu0 %v2755
        %v3982 = vpop.f32.mrf.mxu0
        %v3983 = vadd.f32 %v3822, %v3982
        %v3984 = vpop.f32.mrf.mxu0
        %v3985 = vpop.f32.mrf.mxu0
        %v3986 = vadd.f32 %v3825, %v3985
        %v3987 = vpop.f32.mrf.mxu0
        %3988 = vmatprep.mubr.bf16.mxu0 %v2765
        %3989 = vmatmul.mubr.bf16.gmra.mxu0 %v2764
        %v3990 = vpop.f32.mrf.mxu0
        %v3991 = vadd.f32 %v3830, %v3990
        %v3992 = vpop.f32.mrf.mxu0
        %v3993 = vpop.f32.mrf.mxu0
        %v3994 = vadd.f32 %v3833, %v3993
        %v3995 = vpop.f32.mrf.mxu0
        %3996 = vmatprep.mubr.bf16.mxu0 %v2774
        %3997 = vmatmul.mubr.bf16.gmra.mxu0 %v2773
        %v3998 = vpop.f32.mrf.mxu0
        %v3999 = vadd.f32 %v3838, %v3998
        %v4000 = vpop.f32.mrf.mxu0
        %v4001 = vpop.f32.mrf.mxu0
        %v4002 = vadd.f32 %v3841, %v4001
        %v4003 = vpop.f32.mrf.mxu0
        %4004 = vmatprep.mubr.bf16.mxu0 %v2783
        %4005 = vmatmul.mubr.bf16.gmra.mxu0 %v2782
        %v4006 = vpop.f32.mrf.mxu0
        %v4007 = vadd.f32 %v3846, %v4006
        %v4008 = vpop.f32.mrf.mxu0
        %v4009 = vpop.f32.mrf.mxu0
        %v4010 = vadd.f32 %v3849, %v4009
        %v4011 = vpop.f32.mrf.mxu0
        %4012 = vmatprep.mubr.bf16.mxu0 %v2792
        %4013 = vmatmul.mubr.bf16.gmra.mxu0 %v2791
        %v4014 = vpop.f32.mrf.mxu0
        %v4015 = vadd.f32 %v3854, %v4014
        %v4016 = vpop.f32.mrf.mxu0
        %v4017 = vpop.f32.mrf.mxu0
        %v4018 = vadd.f32 %v3857, %v4017
        %v4019 = vpop.f32.mrf.mxu0
        %4020 = vmatprep.mubr.bf16.mxu0 %v2801
        %4021 = vmatmul.mubr.bf16.gmra.mxu0 %v2800
        %v4022 = vpop.f32.mrf.mxu0
        %v4023 = vadd.f32 %v3862, %v4022
        %v4024 = vpop.f32.mrf.mxu0
        %v4025 = vpop.f32.mrf.mxu0
        %v4026 = vadd.f32 %v3865, %v4025
        %v4027 = vpop.f32.mrf.mxu0
        %4028 = vmatprep.mubr.bf16.mxu0 %v2810
        %4029 = vmatmul.mubr.bf16.gmra.mxu0 %v2809
        %v4030 = vpop.f32.mrf.mxu0
        %v4031 = vadd.f32 %v3870, %v4030
        %v4032 = vpop.f32.mrf.mxu0
        %v4033 = vpop.f32.mrf.mxu0
        %v4034 = vadd.f32 %v3873, %v4033
        %v4035 = vpop.f32.mrf.mxu0
        %4036 = vmatprep.mubr.bf16.mxu0 %v2819
        %4037 = vmatmul.mubr.bf16.gmra.mxu0 %v2818
        %v4038 = vpop.f32.mrf.mxu0
        %v4039 = vadd.f32 %v3878, %v4038
        %v4040 = vpop.f32.mrf.mxu0
        %v4041 = vpop.f32.mrf.mxu0
        %v4042 = vadd.f32 %v3881, %v4041
        %v4043 = vpop.f32.mrf.mxu0
        %4044 = vmatprep.mubr.bf16.mxu0 %v2828
        %4045 = vmatmul.mubr.bf16.gmra.mxu0 %v2827
        %v4046 = vpop.f32.mrf.mxu0
        %v4047 = vadd.f32 %v3886, %v4046
        %v4048 = vpop.f32.mrf.mxu0
        %v4049 = vpop.f32.mrf.mxu0
        %v4050 = vadd.f32 %v3889, %v4049
        %v4051 = vpop.f32.mrf.mxu0
        %4052 = vmatprep.mubr.bf16.mxu0 %v2837
        %4053 = vmatmul.mubr.bf16.gmra.mxu0 %v2836
        %v4054 = vpop.f32.mrf.mxu0
        %v4055 = vadd.f32 %v3894, %v4054
        %v4056 = vpop.f32.mrf.mxu0
        %v4057 = vpop.f32.mrf.mxu0
        %v4058 = vadd.f32 %v3897, %v4057
        %v4059 = vpop.f32.mrf.mxu0
        %4060 = vmatprep.mubr.bf16.mxu0 %v2846
        %4061 = vmatmul.mubr.bf16.gmra.mxu0 %v2845
        %v4062 = vpop.f32.mrf.mxu0
        %v4063 = vadd.f32 %v3902, %v4062
        %v4064 = vpop.f32.mrf.mxu0
        %v4065 = vpop.f32.mrf.mxu0
        %v4066 = vadd.f32 %v3905, %v4065
        %v4067 = vpop.f32.mrf.mxu0
        %4068 = vmatprep.mubr.bf16.mxu0 %v2855
        %4069 = vmatmul.mubr.bf16.gmra.mxu0 %v2854
        %v4070 = vpop.f32.mrf.mxu0
        %v4071 = vadd.f32 %v3910, %v4070
        %v4072 = vpop.f32.mrf.mxu0
        %v4073 = vpop.f32.mrf.mxu0
        %v4074 = vadd.f32 %v3913, %v4073
        %v4075 = vpop.f32.mrf.mxu0
        %4076 = vdwg.mxu0
        %4077 = vmatprep.subr.bf16.mxu0 0
        %4078 = vmatpush1.bf16.msra.mxu0 %v3360
        %4079 = vmatprep.subr.bf16.mxu0 0
        %4080 = vmatpush1.bf16.msra.mxu0 %v3359
        %4081 = vmatprep.subr.bf16.mxu0 0
        %4082 = vmatpush1.bf16.msra.mxu0 %v3358
        %4083 = vmatprep.subr.bf16.mxu0 0
        %4084 = vmatpush1.bf16.msra.mxu0 %v3357
        %4085 = vmatprep.subr.bf16.mxu0 0
        %4086 = vmatpush1.bf16.msra.mxu0 %v3356
        %4087 = vmatprep.subr.bf16.mxu0 0
        %4088 = vmatpush1.bf16.msra.mxu0 %v3355
        %4089 = vmatprep.subr.bf16.mxu0 0
        %4090 = vmatpush1.bf16.msra.mxu0 %v3354
        %4091 = vmatprep.subr.bf16.mxu0 0
        %4092 = vmatpush1.bf16.msra.mxu0 %v3353
        %4093 = vmatprep.subr.bf16.mxu0 0
        %4094 = vmatpush2.bf16.msra.mxu0 0
        %4095 = vmatprep.subr.bf16.mxu0 0
        %4096 = vmatpush2.bf16.msra.mxu0 0
        %4097 = vmatprep.subr.bf16.mxu0 0
        %4098 = vmatpush2.bf16.msra.mxu0 0
        %4099 = vmatprep.subr.bf16.mxu0 0
        %4100 = vmatpush2.bf16.msra.mxu0 0
        %4101 = vmatprep.subr.bf16.mxu0 0
        %4102 = vmatpush2.bf16.msra.mxu0 0
        %4103 = vmatprep.subr.bf16.mxu0 0
        %4104 = vmatpush2.bf16.msra.mxu0 0
        %4105 = vmatprep.subr.bf16.mxu0 0
        %4106 = vmatpush2.bf16.msra.mxu0 0
        %4107 = vmatprep.subr.bf16.mxu0 0
        %4108 = vmatpush2.bf16.msra.mxu0 0
        %4109 = vmatprep.mubr.bf16.mxu0 0
        %4110 = vmatmul.mubr.bf16.gmra.mxu0 %v2721
        %v4111 = vpop.f32.mrf.mxu0
        %v4112 = vadd.f32 %v3951, %v4111
        %v4113 = vpop.f32.mrf.mxu0
        %v4114 = vpop.f32.mrf.mxu0
        %v4115 = vadd.f32 %v3954, %v4114
        %v4116 = vpop.f32.mrf.mxu0
        %4117 = vmatprep.mubr.bf16.mxu0 0
        %4118 = vmatmul.mubr.bf16.gmra.mxu0 %v2730
        %v4119 = vpop.f32.mrf.mxu0
        %v4120 = vadd.f32 %v3959, %v4119
        %v4121 = vpop.f32.mrf.mxu0
        %v4122 = vpop.f32.mrf.mxu0
        %v4123 = vadd.f32 %v3962, %v4122
        %v4124 = vpop.f32.mrf.mxu0
        %4125 = vmatprep.mubr.bf16.mxu0 0
        %4126 = vmatmul.mubr.bf16.gmra.mxu0 %v2739
        %v4127 = vpop.f32.mrf.mxu0
        %v4128 = vadd.f32 %v3967, %v4127
        %v4129 = vpop.f32.mrf.mxu0
        %v4130 = vpop.f32.mrf.mxu0
        %v4131 = vadd.f32 %v3970, %v4130
        %v4132 = vpop.f32.mrf.mxu0
        %4133 = vmatprep.mubr.bf16.mxu0 0
        %4134 = vmatmul.mubr.bf16.gmra.mxu0 %v2748
        %v4135 = vpop.f32.mrf.mxu0
        %v4136 = vadd.f32 %v3975, %v4135
        %v4137 = vpop.f32.mrf.mxu0
        %v4138 = vpop.f32.mrf.mxu0
        %v4139 = vadd.f32 %v3978, %v4138
        %v4140 = vpop.f32.mrf.mxu0
        %4141 = vmatprep.mubr.bf16.mxu0 0
        %4142 = vmatmul.mubr.bf16.gmra.mxu0 %v2757
        %v4143 = vpop.f32.mrf.mxu0
        %v4144 = vadd.f32 %v3983, %v4143
        %v4145 = vpop.f32.mrf.mxu0
        %v4146 = vpop.f32.mrf.mxu0
        %v4147 = vadd.f32 %v3986, %v4146
        %v4148 = vpop.f32.mrf.mxu0
        %4149 = vmatprep.mubr.bf16.mxu0 0
        %4150 = vmatmul.mubr.bf16.gmra.mxu0 %v2766
        %v4151 = vpop.f32.mrf.mxu0
        %v4152 = vadd.f32 %v3991, %v4151
        %v4153 = vpop.f32.mrf.mxu0
        %v4154 = vpop.f32.mrf.mxu0
        %v4155 = vadd.f32 %v3994, %v4154
        %v4156 = vpop.f32.mrf.mxu0
        %4157 = vmatprep.mubr.bf16.mxu0 0
        %4158 = vmatmul.mubr.bf16.gmra.mxu0 %v2775
        %v4159 = vpop.f32.mrf.mxu0
        %v4160 = vadd.f32 %v3999, %v4159
        %v4161 = vpop.f32.mrf.mxu0
        %v4162 = vpop.f32.mrf.mxu0
        %v4163 = vadd.f32 %v4002, %v4162
        %v4164 = vpop.f32.mrf.mxu0
        %4165 = vmatprep.mubr.bf16.mxu0 0
        %4166 = vmatmul.mubr.bf16.gmra.mxu0 %v2784
        %v4167 = vpop.f32.mrf.mxu0
        %v4168 = vadd.f32 %v4007, %v4167
        %v4169 = vpop.f32.mrf.mxu0
        %v4170 = vpop.f32.mrf.mxu0
        %v4171 = vadd.f32 %v4010, %v4170
        %v4172 = vpop.f32.mrf.mxu0
        %4173 = vmatprep.mubr.bf16.mxu0 0
        %4174 = vmatmul.mubr.bf16.gmra.mxu0 %v2793
        %v4175 = vpop.f32.mrf.mxu0
        %v4176 = vadd.f32 %v4015, %v4175
        %v4177 = vpop.f32.mrf.mxu0
        %v4178 = vpop.f32.mrf.mxu0
        %v4179 = vadd.f32 %v4018, %v4178
        %v4180 = vpop.f32.mrf.mxu0
        %4181 = vmatprep.mubr.bf16.mxu0 0
        %4182 = vmatmul.mubr.bf16.gmra.mxu0 %v2802
        %v4183 = vpop.f32.mrf.mxu0
        %v4184 = vadd.f32 %v4023, %v4183
        %v4185 = vpop.f32.mrf.mxu0
        %v4186 = vpop.f32.mrf.mxu0
        %v4187 = vadd.f32 %v4026, %v4186
        %v4188 = vpop.f32.mrf.mxu0
        %4189 = vmatprep.mubr.bf16.mxu0 0
        %4190 = vmatmul.mubr.bf16.gmra.mxu0 %v2811
        %v4191 = vpop.f32.mrf.mxu0
        %v4192 = vadd.f32 %v4031, %v4191
        %v4193 = vpop.f32.mrf.mxu0
        %v4194 = vpop.f32.mrf.mxu0
        %v4195 = vadd.f32 %v4034, %v4194
        %v4196 = vpop.f32.mrf.mxu0
        %4197 = vmatprep.mubr.bf16.mxu0 0
        %4198 = vmatmul.mubr.bf16.gmra.mxu0 %v2820
        %v4199 = vpop.f32.mrf.mxu0
        %v4200 = vadd.f32 %v4039, %v4199
        %v4201 = vpop.f32.mrf.mxu0
        %v4202 = vpop.f32.mrf.mxu0
        %v4203 = vadd.f32 %v4042, %v4202
        %v4204 = vpop.f32.mrf.mxu0
        %4205 = vmatprep.mubr.bf16.mxu0 0
        %4206 = vmatmul.mubr.bf16.gmra.mxu0 %v2829
        %v4207 = vpop.f32.mrf.mxu0
        %v4208 = vadd.f32 %v4047, %v4207
        %v4209 = vpop.f32.mrf.mxu0
        %v4210 = vpop.f32.mrf.mxu0
        %v4211 = vadd.f32 %v4050, %v4210
        %v4212 = vpop.f32.mrf.mxu0
        %4213 = vmatprep.mubr.bf16.mxu0 0
        %4214 = vmatmul.mubr.bf16.gmra.mxu0 %v2838
        %v4215 = vpop.f32.mrf.mxu0
        %v4216 = vadd.f32 %v4055, %v4215
        %v4217 = vpop.f32.mrf.mxu0
        %v4218 = vpop.f32.mrf.mxu0
        %v4219 = vadd.f32 %v4058, %v4218
        %v4220 = vpop.f32.mrf.mxu0
        %4221 = vmatprep.mubr.bf16.mxu0 0
        %4222 = vmatmul.mubr.bf16.gmra.mxu0 %v2847
        %v4223 = vpop.f32.mrf.mxu0
        %v4224 = vadd.f32 %v4063, %v4223
        %v4225 = vpop.f32.mrf.mxu0
        %v4226 = vpop.f32.mrf.mxu0
        %v4227 = vadd.f32 %v4066, %v4226
        %v4228 = vpop.f32.mrf.mxu0
        %4229 = vmatprep.mubr.bf16.mxu0 0
        %4230 = vmatmul.mubr.bf16.gmra.mxu0 %v2856
        %v4231 = vpop.f32.mrf.mxu0
        %v4232 = vadd.f32 %v4071, %v4231
        %v4233 = vpop.f32.mrf.mxu0
        %v4234 = vpop.f32.mrf.mxu0
        %v4235 = vadd.f32 %v4074, %v4234
        %v4236 = vpop.f32.mrf.mxu0
        %4237 = vdwg.mxu0
        %v4238 = vsub.f32 0.0, %v4112
        %v4239 = vsub.f32 0.0, %v4115
        %v4240 = vsub.f32 0.0, %v4120
        %v4241 = vsub.f32 0.0, %v4123
        %v4242 = vsub.f32 0.0, %v4128
        %v4243 = vsub.f32 0.0, %v4131
        %v4244 = vsub.f32 0.0, %v4136
        %v4245 = vsub.f32 0.0, %v4139
        %v4246 = vsub.f32 0.0, %v4144
        %v4247 = vsub.f32 0.0, %v4147
        %v4248 = vsub.f32 0.0, %v4152
        %v4249 = vsub.f32 0.0, %v4155
        %v4250 = vsub.f32 0.0, %v4160
        %v4251 = vsub.f32 0.0, %v4163
        %v4252 = vsub.f32 0.0, %v4168
        %v4253 = vsub.f32 0.0, %v4171
        %v4254 = vsub.f32 0.0, %v4176
        %v4255 = vsub.f32 0.0, %v4179
        %v4256 = vsub.f32 0.0, %v4184
        %v4257 = vsub.f32 0.0, %v4187
        %v4258 = vsub.f32 0.0, %v4192
        %v4259 = vsub.f32 0.0, %v4195
        %v4260 = vsub.f32 0.0, %v4200
        %v4261 = vsub.f32 0.0, %v4203
        %v4262 = vsub.f32 0.0, %v4208
        %v4263 = vsub.f32 0.0, %v4211
        %v4264 = vsub.f32 0.0, %v4216
        %v4265 = vsub.f32 0.0, %v4219
        %v4266 = vsub.f32 0.0, %v4224
        %v4267 = vsub.f32 0.0, %v4227
        %v4268 = vsub.f32 0.0, %v4232
        %v4269 = vsub.f32 0.0, %v4235
        %v4270 = vmul.f32 %v4238, 1.442695
        %v4271 = vpow.pop %v4270
        %v4272 = vmul.f32 %v4239, 1.442695
        %v4273 = vpow.pop %v4272
        %v4274 = vmul.f32 %v4240, 1.442695
        %v4275 = vpow.pop %v4274
        %v4276 = vmul.f32 %v4241, 1.442695
        %v4277 = vpow.pop %v4276
        %v4278 = vmul.f32 %v4242, 1.442695
        %v4279 = vpow.pop %v4278
        %v4280 = vmul.f32 %v4243, 1.442695
        %v4281 = vpow.pop %v4280
        %v4282 = vmul.f32 %v4244, 1.442695
        %v4283 = vpow.pop %v4282
        %v4284 = vmul.f32 %v4245, 1.442695
        %v4285 = vpow.pop %v4284
        %v4286 = vmul.f32 %v4246, 1.442695
        %v4287 = vpow.pop %v4286
        %v4288 = vmul.f32 %v4247, 1.442695
        %v4289 = vpow.pop %v4288
        %v4290 = vmul.f32 %v4248, 1.442695
        %v4291 = vpow.pop %v4290
        %v4292 = vmul.f32 %v4249, 1.442695
        %v4293 = vpow.pop %v4292
        %v4294 = vmul.f32 %v4250, 1.442695
        %v4295 = vpow.pop %v4294
        %v4296 = vmul.f32 %v4251, 1.442695
        %v4297 = vpow.pop %v4296
        %v4298 = vmul.f32 %v4252, 1.442695
        %v4299 = vpow.pop %v4298
        %v4300 = vmul.f32 %v4253, 1.442695
        %v4301 = vpow.pop %v4300
        %v4302 = vmul.f32 %v4254, 1.442695
        %v4303 = vpow.pop %v4302
        %v4304 = vmul.f32 %v4255, 1.442695
        %v4305 = vpow.pop %v4304
        %v4306 = vmul.f32 %v4256, 1.442695
        %v4307 = vpow.pop %v4306
        %v4308 = vmul.f32 %v4257, 1.442695
        %v4309 = vpow.pop %v4308
        %v4310 = vmul.f32 %v4258, 1.442695
        %v4311 = vpow.pop %v4310
        %v4312 = vmul.f32 %v4259, 1.442695
        %v4313 = vpow.pop %v4312
        %v4314 = vmul.f32 %v4260, 1.442695
        %v4315 = vpow.pop %v4314
        %v4316 = vmul.f32 %v4261, 1.442695
        %v4317 = vpow.pop %v4316
        %v4318 = vmul.f32 %v4262, 1.442695
        %v4319 = vpow.pop %v4318
        %v4320 = vmul.f32 %v4263, 1.442695
        %v4321 = vpow.pop %v4320
        %v4322 = vmul.f32 %v4264, 1.442695
        %v4323 = vpow.pop %v4322
        %v4324 = vmul.f32 %v4265, 1.442695
        %v4325 = vpow.pop %v4324
        %v4326 = vmul.f32 %v4266, 1.442695
        %v4327 = vpow.pop %v4326
        %v4328 = vmul.f32 %v4267, 1.442695
        %v4329 = vpow.pop %v4328
        %v4330 = vmul.f32 %v4268, 1.442695
        %v4331 = vpow.pop %v4330
        %v4332 = vmul.f32 %v4269, 1.442695
        %v4333 = vpow.pop %v4332
        %v4334 = vadd.f32 %v4271, 1.0
        %v4335 = vadd.f32 %v4273, 1.0
        %v4336 = vadd.f32 %v4275, 1.0
        %v4337 = vadd.f32 %v4277, 1.0
        %v4338 = vadd.f32 %v4279, 1.0
        %v4339 = vadd.f32 %v4281, 1.0
        %v4340 = vadd.f32 %v4283, 1.0
        %v4341 = vadd.f32 %v4285, 1.0
        %v4342 = vadd.f32 %v4287, 1.0
        %v4343 = vadd.f32 %v4289, 1.0
        %v4344 = vadd.f32 %v4291, 1.0
        %v4345 = vadd.f32 %v4293, 1.0
        %v4346 = vadd.f32 %v4295, 1.0
        %v4347 = vadd.f32 %v4297, 1.0
        %v4348 = vadd.f32 %v4299, 1.0
        %v4349 = vadd.f32 %v4301, 1.0
        %v4350 = vadd.f32 %v4303, 1.0
        %v4351 = vadd.f32 %v4305, 1.0
        %v4352 = vadd.f32 %v4307, 1.0
        %v4353 = vadd.f32 %v4309, 1.0
        %v4354 = vadd.f32 %v4311, 1.0
        %v4355 = vadd.f32 %v4313, 1.0
        %v4356 = vadd.f32 %v4315, 1.0
        %v4357 = vadd.f32 %v4317, 1.0
        %v4358 = vadd.f32 %v4319, 1.0
        %v4359 = vadd.f32 %v4321, 1.0
        %v4360 = vadd.f32 %v4323, 1.0
        %v4361 = vadd.f32 %v4325, 1.0
        %v4362 = vadd.f32 %v4327, 1.0
        %v4363 = vadd.f32 %v4329, 1.0
        %v4364 = vadd.f32 %v4331, 1.0
        %v4365 = vadd.f32 %v4333, 1.0
        %v4366 = vrcp.pop %v4334
        %v4367 = vrcp.pop %v4335
        %v4368 = vrcp.pop %v4336
        %v4369 = vrcp.pop %v4337
        %v4370 = vrcp.pop %v4338
        %v4371 = vrcp.pop %v4339
        %v4372 = vrcp.pop %v4340
        %v4373 = vrcp.pop %v4341
        %v4374 = vrcp.pop %v4342
        %v4375 = vrcp.pop %v4343
        %v4376 = vrcp.pop %v4344
        %v4377 = vrcp.pop %v4345
        %v4378 = vrcp.pop %v4346
        %v4379 = vrcp.pop %v4347
        %v4380 = vrcp.pop %v4348
        %v4381 = vrcp.pop %v4349
        %v4382 = vrcp.pop %v4350
        %v4383 = vrcp.pop %v4351
        %v4384 = vrcp.pop %v4352
        %v4385 = vrcp.pop %v4353
        %v4386 = vrcp.pop %v4354
        %v4387 = vrcp.pop %v4355
        %v4388 = vrcp.pop %v4356
        %v4389 = vrcp.pop %v4357
        %v4390 = vrcp.pop %v4358
        %v4391 = vrcp.pop %v4359
        %v4392 = vrcp.pop %v4360
        %v4393 = vrcp.pop %v4361
        %v4394 = vrcp.pop %v4362
        %v4395 = vrcp.pop %v4363
        %v4396 = vrcp.pop %v4364
        %v4397 = vrcp.pop %v4365
        %v4398 = vmul.f32 %v4112, %v4366
        %v4399 = vmul.f32 %v4115, %v4367
        %v4400 = vmul.f32 %v4120, %v4368
        %v4401 = vmul.f32 %v4123, %v4369
        %v4402 = vmul.f32 %v4128, %v4370
        %v4403 = vmul.f32 %v4131, %v4371
        %v4404 = vmul.f32 %v4136, %v4372
        %v4405 = vmul.f32 %v4139, %v4373
        %v4406 = vmul.f32 %v4144, %v4374
        %v4407 = vmul.f32 %v4147, %v4375
        %v4408 = vmul.f32 %v4152, %v4376
        %v4409 = vmul.f32 %v4155, %v4377
        %v4410 = vmul.f32 %v4160, %v4378
        %v4411 = vmul.f32 %v4163, %v4379
        %v4412 = vmul.f32 %v4168, %v4380
        %v4413 = vmul.f32 %v4171, %v4381
        %v4414 = vmul.f32 %v4176, %v4382
        %v4415 = vmul.f32 %v4179, %v4383
        %v4416 = vmul.f32 %v4184, %v4384
        %v4417 = vmul.f32 %v4187, %v4385
        %v4418 = vmul.f32 %v4192, %v4386
        %v4419 = vmul.f32 %v4195, %v4387
        %v4420 = vmul.f32 %v4200, %v4388
        %v4421 = vmul.f32 %v4203, %v4389
        %v4422 = vmul.f32 %v4208, %v4390
        %v4423 = vmul.f32 %v4211, %v4391
        %v4424 = vmul.f32 %v4216, %v4392
        %v4425 = vmul.f32 %v4219, %v4393
        %v4426 = vmul.f32 %v4224, %v4394
        %v4427 = vmul.f32 %v4227, %v4395
        %v4428 = vmul.f32 %v4232, %v4396
        %v4429 = vmul.f32 %v4235, %v4397
        %vm4430 = vcmask 519168
        %4431 = vst.msk [vmem:[#allocation3] sm:$0xf] %vm4430, 0
        %4432 = vst.msk [vmem:[#allocation3 + $0x4] sm:$0xf] %vm4430, 0
        %vm4433 = vcmask 516096
        %4434 = vst.msk [vmem:[#allocation3 + $0x8] sm:$0x1] %vm4433, 0
        %s4435 = scalar_lea.vmem [#allocation3], 204
        %4436 = vst.msk [vmem:[%s4435] sm:$0xf] %vm4430, 0
        %4437 = vst.msk [vmem:[%s4435 + $0x4] sm:$0xf] %vm4430, 0
        %4438 = vst.msk [vmem:[%s4435 + $0x8] sm:$0x1] %vm4433, 0
        %vm4439 = vcmask 516096
        %vm4440 = vsmask.f32 256
        %vm4441 = vmand %vm4439, %vm4440
        %v4442 = vld [vmem:[#allocation3] sm:$0x1]
        %v4443 = vsel %vm4441, 0, %v4442
        %4444 = vst [vmem:[#allocation3] sm:$0x1] %v4443
        %v4445 = vld [vmem:[#allocation3 + $0xc] sm:$0x1]
        %v4446 = vsel %vm4441, 0, %v4445
        %4447 = vst [vmem:[#allocation3 + $0xc] sm:$0x1] %v4446
        %v4448 = vld [vmem:[#allocation3 + $0x18] sm:$0x1]
        %v4449 = vsel %vm4441, 0, %v4448
        %4450 = vst [vmem:[#allocation3 + $0x18] sm:$0x1] %v4449
        %v4451 = vld [vmem:[#allocation3 + $0x24] sm:$0x1]
        %v4452 = vsel %vm4441, 0, %v4451
        %4453 = vst [vmem:[#allocation3 + $0x24] sm:$0x1] %v4452
        %v4454 = vld [vmem:[#allocation3 + $0x30] sm:$0x1]
        %v4455 = vsel %vm4441, 0, %v4454
        %4456 = vst [vmem:[#allocation3 + $0x30] sm:$0x1] %v4455
        %v4457 = vld [vmem:[#allocation3 + $0x3c] sm:$0x1]
        %v4458 = vsel %vm4441, 0, %v4457
        %4459 = vst [vmem:[#allocation3 + $0x3c] sm:$0x1] %v4458
        %v4460 = vld [vmem:[#allocation3 + $0x48] sm:$0x1]
        %v4461 = vsel %vm4441, 0, %v4460
        %4462 = vst [vmem:[#allocation3 + $0x48] sm:$0x1] %v4461
        %v4463 = vld [vmem:[#allocation3 + $0x54] sm:$0x1]
        %v4464 = vsel %vm4441, 0, %v4463
        %4465 = vst [vmem:[#allocation3 + $0x54] sm:$0x1] %v4464
        %v4466 = vld [vmem:[#allocation3 + $0x60] sm:$0x1]
        %v4467 = vsel %vm4441, 0, %v4466
        %4468 = vst [vmem:[#allocation3 + $0x60] sm:$0x1] %v4467
        %v4469 = vld [vmem:[#allocation3 + $0x6c] sm:$0x1]
        %v4470 = vsel %vm4441, 0, %v4469
        %4471 = vst [vmem:[#allocation3 + $0x6c] sm:$0x1] %v4470
        %v4472 = vld [vmem:[#allocation3 + $0x78] sm:$0x1]
        %v4473 = vsel %vm4441, 0, %v4472
        %4474 = vst [vmem:[#allocation3 + $0x78] sm:$0x1] %v4473
        %v4475 = vld [vmem:[#allocation3 + $0x84] sm:$0x1]
        %v4476 = vsel %vm4441, 0, %v4475
        %4477 = vst [vmem:[#allocation3 + $0x84] sm:$0x1] %v4476
        %v4478 = vld [vmem:[#allocation3 + $0x90] sm:$0x1]
        %v4479 = vsel %vm4441, 0, %v4478
        %4480 = vst [vmem:[#allocation3 + $0x90] sm:$0x1] %v4479
        %v4481 = vld [vmem:[#allocation3 + $0x9c] sm:$0x1]
        %v4482 = vsel %vm4441, 0, %v4481
        %4483 = vst [vmem:[#allocation3 + $0x9c] sm:$0x1] %v4482
        %v4484 = vld [vmem:[#allocation3 + $0xa8] sm:$0x1]
        %v4485 = vsel %vm4441, 0, %v4484
        %4486 = vst [vmem:[#allocation3 + $0xa8] sm:$0x1] %v4485
        %v4487 = vld [vmem:[#allocation3 + $0xb4] sm:$0x1]
        %v4488 = vsel %vm4441, 0, %v4487
        %4489 = vst [vmem:[#allocation3 + $0xb4] sm:$0x1] %v4488
        %v4490 = vld [vmem:[#allocation3 + $0xc0] sm:$0x1]
        %v4491 = vsel %vm4441, 0, %v4490
        %4492 = vst [vmem:[#allocation3 + $0xc0] sm:$0x1] %v4491
        %v4493 = vld [vmem:[#allocation3 + $0xcc] sm:$0x1]
        %v4494 = vsel %vm4441, 0, %v4493
        %4495 = vst [vmem:[#allocation3 + $0xcc] sm:$0x1] %v4494
        %vm4496 = vsmask.f32 7938
        %vm4497 = vmand %vm4439, %vm4496
        %v4498 = vld [vmem:[#allocation3 + $0x8] sm:$0x1]
        %v4499 = vsel %vm4497, 0, %v4498
        %4500 = vst [vmem:[#allocation3 + $0x8] sm:$0x1] %v4499
        %v4501 = vld [vmem:[#allocation3 + $0x14] sm:$0x1]
        %v4502 = vsel %vm4497, 0, %v4501
        %4503 = vst [vmem:[#allocation3 + $0x14] sm:$0x1] %v4502
        %v4504 = vld [vmem:[#allocation3 + $0x20] sm:$0x1]
        %v4505 = vsel %vm4497, 0, %v4504
        %4506 = vst [vmem:[#allocation3 + $0x20] sm:$0x1] %v4505
        %v4507 = vld [vmem:[#allocation3 + $0x2c] sm:$0x1]
        %v4508 = vsel %vm4497, 0, %v4507
        %4509 = vst [vmem:[#allocation3 + $0x2c] sm:$0x1] %v4508
        %v4510 = vld [vmem:[#allocation3 + $0x38] sm:$0x1]
        %v4511 = vsel %vm4497, 0, %v4510
        %4512 = vst [vmem:[#allocation3 + $0x38] sm:$0x1] %v4511
        %v4513 = vld [vmem:[#allocation3 + $0x44] sm:$0x1]
        %v4514 = vsel %vm4497, 0, %v4513
        %4515 = vst [vmem:[#allocation3 + $0x44] sm:$0x1] %v4514
        %v4516 = vld [vmem:[#allocation3 + $0x50] sm:$0x1]
        %v4517 = vsel %vm4497, 0, %v4516
        %4518 = vst [vmem:[#allocation3 + $0x50] sm:$0x1] %v4517
        %v4519 = vld [vmem:[#allocation3 + $0x5c] sm:$0x1]
        %v4520 = vsel %vm4497, 0, %v4519
        %4521 = vst [vmem:[#allocation3 + $0x5c] sm:$0x1] %v4520
        %v4522 = vld [vmem:[#allocation3 + $0x68] sm:$0x1]
        %v4523 = vsel %vm4497, 0, %v4522
        %4524 = vst [vmem:[#allocation3 + $0x68] sm:$0x1] %v4523
        %v4525 = vld [vmem:[#allocation3 + $0x74] sm:$0x1]
        %v4526 = vsel %vm4497, 0, %v4525
        %4527 = vst [vmem:[#allocation3 + $0x74] sm:$0x1] %v4526
        %v4528 = vld [vmem:[#allocation3 + $0x80] sm:$0x1]
        %v4529 = vsel %vm4497, 0, %v4528
        %4530 = vst [vmem:[#allocation3 + $0x80] sm:$0x1] %v4529
        %v4531 = vld [vmem:[#allocation3 + $0x8c] sm:$0x1]
        %v4532 = vsel %vm4497, 0, %v4531
        %4533 = vst [vmem:[#allocation3 + $0x8c] sm:$0x1] %v4532
        %v4534 = vld [vmem:[#allocation3 + $0x98] sm:$0x1]
        %v4535 = vsel %vm4497, 0, %v4534
        %4536 = vst [vmem:[#allocation3 + $0x98] sm:$0x1] %v4535
        %v4537 = vld [vmem:[#allocation3 + $0xa4] sm:$0x1]
        %v4538 = vsel %vm4497, 0, %v4537
        %4539 = vst [vmem:[#allocation3 + $0xa4] sm:$0x1] %v4538
        %v4540 = vld [vmem:[#allocation3 + $0xb0] sm:$0x1]
        %v4541 = vsel %vm4497, 0, %v4540
        %4542 = vst [vmem:[#allocation3 + $0xb0] sm:$0x1] %v4541
        %v4543 = vld [vmem:[#allocation3 + $0xbc] sm:$0x1]
        %v4544 = vsel %vm4497, 0, %v4543
        %4545 = vst [vmem:[#allocation3 + $0xbc] sm:$0x1] %v4544
        %v4546 = vld [vmem:[#allocation3 + $0xc8] sm:$0x1]
        %v4547 = vsel %vm4497, 0, %v4546
        %4548 = vst [vmem:[#allocation3 + $0xc8] sm:$0x1] %v4547
        %v4549 = vld [vmem:[#allocation3 + $0xd4] sm:$0x1]
        %v4550 = vsel %vm4497, 0, %v4549
        %4551 = vst [vmem:[#allocation3 + $0xd4] sm:$0x1] %v4550
        %v4552 = vpack.c.bf16 %v4399, %v4398
        %v4553 = vpack.c.bf16 %v4401, %v4400
        %v4554 = vpack.c.bf16 %v4403, %v4402
        %v4555 = vpack.c.bf16 %v4405, %v4404
        %v4556 = vpack.c.bf16 %v4407, %v4406
        %v4557 = vpack.c.bf16 %v4409, %v4408
        %v4558 = vpack.c.bf16 %v4411, %v4410
        %v4559 = vpack.c.bf16 %v4413, %v4412
        %v4560 = vpack.c.bf16 %v4415, %v4414
        %v4561 = vpack.c.bf16 %v4417, %v4416
        %v4562 = vpack.c.bf16 %v4419, %v4418
        %v4563 = vpack.c.bf16 %v4421, %v4420
        %v4564 = vpack.c.bf16 %v4423, %v4422
        %v4565 = vpack.c.bf16 %v4425, %v4424
        %v4566 = vpack.c.bf16 %v4427, %v4426
        %v4567 = vpack.c.bf16 %v4429, %v4428
        %v4584 = vunpack.c.l.b16 %v4552
        %v4585 = vunpack.c.h.b16 %v4552
        %v4586 = vunpack.c.l.b16 %v4553
        %v4587 = vunpack.c.h.b16 %v4553
        %v4588 = vunpack.c.l.b16 %v4554
        %v4589 = vunpack.c.h.b16 %v4554
        %v4590 = vunpack.c.l.b16 %v4555
        %v4591 = vunpack.c.h.b16 %v4555
        %v4592 = vunpack.c.l.b16 %v4556
        %v4593 = vunpack.c.h.b16 %v4556
        %v4594 = vunpack.c.l.b16 %v4557
        %v4595 = vunpack.c.h.b16 %v4557
        %v4596 = vunpack.c.l.b16 %v4558
        %v4597 = vunpack.c.h.b16 %v4558
        %v4598 = vunpack.c.l.b16 %v4559
        %v4599 = vunpack.c.h.b16 %v4559
        %v4600 = vunpack.c.l.b16 %v4560
        %v4601 = vunpack.c.h.b16 %v4560
        %v4602 = vunpack.c.l.b16 %v4561
        %v4603 = vunpack.c.h.b16 %v4561
        %v4604 = vunpack.c.l.b16 %v4562
        %v4605 = vunpack.c.h.b16 %v4562
        %v4606 = vunpack.c.l.b16 %v4563
        %v4607 = vunpack.c.h.b16 %v4563
        %v4608 = vunpack.c.l.b16 %v4564
        %v4609 = vunpack.c.h.b16 %v4564
        %v4610 = vunpack.c.l.b16 %v4565
        %v4611 = vunpack.c.h.b16 %v4565
        %v4612 = vunpack.c.l.b16 %v4566
        %v4613 = vunpack.c.h.b16 %v4566
        %v4614 = vunpack.c.l.b16 %v4567
        %v4615 = vunpack.c.h.b16 %v4567
        %v4616 = vpack.c.b16 %v4584, %v4584
        %v4617 = vpack.c.b16 %v4585, %v4585
        %v4618 = vpack.c.b16 %v4586, %v4586
        %v4619 = vpack.c.b16 %v4587, %v4587
        %v4620 = vpack.c.b16 %v4588, %v4588
        %v4621 = vpack.c.b16 %v4589, %v4589
        %v4622 = vpack.c.b16 %v4590, %v4590
        %v4623 = vpack.c.b16 %v4591, %v4591
        %v4624 = vpack.c.b16 %v4592, %v4592
        %v4625 = vpack.c.b16 %v4593, %v4593
        %v4626 = vpack.c.b16 %v4594, %v4594
        %v4627 = vpack.c.b16 %v4595, %v4595
        %v4628 = vpack.c.b16 %v4596, %v4596
        %v4629 = vpack.c.b16 %v4597, %v4597
        %v4630 = vpack.c.b16 %v4598, %v4598
        %v4631 = vpack.c.b16 %v4599, %v4599
        %v4632 = vpack.c.b16 %v4600, %v4600
        %v4633 = vpack.c.b16 %v4601, %v4601
        %v4634 = vpack.c.b16 %v4602, %v4602
        %v4635 = vpack.c.b16 %v4603, %v4603
        %v4636 = vpack.c.b16 %v4604, %v4604
        %v4637 = vpack.c.b16 %v4605, %v4605
        %v4638 = vpack.c.b16 %v4606, %v4606
        %v4639 = vpack.c.b16 %v4607, %v4607
        %v4640 = vpack.c.b16 %v4608, %v4608
        %v4641 = vpack.c.b16 %v4609, %v4609
        %v4642 = vpack.c.b16 %v4610, %v4610
        %v4643 = vpack.c.b16 %v4611, %v4611
        %v4644 = vpack.c.b16 %v4612, %v4612
        %v4645 = vpack.c.b16 %v4613, %v4613
        %v4646 = vpack.c.b16 %v4614, %v4614
        %v4647 = vpack.c.b16 %v4615, %v4615
        %vm4648 = vsmask.f32 4368
        %vm4649 = vmor %vm4440, %vm4648
        %v4651 = vshrl.u32 %v4616, 16
        %v4653 = vrot.slane %v4651, 7
        %v4654 = vshll.u32 %v4616, 16
        %v4656 = vor.u32 %v4653, %v4654
        %v4657 = vrot.slane %v4653, 4
        %v4659 = vshrl.u32 %v4617, 16
        %v4661 = vrot.slane %v4659, 7
        %v4662 = vshll.u32 %v4617, 16
        %v4664 = vor.u32 %v4661, %v4662
        %v4665 = vsel %vm4649, %v4657, %v4664
        %v4666 = vrot.slane %v4661, 4
        %v4668 = vshrl.u32 %v4618, 16
        %v4670 = vrot.slane %v4668, 7
        %v4671 = vshll.u32 %v4618, 16
        %v4673 = vor.u32 %v4670, %v4671
        %v4674 = vrot.slane %v4670, 4
        %v4676 = vshrl.u32 %v4619, 16
        %v4678 = vrot.slane %v4676, 7
        %v4679 = vshll.u32 %v4619, 16
        %v4681 = vor.u32 %v4678, %v4679
        %v4682 = vsel %vm4649, %v4674, %v4681
        %v4683 = vrot.slane %v4678, 4
        %v4685 = vshrl.u32 %v4620, 16
        %v4687 = vrot.slane %v4685, 7
        %v4688 = vshll.u32 %v4620, 16
        %v4690 = vor.u32 %v4687, %v4688
        %v4691 = vrot.slane %v4687, 4
        %v4693 = vshrl.u32 %v4621, 16
        %v4695 = vrot.slane %v4693, 7
        %v4696 = vshll.u32 %v4621, 16
        %v4698 = vor.u32 %v4695, %v4696
        %v4699 = vsel %vm4649, %v4691, %v4698
        %v4700 = vrot.slane %v4695, 4
        %v4702 = vshrl.u32 %v4622, 16
        %v4704 = vrot.slane %v4702, 7
        %v4705 = vshll.u32 %v4622, 16
        %v4707 = vor.u32 %v4704, %v4705
        %v4708 = vrot.slane %v4704, 4
        %v4710 = vshrl.u32 %v4623, 16
        %v4712 = vrot.slane %v4710, 7
        %v4713 = vshll.u32 %v4623, 16
        %v4715 = vor.u32 %v4712, %v4713
        %v4716 = vsel %vm4649, %v4708, %v4715
        %v4717 = vrot.slane %v4712, 4
        %v4719 = vshrl.u32 %v4624, 16
        %v4721 = vrot.slane %v4719, 7
        %v4722 = vshll.u32 %v4624, 16
        %v4724 = vor.u32 %v4721, %v4722
        %v4725 = vrot.slane %v4721, 4
        %v4727 = vshrl.u32 %v4625, 16
        %v4729 = vrot.slane %v4727, 7
        %v4730 = vshll.u32 %v4625, 16
        %v4732 = vor.u32 %v4729, %v4730
        %v4733 = vsel %vm4649, %v4725, %v4732
        %v4734 = vrot.slane %v4729, 4
        %v4736 = vshrl.u32 %v4626, 16
        %v4738 = vrot.slane %v4736, 7
        %v4739 = vshll.u32 %v4626, 16
        %v4741 = vor.u32 %v4738, %v4739
        %v4742 = vrot.slane %v4738, 4
        %v4744 = vshrl.u32 %v4627, 16
        %v4746 = vrot.slane %v4744, 7
        %v4747 = vshll.u32 %v4627, 16
        %v4749 = vor.u32 %v4746, %v4747
        %v4750 = vsel %vm4649, %v4742, %v4749
        %v4751 = vrot.slane %v4746, 4
        %v4753 = vshrl.u32 %v4628, 16
        %v4755 = vrot.slane %v4753, 7
        %v4756 = vshll.u32 %v4628, 16
        %v4758 = vor.u32 %v4755, %v4756
        %v4759 = vrot.slane %v4755, 4
        %v4761 = vshrl.u32 %v4629, 16
        %v4763 = vrot.slane %v4761, 7
        %v4764 = vshll.u32 %v4629, 16
        %v4766 = vor.u32 %v4763, %v4764
        %v4767 = vsel %vm4649, %v4759, %v4766
        %v4768 = vrot.slane %v4763, 4
        %v4770 = vshrl.u32 %v4630, 16
        %v4772 = vrot.slane %v4770, 7
        %v4773 = vshll.u32 %v4630, 16
        %v4775 = vor.u32 %v4772, %v4773
        %v4776 = vrot.slane %v4772, 4
        %v4778 = vshrl.u32 %v4631, 16
        %v4780 = vrot.slane %v4778, 7
        %v4781 = vshll.u32 %v4631, 16
        %v4783 = vor.u32 %v4780, %v4781
        %v4784 = vsel %vm4649, %v4776, %v4783
        %v4785 = vrot.slane %v4780, 4
        %v4787 = vshrl.u32 %v4632, 16
        %v4789 = vrot.slane %v4787, 7
        %v4790 = vshll.u32 %v4632, 16
        %v4792 = vor.u32 %v4789, %v4790
        %v4793 = vrot.slane %v4789, 4
        %v4795 = vshrl.u32 %v4633, 16
        %v4797 = vrot.slane %v4795, 7
        %v4798 = vshll.u32 %v4633, 16
        %v4800 = vor.u32 %v4797, %v4798
        %v4801 = vsel %vm4649, %v4793, %v4800
        %v4802 = vrot.slane %v4797, 4
        %v4804 = vshrl.u32 %v4634, 16
        %v4806 = vrot.slane %v4804, 7
        %v4807 = vshll.u32 %v4634, 16
        %v4809 = vor.u32 %v4806, %v4807
        %v4810 = vrot.slane %v4806, 4
        %v4812 = vshrl.u32 %v4635, 16
        %v4814 = vrot.slane %v4812, 7
        %v4815 = vshll.u32 %v4635, 16
        %v4817 = vor.u32 %v4814, %v4815
        %v4818 = vsel %vm4649, %v4810, %v4817
        %v4819 = vrot.slane %v4814, 4
        %v4821 = vshrl.u32 %v4636, 16
        %v4823 = vrot.slane %v4821, 7
        %v4824 = vshll.u32 %v4636, 16
        %v4826 = vor.u32 %v4823, %v4824
        %v4827 = vrot.slane %v4823, 4
        %v4829 = vshrl.u32 %v4637, 16
        %v4831 = vrot.slane %v4829, 7
        %v4832 = vshll.u32 %v4637, 16
        %v4834 = vor.u32 %v4831, %v4832
        %v4835 = vsel %vm4649, %v4827, %v4834
        %v4836 = vrot.slane %v4831, 4
        %v4838 = vshrl.u32 %v4638, 16
        %v4840 = vrot.slane %v4838, 7
        %v4841 = vshll.u32 %v4638, 16
        %v4843 = vor.u32 %v4840, %v4841
        %v4844 = vrot.slane %v4840, 4
        %v4846 = vshrl.u32 %v4639, 16
        %v4848 = vrot.slane %v4846, 7
        %v4849 = vshll.u32 %v4639, 16
        %v4851 = vor.u32 %v4848, %v4849
        %v4852 = vsel %vm4649, %v4844, %v4851
        %v4853 = vrot.slane %v4848, 4
        %v4855 = vshrl.u32 %v4640, 16
        %v4857 = vrot.slane %v4855, 7
        %v4858 = vshll.u32 %v4640, 16
        %v4860 = vor.u32 %v4857, %v4858
        %v4861 = vrot.slane %v4857, 4
        %v4863 = vshrl.u32 %v4641, 16
        %v4865 = vrot.slane %v4863, 7
        %v4866 = vshll.u32 %v4641, 16
        %v4868 = vor.u32 %v4865, %v4866
        %v4869 = vsel %vm4649, %v4861, %v4868
        %v4870 = vrot.slane %v4865, 4
        %v4872 = vshrl.u32 %v4642, 16
        %v4874 = vrot.slane %v4872, 7
        %v4875 = vshll.u32 %v4642, 16
        %v4877 = vor.u32 %v4874, %v4875
        %v4878 = vrot.slane %v4874, 4
        %v4880 = vshrl.u32 %v4643, 16
        %v4882 = vrot.slane %v4880, 7
        %v4883 = vshll.u32 %v4643, 16
        %v4885 = vor.u32 %v4882, %v4883
        %v4886 = vsel %vm4649, %v4878, %v4885
        %v4887 = vrot.slane %v4882, 4
        %v4889 = vshrl.u32 %v4644, 16
        %v4891 = vrot.slane %v4889, 7
        %v4892 = vshll.u32 %v4644, 16
        %v4894 = vor.u32 %v4891, %v4892
        %v4895 = vrot.slane %v4891, 4
        %v4897 = vshrl.u32 %v4645, 16
        %v4899 = vrot.slane %v4897, 7
        %v4900 = vshll.u32 %v4645, 16
        %v4902 = vor.u32 %v4899, %v4900
        %v4903 = vsel %vm4649, %v4895, %v4902
        %v4904 = vrot.slane %v4899, 4
        %v4906 = vshrl.u32 %v4646, 16
        %v4908 = vrot.slane %v4906, 7
        %v4909 = vshll.u32 %v4646, 16
        %v4911 = vor.u32 %v4908, %v4909
        %v4912 = vrot.slane %v4908, 4
        %v4914 = vshrl.u32 %v4647, 16
        %v4916 = vrot.slane %v4914, 7
        %v4917 = vshll.u32 %v4647, 16
        %v4919 = vor.u32 %v4916, %v4917
        %v4920 = vsel %vm4649, %v4912, %v4919
        %v4921 = vrot.slane %v4916, 4
        %s4970 = scalar_lea.vmem [#allocation3], 12
        %vm4971 = vcmask 519168
        %vm4972 = vmand %vm4971, %vm4496
        %v4973 = vld [vmem:[%s4970] sm:$0xf]
        %v4974 = vsel %vm4972, %v4656, %v4973
        %4975 = vst [vmem:[%s4970] sm:$0xf] %v4974
        %4976 = vst.msk [vmem:[%s4970 + $0x4] sm:$0xf] %vm4430, %v4665
        %v4977 = vld [vmem:[%s4970 + $0x8] sm:$0x1]
        %v4978 = vsel %vm4441, %v4666, %v4977
        %4979 = vst [vmem:[%s4970 + $0x8] sm:$0x1] %v4978
        %v4980 = vld [vmem:[%s4970 + $0xc] sm:$0xf]
        %v4981 = vsel %vm4972, %v4673, %v4980
        %4982 = vst [vmem:[%s4970 + $0xc] sm:$0xf] %v4981
        %4983 = vst.msk [vmem:[%s4970 + $0x10] sm:$0xf] %vm4430, %v4682
        %v4984 = vld [vmem:[%s4970 + $0x14] sm:$0x1]
        %v4985 = vsel %vm4441, %v4683, %v4984
        %4986 = vst [vmem:[%s4970 + $0x14] sm:$0x1] %v4985
        %v4987 = vld [vmem:[%s4970 + $0x18] sm:$0xf]
        %v4988 = vsel %vm4972, %v4690, %v4987
        %4989 = vst [vmem:[%s4970 + $0x18] sm:$0xf] %v4988
        %4990 = vst.msk [vmem:[%s4970 + $0x1c] sm:$0xf] %vm4430, %v4699
        %v4991 = vld [vmem:[%s4970 + $0x20] sm:$0x1]
        %v4992 = vsel %vm4441, %v4700, %v4991
        %4993 = vst [vmem:[%s4970 + $0x20] sm:$0x1] %v4992
        %v4994 = vld [vmem:[%s4970 + $0x24] sm:$0xf]
        %v4995 = vsel %vm4972, %v4707, %v4994
        %4996 = vst [vmem:[%s4970 + $0x24] sm:$0xf] %v4995
        %4997 = vst.msk [vmem:[%s4970 + $0x28] sm:$0xf] %vm4430, %v4716
        %v4998 = vld [vmem:[%s4970 + $0x2c] sm:$0x1]
        %v4999 = vsel %vm4441, %v4717, %v4998
        %5000 = vst [vmem:[%s4970 + $0x2c] sm:$0x1] %v4999
        %v5001 = vld [vmem:[%s4970 + $0x30] sm:$0xf]
        %v5002 = vsel %vm4972, %v4724, %v5001
        %5003 = vst [vmem:[%s4970 + $0x30] sm:$0xf] %v5002
        %5004 = vst.msk [vmem:[%s4970 + $0x34] sm:$0xf] %vm4430, %v4733
        %v5005 = vld [vmem:[%s4970 + $0x38] sm:$0x1]
        %v5006 = vsel %vm4441, %v4734, %v5005
        %5007 = vst [vmem:[%s4970 + $0x38] sm:$0x1] %v5006
        %v5008 = vld [vmem:[%s4970 + $0x3c] sm:$0xf]
        %v5009 = vsel %vm4972, %v4741, %v5008
        %5010 = vst [vmem:[%s4970 + $0x3c] sm:$0xf] %v5009
        %5011 = vst.msk [vmem:[%s4970 + $0x40] sm:$0xf] %vm4430, %v4750
        %v5012 = vld [vmem:[%s4970 + $0x44] sm:$0x1]
        %v5013 = vsel %vm4441, %v4751, %v5012
        %5014 = vst [vmem:[%s4970 + $0x44] sm:$0x1] %v5013
        %v5015 = vld [vmem:[%s4970 + $0x48] sm:$0xf]
        %v5016 = vsel %vm4972, %v4758, %v5015
        %5017 = vst [vmem:[%s4970 + $0x48] sm:$0xf] %v5016
        %5018 = vst.msk [vmem:[%s4970 + $0x4c] sm:$0xf] %vm4430, %v4767
        %v5019 = vld [vmem:[%s4970 + $0x50] sm:$0x1]
        %v5020 = vsel %vm4441, %v4768, %v5019
        %5021 = vst [vmem:[%s4970 + $0x50] sm:$0x1] %v5020
        %v5022 = vld [vmem:[%s4970 + $0x54] sm:$0xf]
        %v5023 = vsel %vm4972, %v4775, %v5022
        %5024 = vst [vmem:[%s4970 + $0x54] sm:$0xf] %v5023
        %5025 = vst.msk [vmem:[%s4970 + $0x58] sm:$0xf] %vm4430, %v4784
        %v5026 = vld [vmem:[%s4970 + $0x5c] sm:$0x1]
        %v5027 = vsel %vm4441, %v4785, %v5026
        %5028 = vst [vmem:[%s4970 + $0x5c] sm:$0x1] %v5027
        %v5029 = vld [vmem:[%s4970 + $0x60] sm:$0xf]
        %v5030 = vsel %vm4972, %v4792, %v5029
        %5031 = vst [vmem:[%s4970 + $0x60] sm:$0xf] %v5030
        %5032 = vst.msk [vmem:[%s4970 + $0x64] sm:$0xf] %vm4430, %v4801
        %v5033 = vld [vmem:[%s4970 + $0x68] sm:$0x1]
        %v5034 = vsel %vm4441, %v4802, %v5033
        %5035 = vst [vmem:[%s4970 + $0x68] sm:$0x1] %v5034
        %v5036 = vld [vmem:[%s4970 + $0x6c] sm:$0xf]
        %v5037 = vsel %vm4972, %v4809, %v5036
        %5038 = vst [vmem:[%s4970 + $0x6c] sm:$0xf] %v5037
        %5039 = vst.msk [vmem:[%s4970 + $0x70] sm:$0xf] %vm4430, %v4818
        %v5040 = vld [vmem:[%s4970 + $0x74] sm:$0x1]
        %v5041 = vsel %vm4441, %v4819, %v5040
        %5042 = vst [vmem:[%s4970 + $0x74] sm:$0x1] %v5041
        %v5043 = vld [vmem:[%s4970 + $0x78] sm:$0xf]
        %v5044 = vsel %vm4972, %v4826, %v5043
        %5045 = vst [vmem:[%s4970 + $0x78] sm:$0xf] %v5044
        %5046 = vst.msk [vmem:[%s4970 + $0x7c] sm:$0xf] %vm4430, %v4835
        %v5047 = vld [vmem:[%s4970 + $0x80] sm:$0x1]
        %v5048 = vsel %vm4441, %v4836, %v5047
        %5049 = vst [vmem:[%s4970 + $0x80] sm:$0x1] %v5048
        %v5050 = vld [vmem:[%s4970 + $0x84] sm:$0xf]
        %v5051 = vsel %vm4972, %v4843, %v5050
        %5052 = vst [vmem:[%s4970 + $0x84] sm:$0xf] %v5051
        %5053 = vst.msk [vmem:[%s4970 + $0x88] sm:$0xf] %vm4430, %v4852
        %v5054 = vld [vmem:[%s4970 + $0x8c] sm:$0x1]
        %v5055 = vsel %vm4441, %v4853, %v5054
        %5056 = vst [vmem:[%s4970 + $0x8c] sm:$0x1] %v5055
        %v5057 = vld [vmem:[%s4970 + $0x90] sm:$0xf]
        %v5058 = vsel %vm4972, %v4860, %v5057
        %5059 = vst [vmem:[%s4970 + $0x90] sm:$0xf] %v5058
        %5060 = vst.msk [vmem:[%s4970 + $0x94] sm:$0xf] %vm4430, %v4869
        %v5061 = vld [vmem:[%s4970 + $0x98] sm:$0x1]
        %v5062 = vsel %vm4441, %v4870, %v5061
        %5063 = vst [vmem:[%s4970 + $0x98] sm:$0x1] %v5062
        %v5064 = vld [vmem:[%s4970 + $0x9c] sm:$0xf]
        %v5065 = vsel %vm4972, %v4877, %v5064
        %5066 = vst [vmem:[%s4970 + $0x9c] sm:$0xf] %v5065
        %5067 = vst.msk [vmem:[%s4970 + $0xa0] sm:$0xf] %vm4430, %v4886
        %v5068 = vld [vmem:[%s4970 + $0xa4] sm:$0x1]
        %v5069 = vsel %vm4441, %v4887, %v5068
        %5070 = vst [vmem:[%s4970 + $0xa4] sm:$0x1] %v5069
        %v5071 = vld [vmem:[%s4970 + $0xa8] sm:$0xf]
        %v5072 = vsel %vm4972, %v4894, %v5071
        %5073 = vst [vmem:[%s4970 + $0xa8] sm:$0xf] %v5072
        %5074 = vst.msk [vmem:[%s4970 + $0xac] sm:$0xf] %vm4430, %v4903
        %v5075 = vld [vmem:[%s4970 + $0xb0] sm:$0x1]
        %v5076 = vsel %vm4441, %v4904, %v5075
        %5077 = vst [vmem:[%s4970 + $0xb0] sm:$0x1] %v5076
        %v5078 = vld [vmem:[%s4970 + $0xb4] sm:$0xf]
        %v5079 = vsel %vm4972, %v4911, %v5078
        %5080 = vst [vmem:[%s4970 + $0xb4] sm:$0xf] %v5079
        %5081 = vst.msk [vmem:[%s4970 + $0xb8] sm:$0xf] %vm4430, %v4920
        %v5082 = vld [vmem:[%s4970 + $0xbc] sm:$0x1]
        %v5083 = vsel %vm4441, %v4921, %v5082
        %5084 = vst [vmem:[%s4970 + $0xbc] sm:$0x1] %v5083
        %v5085 = vld [vmem:[#allocation3] sm:$0xf]
        %v5086 = vld [vmem:[#allocation3 + $0x4] sm:$0xf]
        %v5087 = vld [vmem:[#allocation3 + $0xc] sm:$0xf]
        %v5088 = vld [vmem:[#allocation3 + $0x10] sm:$0xf]
        %v5089 = vld [vmem:[#allocation3 + $0x18] sm:$0xf]
        %v5090 = vld [vmem:[#allocation3 + $0x1c] sm:$0xf]
        %v5091 = vld [vmem:[#allocation3 + $0x24] sm:$0xf]
        %v5092 = vld [vmem:[#allocation3 + $0x28] sm:$0xf]
        %v5093 = vld [vmem:[#allocation3 + $0x30] sm:$0xf]
        %v5094 = vld [vmem:[#allocation3 + $0x34] sm:$0xf]
        %v5095 = vld [vmem:[#allocation3 + $0x3c] sm:$0xf]
        %v5096 = vld [vmem:[#allocation3 + $0x40] sm:$0xf]
        %v5097 = vld [vmem:[#allocation3 + $0x48] sm:$0xf]
        %v5098 = vld [vmem:[#allocation3 + $0x4c] sm:$0xf]
        %v5099 = vld [vmem:[#allocation3 + $0x54] sm:$0xf]
        %v5100 = vld [vmem:[#allocation3 + $0x58] sm:$0xf]
        %v5101 = vld [vmem:[#allocation3 + $0x60] sm:$0xf]
        %v5102 = vld [vmem:[#allocation3 + $0x64] sm:$0xf]
        %v5103 = vld [vmem:[#allocation3 + $0x6c] sm:$0xf]
        %v5104 = vld [vmem:[#allocation3 + $0x70] sm:$0xf]
        %v5105 = vld [vmem:[#allocation3 + $0x78] sm:$0xf]
        %v5106 = vld [vmem:[#allocation3 + $0x7c] sm:$0xf]
        %v5107 = vld [vmem:[#allocation3 + $0x84] sm:$0xf]
        %v5108 = vld [vmem:[#allocation3 + $0x88] sm:$0xf]
        %v5109 = vld [vmem:[#allocation3 + $0x90] sm:$0xf]
        %v5110 = vld [vmem:[#allocation3 + $0x94] sm:$0xf]
        %v5111 = vld [vmem:[#allocation3 + $0x9c] sm:$0xf]
        %v5112 = vld [vmem:[#allocation3 + $0xa0] sm:$0xf]
        %v5113 = vld [vmem:[#allocation3 + $0xa8] sm:$0xf]
        %v5114 = vld [vmem:[#allocation3 + $0xac] sm:$0xf]
        %v5115 = vld [vmem:[#allocation3 + $0xb4] sm:$0xf]
        %v5116 = vld [vmem:[#allocation3 + $0xb8] sm:$0xf]
        %5117 = vst.msk [vmem:[#allocation4] sm:$0xf] %vm4430, %v5085
        %5118 = vst.msk [vmem:[#allocation4 + $0x14] sm:$0xf] %vm4430, %v5086
        %5119 = vst.msk [vmem:[#allocation4 + $0x28] sm:$0xf] %vm4430, %v5087
        %5120 = vst.msk [vmem:[#allocation4 + $0x3c] sm:$0xf] %vm4430, %v5088
        %5121 = vst.msk [vmem:[#allocation4 + $0x50] sm:$0xf] %vm4430, %v5089
        %5122 = vst.msk [vmem:[#allocation4 + $0x64] sm:$0xf] %vm4430, %v5090
        %5123 = vst.msk [vmem:[#allocation4 + $0x78] sm:$0xf] %vm4430, %v5091
        %5124 = vst.msk [vmem:[#allocation4 + $0x8c] sm:$0xf] %vm4430, %v5092
        %5125 = vst.msk [vmem:[#allocation4 + $0xa0] sm:$0xf] %vm4430, %v5093
        %5126 = vst.msk [vmem:[#allocation4 + $0xb4] sm:$0xf] %vm4430, %v5094
        %5127 = vst.msk [vmem:[#allocation4 + $0xc8] sm:$0xf] %vm4430, %v5095
        %5128 = vst.msk [vmem:[#allocation4 + $0xdc] sm:$0xf] %vm4430, %v5096
        %5129 = vst.msk [vmem:[#allocation4 + $0xf0] sm:$0xf] %vm4430, %v5097
        %5130 = vst.msk [vmem:[#allocation4 + $0x104] sm:$0xf] %vm4430, %v5098
        %5131 = vst.msk [vmem:[#allocation4 + $0x118] sm:$0xf] %vm4430, %v5099
        %5132 = vst.msk [vmem:[#allocation4 + $0x12c] sm:$0xf] %vm4430, %v5100
        %5133 = vst.msk [vmem:[#allocation4 + $0x140] sm:$0xf] %vm4430, %v5101
        %5134 = vst.msk [vmem:[#allocation4 + $0x154] sm:$0xf] %vm4430, %v5102
        %5135 = vst.msk [vmem:[#allocation4 + $0x168] sm:$0xf] %vm4430, %v5103
        %5136 = vst.msk [vmem:[#allocation4 + $0x17c] sm:$0xf] %vm4430, %v5104
        %5137 = vst.msk [vmem:[#allocation4 + $0x190] sm:$0xf] %vm4430, %v5105
        %5138 = vst.msk [vmem:[#allocation4 + $0x1a4] sm:$0xf] %vm4430, %v5106
        %5139 = vst.msk [vmem:[#allocation4 + $0x1b8] sm:$0xf] %vm4430, %v5107
        %5140 = vst.msk [vmem:[#allocation4 + $0x1cc] sm:$0xf] %vm4430, %v5108
        %5141 = vst.msk [vmem:[#allocation4 + $0x1e0] sm:$0xf] %vm4430, %v5109
        %5142 = vst.msk [vmem:[#allocation4 + $0x1f4] sm:$0xf] %vm4430, %v5110
        %5143 = vst.msk [vmem:[#allocation4 + $0x208] sm:$0xf] %vm4430, %v5111
        %5144 = vst.msk [vmem:[#allocation4 + $0x21c] sm:$0xf] %vm4430, %v5112
        %5145 = vst.msk [vmem:[#allocation4 + $0x230] sm:$0xf] %vm4430, %v5113
        %5146 = vst.msk [vmem:[#allocation4 + $0x244] sm:$0xf] %vm4430, %v5114
        %5147 = vst.msk [vmem:[#allocation4 + $0x258] sm:$0xf] %vm4430, %v5115
        %5148 = vst.msk [vmem:[#allocation4 + $0x26c] sm:$0xf] %vm4430, %v5116
        %v5149 = vld [vmem:[#allocation3] sm:$0xf]
        %v5150 = vld [vmem:[#allocation3 + $0x4] sm:$0xf]
        %v5151 = vld [vmem:[#allocation3 + $0x8] sm:$0x1]
        %v5152 = vld [vmem:[#allocation3 + $0xc] sm:$0xf]
        %v5153 = vld [vmem:[#allocation3 + $0x10] sm:$0xf]
        %v5154 = vld [vmem:[#allocation3 + $0x14] sm:$0x1]
        %v5155 = vld [vmem:[#allocation3 + $0x18] sm:$0xf]
        %v5156 = vld [vmem:[#allocation3 + $0x1c] sm:$0xf]
        %v5157 = vld [vmem:[#allocation3 + $0x20] sm:$0x1]
        %v5158 = vld [vmem:[#allocation3 + $0x24] sm:$0xf]
        %v5159 = vld [vmem:[#allocation3 + $0x28] sm:$0xf]
        %v5160 = vld [vmem:[#allocation3 + $0x2c] sm:$0x1]
        %v5161 = vld [vmem:[#allocation3 + $0x30] sm:$0xf]
        %v5162 = vld [vmem:[#allocation3 + $0x34] sm:$0xf]
        %v5163 = vld [vmem:[#allocation3 + $0x38] sm:$0x1]
        %v5164 = vld [vmem:[#allocation3 + $0x3c] sm:$0xf]
        %v5165 = vld [vmem:[#allocation3 + $0x40] sm:$0xf]
        %v5166 = vld [vmem:[#allocation3 + $0x44] sm:$0x1]
        %v5167 = vld [vmem:[#allocation3 + $0x48] sm:$0xf]
        %v5168 = vld [vmem:[#allocation3 + $0x4c] sm:$0xf]
        %v5169 = vld [vmem:[#allocation3 + $0x50] sm:$0x1]
        %v5170 = vld [vmem:[#allocation3 + $0x54] sm:$0xf]
        %v5171 = vld [vmem:[#allocation3 + $0x58] sm:$0xf]
        %v5172 = vld [vmem:[#allocation3 + $0x5c] sm:$0x1]
        %v5173 = vld [vmem:[#allocation3 + $0x60] sm:$0xf]
        %v5174 = vld [vmem:[#allocation3 + $0x64] sm:$0xf]
        %v5175 = vld [vmem:[#allocation3 + $0x68] sm:$0x1]
        %v5176 = vld [vmem:[#allocation3 + $0x6c] sm:$0xf]
        %v5177 = vld [vmem:[#allocation3 + $0x70] sm:$0xf]
        %v5178 = vld [vmem:[#allocation3 + $0x74] sm:$0x1]
        %v5179 = vld [vmem:[#allocation3 + $0x78] sm:$0xf]
        %v5180 = vld [vmem:[#allocation3 + $0x7c] sm:$0xf]
        %v5181 = vld [vmem:[#allocation3 + $0x80] sm:$0x1]
        %v5182 = vld [vmem:[#allocation3 + $0x84] sm:$0xf]
        %v5183 = vld [vmem:[#allocation3 + $0x88] sm:$0xf]
        %v5184 = vld [vmem:[#allocation3 + $0x8c] sm:$0x1]
        %v5185 = vld [vmem:[#allocation3 + $0x90] sm:$0xf]
        %v5186 = vld [vmem:[#allocation3 + $0x94] sm:$0xf]
        %v5187 = vld [vmem:[#allocation3 + $0x98] sm:$0x1]
        %v5188 = vld [vmem:[#allocation3 + $0x9c] sm:$0xf]
        %v5189 = vld [vmem:[#allocation3 + $0xa0] sm:$0xf]
        %v5190 = vld [vmem:[#allocation3 + $0xa4] sm:$0x1]
        %v5191 = vld [vmem:[#allocation3 + $0xa8] sm:$0xf]
        %v5192 = vld [vmem:[#allocation3 + $0xac] sm:$0xf]
        %v5193 = vld [vmem:[#allocation3 + $0xb0] sm:$0x1]
        %v5194 = vld [vmem:[#allocation3 + $0xb4] sm:$0xf]
        %v5195 = vld [vmem:[#allocation3 + $0xb8] sm:$0xf]
        %v5196 = vld [vmem:[#allocation3 + $0xbc] sm:$0x1]
        %vm5197 = vsmask.f32 3328
        %vm5198 = vsmask.f32 7440
        %vm5199 = vmor %vm5197, %vm5198
        %v5201 = vshrl.u32 %v5149, 16
        %v5203 = vrot.slane %v5201, 4
        %v5204 = vshll.u32 %v5149, 16
        %v5206 = vrot.slane %v5204, 5
        %v5207 = vor.u32 %v5203, %v5206
        %v5208 = vrot.slane %v5207, 4
        %v5210 = vshll.u32 %v5150, 16
        %v5212 = vrot.slane %v5210, 5
        %v5213 = vsel %vm5199, %v5208, %v5212
        %v5214 = vshrl.u32 %v5150, 16
        %v5216 = vrot.slane %v5214, 4
        %v5217 = vor.u32 %v5216, %v5212
        %v5218 = vrot.slane %v5217, 4
        %v5220 = vshll.u32 %v5151, 16
        %v5222 = vrot.slane %v5220, 5
        %v5223 = vsel %vm5199, %v5218, %v5222
        %v5225 = vshrl.u32 %v5152, 16
        %v5227 = vrot.slane %v5225, 4
        %v5228 = vshll.u32 %v5152, 16
        %v5230 = vrot.slane %v5228, 5
        %v5231 = vor.u32 %v5227, %v5230
        %v5232 = vrot.slane %v5231, 4
        %v5234 = vshll.u32 %v5153, 16
        %v5236 = vrot.slane %v5234, 5
        %v5237 = vsel %vm5199, %v5232, %v5236
        %v5238 = vshrl.u32 %v5153, 16
        %v5240 = vrot.slane %v5238, 4
        %v5241 = vor.u32 %v5240, %v5236
        %v5242 = vrot.slane %v5241, 4
        %v5244 = vshll.u32 %v5154, 16
        %v5246 = vrot.slane %v5244, 5
        %v5247 = vsel %vm5199, %v5242, %v5246
        %v5249 = vshrl.u32 %v5155, 16
        %v5251 = vrot.slane %v5249, 4
        %v5252 = vshll.u32 %v5155, 16
        %v5254 = vrot.slane %v5252, 5
        %v5255 = vor.u32 %v5251, %v5254
        %v5256 = vrot.slane %v5255, 4
        %v5258 = vshll.u32 %v5156, 16
        %v5260 = vrot.slane %v5258, 5
        %v5261 = vsel %vm5199, %v5256, %v5260
        %v5262 = vshrl.u32 %v5156, 16
        %v5264 = vrot.slane %v5262, 4
        %v5265 = vor.u32 %v5264, %v5260
        %v5266 = vrot.slane %v5265, 4
        %v5268 = vshll.u32 %v5157, 16
        %v5270 = vrot.slane %v5268, 5
        %v5271 = vsel %vm5199, %v5266, %v5270
        %v5273 = vshrl.u32 %v5158, 16
        %v5275 = vrot.slane %v5273, 4
        %v5276 = vshll.u32 %v5158, 16
        %v5278 = vrot.slane %v5276, 5
        %v5279 = vor.u32 %v5275, %v5278
        %v5280 = vrot.slane %v5279, 4
        %v5282 = vshll.u32 %v5159, 16
        %v5284 = vrot.slane %v5282, 5
        %v5285 = vsel %vm5199, %v5280, %v5284
        %v5286 = vshrl.u32 %v5159, 16
        %v5288 = vrot.slane %v5286, 4
        %v5289 = vor.u32 %v5288, %v5284
        %v5290 = vrot.slane %v5289, 4
        %v5292 = vshll.u32 %v5160, 16
        %v5294 = vrot.slane %v5292, 5
        %v5295 = vsel %vm5199, %v5290, %v5294
        %v5297 = vshrl.u32 %v5161, 16
        %v5299 = vrot.slane %v5297, 4
        %v5300 = vshll.u32 %v5161, 16
        %v5302 = vrot.slane %v5300, 5
        %v5303 = vor.u32 %v5299, %v5302
        %v5304 = vrot.slane %v5303, 4
        %v5306 = vshll.u32 %v5162, 16
        %v5308 = vrot.slane %v5306, 5
        %v5309 = vsel %vm5199, %v5304, %v5308
        %v5310 = vshrl.u32 %v5162, 16
        %v5312 = vrot.slane %v5310, 4
        %v5313 = vor.u32 %v5312, %v5308
        %v5314 = vrot.slane %v5313, 4
        %v5316 = vshll.u32 %v5163, 16
        %v5318 = vrot.slane %v5316, 5
        %v5319 = vsel %vm5199, %v5314, %v5318
        %v5321 = vshrl.u32 %v5164, 16
        %v5323 = vrot.slane %v5321, 4
        %v5324 = vshll.u32 %v5164, 16
        %v5326 = vrot.slane %v5324, 5
        %v5327 = vor.u32 %v5323, %v5326
        %v5328 = vrot.slane %v5327, 4
        %v5330 = vshll.u32 %v5165, 16
        %v5332 = vrot.slane %v5330, 5
        %v5333 = vsel %vm5199, %v5328, %v5332
        %v5334 = vshrl.u32 %v5165, 16
        %v5336 = vrot.slane %v5334, 4
        %v5337 = vor.u32 %v5336, %v5332
        %v5338 = vrot.slane %v5337, 4
        %v5340 = vshll.u32 %v5166, 16
        %v5342 = vrot.slane %v5340, 5
        %v5343 = vsel %vm5199, %v5338, %v5342
        %v5345 = vshrl.u32 %v5167, 16
        %v5347 = vrot.slane %v5345, 4
        %v5348 = vshll.u32 %v5167, 16
        %v5350 = vrot.slane %v5348, 5
        %v5351 = vor.u32 %v5347, %v5350
        %v5352 = vrot.slane %v5351, 4
        %v5354 = vshll.u32 %v5168, 16
        %v5356 = vrot.slane %v5354, 5
        %v5357 = vsel %vm5199, %v5352, %v5356
        %v5358 = vshrl.u32 %v5168, 16
        %v5360 = vrot.slane %v5358, 4
        %v5361 = vor.u32 %v5360, %v5356
        %v5362 = vrot.slane %v5361, 4
        %v5364 = vshll.u32 %v5169, 16
        %v5366 = vrot.slane %v5364, 5
        %v5367 = vsel %vm5199, %v5362, %v5366
        %v5369 = vshrl.u32 %v5170, 16
        %v5371 = vrot.slane %v5369, 4
        %v5372 = vshll.u32 %v5170, 16
        %v5374 = vrot.slane %v5372, 5
        %v5375 = vor.u32 %v5371, %v5374
        %v5376 = vrot.slane %v5375, 4
        %v5378 = vshll.u32 %v5171, 16
        %v5380 = vrot.slane %v5378, 5
        %v5381 = vsel %vm5199, %v5376, %v5380
        %v5382 = vshrl.u32 %v5171, 16
        %v5384 = vrot.slane %v5382, 4
        %v5385 = vor.u32 %v5384, %v5380
        %v5386 = vrot.slane %v5385, 4
        %v5388 = vshll.u32 %v5172, 16
        %v5390 = vrot.slane %v5388, 5
        %v5391 = vsel %vm5199, %v5386, %v5390
        %v5393 = vshrl.u32 %v5173, 16
        %v5395 = vrot.slane %v5393, 4
        %v5396 = vshll.u32 %v5173, 16
        %v5398 = vrot.slane %v5396, 5
        %v5399 = vor.u32 %v5395, %v5398
        %v5400 = vrot.slane %v5399, 4
        %v5402 = vshll.u32 %v5174, 16
        %v5404 = vrot.slane %v5402, 5
        %v5405 = vsel %vm5199, %v5400, %v5404
        %v5406 = vshrl.u32 %v5174, 16
        %v5408 = vrot.slane %v5406, 4
        %v5409 = vor.u32 %v5408, %v5404
        %v5410 = vrot.slane %v5409, 4
        %v5412 = vshll.u32 %v5175, 16
        %v5414 = vrot.slane %v5412, 5
        %v5415 = vsel %vm5199, %v5410, %v5414
        %v5417 = vshrl.u32 %v5176, 16
        %v5419 = vrot.slane %v5417, 4
        %v5420 = vshll.u32 %v5176, 16
        %v5422 = vrot.slane %v5420, 5
        %v5423 = vor.u32 %v5419, %v5422
        %v5424 = vrot.slane %v5423, 4
        %v5426 = vshll.u32 %v5177, 16
        %v5428 = vrot.slane %v5426, 5
        %v5429 = vsel %vm5199, %v5424, %v5428
        %v5430 = vshrl.u32 %v5177, 16
        %v5432 = vrot.slane %v5430, 4
        %v5433 = vor.u32 %v5432, %v5428
        %v5434 = vrot.slane %v5433, 4
        %v5436 = vshll.u32 %v5178, 16
        %v5438 = vrot.slane %v5436, 5
        %v5439 = vsel %vm5199, %v5434, %v5438
        %v5441 = vshrl.u32 %v5179, 16
        %v5443 = vrot.slane %v5441, 4
        %v5444 = vshll.u32 %v5179, 16
        %v5446 = vrot.slane %v5444, 5
        %v5447 = vor.u32 %v5443, %v5446
        %v5448 = vrot.slane %v5447, 4
        %v5450 = vshll.u32 %v5180, 16
        %v5452 = vrot.slane %v5450, 5
        %v5453 = vsel %vm5199, %v5448, %v5452
        %v5454 = vshrl.u32 %v5180, 16
        %v5456 = vrot.slane %v5454, 4
        %v5457 = vor.u32 %v5456, %v5452
        %v5458 = vrot.slane %v5457, 4
        %v5460 = vshll.u32 %v5181, 16
        %v5462 = vrot.slane %v5460, 5
        %v5463 = vsel %vm5199, %v5458, %v5462
        %v5465 = vshrl.u32 %v5182, 16
        %v5467 = vrot.slane %v5465, 4
        %v5468 = vshll.u32 %v5182, 16
        %v5470 = vrot.slane %v5468, 5
        %v5471 = vor.u32 %v5467, %v5470
        %v5472 = vrot.slane %v5471, 4
        %v5474 = vshll.u32 %v5183, 16
        %v5476 = vrot.slane %v5474, 5
        %v5477 = vsel %vm5199, %v5472, %v5476
        %v5478 = vshrl.u32 %v5183, 16
        %v5480 = vrot.slane %v5478, 4
        %v5481 = vor.u32 %v5480, %v5476
        %v5482 = vrot.slane %v5481, 4
        %v5484 = vshll.u32 %v5184, 16
        %v5486 = vrot.slane %v5484, 5
        %v5487 = vsel %vm5199, %v5482, %v5486
        %v5489 = vshrl.u32 %v5185, 16
        %v5491 = vrot.slane %v5489, 4
        %v5492 = vshll.u32 %v5185, 16
        %v5494 = vrot.slane %v5492, 5
        %v5495 = vor.u32 %v5491, %v5494
        %v5496 = vrot.slane %v5495, 4
        %v5498 = vshll.u32 %v5186, 16
        %v5500 = vrot.slane %v5498, 5
        %v5501 = vsel %vm5199, %v5496, %v5500
        %v5502 = vshrl.u32 %v5186, 16
        %v5504 = vrot.slane %v5502, 4
        %v5505 = vor.u32 %v5504, %v5500
        %v5506 = vrot.slane %v5505, 4
        %v5508 = vshll.u32 %v5187, 16
        %v5510 = vrot.slane %v5508, 5
        %v5511 = vsel %vm5199, %v5506, %v5510
        %v5513 = vshrl.u32 %v5188, 16
        %v5515 = vrot.slane %v5513, 4
        %v5516 = vshll.u32 %v5188, 16
        %v5518 = vrot.slane %v5516, 5
        %v5519 = vor.u32 %v5515, %v5518
        %v5520 = vrot.slane %v5519, 4
        %v5522 = vshll.u32 %v5189, 16
        %v5524 = vrot.slane %v5522, 5
        %v5525 = vsel %vm5199, %v5520, %v5524
        %v5526 = vshrl.u32 %v5189, 16
        %v5528 = vrot.slane %v5526, 4
        %v5529 = vor.u32 %v5528, %v5524
        %v5530 = vrot.slane %v5529, 4
        %v5532 = vshll.u32 %v5190, 16
        %v5534 = vrot.slane %v5532, 5
        %v5535 = vsel %vm5199, %v5530, %v5534
        %v5537 = vshrl.u32 %v5191, 16
        %v5539 = vrot.slane %v5537, 4
        %v5540 = vshll.u32 %v5191, 16
        %v5542 = vrot.slane %v5540, 5
        %v5543 = vor.u32 %v5539, %v5542
        %v5544 = vrot.slane %v5543, 4
        %v5546 = vshll.u32 %v5192, 16
        %v5548 = vrot.slane %v5546, 5
        %v5549 = vsel %vm5199, %v5544, %v5548
        %v5550 = vshrl.u32 %v5192, 16
        %v5552 = vrot.slane %v5550, 4
        %v5553 = vor.u32 %v5552, %v5548
        %v5554 = vrot.slane %v5553, 4
        %v5556 = vshll.u32 %v5193, 16
        %v5558 = vrot.slane %v5556, 5
        %v5559 = vsel %vm5199, %v5554, %v5558
        %v5561 = vshrl.u32 %v5194, 16
        %v5563 = vrot.slane %v5561, 4
        %v5564 = vshll.u32 %v5194, 16
        %v5566 = vrot.slane %v5564, 5
        %v5567 = vor.u32 %v5563, %v5566
        %v5568 = vrot.slane %v5567, 4
        %v5570 = vshll.u32 %v5195, 16
        %v5572 = vrot.slane %v5570, 5
        %v5573 = vsel %vm5199, %v5568, %v5572
        %v5574 = vshrl.u32 %v5195, 16
        %v5576 = vrot.slane %v5574, 4
        %v5577 = vor.u32 %v5576, %v5572
        %v5578 = vrot.slane %v5577, 4
        %v5580 = vshll.u32 %v5196, 16
        %v5582 = vrot.slane %v5580, 5
        %v5583 = vsel %vm5199, %v5578, %v5582
        %5584 = vrot.lane.b32.xlu0 %v5213, 64
        %v5585 = vpop.permute.xlu0 %5584
        %5586 = vrot.lane.b32.xlu0 %v5223, 64
        %v5587 = vpop.permute.xlu0 %5586
        %5588 = vrot.lane.b32.xlu0 %v5237, 64
        %v5589 = vpop.permute.xlu0 %5588
        %5590 = vrot.lane.b32.xlu0 %v5247, 64
        %v5591 = vpop.permute.xlu0 %5590
        %5592 = vrot.lane.b32.xlu0 %v5261, 64
        %v5593 = vpop.permute.xlu0 %5592
        %5594 = vrot.lane.b32.xlu0 %v5271, 64
        %v5595 = vpop.permute.xlu0 %5594
        %5596 = vrot.lane.b32.xlu0 %v5285, 64
        %v5597 = vpop.permute.xlu0 %5596
        %5598 = vrot.lane.b32.xlu0 %v5295, 64
        %v5599 = vpop.permute.xlu0 %5598
        %5600 = vrot.lane.b32.xlu0 %v5309, 64
        %v5601 = vpop.permute.xlu0 %5600
        %5602 = vrot.lane.b32.xlu0 %v5319, 64
        %v5603 = vpop.permute.xlu0 %5602
        %5604 = vrot.lane.b32.xlu0 %v5333, 64
        %v5605 = vpop.permute.xlu0 %5604
        %5606 = vrot.lane.b32.xlu0 %v5343, 64
        %v5607 = vpop.permute.xlu0 %5606
        %5608 = vrot.lane.b32.xlu0 %v5357, 64
        %v5609 = vpop.permute.xlu0 %5608
        %5610 = vrot.lane.b32.xlu0 %v5367, 64
        %v5611 = vpop.permute.xlu0 %5610
        %5612 = vrot.lane.b32.xlu0 %v5381, 64
        %v5613 = vpop.permute.xlu0 %5612
        %5614 = vrot.lane.b32.xlu0 %v5391, 64
        %v5615 = vpop.permute.xlu0 %5614
        %5616 = vrot.lane.b32.xlu0 %v5405, 64
        %v5617 = vpop.permute.xlu0 %5616
        %5618 = vrot.lane.b32.xlu0 %v5415, 64
        %v5619 = vpop.permute.xlu0 %5618
        %5620 = vrot.lane.b32.xlu0 %v5429, 64
        %v5621 = vpop.permute.xlu0 %5620
        %5622 = vrot.lane.b32.xlu0 %v5439, 64
        %v5623 = vpop.permute.xlu0 %5622
        %5624 = vrot.lane.b32.xlu0 %v5453, 64
        %v5625 = vpop.permute.xlu0 %5624
        %5626 = vrot.lane.b32.xlu0 %v5463, 64
        %v5627 = vpop.permute.xlu0 %5626
        %5628 = vrot.lane.b32.xlu0 %v5477, 64
        %v5629 = vpop.permute.xlu0 %5628
        %5630 = vrot.lane.b32.xlu0 %v5487, 64
        %v5631 = vpop.permute.xlu0 %5630
        %5632 = vrot.lane.b32.xlu0 %v5501, 64
        %v5633 = vpop.permute.xlu0 %5632
        %5634 = vrot.lane.b32.xlu0 %v5511, 64
        %v5635 = vpop.permute.xlu0 %5634
        %5636 = vrot.lane.b32.xlu0 %v5525, 64
        %v5637 = vpop.permute.xlu0 %5636
        %5638 = vrot.lane.b32.xlu0 %v5535, 64
        %v5639 = vpop.permute.xlu0 %5638
        %5640 = vrot.lane.b32.xlu0 %v5549, 64
        %v5641 = vpop.permute.xlu0 %5640
        %5642 = vrot.lane.b32.xlu0 %v5559, 64
        %v5643 = vpop.permute.xlu0 %5642
        %5644 = vrot.lane.b32.xlu0 %v5573, 64
        %v5645 = vpop.permute.xlu0 %5644
        %5646 = vrot.lane.b32.xlu0 %v5583, 64
        %v5647 = vpop.permute.xlu0 %5646
        %vm5680 = vcmask 1043968
        %5681 = vst.msk [vmem:[#allocation4] sm:$0xf] %vm5680, %v5585
        %5682 = vst.msk [vmem:[#allocation4 + $0x14] sm:$0xf] %vm5680, %v5587
        %5683 = vst.msk [vmem:[#allocation4 + $0x28] sm:$0xf] %vm5680, %v5589
        %5684 = vst.msk [vmem:[#allocation4 + $0x3c] sm:$0xf] %vm5680, %v5591
        %5685 = vst.msk [vmem:[#allocation4 + $0x50] sm:$0xf] %vm5680, %v5593
        %5686 = vst.msk [vmem:[#allocation4 + $0x64] sm:$0xf] %vm5680, %v5595
        %5687 = vst.msk [vmem:[#allocation4 + $0x78] sm:$0xf] %vm5680, %v5597
        %5688 = vst.msk [vmem:[#allocation4 + $0x8c] sm:$0xf] %vm5680, %v5599
        %5689 = vst.msk [vmem:[#allocation4 + $0xa0] sm:$0xf] %vm5680, %v5601
        %5690 = vst.msk [vmem:[#allocation4 + $0xb4] sm:$0xf] %vm5680, %v5603
        %5691 = vst.msk [vmem:[#allocation4 + $0xc8] sm:$0xf] %vm5680, %v5605
        %5692 = vst.msk [vmem:[#allocation4 + $0xdc] sm:$0xf] %vm5680, %v5607
        %5693 = vst.msk [vmem:[#allocation4 + $0xf0] sm:$0xf] %vm5680, %v5609
        %5694 = vst.msk [vmem:[#allocation4 + $0x104] sm:$0xf] %vm5680, %v5611
        %5695 = vst.msk [vmem:[#allocation4 + $0x118] sm:$0xf] %vm5680, %v5613
        %5696 = vst.msk [vmem:[#allocation4 + $0x12c] sm:$0xf] %vm5680, %v5615
        %5697 = vst.msk [vmem:[#allocation4 + $0x140] sm:$0xf] %vm5680, %v5617
        %5698 = vst.msk [vmem:[#allocation4 + $0x154] sm:$0xf] %vm5680, %v5619
        %5699 = vst.msk [vmem:[#allocation4 + $0x168] sm:$0xf] %vm5680, %v5621
        %5700 = vst.msk [vmem:[#allocation4 + $0x17c] sm:$0xf] %vm5680, %v5623
        %5701 = vst.msk [vmem:[#allocation4 + $0x190] sm:$0xf] %vm5680, %v5625
        %5702 = vst.msk [vmem:[#allocation4 + $0x1a4] sm:$0xf] %vm5680, %v5627
        %5703 = vst.msk [vmem:[#allocation4 + $0x1b8] sm:$0xf] %vm5680, %v5629
        %5704 = vst.msk [vmem:[#allocation4 + $0x1cc] sm:$0xf] %vm5680, %v5631
        %5705 = vst.msk [vmem:[#allocation4 + $0x1e0] sm:$0xf] %vm5680, %v5633
        %5706 = vst.msk [vmem:[#allocation4 + $0x1f4] sm:$0xf] %vm5680, %v5635
        %5707 = vst.msk [vmem:[#allocation4 + $0x208] sm:$0xf] %vm5680, %v5637
        %5708 = vst.msk [vmem:[#allocation4 + $0x21c] sm:$0xf] %vm5680, %v5639
        %5709 = vst.msk [vmem:[#allocation4 + $0x230] sm:$0xf] %vm5680, %v5641
        %5710 = vst.msk [vmem:[#allocation4 + $0x244] sm:$0xf] %vm5680, %v5643
        %5711 = vst.msk [vmem:[#allocation4 + $0x258] sm:$0xf] %vm5680, %v5645
        %5712 = vst.msk [vmem:[#allocation4 + $0x26c] sm:$0xf] %vm5680, %v5647
        %v5713 = vld [vmem:[#allocation3] sm:$0xe]
        %v5714 = vld [vmem:[#allocation3 + $0x4] sm:$0xf]
        %v5715 = vld [vmem:[#allocation3 + $0x8] sm:$0x1]
        %v5716 = vld [vmem:[#allocation3 + $0xc] sm:$0xe]
        %v5717 = vld [vmem:[#allocation3 + $0x10] sm:$0xf]
        %v5718 = vld [vmem:[#allocation3 + $0x14] sm:$0x1]
        %v5719 = vld [vmem:[#allocation3 + $0x18] sm:$0xe]
        %v5720 = vld [vmem:[#allocation3 + $0x1c] sm:$0xf]
        %v5721 = vld [vmem:[#allocation3 + $0x20] sm:$0x1]
        %v5722 = vld [vmem:[#allocation3 + $0x24] sm:$0xe]
        %v5723 = vld [vmem:[#allocation3 + $0x28] sm:$0xf]
        %v5724 = vld [vmem:[#allocation3 + $0x2c] sm:$0x1]
        %v5725 = vld [vmem:[#allocation3 + $0x30] sm:$0xe]
        %v5726 = vld [vmem:[#allocation3 + $0x34] sm:$0xf]
        %v5727 = vld [vmem:[#allocation3 + $0x38] sm:$0x1]
        %v5728 = vld [vmem:[#allocation3 + $0x3c] sm:$0xe]
        %v5729 = vld [vmem:[#allocation3 + $0x40] sm:$0xf]
        %v5730 = vld [vmem:[#allocation3 + $0x44] sm:$0x1]
        %v5731 = vld [vmem:[#allocation3 + $0x48] sm:$0xe]
        %v5732 = vld [vmem:[#allocation3 + $0x4c] sm:$0xf]
        %v5733 = vld [vmem:[#allocation3 + $0x50] sm:$0x1]
        %v5734 = vld [vmem:[#allocation3 + $0x54] sm:$0xe]
        %v5735 = vld [vmem:[#allocation3 + $0x58] sm:$0xf]
        %v5736 = vld [vmem:[#allocation3 + $0x5c] sm:$0x1]
        %v5737 = vld [vmem:[#allocation3 + $0x60] sm:$0xe]
        %v5738 = vld [vmem:[#allocation3 + $0x64] sm:$0xf]
        %v5739 = vld [vmem:[#allocation3 + $0x68] sm:$0x1]
        %v5740 = vld [vmem:[#allocation3 + $0x6c] sm:$0xe]
        %v5741 = vld [vmem:[#allocation3 + $0x70] sm:$0xf]
        %v5742 = vld [vmem:[#allocation3 + $0x74] sm:$0x1]
        %v5743 = vld [vmem:[#allocation3 + $0x78] sm:$0xe]
        %v5744 = vld [vmem:[#allocation3 + $0x7c] sm:$0xf]
        %v5745 = vld [vmem:[#allocation3 + $0x80] sm:$0x1]
        %v5746 = vld [vmem:[#allocation3 + $0x84] sm:$0xe]
        %v5747 = vld [vmem:[#allocation3 + $0x88] sm:$0xf]
        %v5748 = vld [vmem:[#allocation3 + $0x8c] sm:$0x1]
        %v5749 = vld [vmem:[#allocation3 + $0x90] sm:$0xe]
        %v5750 = vld [vmem:[#allocation3 + $0x94] sm:$0xf]
        %v5751 = vld [vmem:[#allocation3 + $0x98] sm:$0x1]
        %v5752 = vld [vmem:[#allocation3 + $0x9c] sm:$0xe]
        %v5753 = vld [vmem:[#allocation3 + $0xa0] sm:$0xf]
        %v5754 = vld [vmem:[#allocation3 + $0xa4] sm:$0x1]
        %v5755 = vld [vmem:[#allocation3 + $0xa8] sm:$0xe]
        %v5756 = vld [vmem:[#allocation3 + $0xac] sm:$0xf]
        %v5757 = vld [vmem:[#allocation3 + $0xb0] sm:$0x1]
        %v5758 = vld [vmem:[#allocation3 + $0xb4] sm:$0xe]
        %v5759 = vld [vmem:[#allocation3 + $0xb8] sm:$0xf]
        %v5760 = vld [vmem:[#allocation3 + $0xbc] sm:$0x1]
        %vm5809 = vcmask 1042432
        %vm5810 = vcmask 1046532
        %vm5811 = vmor %vm5809, %vm5810
        %v5812 = vrot.slane %v5713, 5
        %v5813 = vrot.slane %v5812, 4
        %v5814 = vrot.slane %v5714, 5
        %v5815 = vsel %vm5811, %v5813, %v5814
        %v5816 = vrot.slane %v5814, 4
        %v5817 = vrot.slane %v5715, 5
        %v5818 = vsel %vm5811, %v5816, %v5817
        %v5819 = vrot.slane %v5716, 5
        %v5820 = vrot.slane %v5819, 4
        %v5821 = vrot.slane %v5717, 5
        %v5822 = vsel %vm5811, %v5820, %v5821
        %v5823 = vrot.slane %v5821, 4
        %v5824 = vrot.slane %v5718, 5
        %v5825 = vsel %vm5811, %v5823, %v5824
        %v5826 = vrot.slane %v5719, 5
        %v5827 = vrot.slane %v5826, 4
        %v5828 = vrot.slane %v5720, 5
        %v5829 = vsel %vm5811, %v5827, %v5828
        %v5830 = vrot.slane %v5828, 4
        %v5831 = vrot.slane %v5721, 5
        %v5832 = vsel %vm5811, %v5830, %v5831
        %v5833 = vrot.slane %v5722, 5
        %v5834 = vrot.slane %v5833, 4
        %v5835 = vrot.slane %v5723, 5
        %v5836 = vsel %vm5811, %v5834, %v5835
        %v5837 = vrot.slane %v5835, 4
        %v5838 = vrot.slane %v5724, 5
        %v5839 = vsel %vm5811, %v5837, %v5838
        %v5840 = vrot.slane %v5725, 5
        %v5841 = vrot.slane %v5840, 4
        %v5842 = vrot.slane %v5726, 5
        %v5843 = vsel %vm5811, %v5841, %v5842
        %v5844 = vrot.slane %v5842, 4
        %v5845 = vrot.slane %v5727, 5
        %v5846 = vsel %vm5811, %v5844, %v5845
        %v5847 = vrot.slane %v5728, 5
        %v5848 = vrot.slane %v5847, 4
        %v5849 = vrot.slane %v5729, 5
        %v5850 = vsel %vm5811, %v5848, %v5849
        %v5851 = vrot.slane %v5849, 4
        %v5852 = vrot.slane %v5730, 5
        %v5853 = vsel %vm5811, %v5851, %v5852
        %v5854 = vrot.slane %v5731, 5
        %v5855 = vrot.slane %v5854, 4
        %v5856 = vrot.slane %v5732, 5
        %v5857 = vsel %vm5811, %v5855, %v5856
        %v5858 = vrot.slane %v5856, 4
        %v5859 = vrot.slane %v5733, 5
        %v5860 = vsel %vm5811, %v5858, %v5859
        %v5861 = vrot.slane %v5734, 5
        %v5862 = vrot.slane %v5861, 4
        %v5863 = vrot.slane %v5735, 5
        %v5864 = vsel %vm5811, %v5862, %v5863
        %v5865 = vrot.slane %v5863, 4
        %v5866 = vrot.slane %v5736, 5
        %v5867 = vsel %vm5811, %v5865, %v5866
        %v5868 = vrot.slane %v5737, 5
        %v5869 = vrot.slane %v5868, 4
        %v5870 = vrot.slane %v5738, 5
        %v5871 = vsel %vm5811, %v5869, %v5870
        %v5872 = vrot.slane %v5870, 4
        %v5873 = vrot.slane %v5739, 5
        %v5874 = vsel %vm5811, %v5872, %v5873
        %v5875 = vrot.slane %v5740, 5
        %v5876 = vrot.slane %v5875, 4
        %v5877 = vrot.slane %v5741, 5
        %v5878 = vsel %vm5811, %v5876, %v5877
        %v5879 = vrot.slane %v5877, 4
        %v5880 = vrot.slane %v5742, 5
        %v5881 = vsel %vm5811, %v5879, %v5880
        %v5882 = vrot.slane %v5743, 5
        %v5883 = vrot.slane %v5882, 4
        %v5884 = vrot.slane %v5744, 5
        %v5885 = vsel %vm5811, %v5883, %v5884
        %v5886 = vrot.slane %v5884, 4
        %v5887 = vrot.slane %v5745, 5
        %v5888 = vsel %vm5811, %v5886, %v5887
        %v5889 = vrot.slane %v5746, 5
        %v5890 = vrot.slane %v5889, 4
        %v5891 = vrot.slane %v5747, 5
        %v5892 = vsel %vm5811, %v5890, %v5891
        %v5893 = vrot.slane %v5891, 4
        %v5894 = vrot.slane %v5748, 5
        %v5895 = vsel %vm5811, %v5893, %v5894
        %v5896 = vrot.slane %v5749, 5
        %v5897 = vrot.slane %v5896, 4
        %v5898 = vrot.slane %v5750, 5
        %v5899 = vsel %vm5811, %v5897, %v5898
        %v5900 = vrot.slane %v5898, 4
        %v5901 = vrot.slane %v5751, 5
        %v5902 = vsel %vm5811, %v5900, %v5901
        %v5903 = vrot.slane %v5752, 5
        %v5904 = vrot.slane %v5903, 4
        %v5905 = vrot.slane %v5753, 5
        %v5906 = vsel %vm5811, %v5904, %v5905
        %v5907 = vrot.slane %v5905, 4
        %v5908 = vrot.slane %v5754, 5
        %v5909 = vsel %vm5811, %v5907, %v5908
        %v5910 = vrot.slane %v5755, 5
        %v5911 = vrot.slane %v5910, 4
        %v5912 = vrot.slane %v5756, 5
        %v5913 = vsel %vm5811, %v5911, %v5912
        %v5914 = vrot.slane %v5912, 4
        %v5915 = vrot.slane %v5757, 5
        %v5916 = vsel %vm5811, %v5914, %v5915
        %v5917 = vrot.slane %v5758, 5
        %v5918 = vrot.slane %v5917, 4
        %v5919 = vrot.slane %v5759, 5
        %v5920 = vsel %vm5811, %v5918, %v5919
        %v5921 = vrot.slane %v5919, 4
        %v5922 = vrot.slane %v5760, 5
        %v5923 = vsel %vm5811, %v5921, %v5922
        %5956 = vst.msk [vmem:[#allocation4 + $0x4] sm:$0xf] %vm4430, %v5815
        %5957 = vst.msk [vmem:[#allocation4 + $0x18] sm:$0xf] %vm4430, %v5818
        %5958 = vst.msk [vmem:[#allocation4 + $0x2c] sm:$0xf] %vm4430, %v5822
        %5959 = vst.msk [vmem:[#allocation4 + $0x40] sm:$0xf] %vm4430, %v5825
        %5960 = vst.msk [vmem:[#allocation4 + $0x54] sm:$0xf] %vm4430, %v5829
        %5961 = vst.msk [vmem:[#allocation4 + $0x68] sm:$0xf] %vm4430, %v5832
        %5962 = vst.msk [vmem:[#allocation4 + $0x7c] sm:$0xf] %vm4430, %v5836
        %5963 = vst.msk [vmem:[#allocation4 + $0x90] sm:$0xf] %vm4430, %v5839
        %5964 = vst.msk [vmem:[#allocation4 + $0xa4] sm:$0xf] %vm4430, %v5843
        %5965 = vst.msk [vmem:[#allocation4 + $0xb8] sm:$0xf] %vm4430, %v5846
        %5966 = vst.msk [vmem:[#allocation4 + $0xcc] sm:$0xf] %vm4430, %v5850
        %5967 = vst.msk [vmem:[#allocation4 + $0xe0] sm:$0xf] %vm4430, %v5853
        %5968 = vst.msk [vmem:[#allocation4 + $0xf4] sm:$0xf] %vm4430, %v5857
        %5969 = vst.msk [vmem:[#allocation4 + $0x108] sm:$0xf] %vm4430, %v5860
        %5970 = vst.msk [vmem:[#allocation4 + $0x11c] sm:$0xf] %vm4430, %v5864
        %5971 = vst.msk [vmem:[#allocation4 + $0x130] sm:$0xf] %vm4430, %v5867
        %5972 = vst.msk [vmem:[#allocation4 + $0x144] sm:$0xf] %vm4430, %v5871
        %5973 = vst.msk [vmem:[#allocation4 + $0x158] sm:$0xf] %vm4430, %v5874
        %5974 = vst.msk [vmem:[#allocation4 + $0x16c] sm:$0xf] %vm4430, %v5878
        %5975 = vst.msk [vmem:[#allocation4 + $0x180] sm:$0xf] %vm4430, %v5881
        %5976 = vst.msk [vmem:[#allocation4 + $0x194] sm:$0xf] %vm4430, %v5885
        %5977 = vst.msk [vmem:[#allocation4 + $0x1a8] sm:$0xf] %vm4430, %v5888
        %5978 = vst.msk [vmem:[#allocation4 + $0x1bc] sm:$0xf] %vm4430, %v5892
        %5979 = vst.msk [vmem:[#allocation4 + $0x1d0] sm:$0xf] %vm4430, %v5895
        %5980 = vst.msk [vmem:[#allocation4 + $0x1e4] sm:$0xf] %vm4430, %v5899
        %5981 = vst.msk [vmem:[#allocation4 + $0x1f8] sm:$0xf] %vm4430, %v5902
        %5982 = vst.msk [vmem:[#allocation4 + $0x20c] sm:$0xf] %vm4430, %v5906
        %5983 = vst.msk [vmem:[#allocation4 + $0x220] sm:$0xf] %vm4430, %v5909
        %5984 = vst.msk [vmem:[#allocation4 + $0x234] sm:$0xf] %vm4430, %v5913
        %5985 = vst.msk [vmem:[#allocation4 + $0x248] sm:$0xf] %vm4430, %v5916
        %5986 = vst.msk [vmem:[#allocation4 + $0x25c] sm:$0xf] %vm4430, %v5920
        %5987 = vst.msk [vmem:[#allocation4 + $0x270] sm:$0xf] %vm4430, %v5923
        %v5988 = vld [vmem:[%s4970] sm:$0xf]
        %v5989 = vld [vmem:[%s4970 + $0x4] sm:$0xf]
        %v5990 = vld [vmem:[%s4970 + $0xc] sm:$0xf]
        %v5991 = vld [vmem:[%s4970 + $0x10] sm:$0xf]
        %v5992 = vld [vmem:[%s4970 + $0x18] sm:$0xf]
        %v5993 = vld [vmem:[%s4970 + $0x1c] sm:$0xf]
        %v5994 = vld [vmem:[%s4970 + $0x24] sm:$0xf]
        %v5995 = vld [vmem:[%s4970 + $0x28] sm:$0xf]
        %v5996 = vld [vmem:[%s4970 + $0x30] sm:$0xf]
        %v5997 = vld [vmem:[%s4970 + $0x34] sm:$0xf]
        %v5998 = vld [vmem:[%s4970 + $0x3c] sm:$0xf]
        %v5999 = vld [vmem:[%s4970 + $0x40] sm:$0xf]
        %v6000 = vld [vmem:[%s4970 + $0x48] sm:$0xf]
        %v6001 = vld [vmem:[%s4970 + $0x4c] sm:$0xf]
        %v6002 = vld [vmem:[%s4970 + $0x54] sm:$0xf]
        %v6003 = vld [vmem:[%s4970 + $0x58] sm:$0xf]
        %v6004 = vld [vmem:[%s4970 + $0x60] sm:$0xf]
        %v6005 = vld [vmem:[%s4970 + $0x64] sm:$0xf]
        %v6006 = vld [vmem:[%s4970 + $0x6c] sm:$0xf]
        %v6007 = vld [vmem:[%s4970 + $0x70] sm:$0xf]
        %v6008 = vld [vmem:[%s4970 + $0x78] sm:$0xf]
        %v6009 = vld [vmem:[%s4970 + $0x7c] sm:$0xf]
        %v6010 = vld [vmem:[%s4970 + $0x84] sm:$0xf]
        %v6011 = vld [vmem:[%s4970 + $0x88] sm:$0xf]
        %v6012 = vld [vmem:[%s4970 + $0x90] sm:$0xf]
        %v6013 = vld [vmem:[%s4970 + $0x94] sm:$0xf]
        %v6014 = vld [vmem:[%s4970 + $0x9c] sm:$0xf]
        %v6015 = vld [vmem:[%s4970 + $0xa0] sm:$0xf]
        %v6016 = vld [vmem:[%s4970 + $0xa8] sm:$0xf]
        %v6017 = vld [vmem:[%s4970 + $0xac] sm:$0xf]
        %v6018 = vld [vmem:[%s4970 + $0xb4] sm:$0xf]
        %v6019 = vld [vmem:[%s4970 + $0xb8] sm:$0xf]
        %6052 = vrot.lane.b32.xlu0 %v5988, 64
        %v6053 = vpop.permute.xlu0 %6052
        %6054 = vrot.lane.b32.xlu0 %v5989, 64
        %v6055 = vpop.permute.xlu0 %6054
        %6056 = vrot.lane.b32.xlu0 %v5990, 64
        %v6057 = vpop.permute.xlu0 %6056
        %6058 = vrot.lane.b32.xlu0 %v5991, 64
        %v6059 = vpop.permute.xlu0 %6058
        %6060 = vrot.lane.b32.xlu0 %v5992, 64
        %v6061 = vpop.permute.xlu0 %6060
        %6062 = vrot.lane.b32.xlu0 %v5993, 64
        %v6063 = vpop.permute.xlu0 %6062
        %6064 = vrot.lane.b32.xlu0 %v5994, 64
        %v6065 = vpop.permute.xlu0 %6064
        %6066 = vrot.lane.b32.xlu0 %v5995, 64
        %v6067 = vpop.permute.xlu0 %6066
        %6068 = vrot.lane.b32.xlu0 %v5996, 64
        %v6069 = vpop.permute.xlu0 %6068
        %6070 = vrot.lane.b32.xlu0 %v5997, 64
        %v6071 = vpop.permute.xlu0 %6070
        %6072 = vrot.lane.b32.xlu0 %v5998, 64
        %v6073 = vpop.permute.xlu0 %6072
        %6074 = vrot.lane.b32.xlu0 %v5999, 64
        %v6075 = vpop.permute.xlu0 %6074
        %6076 = vrot.lane.b32.xlu0 %v6000, 64
        %v6077 = vpop.permute.xlu0 %6076
        %6078 = vrot.lane.b32.xlu0 %v6001, 64
        %v6079 = vpop.permute.xlu0 %6078
        %6080 = vrot.lane.b32.xlu0 %v6002, 64
        %v6081 = vpop.permute.xlu0 %6080
        %6082 = vrot.lane.b32.xlu0 %v6003, 64
        %v6083 = vpop.permute.xlu0 %6082
        %6084 = vrot.lane.b32.xlu0 %v6004, 64
        %v6085 = vpop.permute.xlu0 %6084
        %6086 = vrot.lane.b32.xlu0 %v6005, 64
        %v6087 = vpop.permute.xlu0 %6086
        %6088 = vrot.lane.b32.xlu0 %v6006, 64
        %v6089 = vpop.permute.xlu0 %6088
        %6090 = vrot.lane.b32.xlu0 %v6007, 64
        %v6091 = vpop.permute.xlu0 %6090
        %6092 = vrot.lane.b32.xlu0 %v6008, 64
        %v6093 = vpop.permute.xlu0 %6092
        %6094 = vrot.lane.b32.xlu0 %v6009, 64
        %v6095 = vpop.permute.xlu0 %6094
        %6096 = vrot.lane.b32.xlu0 %v6010, 64
        %v6097 = vpop.permute.xlu0 %6096
        %6098 = vrot.lane.b32.xlu0 %v6011, 64
        %v6099 = vpop.permute.xlu0 %6098
        %6100 = vrot.lane.b32.xlu0 %v6012, 64
        %v6101 = vpop.permute.xlu0 %6100
        %6102 = vrot.lane.b32.xlu0 %v6013, 64
        %v6103 = vpop.permute.xlu0 %6102
        %6104 = vrot.lane.b32.xlu0 %v6014, 64
        %v6105 = vpop.permute.xlu0 %6104
        %6106 = vrot.lane.b32.xlu0 %v6015, 64
        %v6107 = vpop.permute.xlu0 %6106
        %6108 = vrot.lane.b32.xlu0 %v6016, 64
        %v6109 = vpop.permute.xlu0 %6108
        %6110 = vrot.lane.b32.xlu0 %v6017, 64
        %v6111 = vpop.permute.xlu0 %6110
        %6112 = vrot.lane.b32.xlu0 %v6018, 64
        %v6113 = vpop.permute.xlu0 %6112
        %6114 = vrot.lane.b32.xlu0 %v6019, 64
        %v6115 = vpop.permute.xlu0 %6114
        %6148 = vst.msk [vmem:[#allocation4 + $0x4] sm:$0xf] %vm5680, %v6053
        %6149 = vst.msk [vmem:[#allocation4 + $0x18] sm:$0xf] %vm5680, %v6055
        %6150 = vst.msk [vmem:[#allocation4 + $0x2c] sm:$0xf] %vm5680, %v6057
        %6151 = vst.msk [vmem:[#allocation4 + $0x40] sm:$0xf] %vm5680, %v6059
        %6152 = vst.msk [vmem:[#allocation4 + $0x54] sm:$0xf] %vm5680, %v6061
        %6153 = vst.msk [vmem:[#allocation4 + $0x68] sm:$0xf] %vm5680, %v6063
        %6154 = vst.msk [vmem:[#allocation4 + $0x7c] sm:$0xf] %vm5680, %v6065
        %6155 = vst.msk [vmem:[#allocation4 + $0x90] sm:$0xf] %vm5680, %v6067
        %6156 = vst.msk [vmem:[#allocation4 + $0xa4] sm:$0xf] %vm5680, %v6069
        %6157 = vst.msk [vmem:[#allocation4 + $0xb8] sm:$0xf] %vm5680, %v6071
        %6158 = vst.msk [vmem:[#allocation4 + $0xcc] sm:$0xf] %vm5680, %v6073
        %6159 = vst.msk [vmem:[#allocation4 + $0xe0] sm:$0xf] %vm5680, %v6075
        %6160 = vst.msk [vmem:[#allocation4 + $0xf4] sm:$0xf] %vm5680, %v6077
        %6161 = vst.msk [vmem:[#allocation4 + $0x108] sm:$0xf] %vm5680, %v6079
        %6162 = vst.msk [vmem:[#allocation4 + $0x11c] sm:$0xf] %vm5680, %v6081
        %6163 = vst.msk [vmem:[#allocation4 + $0x130] sm:$0xf] %vm5680, %v6083
        %6164 = vst.msk [vmem:[#allocation4 + $0x144] sm:$0xf] %vm5680, %v6085
        %6165 = vst.msk [vmem:[#allocation4 + $0x158] sm:$0xf] %vm5680, %v6087
        %6166 = vst.msk [vmem:[#allocation4 + $0x16c] sm:$0xf] %vm5680, %v6089
        %6167 = vst.msk [vmem:[#allocation4 + $0x180] sm:$0xf] %vm5680, %v6091
        %6168 = vst.msk [vmem:[#allocation4 + $0x194] sm:$0xf] %vm5680, %v6093
        %6169 = vst.msk [vmem:[#allocation4 + $0x1a8] sm:$0xf] %vm5680, %v6095
        %6170 = vst.msk [vmem:[#allocation4 + $0x1bc] sm:$0xf] %vm5680, %v6097
        %6171 = vst.msk [vmem:[#allocation4 + $0x1d0] sm:$0xf] %vm5680, %v6099
        %6172 = vst.msk [vmem:[#allocation4 + $0x1e4] sm:$0xf] %vm5680, %v6101
        %6173 = vst.msk [vmem:[#allocation4 + $0x1f8] sm:$0xf] %vm5680, %v6103
        %6174 = vst.msk [vmem:[#allocation4 + $0x20c] sm:$0xf] %vm5680, %v6105
        %6175 = vst.msk [vmem:[#allocation4 + $0x220] sm:$0xf] %vm5680, %v6107
        %6176 = vst.msk [vmem:[#allocation4 + $0x234] sm:$0xf] %vm5680, %v6109
        %6177 = vst.msk [vmem:[#allocation4 + $0x248] sm:$0xf] %vm5680, %v6111
        %6178 = vst.msk [vmem:[#allocation4 + $0x25c] sm:$0xf] %vm5680, %v6113
        %6179 = vst.msk [vmem:[#allocation4 + $0x270] sm:$0xf] %vm5680, %v6115
        %v6180 = vld [vmem:[%s4970] sm:$0xf]
        %v6181 = vld [vmem:[%s4970 + $0x4] sm:$0xf]
        %v6182 = vld [vmem:[%s4970 + $0x8] sm:$0x1]
        %v6183 = vld [vmem:[%s4970 + $0xc] sm:$0xf]
        %v6184 = vld [vmem:[%s4970 + $0x10] sm:$0xf]
        %v6185 = vld [vmem:[%s4970 + $0x14] sm:$0x1]
        %v6186 = vld [vmem:[%s4970 + $0x18] sm:$0xf]
        %v6187 = vld [vmem:[%s4970 + $0x1c] sm:$0xf]
        %v6188 = vld [vmem:[%s4970 + $0x20] sm:$0x1]
        %v6189 = vld [vmem:[%s4970 + $0x24] sm:$0xf]
        %v6190 = vld [vmem:[%s4970 + $0x28] sm:$0xf]
        %v6191 = vld [vmem:[%s4970 + $0x2c] sm:$0x1]
        %v6192 = vld [vmem:[%s4970 + $0x30] sm:$0xf]
        %v6193 = vld [vmem:[%s4970 + $0x34] sm:$0xf]
        %v6194 = vld [vmem:[%s4970 + $0x38] sm:$0x1]
        %v6195 = vld [vmem:[%s4970 + $0x3c] sm:$0xf]
        %v6196 = vld [vmem:[%s4970 + $0x40] sm:$0xf]
        %v6197 = vld [vmem:[%s4970 + $0x44] sm:$0x1]
        %v6198 = vld [vmem:[%s4970 + $0x48] sm:$0xf]
        %v6199 = vld [vmem:[%s4970 + $0x4c] sm:$0xf]
        %v6200 = vld [vmem:[%s4970 + $0x50] sm:$0x1]
        %v6201 = vld [vmem:[%s4970 + $0x54] sm:$0xf]
        %v6202 = vld [vmem:[%s4970 + $0x58] sm:$0xf]
        %v6203 = vld [vmem:[%s4970 + $0x5c] sm:$0x1]
        %v6204 = vld [vmem:[%s4970 + $0x60] sm:$0xf]
        %v6205 = vld [vmem:[%s4970 + $0x64] sm:$0xf]
        %v6206 = vld [vmem:[%s4970 + $0x68] sm:$0x1]
        %v6207 = vld [vmem:[%s4970 + $0x6c] sm:$0xf]
        %v6208 = vld [vmem:[%s4970 + $0x70] sm:$0xf]
        %v6209 = vld [vmem:[%s4970 + $0x74] sm:$0x1]
        %v6210 = vld [vmem:[%s4970 + $0x78] sm:$0xf]
        %v6211 = vld [vmem:[%s4970 + $0x7c] sm:$0xf]
        %v6212 = vld [vmem:[%s4970 + $0x80] sm:$0x1]
        %v6213 = vld [vmem:[%s4970 + $0x84] sm:$0xf]
        %v6214 = vld [vmem:[%s4970 + $0x88] sm:$0xf]
        %v6215 = vld [vmem:[%s4970 + $0x8c] sm:$0x1]
        %v6216 = vld [vmem:[%s4970 + $0x90] sm:$0xf]
        %v6217 = vld [vmem:[%s4970 + $0x94] sm:$0xf]
        %v6218 = vld [vmem:[%s4970 + $0x98] sm:$0x1]
        %v6219 = vld [vmem:[%s4970 + $0x9c] sm:$0xf]
        %v6220 = vld [vmem:[%s4970 + $0xa0] sm:$0xf]
        %v6221 = vld [vmem:[%s4970 + $0xa4] sm:$0x1]
        %v6222 = vld [vmem:[%s4970 + $0xa8] sm:$0xf]
        %v6223 = vld [vmem:[%s4970 + $0xac] sm:$0xf]
        %v6224 = vld [vmem:[%s4970 + $0xb0] sm:$0x1]
        %v6225 = vld [vmem:[%s4970 + $0xb4] sm:$0xf]
        %v6226 = vld [vmem:[%s4970 + $0xb8] sm:$0xf]
        %v6227 = vld [vmem:[%s4970 + $0xbc] sm:$0x1]
        %v6229 = vshrl.u32 %v6180, 16
        %v6231 = vrot.slane %v6229, 4
        %v6232 = vshll.u32 %v6180, 16
        %v6234 = vrot.slane %v6232, 5
        %v6235 = vor.u32 %v6231, %v6234
        %v6236 = vrot.slane %v6235, 4
        %v6238 = vshll.u32 %v6181, 16
        %v6240 = vrot.slane %v6238, 5
        %v6241 = vsel %vm5199, %v6236, %v6240
        %v6242 = vshrl.u32 %v6181, 16
        %v6244 = vrot.slane %v6242, 4
        %v6245 = vor.u32 %v6244, %v6240
        %v6246 = vrot.slane %v6245, 4
        %v6248 = vshll.u32 %v6182, 16
        %v6250 = vrot.slane %v6248, 5
        %v6251 = vsel %vm5199, %v6246, %v6250
        %v6253 = vshrl.u32 %v6183, 16
        %v6255 = vrot.slane %v6253, 4
        %v6256 = vshll.u32 %v6183, 16
        %v6258 = vrot.slane %v6256, 5
        %v6259 = vor.u32 %v6255, %v6258
        %v6260 = vrot.slane %v6259, 4
        %v6262 = vshll.u32 %v6184, 16
        %v6264 = vrot.slane %v6262, 5
        %v6265 = vsel %vm5199, %v6260, %v6264
        %v6266 = vshrl.u32 %v6184, 16
        %v6268 = vrot.slane %v6266, 4
        %v6269 = vor.u32 %v6268, %v6264
        %v6270 = vrot.slane %v6269, 4
        %v6272 = vshll.u32 %v6185, 16
        %v6274 = vrot.slane %v6272, 5
        %v6275 = vsel %vm5199, %v6270, %v6274
        %v6277 = vshrl.u32 %v6186, 16
        %v6279 = vrot.slane %v6277, 4
        %v6280 = vshll.u32 %v6186, 16
        %v6282 = vrot.slane %v6280, 5
        %v6283 = vor.u32 %v6279, %v6282
        %v6284 = vrot.slane %v6283, 4
        %v6286 = vshll.u32 %v6187, 16
        %v6288 = vrot.slane %v6286, 5
        %v6289 = vsel %vm5199, %v6284, %v6288
        %v6290 = vshrl.u32 %v6187, 16
        %v6292 = vrot.slane %v6290, 4
        %v6293 = vor.u32 %v6292, %v6288
        %v6294 = vrot.slane %v6293, 4
        %v6296 = vshll.u32 %v6188, 16
        %v6298 = vrot.slane %v6296, 5
        %v6299 = vsel %vm5199, %v6294, %v6298
        %v6301 = vshrl.u32 %v6189, 16
        %v6303 = vrot.slane %v6301, 4
        %v6304 = vshll.u32 %v6189, 16
        %v6306 = vrot.slane %v6304, 5
        %v6307 = vor.u32 %v6303, %v6306
        %v6308 = vrot.slane %v6307, 4
        %v6310 = vshll.u32 %v6190, 16
        %v6312 = vrot.slane %v6310, 5
        %v6313 = vsel %vm5199, %v6308, %v6312
        %v6314 = vshrl.u32 %v6190, 16
        %v6316 = vrot.slane %v6314, 4
        %v6317 = vor.u32 %v6316, %v6312
        %v6318 = vrot.slane %v6317, 4
        %v6320 = vshll.u32 %v6191, 16
        %v6322 = vrot.slane %v6320, 5
        %v6323 = vsel %vm5199, %v6318, %v6322
        %v6325 = vshrl.u32 %v6192, 16
        %v6327 = vrot.slane %v6325, 4
        %v6328 = vshll.u32 %v6192, 16
        %v6330 = vrot.slane %v6328, 5
        %v6331 = vor.u32 %v6327, %v6330
        %v6332 = vrot.slane %v6331, 4
        %v6334 = vshll.u32 %v6193, 16
        %v6336 = vrot.slane %v6334, 5
        %v6337 = vsel %vm5199, %v6332, %v6336
        %v6338 = vshrl.u32 %v6193, 16
        %v6340 = vrot.slane %v6338, 4
        %v6341 = vor.u32 %v6340, %v6336
        %v6342 = vrot.slane %v6341, 4
        %v6344 = vshll.u32 %v6194, 16
        %v6346 = vrot.slane %v6344, 5
        %v6347 = vsel %vm5199, %v6342, %v6346
        %v6349 = vshrl.u32 %v6195, 16
        %v6351 = vrot.slane %v6349, 4
        %v6352 = vshll.u32 %v6195, 16
        %v6354 = vrot.slane %v6352, 5
        %v6355 = vor.u32 %v6351, %v6354
        %v6356 = vrot.slane %v6355, 4
        %v6358 = vshll.u32 %v6196, 16
        %v6360 = vrot.slane %v6358, 5
        %v6361 = vsel %vm5199, %v6356, %v6360
        %v6362 = vshrl.u32 %v6196, 16
        %v6364 = vrot.slane %v6362, 4
        %v6365 = vor.u32 %v6364, %v6360
        %v6366 = vrot.slane %v6365, 4
        %v6368 = vshll.u32 %v6197, 16
        %v6370 = vrot.slane %v6368, 5
        %v6371 = vsel %vm5199, %v6366, %v6370
        %v6373 = vshrl.u32 %v6198, 16
        %v6375 = vrot.slane %v6373, 4
        %v6376 = vshll.u32 %v6198, 16
        %v6378 = vrot.slane %v6376, 5
        %v6379 = vor.u32 %v6375, %v6378
        %v6380 = vrot.slane %v6379, 4
        %v6382 = vshll.u32 %v6199, 16
        %v6384 = vrot.slane %v6382, 5
        %v6385 = vsel %vm5199, %v6380, %v6384
        %v6386 = vshrl.u32 %v6199, 16
        %v6388 = vrot.slane %v6386, 4
        %v6389 = vor.u32 %v6388, %v6384
        %v6390 = vrot.slane %v6389, 4
        %v6392 = vshll.u32 %v6200, 16
        %v6394 = vrot.slane %v6392, 5
        %v6395 = vsel %vm5199, %v6390, %v6394
        %v6397 = vshrl.u32 %v6201, 16
        %v6399 = vrot.slane %v6397, 4
        %v6400 = vshll.u32 %v6201, 16
        %v6402 = vrot.slane %v6400, 5
        %v6403 = vor.u32 %v6399, %v6402
        %v6404 = vrot.slane %v6403, 4
        %v6406 = vshll.u32 %v6202, 16
        %v6408 = vrot.slane %v6406, 5
        %v6409 = vsel %vm5199, %v6404, %v6408
        %v6410 = vshrl.u32 %v6202, 16
        %v6412 = vrot.slane %v6410, 4
        %v6413 = vor.u32 %v6412, %v6408
        %v6414 = vrot.slane %v6413, 4
        %v6416 = vshll.u32 %v6203, 16
        %v6418 = vrot.slane %v6416, 5
        %v6419 = vsel %vm5199, %v6414, %v6418
        %v6421 = vshrl.u32 %v6204, 16
        %v6423 = vrot.slane %v6421, 4
        %v6424 = vshll.u32 %v6204, 16
        %v6426 = vrot.slane %v6424, 5
        %v6427 = vor.u32 %v6423, %v6426
        %v6428 = vrot.slane %v6427, 4
        %v6430 = vshll.u32 %v6205, 16
        %v6432 = vrot.slane %v6430, 5
        %v6433 = vsel %vm5199, %v6428, %v6432
        %v6434 = vshrl.u32 %v6205, 16
        %v6436 = vrot.slane %v6434, 4
        %v6437 = vor.u32 %v6436, %v6432
        %v6438 = vrot.slane %v6437, 4
        %v6440 = vshll.u32 %v6206, 16
        %v6442 = vrot.slane %v6440, 5
        %v6443 = vsel %vm5199, %v6438, %v6442
        %v6445 = vshrl.u32 %v6207, 16
        %v6447 = vrot.slane %v6445, 4
        %v6448 = vshll.u32 %v6207, 16
        %v6450 = vrot.slane %v6448, 5
        %v6451 = vor.u32 %v6447, %v6450
        %v6452 = vrot.slane %v6451, 4
        %v6454 = vshll.u32 %v6208, 16
        %v6456 = vrot.slane %v6454, 5
        %v6457 = vsel %vm5199, %v6452, %v6456
        %v6458 = vshrl.u32 %v6208, 16
        %v6460 = vrot.slane %v6458, 4
        %v6461 = vor.u32 %v6460, %v6456
        %v6462 = vrot.slane %v6461, 4
        %v6464 = vshll.u32 %v6209, 16
        %v6466 = vrot.slane %v6464, 5
        %v6467 = vsel %vm5199, %v6462, %v6466
        %v6469 = vshrl.u32 %v6210, 16
        %v6471 = vrot.slane %v6469, 4
        %v6472 = vshll.u32 %v6210, 16
        %v6474 = vrot.slane %v6472, 5
        %v6475 = vor.u32 %v6471, %v6474
        %v6476 = vrot.slane %v6475, 4
        %v6478 = vshll.u32 %v6211, 16
        %v6480 = vrot.slane %v6478, 5
        %v6481 = vsel %vm5199, %v6476, %v6480
        %v6482 = vshrl.u32 %v6211, 16
        %v6484 = vrot.slane %v6482, 4
        %v6485 = vor.u32 %v6484, %v6480
        %v6486 = vrot.slane %v6485, 4
        %v6488 = vshll.u32 %v6212, 16
        %v6490 = vrot.slane %v6488, 5
        %v6491 = vsel %vm5199, %v6486, %v6490
        %v6493 = vshrl.u32 %v6213, 16
        %v6495 = vrot.slane %v6493, 4
        %v6496 = vshll.u32 %v6213, 16
        %v6498 = vrot.slane %v6496, 5
        %v6499 = vor.u32 %v6495, %v6498
        %v6500 = vrot.slane %v6499, 4
        %v6502 = vshll.u32 %v6214, 16
        %v6504 = vrot.slane %v6502, 5
        %v6505 = vsel %vm5199, %v6500, %v6504
        %v6506 = vshrl.u32 %v6214, 16
        %v6508 = vrot.slane %v6506, 4
        %v6509 = vor.u32 %v6508, %v6504
        %v6510 = vrot.slane %v6509, 4
        %v6512 = vshll.u32 %v6215, 16
        %v6514 = vrot.slane %v6512, 5
        %v6515 = vsel %vm5199, %v6510, %v6514
        %v6517 = vshrl.u32 %v6216, 16
        %v6519 = vrot.slane %v6517, 4
        %v6520 = vshll.u32 %v6216, 16
        %v6522 = vrot.slane %v6520, 5
        %v6523 = vor.u32 %v6519, %v6522
        %v6524 = vrot.slane %v6523, 4
        %v6526 = vshll.u32 %v6217, 16
        %v6528 = vrot.slane %v6526, 5
        %v6529 = vsel %vm5199, %v6524, %v6528
        %v6530 = vshrl.u32 %v6217, 16
        %v6532 = vrot.slane %v6530, 4
        %v6533 = vor.u32 %v6532, %v6528
        %v6534 = vrot.slane %v6533, 4
        %v6536 = vshll.u32 %v6218, 16
        %v6538 = vrot.slane %v6536, 5
        %v6539 = vsel %vm5199, %v6534, %v6538
        %v6541 = vshrl.u32 %v6219, 16
        %v6543 = vrot.slane %v6541, 4
        %v6544 = vshll.u32 %v6219, 16
        %v6546 = vrot.slane %v6544, 5
        %v6547 = vor.u32 %v6543, %v6546
        %v6548 = vrot.slane %v6547, 4
        %v6550 = vshll.u32 %v6220, 16
        %v6552 = vrot.slane %v6550, 5
        %v6553 = vsel %vm5199, %v6548, %v6552
        %v6554 = vshrl.u32 %v6220, 16
        %v6556 = vrot.slane %v6554, 4
        %v6557 = vor.u32 %v6556, %v6552
        %v6558 = vrot.slane %v6557, 4
        %v6560 = vshll.u32 %v6221, 16
        %v6562 = vrot.slane %v6560, 5
        %v6563 = vsel %vm5199, %v6558, %v6562
        %v6565 = vshrl.u32 %v6222, 16
        %v6567 = vrot.slane %v6565, 4
        %v6568 = vshll.u32 %v6222, 16
        %v6570 = vrot.slane %v6568, 5
        %v6571 = vor.u32 %v6567, %v6570
        %v6572 = vrot.slane %v6571, 4
        %v6574 = vshll.u32 %v6223, 16
        %v6576 = vrot.slane %v6574, 5
        %v6577 = vsel %vm5199, %v6572, %v6576
        %v6578 = vshrl.u32 %v6223, 16
        %v6580 = vrot.slane %v6578, 4
        %v6581 = vor.u32 %v6580, %v6576
        %v6582 = vrot.slane %v6581, 4
        %v6584 = vshll.u32 %v6224, 16
        %v6586 = vrot.slane %v6584, 5
        %v6587 = vsel %vm5199, %v6582, %v6586
        %v6589 = vshrl.u32 %v6225, 16
        %v6591 = vrot.slane %v6589, 4
        %v6592 = vshll.u32 %v6225, 16
        %v6594 = vrot.slane %v6592, 5
        %v6595 = vor.u32 %v6591, %v6594
        %v6596 = vrot.slane %v6595, 4
        %v6598 = vshll.u32 %v6226, 16
        %v6600 = vrot.slane %v6598, 5
        %v6601 = vsel %vm5199, %v6596, %v6600
        %v6602 = vshrl.u32 %v6226, 16
        %v6604 = vrot.slane %v6602, 4
        %v6605 = vor.u32 %v6604, %v6600
        %v6606 = vrot.slane %v6605, 4
        %v6608 = vshll.u32 %v6227, 16
        %v6610 = vrot.slane %v6608, 5
        %v6611 = vsel %vm5199, %v6606, %v6610
        %6644 = vst.msk [vmem:[#allocation4 + $0x8] sm:$0xf] %vm4430, %v6241
        %6645 = vst.msk [vmem:[#allocation4 + $0x1c] sm:$0xf] %vm4430, %v6251
        %6646 = vst.msk [vmem:[#allocation4 + $0x30] sm:$0xf] %vm4430, %v6265
        %6647 = vst.msk [vmem:[#allocation4 + $0x44] sm:$0xf] %vm4430, %v6275
        %6648 = vst.msk [vmem:[#allocation4 + $0x58] sm:$0xf] %vm4430, %v6289
        %6649 = vst.msk [vmem:[#allocation4 + $0x6c] sm:$0xf] %vm4430, %v6299
        %6650 = vst.msk [vmem:[#allocation4 + $0x80] sm:$0xf] %vm4430, %v6313
        %6651 = vst.msk [vmem:[#allocation4 + $0x94] sm:$0xf] %vm4430, %v6323
        %6652 = vst.msk [vmem:[#allocation4 + $0xa8] sm:$0xf] %vm4430, %v6337
        %6653 = vst.msk [vmem:[#allocation4 + $0xbc] sm:$0xf] %vm4430, %v6347
        %6654 = vst.msk [vmem:[#allocation4 + $0xd0] sm:$0xf] %vm4430, %v6361
        %6655 = vst.msk [vmem:[#allocation4 + $0xe4] sm:$0xf] %vm4430, %v6371
        %6656 = vst.msk [vmem:[#allocation4 + $0xf8] sm:$0xf] %vm4430, %v6385
        %6657 = vst.msk [vmem:[#allocation4 + $0x10c] sm:$0xf] %vm4430, %v6395
        %6658 = vst.msk [vmem:[#allocation4 + $0x120] sm:$0xf] %vm4430, %v6409
        %6659 = vst.msk [vmem:[#allocation4 + $0x134] sm:$0xf] %vm4430, %v6419
        %6660 = vst.msk [vmem:[#allocation4 + $0x148] sm:$0xf] %vm4430, %v6433
        %6661 = vst.msk [vmem:[#allocation4 + $0x15c] sm:$0xf] %vm4430, %v6443
        %6662 = vst.msk [vmem:[#allocation4 + $0x170] sm:$0xf] %vm4430, %v6457
        %6663 = vst.msk [vmem:[#allocation4 + $0x184] sm:$0xf] %vm4430, %v6467
        %6664 = vst.msk [vmem:[#allocation4 + $0x198] sm:$0xf] %vm4430, %v6481
        %6665 = vst.msk [vmem:[#allocation4 + $0x1ac] sm:$0xf] %vm4430, %v6491
        %6666 = vst.msk [vmem:[#allocation4 + $0x1c0] sm:$0xf] %vm4430, %v6505
        %6667 = vst.msk [vmem:[#allocation4 + $0x1d4] sm:$0xf] %vm4430, %v6515
        %6668 = vst.msk [vmem:[#allocation4 + $0x1e8] sm:$0xf] %vm4430, %v6529
        %6669 = vst.msk [vmem:[#allocation4 + $0x1fc] sm:$0xf] %vm4430, %v6539
        %6670 = vst.msk [vmem:[#allocation4 + $0x210] sm:$0xf] %vm4430, %v6553
        %6671 = vst.msk [vmem:[#allocation4 + $0x224] sm:$0xf] %vm4430, %v6563
        %6672 = vst.msk [vmem:[#allocation4 + $0x238] sm:$0xf] %vm4430, %v6577
        %6673 = vst.msk [vmem:[#allocation4 + $0x24c] sm:$0xf] %vm4430, %v6587
        %6674 = vst.msk [vmem:[#allocation4 + $0x260] sm:$0xf] %vm4430, %v6601
        %6675 = vst.msk [vmem:[#allocation4 + $0x274] sm:$0xf] %vm4430, %v6611
        %v6676 = vld [vmem:[%s4970] sm:$0xe]
        %v6677 = vld [vmem:[%s4970 + $0x4] sm:$0xf]
        %v6678 = vld [vmem:[%s4970 + $0x8] sm:$0x1]
        %v6679 = vld [vmem:[%s4970 + $0xc] sm:$0xe]
        %v6680 = vld [vmem:[%s4970 + $0x10] sm:$0xf]
        %v6681 = vld [vmem:[%s4970 + $0x14] sm:$0x1]
        %v6682 = vld [vmem:[%s4970 + $0x18] sm:$0xe]
        %v6683 = vld [vmem:[%s4970 + $0x1c] sm:$0xf]
        %v6684 = vld [vmem:[%s4970 + $0x20] sm:$0x1]
        %v6685 = vld [vmem:[%s4970 + $0x24] sm:$0xe]
        %v6686 = vld [vmem:[%s4970 + $0x28] sm:$0xf]
        %v6687 = vld [vmem:[%s4970 + $0x2c] sm:$0x1]
        %v6688 = vld [vmem:[%s4970 + $0x30] sm:$0xe]
        %v6689 = vld [vmem:[%s4970 + $0x34] sm:$0xf]
        %v6690 = vld [vmem:[%s4970 + $0x38] sm:$0x1]
        %v6691 = vld [vmem:[%s4970 + $0x3c] sm:$0xe]
        %v6692 = vld [vmem:[%s4970 + $0x40] sm:$0xf]
        %v6693 = vld [vmem:[%s4970 + $0x44] sm:$0x1]
        %v6694 = vld [vmem:[%s4970 + $0x48] sm:$0xe]
        %v6695 = vld [vmem:[%s4970 + $0x4c] sm:$0xf]
        %v6696 = vld [vmem:[%s4970 + $0x50] sm:$0x1]
        %v6697 = vld [vmem:[%s4970 + $0x54] sm:$0xe]
        %v6698 = vld [vmem:[%s4970 + $0x58] sm:$0xf]
        %v6699 = vld [vmem:[%s4970 + $0x5c] sm:$0x1]
        %v6700 = vld [vmem:[%s4970 + $0x60] sm:$0xe]
        %v6701 = vld [vmem:[%s4970 + $0x64] sm:$0xf]
        %v6702 = vld [vmem:[%s4970 + $0x68] sm:$0x1]
        %v6703 = vld [vmem:[%s4970 + $0x6c] sm:$0xe]
        %v6704 = vld [vmem:[%s4970 + $0x70] sm:$0xf]
        %v6705 = vld [vmem:[%s4970 + $0x74] sm:$0x1]
        %v6706 = vld [vmem:[%s4970 + $0x78] sm:$0xe]
        %v6707 = vld [vmem:[%s4970 + $0x7c] sm:$0xf]
        %v6708 = vld [vmem:[%s4970 + $0x80] sm:$0x1]
        %v6709 = vld [vmem:[%s4970 + $0x84] sm:$0xe]
        %v6710 = vld [vmem:[%s4970 + $0x88] sm:$0xf]
        %v6711 = vld [vmem:[%s4970 + $0x8c] sm:$0x1]
        %v6712 = vld [vmem:[%s4970 + $0x90] sm:$0xe]
        %v6713 = vld [vmem:[%s4970 + $0x94] sm:$0xf]
        %v6714 = vld [vmem:[%s4970 + $0x98] sm:$0x1]
        %v6715 = vld [vmem:[%s4970 + $0x9c] sm:$0xe]
        %v6716 = vld [vmem:[%s4970 + $0xa0] sm:$0xf]
        %v6717 = vld [vmem:[%s4970 + $0xa4] sm:$0x1]
        %v6718 = vld [vmem:[%s4970 + $0xa8] sm:$0xe]
        %v6719 = vld [vmem:[%s4970 + $0xac] sm:$0xf]
        %v6720 = vld [vmem:[%s4970 + $0xb0] sm:$0x1]
        %v6721 = vld [vmem:[%s4970 + $0xb4] sm:$0xe]
        %v6722 = vld [vmem:[%s4970 + $0xb8] sm:$0xf]
        %v6723 = vld [vmem:[%s4970 + $0xbc] sm:$0x1]
        %v6772 = vrot.slane %v6676, 5
        %v6773 = vrot.slane %v6772, 4
        %v6774 = vrot.slane %v6677, 5
        %v6775 = vsel %vm5811, %v6773, %v6774
        %v6776 = vrot.slane %v6774, 4
        %v6777 = vrot.slane %v6678, 5
        %v6778 = vsel %vm5811, %v6776, %v6777
        %v6779 = vrot.slane %v6679, 5
        %v6780 = vrot.slane %v6779, 4
        %v6781 = vrot.slane %v6680, 5
        %v6782 = vsel %vm5811, %v6780, %v6781
        %v6783 = vrot.slane %v6781, 4
        %v6784 = vrot.slane %v6681, 5
        %v6785 = vsel %vm5811, %v6783, %v6784
        %v6786 = vrot.slane %v6682, 5
        %v6787 = vrot.slane %v6786, 4
        %v6788 = vrot.slane %v6683, 5
        %v6789 = vsel %vm5811, %v6787, %v6788
        %v6790 = vrot.slane %v6788, 4
        %v6791 = vrot.slane %v6684, 5
        %v6792 = vsel %vm5811, %v6790, %v6791
        %v6793 = vrot.slane %v6685, 5
        %v6794 = vrot.slane %v6793, 4
        %v6795 = vrot.slane %v6686, 5
        %v6796 = vsel %vm5811, %v6794, %v6795
        %v6797 = vrot.slane %v6795, 4
        %v6798 = vrot.slane %v6687, 5
        %v6799 = vsel %vm5811, %v6797, %v6798
        %v6800 = vrot.slane %v6688, 5
        %v6801 = vrot.slane %v6800, 4
        %v6802 = vrot.slane %v6689, 5
        %v6803 = vsel %vm5811, %v6801, %v6802
        %v6804 = vrot.slane %v6802, 4
        %v6805 = vrot.slane %v6690, 5
        %v6806 = vsel %vm5811, %v6804, %v6805
        %v6807 = vrot.slane %v6691, 5
        %v6808 = vrot.slane %v6807, 4
        %v6809 = vrot.slane %v6692, 5
        %v6810 = vsel %vm5811, %v6808, %v6809
        %v6811 = vrot.slane %v6809, 4
        %v6812 = vrot.slane %v6693, 5
        %v6813 = vsel %vm5811, %v6811, %v6812
        %v6814 = vrot.slane %v6694, 5
        %v6815 = vrot.slane %v6814, 4
        %v6816 = vrot.slane %v6695, 5
        %v6817 = vsel %vm5811, %v6815, %v6816
        %v6818 = vrot.slane %v6816, 4
        %v6819 = vrot.slane %v6696, 5
        %v6820 = vsel %vm5811, %v6818, %v6819
        %v6821 = vrot.slane %v6697, 5
        %v6822 = vrot.slane %v6821, 4
        %v6823 = vrot.slane %v6698, 5
        %v6824 = vsel %vm5811, %v6822, %v6823
        %v6825 = vrot.slane %v6823, 4
        %v6826 = vrot.slane %v6699, 5
        %v6827 = vsel %vm5811, %v6825, %v6826
        %v6828 = vrot.slane %v6700, 5
        %v6829 = vrot.slane %v6828, 4
        %v6830 = vrot.slane %v6701, 5
        %v6831 = vsel %vm5811, %v6829, %v6830
        %v6832 = vrot.slane %v6830, 4
        %v6833 = vrot.slane %v6702, 5
        %v6834 = vsel %vm5811, %v6832, %v6833
        %v6835 = vrot.slane %v6703, 5
        %v6836 = vrot.slane %v6835, 4
        %v6837 = vrot.slane %v6704, 5
        %v6838 = vsel %vm5811, %v6836, %v6837
        %v6839 = vrot.slane %v6837, 4
        %v6840 = vrot.slane %v6705, 5
        %v6841 = vsel %vm5811, %v6839, %v6840
        %v6842 = vrot.slane %v6706, 5
        %v6843 = vrot.slane %v6842, 4
        %v6844 = vrot.slane %v6707, 5
        %v6845 = vsel %vm5811, %v6843, %v6844
        %v6846 = vrot.slane %v6844, 4
        %v6847 = vrot.slane %v6708, 5
        %v6848 = vsel %vm5811, %v6846, %v6847
        %v6849 = vrot.slane %v6709, 5
        %v6850 = vrot.slane %v6849, 4
        %v6851 = vrot.slane %v6710, 5
        %v6852 = vsel %vm5811, %v6850, %v6851
        %v6853 = vrot.slane %v6851, 4
        %v6854 = vrot.slane %v6711, 5
        %v6855 = vsel %vm5811, %v6853, %v6854
        %v6856 = vrot.slane %v6712, 5
        %v6857 = vrot.slane %v6856, 4
        %v6858 = vrot.slane %v6713, 5
        %v6859 = vsel %vm5811, %v6857, %v6858
        %v6860 = vrot.slane %v6858, 4
        %v6861 = vrot.slane %v6714, 5
        %v6862 = vsel %vm5811, %v6860, %v6861
        %v6863 = vrot.slane %v6715, 5
        %v6864 = vrot.slane %v6863, 4
        %v6865 = vrot.slane %v6716, 5
        %v6866 = vsel %vm5811, %v6864, %v6865
        %v6867 = vrot.slane %v6865, 4
        %v6868 = vrot.slane %v6717, 5
        %v6869 = vsel %vm5811, %v6867, %v6868
        %v6870 = vrot.slane %v6718, 5
        %v6871 = vrot.slane %v6870, 4
        %v6872 = vrot.slane %v6719, 5
        %v6873 = vsel %vm5811, %v6871, %v6872
        %v6874 = vrot.slane %v6872, 4
        %v6875 = vrot.slane %v6720, 5
        %v6876 = vsel %vm5811, %v6874, %v6875
        %v6877 = vrot.slane %v6721, 5
        %v6878 = vrot.slane %v6877, 4
        %v6879 = vrot.slane %v6722, 5
        %v6880 = vsel %vm5811, %v6878, %v6879
        %v6881 = vrot.slane %v6879, 4
        %v6882 = vrot.slane %v6723, 5
        %v6883 = vsel %vm5811, %v6881, %v6882
        %6884 = vrot.lane.b32.xlu0 %v6775, 64
        %v6885 = vpop.permute.xlu0 %6884
        %6886 = vrot.lane.b32.xlu0 %v6778, 64
        %v6887 = vpop.permute.xlu0 %6886
        %6888 = vrot.lane.b32.xlu0 %v6782, 64
        %v6889 = vpop.permute.xlu0 %6888
        %6890 = vrot.lane.b32.xlu0 %v6785, 64
        %v6891 = vpop.permute.xlu0 %6890
        %6892 = vrot.lane.b32.xlu0 %v6789, 64
        %v6893 = vpop.permute.xlu0 %6892
        %6894 = vrot.lane.b32.xlu0 %v6792, 64
        %v6895 = vpop.permute.xlu0 %6894
        %6896 = vrot.lane.b32.xlu0 %v6796, 64
        %v6897 = vpop.permute.xlu0 %6896
        %6898 = vrot.lane.b32.xlu0 %v6799, 64
        %v6899 = vpop.permute.xlu0 %6898
        %6900 = vrot.lane.b32.xlu0 %v6803, 64
        %v6901 = vpop.permute.xlu0 %6900
        %6902 = vrot.lane.b32.xlu0 %v6806, 64
        %v6903 = vpop.permute.xlu0 %6902
        %6904 = vrot.lane.b32.xlu0 %v6810, 64
        %v6905 = vpop.permute.xlu0 %6904
        %6906 = vrot.lane.b32.xlu0 %v6813, 64
        %v6907 = vpop.permute.xlu0 %6906
        %6908 = vrot.lane.b32.xlu0 %v6817, 64
        %v6909 = vpop.permute.xlu0 %6908
        %6910 = vrot.lane.b32.xlu0 %v6820, 64
        %v6911 = vpop.permute.xlu0 %6910
        %6912 = vrot.lane.b32.xlu0 %v6824, 64
        %v6913 = vpop.permute.xlu0 %6912
        %6914 = vrot.lane.b32.xlu0 %v6827, 64
        %v6915 = vpop.permute.xlu0 %6914
        %6916 = vrot.lane.b32.xlu0 %v6831, 64
        %v6917 = vpop.permute.xlu0 %6916
        %6918 = vrot.lane.b32.xlu0 %v6834, 64
        %v6919 = vpop.permute.xlu0 %6918
        %6920 = vrot.lane.b32.xlu0 %v6838, 64
        %v6921 = vpop.permute.xlu0 %6920
        %6922 = vrot.lane.b32.xlu0 %v6841, 64
        %v6923 = vpop.permute.xlu0 %6922
        %6924 = vrot.lane.b32.xlu0 %v6845, 64
        %v6925 = vpop.permute.xlu0 %6924
        %6926 = vrot.lane.b32.xlu0 %v6848, 64
        %v6927 = vpop.permute.xlu0 %6926
        %6928 = vrot.lane.b32.xlu0 %v6852, 64
        %v6929 = vpop.permute.xlu0 %6928
        %6930 = vrot.lane.b32.xlu0 %v6855, 64
        %v6931 = vpop.permute.xlu0 %6930
        %6932 = vrot.lane.b32.xlu0 %v6859, 64
        %v6933 = vpop.permute.xlu0 %6932
        %6934 = vrot.lane.b32.xlu0 %v6862, 64
        %v6935 = vpop.permute.xlu0 %6934
        %6936 = vrot.lane.b32.xlu0 %v6866, 64
        %v6937 = vpop.permute.xlu0 %6936
        %6938 = vrot.lane.b32.xlu0 %v6869, 64
        %v6939 = vpop.permute.xlu0 %6938
        %6940 = vrot.lane.b32.xlu0 %v6873, 64
        %v6941 = vpop.permute.xlu0 %6940
        %6942 = vrot.lane.b32.xlu0 %v6876, 64
        %v6943 = vpop.permute.xlu0 %6942
        %6944 = vrot.lane.b32.xlu0 %v6880, 64
        %v6945 = vpop.permute.xlu0 %6944
        %6946 = vrot.lane.b32.xlu0 %v6883, 64
        %v6947 = vpop.permute.xlu0 %6946
        %6980 = vst.msk [vmem:[#allocation4 + $0x8] sm:$0xf] %vm5680, %v6885
        %6981 = vst.msk [vmem:[#allocation4 + $0x1c] sm:$0xf] %vm5680, %v6887
        %6982 = vst.msk [vmem:[#allocation4 + $0x30] sm:$0xf] %vm5680, %v6889
        %6983 = vst.msk [vmem:[#allocation4 + $0x44] sm:$0xf] %vm5680, %v6891
        %6984 = vst.msk [vmem:[#allocation4 + $0x58] sm:$0xf] %vm5680, %v6893
        %6985 = vst.msk [vmem:[#allocation4 + $0x6c] sm:$0xf] %vm5680, %v6895
        %6986 = vst.msk [vmem:[#allocation4 + $0x80] sm:$0xf] %vm5680, %v6897
        %6987 = vst.msk [vmem:[#allocation4 + $0x94] sm:$0xf] %vm5680, %v6899
        %6988 = vst.msk [vmem:[#allocation4 + $0xa8] sm:$0xf] %vm5680, %v6901
        %6989 = vst.msk [vmem:[#allocation4 + $0xbc] sm:$0xf] %vm5680, %v6903
        %6990 = vst.msk [vmem:[#allocation4 + $0xd0] sm:$0xf] %vm5680, %v6905
        %6991 = vst.msk [vmem:[#allocation4 + $0xe4] sm:$0xf] %vm5680, %v6907
        %6992 = vst.msk [vmem:[#allocation4 + $0xf8] sm:$0xf] %vm5680, %v6909
        %6993 = vst.msk [vmem:[#allocation4 + $0x10c] sm:$0xf] %vm5680, %v6911
        %6994 = vst.msk [vmem:[#allocation4 + $0x120] sm:$0xf] %vm5680, %v6913
        %6995 = vst.msk [vmem:[#allocation4 + $0x134] sm:$0xf] %vm5680, %v6915
        %6996 = vst.msk [vmem:[#allocation4 + $0x148] sm:$0xf] %vm5680, %v6917
        %6997 = vst.msk [vmem:[#allocation4 + $0x15c] sm:$0xf] %vm5680, %v6919
        %6998 = vst.msk [vmem:[#allocation4 + $0x170] sm:$0xf] %vm5680, %v6921
        %6999 = vst.msk [vmem:[#allocation4 + $0x184] sm:$0xf] %vm5680, %v6923
        %7000 = vst.msk [vmem:[#allocation4 + $0x198] sm:$0xf] %vm5680, %v6925
        %7001 = vst.msk [vmem:[#allocation4 + $0x1ac] sm:$0xf] %vm5680, %v6927
        %7002 = vst.msk [vmem:[#allocation4 + $0x1c0] sm:$0xf] %vm5680, %v6929
        %7003 = vst.msk [vmem:[#allocation4 + $0x1d4] sm:$0xf] %vm5680, %v6931
        %7004 = vst.msk [vmem:[#allocation4 + $0x1e8] sm:$0xf] %vm5680, %v6933
        %7005 = vst.msk [vmem:[#allocation4 + $0x1fc] sm:$0xf] %vm5680, %v6935
        %7006 = vst.msk [vmem:[#allocation4 + $0x210] sm:$0xf] %vm5680, %v6937
        %7007 = vst.msk [vmem:[#allocation4 + $0x224] sm:$0xf] %vm5680, %v6939
        %7008 = vst.msk [vmem:[#allocation4 + $0x238] sm:$0xf] %vm5680, %v6941
        %7009 = vst.msk [vmem:[#allocation4 + $0x24c] sm:$0xf] %vm5680, %v6943
        %7010 = vst.msk [vmem:[#allocation4 + $0x260] sm:$0xf] %vm5680, %v6945
        %7011 = vst.msk [vmem:[#allocation4 + $0x274] sm:$0xf] %vm5680, %v6947
        %s7012 = scalar_lea.vmem [#allocation3], 24
        %v7013 = vld [vmem:[%s7012] sm:$0xf]
        %v7014 = vld [vmem:[%s7012 + $0x4] sm:$0xf]
        %v7015 = vld [vmem:[%s7012 + $0xc] sm:$0xf]
        %v7016 = vld [vmem:[%s7012 + $0x10] sm:$0xf]
        %v7017 = vld [vmem:[%s7012 + $0x18] sm:$0xf]
        %v7018 = vld [vmem:[%s7012 + $0x1c] sm:$0xf]
        %v7019 = vld [vmem:[%s7012 + $0x24] sm:$0xf]
        %v7020 = vld [vmem:[%s7012 + $0x28] sm:$0xf]
        %v7021 = vld [vmem:[%s7012 + $0x30] sm:$0xf]
        %v7022 = vld [vmem:[%s7012 + $0x34] sm:$0xf]
        %v7023 = vld [vmem:[%s7012 + $0x3c] sm:$0xf]
        %v7024 = vld [vmem:[%s7012 + $0x40] sm:$0xf]
        %v7025 = vld [vmem:[%s7012 + $0x48] sm:$0xf]
        %v7026 = vld [vmem:[%s7012 + $0x4c] sm:$0xf]
        %v7027 = vld [vmem:[%s7012 + $0x54] sm:$0xf]
        %v7028 = vld [vmem:[%s7012 + $0x58] sm:$0xf]
        %v7029 = vld [vmem:[%s7012 + $0x60] sm:$0xf]
        %v7030 = vld [vmem:[%s7012 + $0x64] sm:$0xf]
        %v7031 = vld [vmem:[%s7012 + $0x6c] sm:$0xf]
        %v7032 = vld [vmem:[%s7012 + $0x70] sm:$0xf]
        %v7033 = vld [vmem:[%s7012 + $0x78] sm:$0xf]
        %v7034 = vld [vmem:[%s7012 + $0x7c] sm:$0xf]
        %v7035 = vld [vmem:[%s7012 + $0x84] sm:$0xf]
        %v7036 = vld [vmem:[%s7012 + $0x88] sm:$0xf]
        %v7037 = vld [vmem:[%s7012 + $0x90] sm:$0xf]
        %v7038 = vld [vmem:[%s7012 + $0x94] sm:$0xf]
        %v7039 = vld [vmem:[%s7012 + $0x9c] sm:$0xf]
        %v7040 = vld [vmem:[%s7012 + $0xa0] sm:$0xf]
        %v7041 = vld [vmem:[%s7012 + $0xa8] sm:$0xf]
        %v7042 = vld [vmem:[%s7012 + $0xac] sm:$0xf]
        %v7043 = vld [vmem:[%s7012 + $0xb4] sm:$0xf]
        %v7044 = vld [vmem:[%s7012 + $0xb8] sm:$0xf]
        %7045 = vst.msk [vmem:[#allocation4 + $0xc] sm:$0xf] %vm4430, %v7013
        %7046 = vst.msk [vmem:[#allocation4 + $0x20] sm:$0xf] %vm4430, %v7014
        %7047 = vst.msk [vmem:[#allocation4 + $0x34] sm:$0xf] %vm4430, %v7015
        %7048 = vst.msk [vmem:[#allocation4 + $0x48] sm:$0xf] %vm4430, %v7016
        %7049 = vst.msk [vmem:[#allocation4 + $0x5c] sm:$0xf] %vm4430, %v7017
        %7050 = vst.msk [vmem:[#allocation4 + $0x70] sm:$0xf] %vm4430, %v7018
        %7051 = vst.msk [vmem:[#allocation4 + $0x84] sm:$0xf] %vm4430, %v7019
        %7052 = vst.msk [vmem:[#allocation4 + $0x98] sm:$0xf] %vm4430, %v7020
        %7053 = vst.msk [vmem:[#allocation4 + $0xac] sm:$0xf] %vm4430, %v7021
        %7054 = vst.msk [vmem:[#allocation4 + $0xc0] sm:$0xf] %vm4430, %v7022
        %7055 = vst.msk [vmem:[#allocation4 + $0xd4] sm:$0xf] %vm4430, %v7023
        %7056 = vst.msk [vmem:[#allocation4 + $0xe8] sm:$0xf] %vm4430, %v7024
        %7057 = vst.msk [vmem:[#allocation4 + $0xfc] sm:$0xf] %vm4430, %v7025
        %7058 = vst.msk [vmem:[#allocation4 + $0x110] sm:$0xf] %vm4430, %v7026
        %7059 = vst.msk [vmem:[#allocation4 + $0x124] sm:$0xf] %vm4430, %v7027
        %7060 = vst.msk [vmem:[#allocation4 + $0x138] sm:$0xf] %vm4430, %v7028
        %7061 = vst.msk [vmem:[#allocation4 + $0x14c] sm:$0xf] %vm4430, %v7029
        %7062 = vst.msk [vmem:[#allocation4 + $0x160] sm:$0xf] %vm4430, %v7030
        %7063 = vst.msk [vmem:[#allocation4 + $0x174] sm:$0xf] %vm4430, %v7031
        %7064 = vst.msk [vmem:[#allocation4 + $0x188] sm:$0xf] %vm4430, %v7032
        %7065 = vst.msk [vmem:[#allocation4 + $0x19c] sm:$0xf] %vm4430, %v7033
        %7066 = vst.msk [vmem:[#allocation4 + $0x1b0] sm:$0xf] %vm4430, %v7034
        %7067 = vst.msk [vmem:[#allocation4 + $0x1c4] sm:$0xf] %vm4430, %v7035
        %7068 = vst.msk [vmem:[#allocation4 + $0x1d8] sm:$0xf] %vm4430, %v7036
        %7069 = vst.msk [vmem:[#allocation4 + $0x1ec] sm:$0xf] %vm4430, %v7037
        %7070 = vst.msk [vmem:[#allocation4 + $0x200] sm:$0xf] %vm4430, %v7038
        %7071 = vst.msk [vmem:[#allocation4 + $0x214] sm:$0xf] %vm4430, %v7039
        %7072 = vst.msk [vmem:[#allocation4 + $0x228] sm:$0xf] %vm4430, %v7040
        %7073 = vst.msk [vmem:[#allocation4 + $0x23c] sm:$0xf] %vm4430, %v7041
        %7074 = vst.msk [vmem:[#allocation4 + $0x250] sm:$0xf] %vm4430, %v7042
        %7075 = vst.msk [vmem:[#allocation4 + $0x264] sm:$0xf] %vm4430, %v7043
        %7076 = vst.msk [vmem:[#allocation4 + $0x278] sm:$0xf] %vm4430, %v7044
        %v7077 = vld [vmem:[%s7012] sm:$0xf]
        %v7078 = vld [vmem:[%s7012 + $0x4] sm:$0xf]
        %v7079 = vld [vmem:[%s7012 + $0x8] sm:$0x1]
        %v7080 = vld [vmem:[%s7012 + $0xc] sm:$0xf]
        %v7081 = vld [vmem:[%s7012 + $0x10] sm:$0xf]
        %v7082 = vld [vmem:[%s7012 + $0x14] sm:$0x1]
        %v7083 = vld [vmem:[%s7012 + $0x18] sm:$0xf]
        %v7084 = vld [vmem:[%s7012 + $0x1c] sm:$0xf]
        %v7085 = vld [vmem:[%s7012 + $0x20] sm:$0x1]
        %v7086 = vld [vmem:[%s7012 + $0x24] sm:$0xf]
        %v7087 = vld [vmem:[%s7012 + $0x28] sm:$0xf]
        %v7088 = vld [vmem:[%s7012 + $0x2c] sm:$0x1]
        %v7089 = vld [vmem:[%s7012 + $0x30] sm:$0xf]
        %v7090 = vld [vmem:[%s7012 + $0x34] sm:$0xf]
        %v7091 = vld [vmem:[%s7012 + $0x38] sm:$0x1]
        %v7092 = vld [vmem:[%s7012 + $0x3c] sm:$0xf]
        %v7093 = vld [vmem:[%s7012 + $0x40] sm:$0xf]
        %v7094 = vld [vmem:[%s7012 + $0x44] sm:$0x1]
        %v7095 = vld [vmem:[%s7012 + $0x48] sm:$0xf]
        %v7096 = vld [vmem:[%s7012 + $0x4c] sm:$0xf]
        %v7097 = vld [vmem:[%s7012 + $0x50] sm:$0x1]
        %v7098 = vld [vmem:[%s7012 + $0x54] sm:$0xf]
        %v7099 = vld [vmem:[%s7012 + $0x58] sm:$0xf]
        %v7100 = vld [vmem:[%s7012 + $0x5c] sm:$0x1]
        %v7101 = vld [vmem:[%s7012 + $0x60] sm:$0xf]
        %v7102 = vld [vmem:[%s7012 + $0x64] sm:$0xf]
        %v7103 = vld [vmem:[%s7012 + $0x68] sm:$0x1]
        %v7104 = vld [vmem:[%s7012 + $0x6c] sm:$0xf]
        %v7105 = vld [vmem:[%s7012 + $0x70] sm:$0xf]
        %v7106 = vld [vmem:[%s7012 + $0x74] sm:$0x1]
        %v7107 = vld [vmem:[%s7012 + $0x78] sm:$0xf]
        %v7108 = vld [vmem:[%s7012 + $0x7c] sm:$0xf]
        %v7109 = vld [vmem:[%s7012 + $0x80] sm:$0x1]
        %v7110 = vld [vmem:[%s7012 + $0x84] sm:$0xf]
        %v7111 = vld [vmem:[%s7012 + $0x88] sm:$0xf]
        %v7112 = vld [vmem:[%s7012 + $0x8c] sm:$0x1]
        %v7113 = vld [vmem:[%s7012 + $0x90] sm:$0xf]
        %v7114 = vld [vmem:[%s7012 + $0x94] sm:$0xf]
        %v7115 = vld [vmem:[%s7012 + $0x98] sm:$0x1]
        %v7116 = vld [vmem:[%s7012 + $0x9c] sm:$0xf]
        %v7117 = vld [vmem:[%s7012 + $0xa0] sm:$0xf]
        %v7118 = vld [vmem:[%s7012 + $0xa4] sm:$0x1]
        %v7119 = vld [vmem:[%s7012 + $0xa8] sm:$0xf]
        %v7120 = vld [vmem:[%s7012 + $0xac] sm:$0xf]
        %v7121 = vld [vmem:[%s7012 + $0xb0] sm:$0x1]
        %v7122 = vld [vmem:[%s7012 + $0xb4] sm:$0xf]
        %v7123 = vld [vmem:[%s7012 + $0xb8] sm:$0xf]
        %v7124 = vld [vmem:[%s7012 + $0xbc] sm:$0x1]
        %v7126 = vshrl.u32 %v7077, 16
        %v7128 = vrot.slane %v7126, 4
        %v7129 = vshll.u32 %v7077, 16
        %v7131 = vrot.slane %v7129, 5
        %v7132 = vor.u32 %v7128, %v7131
        %v7133 = vrot.slane %v7132, 4
        %v7135 = vshll.u32 %v7078, 16
        %v7137 = vrot.slane %v7135, 5
        %v7138 = vsel %vm5199, %v7133, %v7137
        %v7139 = vshrl.u32 %v7078, 16
        %v7141 = vrot.slane %v7139, 4
        %v7142 = vor.u32 %v7141, %v7137
        %v7143 = vrot.slane %v7142, 4
        %v7145 = vshll.u32 %v7079, 16
        %v7147 = vrot.slane %v7145, 5
        %v7148 = vsel %vm5199, %v7143, %v7147
        %v7150 = vshrl.u32 %v7080, 16
        %v7152 = vrot.slane %v7150, 4
        %v7153 = vshll.u32 %v7080, 16
        %v7155 = vrot.slane %v7153, 5
        %v7156 = vor.u32 %v7152, %v7155
        %v7157 = vrot.slane %v7156, 4
        %v7159 = vshll.u32 %v7081, 16
        %v7161 = vrot.slane %v7159, 5
        %v7162 = vsel %vm5199, %v7157, %v7161
        %v7163 = vshrl.u32 %v7081, 16
        %v7165 = vrot.slane %v7163, 4
        %v7166 = vor.u32 %v7165, %v7161
        %v7167 = vrot.slane %v7166, 4
        %v7169 = vshll.u32 %v7082, 16
        %v7171 = vrot.slane %v7169, 5
        %v7172 = vsel %vm5199, %v7167, %v7171
        %v7174 = vshrl.u32 %v7083, 16
        %v7176 = vrot.slane %v7174, 4
        %v7177 = vshll.u32 %v7083, 16
        %v7179 = vrot.slane %v7177, 5
        %v7180 = vor.u32 %v7176, %v7179
        %v7181 = vrot.slane %v7180, 4
        %v7183 = vshll.u32 %v7084, 16
        %v7185 = vrot.slane %v7183, 5
        %v7186 = vsel %vm5199, %v7181, %v7185
        %v7187 = vshrl.u32 %v7084, 16
        %v7189 = vrot.slane %v7187, 4
        %v7190 = vor.u32 %v7189, %v7185
        %v7191 = vrot.slane %v7190, 4
        %v7193 = vshll.u32 %v7085, 16
        %v7195 = vrot.slane %v7193, 5
        %v7196 = vsel %vm5199, %v7191, %v7195
        %v7198 = vshrl.u32 %v7086, 16
        %v7200 = vrot.slane %v7198, 4
        %v7201 = vshll.u32 %v7086, 16
        %v7203 = vrot.slane %v7201, 5
        %v7204 = vor.u32 %v7200, %v7203
        %v7205 = vrot.slane %v7204, 4
        %v7207 = vshll.u32 %v7087, 16
        %v7209 = vrot.slane %v7207, 5
        %v7210 = vsel %vm5199, %v7205, %v7209
        %v7211 = vshrl.u32 %v7087, 16
        %v7213 = vrot.slane %v7211, 4
        %v7214 = vor.u32 %v7213, %v7209
        %v7215 = vrot.slane %v7214, 4
        %v7217 = vshll.u32 %v7088, 16
        %v7219 = vrot.slane %v7217, 5
        %v7220 = vsel %vm5199, %v7215, %v7219
        %v7222 = vshrl.u32 %v7089, 16
        %v7224 = vrot.slane %v7222, 4
        %v7225 = vshll.u32 %v7089, 16
        %v7227 = vrot.slane %v7225, 5
        %v7228 = vor.u32 %v7224, %v7227
        %v7229 = vrot.slane %v7228, 4
        %v7231 = vshll.u32 %v7090, 16
        %v7233 = vrot.slane %v7231, 5
        %v7234 = vsel %vm5199, %v7229, %v7233
        %v7235 = vshrl.u32 %v7090, 16
        %v7237 = vrot.slane %v7235, 4
        %v7238 = vor.u32 %v7237, %v7233
        %v7239 = vrot.slane %v7238, 4
        %v7241 = vshll.u32 %v7091, 16
        %v7243 = vrot.slane %v7241, 5
        %v7244 = vsel %vm5199, %v7239, %v7243
        %v7246 = vshrl.u32 %v7092, 16
        %v7248 = vrot.slane %v7246, 4
        %v7249 = vshll.u32 %v7092, 16
        %v7251 = vrot.slane %v7249, 5
        %v7252 = vor.u32 %v7248, %v7251
        %v7253 = vrot.slane %v7252, 4
        %v7255 = vshll.u32 %v7093, 16
        %v7257 = vrot.slane %v7255, 5
        %v7258 = vsel %vm5199, %v7253, %v7257
        %v7259 = vshrl.u32 %v7093, 16
        %v7261 = vrot.slane %v7259, 4
        %v7262 = vor.u32 %v7261, %v7257
        %v7263 = vrot.slane %v7262, 4
        %v7265 = vshll.u32 %v7094, 16
        %v7267 = vrot.slane %v7265, 5
        %v7268 = vsel %vm5199, %v7263, %v7267
        %v7270 = vshrl.u32 %v7095, 16
        %v7272 = vrot.slane %v7270, 4
        %v7273 = vshll.u32 %v7095, 16
        %v7275 = vrot.slane %v7273, 5
        %v7276 = vor.u32 %v7272, %v7275
        %v7277 = vrot.slane %v7276, 4
        %v7279 = vshll.u32 %v7096, 16
        %v7281 = vrot.slane %v7279, 5
        %v7282 = vsel %vm5199, %v7277, %v7281
        %v7283 = vshrl.u32 %v7096, 16
        %v7285 = vrot.slane %v7283, 4
        %v7286 = vor.u32 %v7285, %v7281
        %v7287 = vrot.slane %v7286, 4
        %v7289 = vshll.u32 %v7097, 16
        %v7291 = vrot.slane %v7289, 5
        %v7292 = vsel %vm5199, %v7287, %v7291
        %v7294 = vshrl.u32 %v7098, 16
        %v7296 = vrot.slane %v7294, 4
        %v7297 = vshll.u32 %v7098, 16
        %v7299 = vrot.slane %v7297, 5
        %v7300 = vor.u32 %v7296, %v7299
        %v7301 = vrot.slane %v7300, 4
        %v7303 = vshll.u32 %v7099, 16
        %v7305 = vrot.slane %v7303, 5
        %v7306 = vsel %vm5199, %v7301, %v7305
        %v7307 = vshrl.u32 %v7099, 16
        %v7309 = vrot.slane %v7307, 4
        %v7310 = vor.u32 %v7309, %v7305
        %v7311 = vrot.slane %v7310, 4
        %v7313 = vshll.u32 %v7100, 16
        %v7315 = vrot.slane %v7313, 5
        %v7316 = vsel %vm5199, %v7311, %v7315
        %v7318 = vshrl.u32 %v7101, 16
        %v7320 = vrot.slane %v7318, 4
        %v7321 = vshll.u32 %v7101, 16
        %v7323 = vrot.slane %v7321, 5
        %v7324 = vor.u32 %v7320, %v7323
        %v7325 = vrot.slane %v7324, 4
        %v7327 = vshll.u32 %v7102, 16
        %v7329 = vrot.slane %v7327, 5
        %v7330 = vsel %vm5199, %v7325, %v7329
        %v7331 = vshrl.u32 %v7102, 16
        %v7333 = vrot.slane %v7331, 4
        %v7334 = vor.u32 %v7333, %v7329
        %v7335 = vrot.slane %v7334, 4
        %v7337 = vshll.u32 %v7103, 16
        %v7339 = vrot.slane %v7337, 5
        %v7340 = vsel %vm5199, %v7335, %v7339
        %v7342 = vshrl.u32 %v7104, 16
        %v7344 = vrot.slane %v7342, 4
        %v7345 = vshll.u32 %v7104, 16
        %v7347 = vrot.slane %v7345, 5
        %v7348 = vor.u32 %v7344, %v7347
        %v7349 = vrot.slane %v7348, 4
        %v7351 = vshll.u32 %v7105, 16
        %v7353 = vrot.slane %v7351, 5
        %v7354 = vsel %vm5199, %v7349, %v7353
        %v7355 = vshrl.u32 %v7105, 16
        %v7357 = vrot.slane %v7355, 4
        %v7358 = vor.u32 %v7357, %v7353
        %v7359 = vrot.slane %v7358, 4
        %v7361 = vshll.u32 %v7106, 16
        %v7363 = vrot.slane %v7361, 5
        %v7364 = vsel %vm5199, %v7359, %v7363
        %v7366 = vshrl.u32 %v7107, 16
        %v7368 = vrot.slane %v7366, 4
        %v7369 = vshll.u32 %v7107, 16
        %v7371 = vrot.slane %v7369, 5
        %v7372 = vor.u32 %v7368, %v7371
        %v7373 = vrot.slane %v7372, 4
        %v7375 = vshll.u32 %v7108, 16
        %v7377 = vrot.slane %v7375, 5
        %v7378 = vsel %vm5199, %v7373, %v7377
        %v7379 = vshrl.u32 %v7108, 16
        %v7381 = vrot.slane %v7379, 4
        %v7382 = vor.u32 %v7381, %v7377
        %v7383 = vrot.slane %v7382, 4
        %v7385 = vshll.u32 %v7109, 16
        %v7387 = vrot.slane %v7385, 5
        %v7388 = vsel %vm5199, %v7383, %v7387
        %v7390 = vshrl.u32 %v7110, 16
        %v7392 = vrot.slane %v7390, 4
        %v7393 = vshll.u32 %v7110, 16
        %v7395 = vrot.slane %v7393, 5
        %v7396 = vor.u32 %v7392, %v7395
        %v7397 = vrot.slane %v7396, 4
        %v7399 = vshll.u32 %v7111, 16
        %v7401 = vrot.slane %v7399, 5
        %v7402 = vsel %vm5199, %v7397, %v7401
        %v7403 = vshrl.u32 %v7111, 16
        %v7405 = vrot.slane %v7403, 4
        %v7406 = vor.u32 %v7405, %v7401
        %v7407 = vrot.slane %v7406, 4
        %v7409 = vshll.u32 %v7112, 16
        %v7411 = vrot.slane %v7409, 5
        %v7412 = vsel %vm5199, %v7407, %v7411
        %v7414 = vshrl.u32 %v7113, 16
        %v7416 = vrot.slane %v7414, 4
        %v7417 = vshll.u32 %v7113, 16
        %v7419 = vrot.slane %v7417, 5
        %v7420 = vor.u32 %v7416, %v7419
        %v7421 = vrot.slane %v7420, 4
        %v7423 = vshll.u32 %v7114, 16
        %v7425 = vrot.slane %v7423, 5
        %v7426 = vsel %vm5199, %v7421, %v7425
        %v7427 = vshrl.u32 %v7114, 16
        %v7429 = vrot.slane %v7427, 4
        %v7430 = vor.u32 %v7429, %v7425
        %v7431 = vrot.slane %v7430, 4
        %v7433 = vshll.u32 %v7115, 16
        %v7435 = vrot.slane %v7433, 5
        %v7436 = vsel %vm5199, %v7431, %v7435
        %v7438 = vshrl.u32 %v7116, 16
        %v7440 = vrot.slane %v7438, 4
        %v7441 = vshll.u32 %v7116, 16
        %v7443 = vrot.slane %v7441, 5
        %v7444 = vor.u32 %v7440, %v7443
        %v7445 = vrot.slane %v7444, 4
        %v7447 = vshll.u32 %v7117, 16
        %v7449 = vrot.slane %v7447, 5
        %v7450 = vsel %vm5199, %v7445, %v7449
        %v7451 = vshrl.u32 %v7117, 16
        %v7453 = vrot.slane %v7451, 4
        %v7454 = vor.u32 %v7453, %v7449
        %v7455 = vrot.slane %v7454, 4
        %v7457 = vshll.u32 %v7118, 16
        %v7459 = vrot.slane %v7457, 5
        %v7460 = vsel %vm5199, %v7455, %v7459
        %v7462 = vshrl.u32 %v7119, 16
        %v7464 = vrot.slane %v7462, 4
        %v7465 = vshll.u32 %v7119, 16
        %v7467 = vrot.slane %v7465, 5
        %v7468 = vor.u32 %v7464, %v7467
        %v7469 = vrot.slane %v7468, 4
        %v7471 = vshll.u32 %v7120, 16
        %v7473 = vrot.slane %v7471, 5
        %v7474 = vsel %vm5199, %v7469, %v7473
        %v7475 = vshrl.u32 %v7120, 16
        %v7477 = vrot.slane %v7475, 4
        %v7478 = vor.u32 %v7477, %v7473
        %v7479 = vrot.slane %v7478, 4
        %v7481 = vshll.u32 %v7121, 16
        %v7483 = vrot.slane %v7481, 5
        %v7484 = vsel %vm5199, %v7479, %v7483
        %v7486 = vshrl.u32 %v7122, 16
        %v7488 = vrot.slane %v7486, 4
        %v7489 = vshll.u32 %v7122, 16
        %v7491 = vrot.slane %v7489, 5
        %v7492 = vor.u32 %v7488, %v7491
        %v7493 = vrot.slane %v7492, 4
        %v7495 = vshll.u32 %v7123, 16
        %v7497 = vrot.slane %v7495, 5
        %v7498 = vsel %vm5199, %v7493, %v7497
        %v7499 = vshrl.u32 %v7123, 16
        %v7501 = vrot.slane %v7499, 4
        %v7502 = vor.u32 %v7501, %v7497
        %v7503 = vrot.slane %v7502, 4
        %v7505 = vshll.u32 %v7124, 16
        %v7507 = vrot.slane %v7505, 5
        %v7508 = vsel %vm5199, %v7503, %v7507
        %7509 = vrot.lane.b32.xlu0 %v7138, 64
        %v7510 = vpop.permute.xlu0 %7509
        %7511 = vrot.lane.b32.xlu0 %v7148, 64
        %v7512 = vpop.permute.xlu0 %7511
        %7513 = vrot.lane.b32.xlu0 %v7162, 64
        %v7514 = vpop.permute.xlu0 %7513
        %7515 = vrot.lane.b32.xlu0 %v7172, 64
        %v7516 = vpop.permute.xlu0 %7515
        %7517 = vrot.lane.b32.xlu0 %v7186, 64
        %v7518 = vpop.permute.xlu0 %7517
        %7519 = vrot.lane.b32.xlu0 %v7196, 64
        %v7520 = vpop.permute.xlu0 %7519
        %7521 = vrot.lane.b32.xlu0 %v7210, 64
        %v7522 = vpop.permute.xlu0 %7521
        %7523 = vrot.lane.b32.xlu0 %v7220, 64
        %v7524 = vpop.permute.xlu0 %7523
        %7525 = vrot.lane.b32.xlu0 %v7234, 64
        %v7526 = vpop.permute.xlu0 %7525
        %7527 = vrot.lane.b32.xlu0 %v7244, 64
        %v7528 = vpop.permute.xlu0 %7527
        %7529 = vrot.lane.b32.xlu0 %v7258, 64
        %v7530 = vpop.permute.xlu0 %7529
        %7531 = vrot.lane.b32.xlu0 %v7268, 64
        %v7532 = vpop.permute.xlu0 %7531
        %7533 = vrot.lane.b32.xlu0 %v7282, 64
        %v7534 = vpop.permute.xlu0 %7533
        %7535 = vrot.lane.b32.xlu0 %v7292, 64
        %v7536 = vpop.permute.xlu0 %7535
        %7537 = vrot.lane.b32.xlu0 %v7306, 64
        %v7538 = vpop.permute.xlu0 %7537
        %7539 = vrot.lane.b32.xlu0 %v7316, 64
        %v7540 = vpop.permute.xlu0 %7539
        %7541 = vrot.lane.b32.xlu0 %v7330, 64
        %v7542 = vpop.permute.xlu0 %7541
        %7543 = vrot.lane.b32.xlu0 %v7340, 64
        %v7544 = vpop.permute.xlu0 %7543
        %7545 = vrot.lane.b32.xlu0 %v7354, 64
        %v7546 = vpop.permute.xlu0 %7545
        %7547 = vrot.lane.b32.xlu0 %v7364, 64
        %v7548 = vpop.permute.xlu0 %7547
        %7549 = vrot.lane.b32.xlu0 %v7378, 64
        %v7550 = vpop.permute.xlu0 %7549
        %7551 = vrot.lane.b32.xlu0 %v7388, 64
        %v7552 = vpop.permute.xlu0 %7551
        %7553 = vrot.lane.b32.xlu0 %v7402, 64
        %v7554 = vpop.permute.xlu0 %7553
        %7555 = vrot.lane.b32.xlu0 %v7412, 64
        %v7556 = vpop.permute.xlu0 %7555
        %7557 = vrot.lane.b32.xlu0 %v7426, 64
        %v7558 = vpop.permute.xlu0 %7557
        %7559 = vrot.lane.b32.xlu0 %v7436, 64
        %v7560 = vpop.permute.xlu0 %7559
        %7561 = vrot.lane.b32.xlu0 %v7450, 64
        %v7562 = vpop.permute.xlu0 %7561
        %7563 = vrot.lane.b32.xlu0 %v7460, 64
        %v7564 = vpop.permute.xlu0 %7563
        %7565 = vrot.lane.b32.xlu0 %v7474, 64
        %v7566 = vpop.permute.xlu0 %7565
        %7567 = vrot.lane.b32.xlu0 %v7484, 64
        %v7568 = vpop.permute.xlu0 %7567
        %7569 = vrot.lane.b32.xlu0 %v7498, 64
        %v7570 = vpop.permute.xlu0 %7569
        %7571 = vrot.lane.b32.xlu0 %v7508, 64
        %v7572 = vpop.permute.xlu0 %7571
        %7605 = vst.msk [vmem:[#allocation4 + $0xc] sm:$0xf] %vm5680, %v7510
        %7606 = vst.msk [vmem:[#allocation4 + $0x20] sm:$0xf] %vm5680, %v7512
        %7607 = vst.msk [vmem:[#allocation4 + $0x34] sm:$0xf] %vm5680, %v7514
        %7608 = vst.msk [vmem:[#allocation4 + $0x48] sm:$0xf] %vm5680, %v7516
        %7609 = vst.msk [vmem:[#allocation4 + $0x5c] sm:$0xf] %vm5680, %v7518
        %7610 = vst.msk [vmem:[#allocation4 + $0x70] sm:$0xf] %vm5680, %v7520
        %7611 = vst.msk [vmem:[#allocation4 + $0x84] sm:$0xf] %vm5680, %v7522
        %7612 = vst.msk [vmem:[#allocation4 + $0x98] sm:$0xf] %vm5680, %v7524
        %7613 = vst.msk [vmem:[#allocation4 + $0xac] sm:$0xf] %vm5680, %v7526
        %7614 = vst.msk [vmem:[#allocation4 + $0xc0] sm:$0xf] %vm5680, %v7528
        %7615 = vst.msk [vmem:[#allocation4 + $0xd4] sm:$0xf] %vm5680, %v7530
        %7616 = vst.msk [vmem:[#allocation4 + $0xe8] sm:$0xf] %vm5680, %v7532
        %7617 = vst.msk [vmem:[#allocation4 + $0xfc] sm:$0xf] %vm5680, %v7534
        %7618 = vst.msk [vmem:[#allocation4 + $0x110] sm:$0xf] %vm5680, %v7536
        %7619 = vst.msk [vmem:[#allocation4 + $0x124] sm:$0xf] %vm5680, %v7538
        %7620 = vst.msk [vmem:[#allocation4 + $0x138] sm:$0xf] %vm5680, %v7540
        %7621 = vst.msk [vmem:[#allocation4 + $0x14c] sm:$0xf] %vm5680, %v7542
        %7622 = vst.msk [vmem:[#allocation4 + $0x160] sm:$0xf] %vm5680, %v7544
        %7623 = vst.msk [vmem:[#allocation4 + $0x174] sm:$0xf] %vm5680, %v7546
        %7624 = vst.msk [vmem:[#allocation4 + $0x188] sm:$0xf] %vm5680, %v7548
        %7625 = vst.msk [vmem:[#allocation4 + $0x19c] sm:$0xf] %vm5680, %v7550
        %7626 = vst.msk [vmem:[#allocation4 + $0x1b0] sm:$0xf] %vm5680, %v7552
        %7627 = vst.msk [vmem:[#allocation4 + $0x1c4] sm:$0xf] %vm5680, %v7554
        %7628 = vst.msk [vmem:[#allocation4 + $0x1d8] sm:$0xf] %vm5680, %v7556
        %7629 = vst.msk [vmem:[#allocation4 + $0x1ec] sm:$0xf] %vm5680, %v7558
        %7630 = vst.msk [vmem:[#allocation4 + $0x200] sm:$0xf] %vm5680, %v7560
        %7631 = vst.msk [vmem:[#allocation4 + $0x214] sm:$0xf] %vm5680, %v7562
        %7632 = vst.msk [vmem:[#allocation4 + $0x228] sm:$0xf] %vm5680, %v7564
        %7633 = vst.msk [vmem:[#allocation4 + $0x23c] sm:$0xf] %vm5680, %v7566
        %7634 = vst.msk [vmem:[#allocation4 + $0x250] sm:$0xf] %vm5680, %v7568
        %7635 = vst.msk [vmem:[#allocation4 + $0x264] sm:$0xf] %vm5680, %v7570
        %7636 = vst.msk [vmem:[#allocation4 + $0x278] sm:$0xf] %vm5680, %v7572
        %v7637 = vld [vmem:[%s7012] sm:$0xe]
        %v7638 = vld [vmem:[%s7012 + $0x4] sm:$0xf]
        %v7639 = vld [vmem:[%s7012 + $0x8] sm:$0x1]
        %v7640 = vld [vmem:[%s7012 + $0xc] sm:$0xe]
        %v7641 = vld [vmem:[%s7012 + $0x10] sm:$0xf]
        %v7642 = vld [vmem:[%s7012 + $0x14] sm:$0x1]
        %v7643 = vld [vmem:[%s7012 + $0x18] sm:$0xe]
        %v7644 = vld [vmem:[%s7012 + $0x1c] sm:$0xf]
        %v7645 = vld [vmem:[%s7012 + $0x20] sm:$0x1]
        %v7646 = vld [vmem:[%s7012 + $0x24] sm:$0xe]
        %v7647 = vld [vmem:[%s7012 + $0x28] sm:$0xf]
        %v7648 = vld [vmem:[%s7012 + $0x2c] sm:$0x1]
        %v7649 = vld [vmem:[%s7012 + $0x30] sm:$0xe]
        %v7650 = vld [vmem:[%s7012 + $0x34] sm:$0xf]
        %v7651 = vld [vmem:[%s7012 + $0x38] sm:$0x1]
        %v7652 = vld [vmem:[%s7012 + $0x3c] sm:$0xe]
        %v7653 = vld [vmem:[%s7012 + $0x40] sm:$0xf]
        %v7654 = vld [vmem:[%s7012 + $0x44] sm:$0x1]
        %v7655 = vld [vmem:[%s7012 + $0x48] sm:$0xe]
        %v7656 = vld [vmem:[%s7012 + $0x4c] sm:$0xf]
        %v7657 = vld [vmem:[%s7012 + $0x50] sm:$0x1]
        %v7658 = vld [vmem:[%s7012 + $0x54] sm:$0xe]
        %v7659 = vld [vmem:[%s7012 + $0x58] sm:$0xf]
        %v7660 = vld [vmem:[%s7012 + $0x5c] sm:$0x1]
        %v7661 = vld [vmem:[%s7012 + $0x60] sm:$0xe]
        %v7662 = vld [vmem:[%s7012 + $0x64] sm:$0xf]
        %v7663 = vld [vmem:[%s7012 + $0x68] sm:$0x1]
        %v7664 = vld [vmem:[%s7012 + $0x6c] sm:$0xe]
        %v7665 = vld [vmem:[%s7012 + $0x70] sm:$0xf]
        %v7666 = vld [vmem:[%s7012 + $0x74] sm:$0x1]
        %v7667 = vld [vmem:[%s7012 + $0x78] sm:$0xe]
        %v7668 = vld [vmem:[%s7012 + $0x7c] sm:$0xf]
        %v7669 = vld [vmem:[%s7012 + $0x80] sm:$0x1]
        %v7670 = vld [vmem:[%s7012 + $0x84] sm:$0xe]
        %v7671 = vld [vmem:[%s7012 + $0x88] sm:$0xf]
        %v7672 = vld [vmem:[%s7012 + $0x8c] sm:$0x1]
        %v7673 = vld [vmem:[%s7012 + $0x90] sm:$0xe]
        %v7674 = vld [vmem:[%s7012 + $0x94] sm:$0xf]
        %v7675 = vld [vmem:[%s7012 + $0x98] sm:$0x1]
        %v7676 = vld [vmem:[%s7012 + $0x9c] sm:$0xe]
        %v7677 = vld [vmem:[%s7012 + $0xa0] sm:$0xf]
        %v7678 = vld [vmem:[%s7012 + $0xa4] sm:$0x1]
        %v7679 = vld [vmem:[%s7012 + $0xa8] sm:$0xe]
        %v7680 = vld [vmem:[%s7012 + $0xac] sm:$0xf]
        %v7681 = vld [vmem:[%s7012 + $0xb0] sm:$0x1]
        %v7682 = vld [vmem:[%s7012 + $0xb4] sm:$0xe]
        %v7683 = vld [vmem:[%s7012 + $0xb8] sm:$0xf]
        %v7684 = vld [vmem:[%s7012 + $0xbc] sm:$0x1]
        %v7733 = vrot.slane %v7637, 5
        %v7734 = vrot.slane %v7733, 4
        %v7735 = vrot.slane %v7638, 5
        %v7736 = vsel %vm5811, %v7734, %v7735
        %v7737 = vrot.slane %v7735, 4
        %v7738 = vrot.slane %v7639, 5
        %v7739 = vsel %vm5811, %v7737, %v7738
        %v7740 = vrot.slane %v7640, 5
        %v7741 = vrot.slane %v7740, 4
        %v7742 = vrot.slane %v7641, 5
        %v7743 = vsel %vm5811, %v7741, %v7742
        %v7744 = vrot.slane %v7742, 4
        %v7745 = vrot.slane %v7642, 5
        %v7746 = vsel %vm5811, %v7744, %v7745
        %v7747 = vrot.slane %v7643, 5
        %v7748 = vrot.slane %v7747, 4
        %v7749 = vrot.slane %v7644, 5
        %v7750 = vsel %vm5811, %v7748, %v7749
        %v7751 = vrot.slane %v7749, 4
        %v7752 = vrot.slane %v7645, 5
        %v7753 = vsel %vm5811, %v7751, %v7752
        %v7754 = vrot.slane %v7646, 5
        %v7755 = vrot.slane %v7754, 4
        %v7756 = vrot.slane %v7647, 5
        %v7757 = vsel %vm5811, %v7755, %v7756
        %v7758 = vrot.slane %v7756, 4
        %v7759 = vrot.slane %v7648, 5
        %v7760 = vsel %vm5811, %v7758, %v7759
        %v7761 = vrot.slane %v7649, 5
        %v7762 = vrot.slane %v7761, 4
        %v7763 = vrot.slane %v7650, 5
        %v7764 = vsel %vm5811, %v7762, %v7763
        %v7765 = vrot.slane %v7763, 4
        %v7766 = vrot.slane %v7651, 5
        %v7767 = vsel %vm5811, %v7765, %v7766
        %v7768 = vrot.slane %v7652, 5
        %v7769 = vrot.slane %v7768, 4
        %v7770 = vrot.slane %v7653, 5
        %v7771 = vsel %vm5811, %v7769, %v7770
        %v7772 = vrot.slane %v7770, 4
        %v7773 = vrot.slane %v7654, 5
        %v7774 = vsel %vm5811, %v7772, %v7773
        %v7775 = vrot.slane %v7655, 5
        %v7776 = vrot.slane %v7775, 4
        %v7777 = vrot.slane %v7656, 5
        %v7778 = vsel %vm5811, %v7776, %v7777
        %v7779 = vrot.slane %v7777, 4
        %v7780 = vrot.slane %v7657, 5
        %v7781 = vsel %vm5811, %v7779, %v7780
        %v7782 = vrot.slane %v7658, 5
        %v7783 = vrot.slane %v7782, 4
        %v7784 = vrot.slane %v7659, 5
        %v7785 = vsel %vm5811, %v7783, %v7784
        %v7786 = vrot.slane %v7784, 4
        %v7787 = vrot.slane %v7660, 5
        %v7788 = vsel %vm5811, %v7786, %v7787
        %v7789 = vrot.slane %v7661, 5
        %v7790 = vrot.slane %v7789, 4
        %v7791 = vrot.slane %v7662, 5
        %v7792 = vsel %vm5811, %v7790, %v7791
        %v7793 = vrot.slane %v7791, 4
        %v7794 = vrot.slane %v7663, 5
        %v7795 = vsel %vm5811, %v7793, %v7794
        %v7796 = vrot.slane %v7664, 5
        %v7797 = vrot.slane %v7796, 4
        %v7798 = vrot.slane %v7665, 5
        %v7799 = vsel %vm5811, %v7797, %v7798
        %v7800 = vrot.slane %v7798, 4
        %v7801 = vrot.slane %v7666, 5
        %v7802 = vsel %vm5811, %v7800, %v7801
        %v7803 = vrot.slane %v7667, 5
        %v7804 = vrot.slane %v7803, 4
        %v7805 = vrot.slane %v7668, 5
        %v7806 = vsel %vm5811, %v7804, %v7805
        %v7807 = vrot.slane %v7805, 4
        %v7808 = vrot.slane %v7669, 5
        %v7809 = vsel %vm5811, %v7807, %v7808
        %v7810 = vrot.slane %v7670, 5
        %v7811 = vrot.slane %v7810, 4
        %v7812 = vrot.slane %v7671, 5
        %v7813 = vsel %vm5811, %v7811, %v7812
        %v7814 = vrot.slane %v7812, 4
        %v7815 = vrot.slane %v7672, 5
        %v7816 = vsel %vm5811, %v7814, %v7815
        %v7817 = vrot.slane %v7673, 5
        %v7818 = vrot.slane %v7817, 4
        %v7819 = vrot.slane %v7674, 5
        %v7820 = vsel %vm5811, %v7818, %v7819
        %v7821 = vrot.slane %v7819, 4
        %v7822 = vrot.slane %v7675, 5
        %v7823 = vsel %vm5811, %v7821, %v7822
        %v7824 = vrot.slane %v7676, 5
        %v7825 = vrot.slane %v7824, 4
        %v7826 = vrot.slane %v7677, 5
        %v7827 = vsel %vm5811, %v7825, %v7826
        %v7828 = vrot.slane %v7826, 4
        %v7829 = vrot.slane %v7678, 5
        %v7830 = vsel %vm5811, %v7828, %v7829
        %v7831 = vrot.slane %v7679, 5
        %v7832 = vrot.slane %v7831, 4
        %v7833 = vrot.slane %v7680, 5
        %v7834 = vsel %vm5811, %v7832, %v7833
        %v7835 = vrot.slane %v7833, 4
        %v7836 = vrot.slane %v7681, 5
        %v7837 = vsel %vm5811, %v7835, %v7836
        %v7838 = vrot.slane %v7682, 5
        %v7839 = vrot.slane %v7838, 4
        %v7840 = vrot.slane %v7683, 5
        %v7841 = vsel %vm5811, %v7839, %v7840
        %v7842 = vrot.slane %v7840, 4
        %v7843 = vrot.slane %v7684, 5
        %v7844 = vsel %vm5811, %v7842, %v7843
        %7877 = vst.msk [vmem:[#allocation4 + $0x10] sm:$0xf] %vm4430, %v7736
        %7878 = vst.msk [vmem:[#allocation4 + $0x24] sm:$0xf] %vm4430, %v7739
        %7879 = vst.msk [vmem:[#allocation4 + $0x38] sm:$0xf] %vm4430, %v7743
        %7880 = vst.msk [vmem:[#allocation4 + $0x4c] sm:$0xf] %vm4430, %v7746
        %7881 = vst.msk [vmem:[#allocation4 + $0x60] sm:$0xf] %vm4430, %v7750
        %7882 = vst.msk [vmem:[#allocation4 + $0x74] sm:$0xf] %vm4430, %v7753
        %7883 = vst.msk [vmem:[#allocation4 + $0x88] sm:$0xf] %vm4430, %v7757
        %7884 = vst.msk [vmem:[#allocation4 + $0x9c] sm:$0xf] %vm4430, %v7760
        %7885 = vst.msk [vmem:[#allocation4 + $0xb0] sm:$0xf] %vm4430, %v7764
        %7886 = vst.msk [vmem:[#allocation4 + $0xc4] sm:$0xf] %vm4430, %v7767
        %7887 = vst.msk [vmem:[#allocation4 + $0xd8] sm:$0xf] %vm4430, %v7771
        %7888 = vst.msk [vmem:[#allocation4 + $0xec] sm:$0xf] %vm4430, %v7774
        %7889 = vst.msk [vmem:[#allocation4 + $0x100] sm:$0xf] %vm4430, %v7778
        %7890 = vst.msk [vmem:[#allocation4 + $0x114] sm:$0xf] %vm4430, %v7781
        %7891 = vst.msk [vmem:[#allocation4 + $0x128] sm:$0xf] %vm4430, %v7785
        %7892 = vst.msk [vmem:[#allocation4 + $0x13c] sm:$0xf] %vm4430, %v7788
        %7893 = vst.msk [vmem:[#allocation4 + $0x150] sm:$0xf] %vm4430, %v7792
        %7894 = vst.msk [vmem:[#allocation4 + $0x164] sm:$0xf] %vm4430, %v7795
        %7895 = vst.msk [vmem:[#allocation4 + $0x178] sm:$0xf] %vm4430, %v7799
        %7896 = vst.msk [vmem:[#allocation4 + $0x18c] sm:$0xf] %vm4430, %v7802
        %7897 = vst.msk [vmem:[#allocation4 + $0x1a0] sm:$0xf] %vm4430, %v7806
        %7898 = vst.msk [vmem:[#allocation4 + $0x1b4] sm:$0xf] %vm4430, %v7809
        %7899 = vst.msk [vmem:[#allocation4 + $0x1c8] sm:$0xf] %vm4430, %v7813
        %7900 = vst.msk [vmem:[#allocation4 + $0x1dc] sm:$0xf] %vm4430, %v7816
        %7901 = vst.msk [vmem:[#allocation4 + $0x1f0] sm:$0xf] %vm4430, %v7820
        %7902 = vst.msk [vmem:[#allocation4 + $0x204] sm:$0xf] %vm4430, %v7823
        %7903 = vst.msk [vmem:[#allocation4 + $0x218] sm:$0xf] %vm4430, %v7827
        %7904 = vst.msk [vmem:[#allocation4 + $0x22c] sm:$0xf] %vm4430, %v7830
        %7905 = vst.msk [vmem:[#allocation4 + $0x240] sm:$0xf] %vm4430, %v7834
        %7906 = vst.msk [vmem:[#allocation4 + $0x254] sm:$0xf] %vm4430, %v7837
        %7907 = vst.msk [vmem:[#allocation4 + $0x268] sm:$0xf] %vm4430, %v7841
        %7908 = vst.msk [vmem:[#allocation4 + $0x27c] sm:$0xf] %vm4430, %v7844
        %v7909 = vld [vmem:[#allocation4] sm:$0xff]
        %v7910 = vld [vmem:[#allocation4 + $0x8] sm:$0xff]
        %v7911 = vld [vmem:[#allocation4 + $0x10] sm:$0xf]
        %v7912 = vld [vmem:[#allocation4 + $0x14] sm:$0xff]
        %v7913 = vld [vmem:[#allocation4 + $0x1c] sm:$0xff]
        %v7914 = vld [vmem:[#allocation4 + $0x24] sm:$0xf]
        %v7915 = vld [vmem:[#allocation4 + $0x28] sm:$0xff]
        %v7916 = vld [vmem:[#allocation4 + $0x30] sm:$0xff]
        %v7917 = vld [vmem:[#allocation4 + $0x38] sm:$0xf]
        %v7918 = vld [vmem:[#allocation4 + $0x3c] sm:$0xff]
        %v7919 = vld [vmem:[#allocation4 + $0x44] sm:$0xff]
        %v7920 = vld [vmem:[#allocation4 + $0x4c] sm:$0xf]
        %v7921 = vld [vmem:[#allocation4 + $0x50] sm:$0xff]
        %v7922 = vld [vmem:[#allocation4 + $0x58] sm:$0xff]
        %v7923 = vld [vmem:[#allocation4 + $0x60] sm:$0xf]
        %v7924 = vld [vmem:[#allocation4 + $0x64] sm:$0xff]
        %v7925 = vld [vmem:[#allocation4 + $0x6c] sm:$0xff]
        %v7926 = vld [vmem:[#allocation4 + $0x74] sm:$0xf]
        %v7927 = vld [vmem:[#allocation4 + $0x78] sm:$0xff]
        %v7928 = vld [vmem:[#allocation4 + $0x80] sm:$0xff]
        %v7929 = vld [vmem:[#allocation4 + $0x88] sm:$0xf]
        %v7930 = vld [vmem:[#allocation4 + $0x8c] sm:$0xff]
        %v7931 = vld [vmem:[#allocation4 + $0x94] sm:$0xff]
        %v7932 = vld [vmem:[#allocation4 + $0x9c] sm:$0xf]
        %v7933 = vld [vmem:[#allocation4 + $0xa0] sm:$0xff]
        %v7934 = vld [vmem:[#allocation4 + $0xa8] sm:$0xff]
        %v7935 = vld [vmem:[#allocation4 + $0xb0] sm:$0xf]
        %v7936 = vld [vmem:[#allocation4 + $0xb4] sm:$0xff]
        %v7937 = vld [vmem:[#allocation4 + $0xbc] sm:$0xff]
        %v7938 = vld [vmem:[#allocation4 + $0xc4] sm:$0xf]
        %v7939 = vld [vmem:[#allocation4 + $0xc8] sm:$0xff]
        %v7940 = vld [vmem:[#allocation4 + $0xd0] sm:$0xff]
        %v7941 = vld [vmem:[#allocation4 + $0xd8] sm:$0xf]
        %v7942 = vld [vmem:[#allocation4 + $0xdc] sm:$0xff]
        %v7943 = vld [vmem:[#allocation4 + $0xe4] sm:$0xff]
        %v7944 = vld [vmem:[#allocation4 + $0xec] sm:$0xf]
        %v7945 = vld [vmem:[#allocation4 + $0xf0] sm:$0xff]
        %v7946 = vld [vmem:[#allocation4 + $0xf8] sm:$0xff]
        %v7947 = vld [vmem:[#allocation4 + $0x100] sm:$0xf]
        %v7948 = vld [vmem:[#allocation4 + $0x104] sm:$0xff]
        %v7949 = vld [vmem:[#allocation4 + $0x10c] sm:$0xff]
        %v7950 = vld [vmem:[#allocation4 + $0x114] sm:$0xf]
        %v7951 = vld [vmem:[#allocation4 + $0x118] sm:$0xff]
        %v7952 = vld [vmem:[#allocation4 + $0x120] sm:$0xff]
        %v7953 = vld [vmem:[#allocation4 + $0x128] sm:$0xf]
        %v7954 = vld [vmem:[#allocation4 + $0x12c] sm:$0xff]
        %v7955 = vld [vmem:[#allocation4 + $0x134] sm:$0xff]
        %v7956 = vld [vmem:[#allocation4 + $0x13c] sm:$0xf]
        %v7957 = vld [vmem:[#allocation4 + $0x140] sm:$0xff]
        %v7958 = vld [vmem:[#allocation4 + $0x148] sm:$0xff]
        %v7959 = vld [vmem:[#allocation4 + $0x150] sm:$0xf]
        %v7960 = vld [vmem:[#allocation4 + $0x154] sm:$0xff]
        %v7961 = vld [vmem:[#allocation4 + $0x15c] sm:$0xff]
        %v7962 = vld [vmem:[#allocation4 + $0x164] sm:$0xf]
        %v7963 = vld [vmem:[#allocation4 + $0x168] sm:$0xff]
        %v7964 = vld [vmem:[#allocation4 + $0x170] sm:$0xff]
        %v7965 = vld [vmem:[#allocation4 + $0x178] sm:$0xf]
        %v7966 = vld [vmem:[#allocation4 + $0x17c] sm:$0xff]
        %v7967 = vld [vmem:[#allocation4 + $0x184] sm:$0xff]
        %v7968 = vld [vmem:[#allocation4 + $0x18c] sm:$0xf]
        %v7969 = vld [vmem:[#allocation4 + $0x190] sm:$0xff]
        %v7970 = vld [vmem:[#allocation4 + $0x198] sm:$0xff]
        %v7971 = vld [vmem:[#allocation4 + $0x1a0] sm:$0xf]
        %v7972 = vld [vmem:[#allocation4 + $0x1a4] sm:$0xff]
        %v7973 = vld [vmem:[#allocation4 + $0x1ac] sm:$0xff]
        %v7974 = vld [vmem:[#allocation4 + $0x1b4] sm:$0xf]
        %v7975 = vld [vmem:[#allocation4 + $0x1b8] sm:$0xff]
        %v7976 = vld [vmem:[#allocation4 + $0x1c0] sm:$0xff]
        %v7977 = vld [vmem:[#allocation4 + $0x1c8] sm:$0xf]
        %v7978 = vld [vmem:[#allocation4 + $0x1cc] sm:$0xff]
        %v7979 = vld [vmem:[#allocation4 + $0x1d4] sm:$0xff]
        %v7980 = vld [vmem:[#allocation4 + $0x1dc] sm:$0xf]
        %v7981 = vld [vmem:[#allocation4 + $0x1e0] sm:$0xff]
        %v7982 = vld [vmem:[#allocation4 + $0x1e8] sm:$0xff]
        %v7983 = vld [vmem:[#allocation4 + $0x1f0] sm:$0xf]
        %v7984 = vld [vmem:[#allocation4 + $0x1f4] sm:$0xff]
        %v7985 = vld [vmem:[#allocation4 + $0x1fc] sm:$0xff]
        %v7986 = vld [vmem:[#allocation4 + $0x204] sm:$0xf]
        %v7987 = vld [vmem:[#allocation4 + $0x208] sm:$0xff]
        %v7988 = vld [vmem:[#allocation4 + $0x210] sm:$0xff]
        %v7989 = vld [vmem:[#allocation4 + $0x218] sm:$0xf]
        %v7990 = vld [vmem:[#allocation4 + $0x21c] sm:$0xff]
        %v7991 = vld [vmem:[#allocation4 + $0x224] sm:$0xff]
        %v7992 = vld [vmem:[#allocation4 + $0x22c] sm:$0xf]
        %v7993 = vld [vmem:[#allocation4 + $0x230] sm:$0xff]
        %v7994 = vld [vmem:[#allocation4 + $0x238] sm:$0xff]
        %v7995 = vld [vmem:[#allocation4 + $0x240] sm:$0xf]
        %v7996 = vld [vmem:[#allocation4 + $0x244] sm:$0xff]
        %v7997 = vld [vmem:[#allocation4 + $0x24c] sm:$0xff]
        %v7998 = vld [vmem:[#allocation4 + $0x254] sm:$0xf]
        %v7999 = vld [vmem:[#allocation4 + $0x258] sm:$0xff]
        %v8000 = vld [vmem:[#allocation4 + $0x260] sm:$0xff]
        %v8001 = vld [vmem:[#allocation4 + $0x268] sm:$0xf]
        %v8002 = vld [vmem:[#allocation4 + $0x26c] sm:$0xff]
        %v8003 = vld [vmem:[#allocation4 + $0x274] sm:$0xff]
        %v8004 = vld [vmem:[#allocation4 + $0x27c] sm:$0xf]
        %v8005 = vld [vmem:[%s3] sm:$0xf]
        %v8006 = vld [vmem:[%s3 + $0x4] sm:$0xf]
        %v8007 = vld [vmem:[%s3 + $0x8] sm:$0xf]
        %v8008 = vld [vmem:[%s3 + $0xc] sm:$0xf]
        %v8009 = vld [vmem:[%s3 + $0x10] sm:$0xf]
        %v8010 = vld [vmem:[%s3 + $0x14] sm:$0xf]
        %v8011 = vld [vmem:[%s3 + $0x18] sm:$0xf]
        %v8012 = vld [vmem:[%s3 + $0x1c] sm:$0xf]
        %v8013 = vld [vmem:[%s3 + $0x20] sm:$0xf]
        %v8014 = vld [vmem:[%s3 + $0x24] sm:$0xf]
        %v8015 = vld [vmem:[%s3 + $0x28] sm:$0xf]
        %v8016 = vld [vmem:[%s3 + $0x2c] sm:$0xf]
        %v8017 = vld [vmem:[%s3 + $0x30] sm:$0xf]
        %v8018 = vld [vmem:[%s3 + $0x34] sm:$0xf]
        %v8019 = vld [vmem:[%s3 + $0x38] sm:$0xf]
        %v8020 = vld [vmem:[%s3 + $0x3c] sm:$0xf]
        %v8021 = vld [vmem:[%s3 + $0x40] sm:$0xf]
        %v8022 = vld [vmem:[%s3 + $0x44] sm:$0xf]
        %v8023 = vld [vmem:[%s3 + $0x48] sm:$0xf]
        %v8024 = vld [vmem:[%s3 + $0x4c] sm:$0xf]
        %v8025 = vld [vmem:[%s3 + $0x50] sm:$0xf]
        %v8026 = vld [vmem:[%s3 + $0x54] sm:$0xf]
        %v8027 = vld [vmem:[%s3 + $0x58] sm:$0xf]
        %v8028 = vld [vmem:[%s3 + $0x5c] sm:$0xf]
        %v8029 = vld [vmem:[%s3 + $0x60] sm:$0xf]
        %v8030 = vld [vmem:[%s3 + $0x64] sm:$0xf]
        %v8031 = vld [vmem:[%s3 + $0x68] sm:$0xf]
        %v8032 = vld [vmem:[%s3 + $0x6c] sm:$0xf]
        %v8033 = vld [vmem:[%s3 + $0x70] sm:$0xf]
        %v8034 = vld [vmem:[%s3 + $0x74] sm:$0xf]
        %v8035 = vld [vmem:[%s3 + $0x78] sm:$0xf]
        %v8036 = vld [vmem:[%s3 + $0x7c] sm:$0xf]
        %v8037 = vld [vmem:[%s3 + $0x80] sm:$0xf]
        %v8038 = vld [vmem:[%s3 + $0x84] sm:$0xf]
        %v8039 = vld [vmem:[%s3 + $0x88] sm:$0xf]
        %v8040 = vld [vmem:[%s3 + $0x8c] sm:$0xf]
        %v8041 = vld [vmem:[%s3 + $0x90] sm:$0xf]
        %v8042 = vld [vmem:[%s3 + $0x94] sm:$0xf]
        %v8043 = vld [vmem:[%s3 + $0x98] sm:$0xf]
        %v8044 = vld [vmem:[%s3 + $0x9c] sm:$0xf]
        %v8045 = vld [vmem:[%s3 + $0xa0] sm:$0xf]
        %v8046 = vld [vmem:[%s3 + $0xa4] sm:$0xf]
        %v8047 = vld [vmem:[%s3 + $0xa8] sm:$0xf]
        %v8048 = vld [vmem:[%s3 + $0xac] sm:$0xf]
        %v8049 = vld [vmem:[%s3 + $0xb0] sm:$0xf]
        %v8050 = vld [vmem:[%s3 + $0xb4] sm:$0xf]
        %v8051 = vld [vmem:[%s3 + $0xb8] sm:$0xf]
        %v8052 = vld [vmem:[%s3 + $0xbc] sm:$0xf]
        %v8053 = vld [vmem:[%s3 + $0xc0] sm:$0xf]
        %v8054 = vld [vmem:[%s3 + $0xc4] sm:$0xf]
        %v8055 = vld [vmem:[%s3 + $0xc8] sm:$0xf]
        %v8056 = vld [vmem:[%s3 + $0xcc] sm:$0xf]
        %v8057 = vld [vmem:[%s3 + $0xd0] sm:$0xf]
        %v8058 = vld [vmem:[%s3 + $0xd4] sm:$0xf]
        %v8059 = vld [vmem:[%s3 + $0xd8] sm:$0xf]
        %v8060 = vld [vmem:[%s3 + $0xdc] sm:$0xf]
        %v8061 = vld [vmem:[%s3 + $0xe0] sm:$0xf]
        %v8062 = vld [vmem:[%s3 + $0xe4] sm:$0xf]
        %v8063 = vld [vmem:[%s3 + $0xe8] sm:$0xf]
        %v8064 = vld [vmem:[%s3 + $0xec] sm:$0xf]
        %v8065 = vld [vmem:[%s3 + $0xf0] sm:$0xf]
        %v8066 = vld [vmem:[%s3 + $0xf4] sm:$0xf]
        %v8067 = vld [vmem:[%s3 + $0xf8] sm:$0xf]
        %v8068 = vld [vmem:[%s3 + $0xfc] sm:$0xf]
        %v8069 = vld [vmem:[%s3 + $0x100] sm:$0xf]
        %v8070 = vld [vmem:[%s3 + $0x104] sm:$0xf]
        %v8071 = vld [vmem:[%s3 + $0x108] sm:$0xf]
        %v8072 = vld [vmem:[%s3 + $0x10c] sm:$0xf]
        %v8073 = vld [vmem:[%s3 + $0x110] sm:$0xf]
        %v8074 = vld [vmem:[%s3 + $0x114] sm:$0xf]
        %v8075 = vld [vmem:[%s3 + $0x118] sm:$0xf]
        %v8076 = vld [vmem:[%s3 + $0x11c] sm:$0xf]
        %v8077 = vld [vmem:[%s4] sm:$0x1]
        %v8079 = vlaneseq
        %v8080 = vshrl.u32 %v8079, 7
        %v8081 = vsub.s32 0, %v8080
        %v8082 = vrot.slane %v8077, %v8081
        %v8180 = vunpack.c.l.b16 %v7909
        %v8181 = vunpack.c.h.b16 %v7909
        %v8182 = vunpack.c.l.b16 %v7910
        %v8183 = vunpack.c.h.b16 %v7910
        %v8184 = vunpack.c.l.b16 %v7911
        %v8185 = vunpack.c.l.b16 %v7912
        %v8186 = vunpack.c.h.b16 %v7912
        %v8187 = vunpack.c.l.b16 %v7913
        %v8188 = vunpack.c.h.b16 %v7913
        %v8189 = vunpack.c.l.b16 %v7914
        %v8190 = vunpack.c.l.b16 %v7915
        %v8191 = vunpack.c.h.b16 %v7915
        %v8192 = vunpack.c.l.b16 %v7916
        %v8193 = vunpack.c.h.b16 %v7916
        %v8194 = vunpack.c.l.b16 %v7917
        %v8195 = vunpack.c.l.b16 %v7918
        %v8196 = vunpack.c.h.b16 %v7918
        %v8197 = vunpack.c.l.b16 %v7919
        %v8198 = vunpack.c.h.b16 %v7919
        %v8199 = vunpack.c.l.b16 %v7920
        %v8200 = vunpack.c.l.b16 %v7921
        %v8201 = vunpack.c.h.b16 %v7921
        %v8202 = vunpack.c.l.b16 %v7922
        %v8203 = vunpack.c.h.b16 %v7922
        %v8204 = vunpack.c.l.b16 %v7923
        %v8205 = vunpack.c.l.b16 %v7924
        %v8206 = vunpack.c.h.b16 %v7924
        %v8207 = vunpack.c.l.b16 %v7925
        %v8208 = vunpack.c.h.b16 %v7925
        %v8209 = vunpack.c.l.b16 %v7926
        %v8210 = vunpack.c.l.b16 %v7927
        %v8211 = vunpack.c.h.b16 %v7927
        %v8212 = vunpack.c.l.b16 %v7928
        %v8213 = vunpack.c.h.b16 %v7928
        %v8214 = vunpack.c.l.b16 %v7929
        %v8215 = vunpack.c.l.b16 %v7930
        %v8216 = vunpack.c.h.b16 %v7930
        %v8217 = vunpack.c.l.b16 %v7931
        %v8218 = vunpack.c.h.b16 %v7931
        %v8219 = vunpack.c.l.b16 %v7932
        %v8220 = vunpack.c.l.b16 %v7933
        %v8221 = vunpack.c.h.b16 %v7933
        %v8222 = vunpack.c.l.b16 %v7934
        %v8223 = vunpack.c.h.b16 %v7934
        %v8224 = vunpack.c.l.b16 %v7935
        %v8225 = vunpack.c.l.b16 %v7936
        %v8226 = vunpack.c.h.b16 %v7936
        %v8227 = vunpack.c.l.b16 %v7937
        %v8228 = vunpack.c.h.b16 %v7937
        %v8229 = vunpack.c.l.b16 %v7938
        %v8230 = vunpack.c.l.b16 %v7939
        %v8231 = vunpack.c.h.b16 %v7939
        %v8232 = vunpack.c.l.b16 %v7940
        %v8233 = vunpack.c.h.b16 %v7940
        %v8234 = vunpack.c.l.b16 %v7941
        %v8235 = vunpack.c.l.b16 %v7942
        %v8236 = vunpack.c.h.b16 %v7942
        %v8237 = vunpack.c.l.b16 %v7943
        %v8238 = vunpack.c.h.b16 %v7943
        %v8239 = vunpack.c.l.b16 %v7944
        %v8240 = vunpack.c.l.b16 %v7945
        %v8241 = vunpack.c.h.b16 %v7945
        %v8242 = vunpack.c.l.b16 %v7946
        %v8243 = vunpack.c.h.b16 %v7946
        %v8244 = vunpack.c.l.b16 %v7947
        %v8245 = vunpack.c.l.b16 %v7948
        %v8246 = vunpack.c.h.b16 %v7948
        %v8247 = vunpack.c.l.b16 %v7949
        %v8248 = vunpack.c.h.b16 %v7949
        %v8249 = vunpack.c.l.b16 %v7950
        %v8250 = vunpack.c.l.b16 %v7951
        %v8251 = vunpack.c.h.b16 %v7951
        %v8252 = vunpack.c.l.b16 %v7952
        %v8253 = vunpack.c.h.b16 %v7952
        %v8254 = vunpack.c.l.b16 %v7953
        %v8255 = vunpack.c.l.b16 %v7954
        %v8256 = vunpack.c.h.b16 %v7954
        %v8257 = vunpack.c.l.b16 %v7955
        %v8258 = vunpack.c.h.b16 %v7955
        %v8259 = vunpack.c.l.b16 %v7956
        %v8260 = vunpack.c.l.b16 %v7957
        %v8261 = vunpack.c.h.b16 %v7957
        %v8262 = vunpack.c.l.b16 %v7958
        %v8263 = vunpack.c.h.b16 %v7958
        %v8264 = vunpack.c.l.b16 %v7959
        %v8265 = vunpack.c.l.b16 %v7960
        %v8266 = vunpack.c.h.b16 %v7960
        %v8267 = vunpack.c.l.b16 %v7961
        %v8268 = vunpack.c.h.b16 %v7961
        %v8269 = vunpack.c.l.b16 %v7962
        %v8270 = vunpack.c.l.b16 %v7963
        %v8271 = vunpack.c.h.b16 %v7963
        %v8272 = vunpack.c.l.b16 %v7964
        %v8273 = vunpack.c.h.b16 %v7964
        %v8274 = vunpack.c.l.b16 %v7965
        %v8275 = vunpack.c.l.b16 %v7966
        %v8276 = vunpack.c.h.b16 %v7966
        %v8277 = vunpack.c.l.b16 %v7967
        %v8278 = vunpack.c.h.b16 %v7967
        %v8279 = vunpack.c.l.b16 %v7968
        %v8280 = vunpack.c.l.b16 %v7969
        %v8281 = vunpack.c.h.b16 %v7969
        %v8282 = vunpack.c.l.b16 %v7970
        %v8283 = vunpack.c.h.b16 %v7970
        %v8284 = vunpack.c.l.b16 %v7971
        %v8285 = vunpack.c.l.b16 %v7972
        %v8286 = vunpack.c.h.b16 %v7972
        %v8287 = vunpack.c.l.b16 %v7973
        %v8288 = vunpack.c.h.b16 %v7973
        %v8289 = vunpack.c.l.b16 %v7974
        %v8290 = vunpack.c.l.b16 %v7975
        %v8291 = vunpack.c.h.b16 %v7975
        %v8292 = vunpack.c.l.b16 %v7976
        %v8293 = vunpack.c.h.b16 %v7976
        %v8294 = vunpack.c.l.b16 %v7977
        %v8295 = vunpack.c.l.b16 %v7978
        %v8296 = vunpack.c.h.b16 %v7978
        %v8297 = vunpack.c.l.b16 %v7979
        %v8298 = vunpack.c.h.b16 %v7979
        %v8299 = vunpack.c.l.b16 %v7980
        %v8300 = vunpack.c.l.b16 %v7981
        %v8301 = vunpack.c.h.b16 %v7981
        %v8302 = vunpack.c.l.b16 %v7982
        %v8303 = vunpack.c.h.b16 %v7982
        %v8304 = vunpack.c.l.b16 %v7983
        %v8305 = vunpack.c.l.b16 %v7984
        %v8306 = vunpack.c.h.b16 %v7984
        %v8307 = vunpack.c.l.b16 %v7985
        %v8308 = vunpack.c.h.b16 %v7985
        %v8309 = vunpack.c.l.b16 %v7986
        %v8310 = vunpack.c.l.b16 %v7987
        %v8311 = vunpack.c.h.b16 %v7987
        %v8312 = vunpack.c.l.b16 %v7988
        %v8313 = vunpack.c.h.b16 %v7988
        %v8314 = vunpack.c.l.b16 %v7989
        %v8315 = vunpack.c.l.b16 %v7990
        %v8316 = vunpack.c.h.b16 %v7990
        %v8317 = vunpack.c.l.b16 %v7991
        %v8318 = vunpack.c.h.b16 %v7991
        %v8319 = vunpack.c.l.b16 %v7992
        %v8320 = vunpack.c.l.b16 %v7993
        %v8321 = vunpack.c.h.b16 %v7993
        %v8322 = vunpack.c.l.b16 %v7994
        %v8323 = vunpack.c.h.b16 %v7994
        %v8324 = vunpack.c.l.b16 %v7995
        %v8325 = vunpack.c.l.b16 %v7996
        %v8326 = vunpack.c.h.b16 %v7996
        %v8327 = vunpack.c.l.b16 %v7997
        %v8328 = vunpack.c.h.b16 %v7997
        %v8329 = vunpack.c.l.b16 %v7998
        %v8330 = vunpack.c.l.b16 %v7999
        %v8331 = vunpack.c.h.b16 %v7999
        %v8332 = vunpack.c.l.b16 %v8000
        %v8333 = vunpack.c.h.b16 %v8000
        %v8334 = vunpack.c.l.b16 %v8001
        %v8335 = vunpack.c.l.b16 %v8002
        %v8336 = vunpack.c.h.b16 %v8002
        %v8337 = vunpack.c.l.b16 %v8003
        %v8338 = vunpack.c.h.b16 %v8003
        %v8339 = vunpack.c.l.b16 %v8004
        %v8340 = vpack.c.b16 %v8185, %v8180
        %v8341 = vpack.c.b16 %v8186, %v8181
        %v8342 = vpack.c.b16 %v8187, %v8182
        %v8343 = vpack.c.b16 %v8188, %v8183
        %v8344 = vpack.c.b16 %v8189, %v8184
        %v8345 = vpack.c.b16 %v8195, %v8190
        %v8346 = vpack.c.b16 %v8196, %v8191
        %v8347 = vpack.c.b16 %v8197, %v8192
        %v8348 = vpack.c.b16 %v8198, %v8193
        %v8349 = vpack.c.b16 %v8199, %v8194
        %v8350 = vpack.c.b16 %v8205, %v8200
        %v8351 = vpack.c.b16 %v8206, %v8201
        %v8352 = vpack.c.b16 %v8207, %v8202
        %v8353 = vpack.c.b16 %v8208, %v8203
        %v8354 = vpack.c.b16 %v8209, %v8204
        %v8355 = vpack.c.b16 %v8215, %v8210
        %v8356 = vpack.c.b16 %v8216, %v8211
        %v8357 = vpack.c.b16 %v8217, %v8212
        %v8358 = vpack.c.b16 %v8218, %v8213
        %v8359 = vpack.c.b16 %v8219, %v8214
        %v8360 = vpack.c.b16 %v8225, %v8220
        %v8361 = vpack.c.b16 %v8226, %v8221
        %v8362 = vpack.c.b16 %v8227, %v8222
        %v8363 = vpack.c.b16 %v8228, %v8223
        %v8364 = vpack.c.b16 %v8229, %v8224
        %v8365 = vpack.c.b16 %v8235, %v8230
        %v8366 = vpack.c.b16 %v8236, %v8231
        %v8367 = vpack.c.b16 %v8237, %v8232
        %v8368 = vpack.c.b16 %v8238, %v8233
        %v8369 = vpack.c.b16 %v8239, %v8234
        %v8370 = vpack.c.b16 %v8245, %v8240
        %v8371 = vpack.c.b16 %v8246, %v8241
        %v8372 = vpack.c.b16 %v8247, %v8242
        %v8373 = vpack.c.b16 %v8248, %v8243
        %v8374 = vpack.c.b16 %v8249, %v8244
        %v8375 = vpack.c.b16 %v8255, %v8250
        %v8376 = vpack.c.b16 %v8256, %v8251
        %v8377 = vpack.c.b16 %v8257, %v8252
        %v8378 = vpack.c.b16 %v8258, %v8253
        %v8379 = vpack.c.b16 %v8259, %v8254
        %v8380 = vpack.c.b16 %v8265, %v8260
        %v8381 = vpack.c.b16 %v8266, %v8261
        %v8382 = vpack.c.b16 %v8267, %v8262
        %v8383 = vpack.c.b16 %v8268, %v8263
        %v8384 = vpack.c.b16 %v8269, %v8264
        %v8385 = vpack.c.b16 %v8275, %v8270
        %v8386 = vpack.c.b16 %v8276, %v8271
        %v8387 = vpack.c.b16 %v8277, %v8272
        %v8388 = vpack.c.b16 %v8278, %v8273
        %v8389 = vpack.c.b16 %v8279, %v8274
        %v8390 = vpack.c.b16 %v8285, %v8280
        %v8391 = vpack.c.b16 %v8286, %v8281
        %v8392 = vpack.c.b16 %v8287, %v8282
        %v8393 = vpack.c.b16 %v8288, %v8283
        %v8394 = vpack.c.b16 %v8289, %v8284
        %v8395 = vpack.c.b16 %v8295, %v8290
        %v8396 = vpack.c.b16 %v8296, %v8291
        %v8397 = vpack.c.b16 %v8297, %v8292
        %v8398 = vpack.c.b16 %v8298, %v8293
        %v8399 = vpack.c.b16 %v8299, %v8294
        %v8400 = vpack.c.b16 %v8305, %v8300
        %v8401 = vpack.c.b16 %v8306, %v8301
        %v8402 = vpack.c.b16 %v8307, %v8302
        %v8403 = vpack.c.b16 %v8308, %v8303
        %v8404 = vpack.c.b16 %v8309, %v8304
        %v8405 = vpack.c.b16 %v8315, %v8310
        %v8406 = vpack.c.b16 %v8316, %v8311
        %v8407 = vpack.c.b16 %v8317, %v8312
        %v8408 = vpack.c.b16 %v8318, %v8313
        %v8409 = vpack.c.b16 %v8319, %v8314
        %v8410 = vpack.c.b16 %v8325, %v8320
        %v8411 = vpack.c.b16 %v8326, %v8321
        %v8412 = vpack.c.b16 %v8327, %v8322
        %v8413 = vpack.c.b16 %v8328, %v8323
        %v8414 = vpack.c.b16 %v8329, %v8324
        %v8415 = vpack.c.b16 %v8335, %v8330
        %v8416 = vpack.c.b16 %v8336, %v8331
        %v8417 = vpack.c.b16 %v8337, %v8332
        %v8418 = vpack.c.b16 %v8338, %v8333
        %v8419 = vpack.c.b16 %v8339, %v8334
        %v8556 = vunpack.c.l.b16 %v8005
        %v8557 = vunpack.c.l.b16 %v8006
        %v8558 = vunpack.c.l.b16 %v8007
        %v8559 = vunpack.c.l.b16 %v8008
        %v8560 = vunpack.c.l.b16 %v8009
        %v8561 = vunpack.c.l.b16 %v8010
        %v8562 = vunpack.c.l.b16 %v8011
        %v8563 = vunpack.c.l.b16 %v8012
        %v8564 = vunpack.c.l.b16 %v8013
        %v8565 = vunpack.c.l.b16 %v8014
        %v8566 = vunpack.c.l.b16 %v8015
        %v8567 = vunpack.c.l.b16 %v8016
        %v8568 = vunpack.c.l.b16 %v8017
        %v8569 = vunpack.c.l.b16 %v8018
        %v8570 = vunpack.c.l.b16 %v8019
        %v8571 = vunpack.c.l.b16 %v8020
        %v8572 = vunpack.c.l.b16 %v8021
        %v8573 = vunpack.c.l.b16 %v8022
        %v8574 = vunpack.c.l.b16 %v8023
        %v8575 = vunpack.c.l.b16 %v8024
        %v8576 = vunpack.c.l.b16 %v8025
        %v8577 = vunpack.c.l.b16 %v8026
        %v8578 = vunpack.c.l.b16 %v8027
        %v8579 = vunpack.c.l.b16 %v8028
        %v8580 = vunpack.c.l.b16 %v8029
        %v8581 = vunpack.c.l.b16 %v8030
        %v8582 = vunpack.c.l.b16 %v8031
        %v8583 = vunpack.c.l.b16 %v8032
        %v8584 = vunpack.c.l.b16 %v8033
        %v8585 = vunpack.c.l.b16 %v8034
        %v8586 = vunpack.c.l.b16 %v8035
        %v8587 = vunpack.c.l.b16 %v8036
        %v8588 = vunpack.c.l.b16 %v8037
        %v8589 = vunpack.c.l.b16 %v8038
        %v8590 = vunpack.c.l.b16 %v8039
        %v8591 = vunpack.c.l.b16 %v8040
        %v8592 = vunpack.c.l.b16 %v8041
        %v8593 = vunpack.c.l.b16 %v8042
        %v8594 = vunpack.c.l.b16 %v8043
        %v8595 = vunpack.c.l.b16 %v8044
        %v8596 = vunpack.c.l.b16 %v8045
        %v8597 = vunpack.c.l.b16 %v8046
        %v8598 = vunpack.c.l.b16 %v8047
        %v8599 = vunpack.c.l.b16 %v8048
        %v8600 = vunpack.c.l.b16 %v8049
        %v8601 = vunpack.c.l.b16 %v8050
        %v8602 = vunpack.c.l.b16 %v8051
        %v8603 = vunpack.c.l.b16 %v8052
        %v8604 = vunpack.c.l.b16 %v8053
        %v8605 = vunpack.c.l.b16 %v8054
        %v8606 = vunpack.c.l.b16 %v8055
        %v8607 = vunpack.c.l.b16 %v8056
        %v8608 = vunpack.c.l.b16 %v8057
        %v8609 = vunpack.c.l.b16 %v8058
        %v8610 = vunpack.c.l.b16 %v8059
        %v8611 = vunpack.c.l.b16 %v8060
        %v8612 = vunpack.c.l.b16 %v8061
        %v8613 = vunpack.c.l.b16 %v8062
        %v8614 = vunpack.c.l.b16 %v8063
        %v8615 = vunpack.c.l.b16 %v8064
        %v8616 = vunpack.c.l.b16 %v8065
        %v8617 = vunpack.c.l.b16 %v8066
        %v8618 = vunpack.c.l.b16 %v8067
        %v8619 = vunpack.c.l.b16 %v8068
        %v8620 = vunpack.c.l.b16 %v8069
        %v8621 = vunpack.c.l.b16 %v8070
        %v8622 = vunpack.c.l.b16 %v8071
        %v8623 = vunpack.c.l.b16 %v8072
        %v8624 = vunpack.c.l.b16 %v8073
        %v8625 = vunpack.c.l.b16 %v8074
        %v8626 = vunpack.c.l.b16 %v8075
        %v8627 = vunpack.c.l.b16 %v8076
        %v8628 = vpack.c.b16 %v8557, %v8556
        %v8629 = vpack.c.b16 %v8559, %v8558
        %v8630 = vpack.c.b16 %v8561, %v8560
        %v8631 = vpack.c.b16 %v8563, %v8562
        %v8632 = vpack.c.b16 %v8565, %v8564
        %v8633 = vpack.c.b16 %v8567, %v8566
        %v8634 = vpack.c.b16 %v8569, %v8568
        %v8635 = vpack.c.b16 %v8571, %v8570
        %v8636 = vpack.c.b16 %v8573, %v8572
        %v8637 = vpack.c.b16 %v8575, %v8574
        %v8638 = vpack.c.b16 %v8577, %v8576
        %v8639 = vpack.c.b16 %v8579, %v8578
        %v8640 = vpack.c.b16 %v8581, %v8580
        %v8641 = vpack.c.b16 %v8583, %v8582
        %v8642 = vpack.c.b16 %v8585, %v8584
        %v8643 = vpack.c.b16 %v8587, %v8586
        %v8644 = vpack.c.b16 %v8589, %v8588
        %v8645 = vpack.c.b16 %v8591, %v8590
        %v8646 = vpack.c.b16 %v8593, %v8592
        %v8647 = vpack.c.b16 %v8595, %v8594
        %v8648 = vpack.c.b16 %v8597, %v8596
        %v8649 = vpack.c.b16 %v8599, %v8598
        %v8650 = vpack.c.b16 %v8601, %v8600
        %v8651 = vpack.c.b16 %v8603, %v8602
        %v8652 = vpack.c.b16 %v8605, %v8604
        %v8653 = vpack.c.b16 %v8607, %v8606
        %v8654 = vpack.c.b16 %v8609, %v8608
        %v8655 = vpack.c.b16 %v8611, %v8610
        %v8656 = vpack.c.b16 %v8613, %v8612
        %v8657 = vpack.c.b16 %v8615, %v8614
        %v8658 = vpack.c.b16 %v8617, %v8616
        %v8659 = vpack.c.b16 %v8619, %v8618
        %v8660 = vpack.c.b16 %v8621, %v8620
        %v8661 = vpack.c.b16 %v8623, %v8622
        %v8662 = vpack.c.b16 %v8625, %v8624
        %v8663 = vpack.c.b16 %v8627, %v8626
        %vm8700 = vcmask 523264
        %v8702 = vsel %vm8700, %v8344, 0
        %v8705 = vsel %vm8700, %v8349, 0
        %v8708 = vsel %vm8700, %v8354, 0
        %v8711 = vsel %vm8700, %v8359, 0
        %v8714 = vsel %vm8700, %v8364, 0
        %v8717 = vsel %vm8700, %v8369, 0
        %v8720 = vsel %vm8700, %v8374, 0
        %v8723 = vsel %vm8700, %v8379, 0
        %v8726 = vsel %vm8700, %v8384, 0
        %v8729 = vsel %vm8700, %v8389, 0
        %v8732 = vsel %vm8700, %v8394, 0
        %v8735 = vsel %vm8700, %v8399, 0
        %v8738 = vsel %vm8700, %v8404, 0
        %v8741 = vsel %vm8700, %v8409, 0
        %v8744 = vsel %vm8700, %v8414, 0
        %v8747 = vsel %vm8700, %v8419, 0
        %8749 = vmatprep.subr.bf16.mxu0 0
        %8750 = vmatpush1.bf16.msra.mxu0 %v8635
        %8751 = vmatprep.subr.bf16.mxu0 0
        %8752 = vmatpush1.bf16.msra.mxu0 %v8634
        %8753 = vmatprep.subr.bf16.mxu0 0
        %8754 = vmatpush1.bf16.msra.mxu0 %v8633
        %8755 = vmatprep.subr.bf16.mxu0 0
        %8756 = vmatpush1.bf16.msra.mxu0 %v8632
        %8757 = vmatprep.subr.bf16.mxu0 0
        %8758 = vmatpush1.bf16.msra.mxu0 %v8631
        %8759 = vmatprep.subr.bf16.mxu0 0
        %8760 = vmatpush1.bf16.msra.mxu0 %v8630
        %8761 = vmatprep.subr.bf16.mxu0 0
        %8762 = vmatpush1.bf16.msra.mxu0 %v8629
        %8763 = vmatprep.subr.bf16.mxu0 0
        %8764 = vmatpush1.bf16.msra.mxu0 %v8628
        %8765 = vmatprep.subr.bf16.mxu0 0
        %8766 = vmatpush2.bf16.msra.mxu0 %v8643
        %8767 = vmatprep.subr.bf16.mxu0 0
        %8768 = vmatpush2.bf16.msra.mxu0 %v8642
        %8769 = vmatprep.subr.bf16.mxu0 0
        %8770 = vmatpush2.bf16.msra.mxu0 %v8641
        %8771 = vmatprep.subr.bf16.mxu0 0
        %8772 = vmatpush2.bf16.msra.mxu0 %v8640
        %8773 = vmatprep.subr.bf16.mxu0 0
        %8774 = vmatpush2.bf16.msra.mxu0 %v8639
        %8775 = vmatprep.subr.bf16.mxu0 0
        %8776 = vmatpush2.bf16.msra.mxu0 %v8638
        %8777 = vmatprep.subr.bf16.mxu0 0
        %8778 = vmatpush2.bf16.msra.mxu0 %v8637
        %8779 = vmatprep.subr.bf16.mxu0 0
        %8780 = vmatpush2.bf16.msra.mxu0 %v8636
        %8781 = vmatprep.mubr.bf16.mxu0 %v8341
        %8782 = vmatmul.mubr.bf16.gmra.mxu0 %v8340
        %v8783 = vpop.f32.mrf.mxu0
        %v8784 = vadd.f32 %v8082, %v8783
        %v8785 = vpop.f32.mrf.mxu0
        %v8786 = vpop.f32.mrf.mxu0
        %v8787 = vadd.f32 %v8082, %v8786
        %v8788 = vpop.f32.mrf.mxu0
        %8789 = vmatprep.mubr.bf16.mxu0 %v8346
        %8790 = vmatmul.mubr.bf16.gmra.mxu0 %v8345
        %v8791 = vpop.f32.mrf.mxu0
        %v8792 = vadd.f32 %v8082, %v8791
        %v8793 = vpop.f32.mrf.mxu0
        %v8794 = vpop.f32.mrf.mxu0
        %v8795 = vadd.f32 %v8082, %v8794
        %v8796 = vpop.f32.mrf.mxu0
        %8797 = vmatprep.mubr.bf16.mxu0 %v8351
        %8798 = vmatmul.mubr.bf16.gmra.mxu0 %v8350
        %v8799 = vpop.f32.mrf.mxu0
        %v8800 = vadd.f32 %v8082, %v8799
        %v8801 = vpop.f32.mrf.mxu0
        %v8802 = vpop.f32.mrf.mxu0
        %v8803 = vadd.f32 %v8082, %v8802
        %v8804 = vpop.f32.mrf.mxu0
        %8805 = vmatprep.mubr.bf16.mxu0 %v8356
        %8806 = vmatmul.mubr.bf16.gmra.mxu0 %v8355
        %v8807 = vpop.f32.mrf.mxu0
        %v8808 = vadd.f32 %v8082, %v8807
        %v8809 = vpop.f32.mrf.mxu0
        %v8810 = vpop.f32.mrf.mxu0
        %v8811 = vadd.f32 %v8082, %v8810
        %v8812 = vpop.f32.mrf.mxu0
        %8813 = vmatprep.mubr.bf16.mxu0 %v8361
        %8814 = vmatmul.mubr.bf16.gmra.mxu0 %v8360
        %v8815 = vpop.f32.mrf.mxu0
        %v8816 = vadd.f32 %v8082, %v8815
        %v8817 = vpop.f32.mrf.mxu0
        %v8818 = vpop.f32.mrf.mxu0
        %v8819 = vadd.f32 %v8082, %v8818
        %v8820 = vpop.f32.mrf.mxu0
        %8821 = vmatprep.mubr.bf16.mxu0 %v8366
        %8822 = vmatmul.mubr.bf16.gmra.mxu0 %v8365
        %v8823 = vpop.f32.mrf.mxu0
        %v8824 = vadd.f32 %v8082, %v8823
        %v8825 = vpop.f32.mrf.mxu0
        %v8826 = vpop.f32.mrf.mxu0
        %v8827 = vadd.f32 %v8082, %v8826
        %v8828 = vpop.f32.mrf.mxu0
        %8829 = vmatprep.mubr.bf16.mxu0 %v8371
        %8830 = vmatmul.mubr.bf16.gmra.mxu0 %v8370
        %v8831 = vpop.f32.mrf.mxu0
        %v8832 = vadd.f32 %v8082, %v8831
        %v8833 = vpop.f32.mrf.mxu0
        %v8834 = vpop.f32.mrf.mxu0
        %v8835 = vadd.f32 %v8082, %v8834
        %v8836 = vpop.f32.mrf.mxu0
        %8837 = vmatprep.mubr.bf16.mxu0 %v8376
        %8838 = vmatmul.mubr.bf16.gmra.mxu0 %v8375
        %v8839 = vpop.f32.mrf.mxu0
        %v8840 = vadd.f32 %v8082, %v8839
        %v8841 = vpop.f32.mrf.mxu0
        %v8842 = vpop.f32.mrf.mxu0
        %v8843 = vadd.f32 %v8082, %v8842
        %v8844 = vpop.f32.mrf.mxu0
        %8845 = vmatprep.mubr.bf16.mxu0 %v8381
        %8846 = vmatmul.mubr.bf16.gmra.mxu0 %v8380
        %v8847 = vpop.f32.mrf.mxu0
        %v8848 = vadd.f32 %v8082, %v8847
        %v8849 = vpop.f32.mrf.mxu0
        %v8850 = vpop.f32.mrf.mxu0
        %v8851 = vadd.f32 %v8082, %v8850
        %v8852 = vpop.f32.mrf.mxu0
        %8853 = vmatprep.mubr.bf16.mxu0 %v8386
        %8854 = vmatmul.mubr.bf16.gmra.mxu0 %v8385
        %v8855 = vpop.f32.mrf.mxu0
        %v8856 = vadd.f32 %v8082, %v8855
        %v8857 = vpop.f32.mrf.mxu0
        %v8858 = vpop.f32.mrf.mxu0
        %v8859 = vadd.f32 %v8082, %v8858
        %v8860 = vpop.f32.mrf.mxu0
        %8861 = vmatprep.mubr.bf16.mxu0 %v8391
        %8862 = vmatmul.mubr.bf16.gmra.mxu0 %v8390
        %v8863 = vpop.f32.mrf.mxu0
        %v8864 = vadd.f32 %v8082, %v8863
        %v8865 = vpop.f32.mrf.mxu0
        %v8866 = vpop.f32.mrf.mxu0
        %v8867 = vadd.f32 %v8082, %v8866
        %v8868 = vpop.f32.mrf.mxu0
        %8869 = vmatprep.mubr.bf16.mxu0 %v8396
        %8870 = vmatmul.mubr.bf16.gmra.mxu0 %v8395
        %v8871 = vpop.f32.mrf.mxu0
        %v8872 = vadd.f32 %v8082, %v8871
        %v8873 = vpop.f32.mrf.mxu0
        %v8874 = vpop.f32.mrf.mxu0
        %v8875 = vadd.f32 %v8082, %v8874
        %v8876 = vpop.f32.mrf.mxu0
        %8877 = vmatprep.mubr.bf16.mxu0 %v8401
        %8878 = vmatmul.mubr.bf16.gmra.mxu0 %v8400
        %v8879 = vpop.f32.mrf.mxu0
        %v8880 = vadd.f32 %v8082, %v8879
        %v8881 = vpop.f32.mrf.mxu0
        %v8882 = vpop.f32.mrf.mxu0
        %v8883 = vadd.f32 %v8082, %v8882
        %v8884 = vpop.f32.mrf.mxu0
        %8885 = vmatprep.mubr.bf16.mxu0 %v8406
        %8886 = vmatmul.mubr.bf16.gmra.mxu0 %v8405
        %v8887 = vpop.f32.mrf.mxu0
        %v8888 = vadd.f32 %v8082, %v8887
        %v8889 = vpop.f32.mrf.mxu0
        %v8890 = vpop.f32.mrf.mxu0
        %v8891 = vadd.f32 %v8082, %v8890
        %v8892 = vpop.f32.mrf.mxu0
        %8893 = vmatprep.mubr.bf16.mxu0 %v8411
        %8894 = vmatmul.mubr.bf16.gmra.mxu0 %v8410
        %v8895 = vpop.f32.mrf.mxu0
        %v8896 = vadd.f32 %v8082, %v8895
        %v8897 = vpop.f32.mrf.mxu0
        %v8898 = vpop.f32.mrf.mxu0
        %v8899 = vadd.f32 %v8082, %v8898
        %v8900 = vpop.f32.mrf.mxu0
        %8901 = vmatprep.mubr.bf16.mxu0 %v8416
        %8902 = vmatmul.mubr.bf16.gmra.mxu0 %v8415
        %v8903 = vpop.f32.mrf.mxu0
        %v8904 = vadd.f32 %v8082, %v8903
        %v8905 = vpop.f32.mrf.mxu0
        %v8906 = vpop.f32.mrf.mxu0
        %v8907 = vadd.f32 %v8082, %v8906
        %v8908 = vpop.f32.mrf.mxu0
        %8909 = vdwg.mxu0
        %8910 = vmatprep.subr.bf16.mxu0 0
        %8911 = vmatpush1.bf16.msra.mxu0 %v8651
        %8912 = vmatprep.subr.bf16.mxu0 0
        %8913 = vmatpush1.bf16.msra.mxu0 %v8650
        %8914 = vmatprep.subr.bf16.mxu0 0
        %8915 = vmatpush1.bf16.msra.mxu0 %v8649
        %8916 = vmatprep.subr.bf16.mxu0 0
        %8917 = vmatpush1.bf16.msra.mxu0 %v8648
        %8918 = vmatprep.subr.bf16.mxu0 0
        %8919 = vmatpush1.bf16.msra.mxu0 %v8647
        %8920 = vmatprep.subr.bf16.mxu0 0
        %8921 = vmatpush1.bf16.msra.mxu0 %v8646
        %8922 = vmatprep.subr.bf16.mxu0 0
        %8923 = vmatpush1.bf16.msra.mxu0 %v8645
        %8924 = vmatprep.subr.bf16.mxu0 0
        %8925 = vmatpush1.bf16.msra.mxu0 %v8644
        %8926 = vmatprep.subr.bf16.mxu0 0
        %8927 = vmatpush2.bf16.msra.mxu0 %v8659
        %8928 = vmatprep.subr.bf16.mxu0 0
        %8929 = vmatpush2.bf16.msra.mxu0 %v8658
        %8930 = vmatprep.subr.bf16.mxu0 0
        %8931 = vmatpush2.bf16.msra.mxu0 %v8657
        %8932 = vmatprep.subr.bf16.mxu0 0
        %8933 = vmatpush2.bf16.msra.mxu0 %v8656
        %8934 = vmatprep.subr.bf16.mxu0 0
        %8935 = vmatpush2.bf16.msra.mxu0 %v8655
        %8936 = vmatprep.subr.bf16.mxu0 0
        %8937 = vmatpush2.bf16.msra.mxu0 %v8654
        %8938 = vmatprep.subr.bf16.mxu0 0
        %8939 = vmatpush2.bf16.msra.mxu0 %v8653
        %8940 = vmatprep.subr.bf16.mxu0 0
        %8941 = vmatpush2.bf16.msra.mxu0 %v8652
        %8942 = vmatprep.mubr.bf16.mxu0 %v8343
        %8943 = vmatmul.mubr.bf16.gmra.mxu0 %v8342
        %v8944 = vpop.f32.mrf.mxu0
        %v8945 = vadd.f32 %v8784, %v8944
        %v8946 = vpop.f32.mrf.mxu0
        %v8947 = vpop.f32.mrf.mxu0
        %v8948 = vadd.f32 %v8787, %v8947
        %v8949 = vpop.f32.mrf.mxu0
        %8950 = vmatprep.mubr.bf16.mxu0 %v8348
        %8951 = vmatmul.mubr.bf16.gmra.mxu0 %v8347
        %v8952 = vpop.f32.mrf.mxu0
        %v8953 = vadd.f32 %v8792, %v8952
        %v8954 = vpop.f32.mrf.mxu0
        %v8955 = vpop.f32.mrf.mxu0
        %v8956 = vadd.f32 %v8795, %v8955
        %v8957 = vpop.f32.mrf.mxu0
        %8958 = vmatprep.mubr.bf16.mxu0 %v8353
        %8959 = vmatmul.mubr.bf16.gmra.mxu0 %v8352
        %v8960 = vpop.f32.mrf.mxu0
        %v8961 = vadd.f32 %v8800, %v8960
        %v8962 = vpop.f32.mrf.mxu0
        %v8963 = vpop.f32.mrf.mxu0
        %v8964 = vadd.f32 %v8803, %v8963
        %v8965 = vpop.f32.mrf.mxu0
        %8966 = vmatprep.mubr.bf16.mxu0 %v8358
        %8967 = vmatmul.mubr.bf16.gmra.mxu0 %v8357
        %v8968 = vpop.f32.mrf.mxu0
        %v8969 = vadd.f32 %v8808, %v8968
        %v8970 = vpop.f32.mrf.mxu0
        %v8971 = vpop.f32.mrf.mxu0
        %v8972 = vadd.f32 %v8811, %v8971
        %v8973 = vpop.f32.mrf.mxu0
        %8974 = vmatprep.mubr.bf16.mxu0 %v8363
        %8975 = vmatmul.mubr.bf16.gmra.mxu0 %v8362
        %v8976 = vpop.f32.mrf.mxu0
        %v8977 = vadd.f32 %v8816, %v8976
        %v8978 = vpop.f32.mrf.mxu0
        %v8979 = vpop.f32.mrf.mxu0
        %v8980 = vadd.f32 %v8819, %v8979
        %v8981 = vpop.f32.mrf.mxu0
        %8982 = vmatprep.mubr.bf16.mxu0 %v8368
        %8983 = vmatmul.mubr.bf16.gmra.mxu0 %v8367
        %v8984 = vpop.f32.mrf.mxu0
        %v8985 = vadd.f32 %v8824, %v8984
        %v8986 = vpop.f32.mrf.mxu0
        %v8987 = vpop.f32.mrf.mxu0
        %v8988 = vadd.f32 %v8827, %v8987
        %v8989 = vpop.f32.mrf.mxu0
        %8990 = vmatprep.mubr.bf16.mxu0 %v8373
        %8991 = vmatmul.mubr.bf16.gmra.mxu0 %v8372
        %v8992 = vpop.f32.mrf.mxu0
        %v8993 = vadd.f32 %v8832, %v8992
        %v8994 = vpop.f32.mrf.mxu0
        %v8995 = vpop.f32.mrf.mxu0
        %v8996 = vadd.f32 %v8835, %v8995
        %v8997 = vpop.f32.mrf.mxu0
        %8998 = vmatprep.mubr.bf16.mxu0 %v8378
        %8999 = vmatmul.mubr.bf16.gmra.mxu0 %v8377
        %v9000 = vpop.f32.mrf.mxu0
        %v9001 = vadd.f32 %v8840, %v9000
        %v9002 = vpop.f32.mrf.mxu0
        %v9003 = vpop.f32.mrf.mxu0
        %v9004 = vadd.f32 %v8843, %v9003
        %v9005 = vpop.f32.mrf.mxu0
        %9006 = vmatprep.mubr.bf16.mxu0 %v8383
        %9007 = vmatmul.mubr.bf16.gmra.mxu0 %v8382
        %v9008 = vpop.f32.mrf.mxu0
        %v9009 = vadd.f32 %v8848, %v9008
        %v9010 = vpop.f32.mrf.mxu0
        %v9011 = vpop.f32.mrf.mxu0
        %v9012 = vadd.f32 %v8851, %v9011
        %v9013 = vpop.f32.mrf.mxu0
        %9014 = vmatprep.mubr.bf16.mxu0 %v8388
        %9015 = vmatmul.mubr.bf16.gmra.mxu0 %v8387
        %v9016 = vpop.f32.mrf.mxu0
        %v9017 = vadd.f32 %v8856, %v9016
        %v9018 = vpop.f32.mrf.mxu0
        %v9019 = vpop.f32.mrf.mxu0
        %v9020 = vadd.f32 %v8859, %v9019
        %v9021 = vpop.f32.mrf.mxu0
        %9022 = vmatprep.mubr.bf16.mxu0 %v8393
        %9023 = vmatmul.mubr.bf16.gmra.mxu0 %v8392
        %v9024 = vpop.f32.mrf.mxu0
        %v9025 = vadd.f32 %v8864, %v9024
        %v9026 = vpop.f32.mrf.mxu0
        %v9027 = vpop.f32.mrf.mxu0
        %v9028 = vadd.f32 %v8867, %v9027
        %v9029 = vpop.f32.mrf.mxu0
        %9030 = vmatprep.mubr.bf16.mxu0 %v8398
        %9031 = vmatmul.mubr.bf16.gmra.mxu0 %v8397
        %v9032 = vpop.f32.mrf.mxu0
        %v9033 = vadd.f32 %v8872, %v9032
        %v9034 = vpop.f32.mrf.mxu0
        %v9035 = vpop.f32.mrf.mxu0
        %v9036 = vadd.f32 %v8875, %v9035
        %v9037 = vpop.f32.mrf.mxu0
        %9038 = vmatprep.mubr.bf16.mxu0 %v8403
        %9039 = vmatmul.mubr.bf16.gmra.mxu0 %v8402
        %v9040 = vpop.f32.mrf.mxu0
        %v9041 = vadd.f32 %v8880, %v9040
        %v9042 = vpop.f32.mrf.mxu0
        %v9043 = vpop.f32.mrf.mxu0
        %v9044 = vadd.f32 %v8883, %v9043
        %v9045 = vpop.f32.mrf.mxu0
        %9046 = vmatprep.mubr.bf16.mxu0 %v8408
        %9047 = vmatmul.mubr.bf16.gmra.mxu0 %v8407
        %v9048 = vpop.f32.mrf.mxu0
        %v9049 = vadd.f32 %v8888, %v9048
        %v9050 = vpop.f32.mrf.mxu0
        %v9051 = vpop.f32.mrf.mxu0
        %v9052 = vadd.f32 %v8891, %v9051
        %v9053 = vpop.f32.mrf.mxu0
        %9054 = vmatprep.mubr.bf16.mxu0 %v8413
        %9055 = vmatmul.mubr.bf16.gmra.mxu0 %v8412
        %v9056 = vpop.f32.mrf.mxu0
        %v9057 = vadd.f32 %v8896, %v9056
        %v9058 = vpop.f32.mrf.mxu0
        %v9059 = vpop.f32.mrf.mxu0
        %v9060 = vadd.f32 %v8899, %v9059
        %v9061 = vpop.f32.mrf.mxu0
        %9062 = vmatprep.mubr.bf16.mxu0 %v8418
        %9063 = vmatmul.mubr.bf16.gmra.mxu0 %v8417
        %v9064 = vpop.f32.mrf.mxu0
        %v9065 = vadd.f32 %v8904, %v9064
        %v9066 = vpop.f32.mrf.mxu0
        %v9067 = vpop.f32.mrf.mxu0
        %v9068 = vadd.f32 %v8907, %v9067
        %v9069 = vpop.f32.mrf.mxu0
        %9070 = vdwg.mxu0
        %9071 = vmatprep.subr.bf16.mxu0 0
        %9072 = vmatpush1.bf16.msra.mxu0 0
        %9073 = vmatprep.subr.bf16.mxu0 0
        %9074 = vmatpush1.bf16.msra.mxu0 0
        %9075 = vmatprep.subr.bf16.mxu0 0
        %9076 = vmatpush1.bf16.msra.mxu0 0
        %9077 = vmatprep.subr.bf16.mxu0 0
        %9078 = vmatpush1.bf16.msra.mxu0 0
        %9079 = vmatprep.subr.bf16.mxu0 0
        %9080 = vmatpush1.bf16.msra.mxu0 %v8663
        %9081 = vmatprep.subr.bf16.mxu0 0
        %9082 = vmatpush1.bf16.msra.mxu0 %v8662
        %9083 = vmatprep.subr.bf16.mxu0 0
        %9084 = vmatpush1.bf16.msra.mxu0 %v8661
        %9085 = vmatprep.subr.bf16.mxu0 0
        %9086 = vmatpush1.bf16.msra.mxu0 %v8660
        %9087 = vmatprep.subr.bf16.mxu0 0
        %9088 = vmatpush2.bf16.msra.mxu0 0
        %9089 = vmatprep.subr.bf16.mxu0 0
        %9090 = vmatpush2.bf16.msra.mxu0 0
        %9091 = vmatprep.subr.bf16.mxu0 0
        %9092 = vmatpush2.bf16.msra.mxu0 0
        %9093 = vmatprep.subr.bf16.mxu0 0
        %9094 = vmatpush2.bf16.msra.mxu0 0
        %9095 = vmatprep.subr.bf16.mxu0 0
        %9096 = vmatpush2.bf16.msra.mxu0 0
        %9097 = vmatprep.subr.bf16.mxu0 0
        %9098 = vmatpush2.bf16.msra.mxu0 0
        %9099 = vmatprep.subr.bf16.mxu0 0
        %9100 = vmatpush2.bf16.msra.mxu0 0
        %9101 = vmatprep.subr.bf16.mxu0 0
        %9102 = vmatpush2.bf16.msra.mxu0 0
        %9103 = vmatprep.mubr.bf16.mxu0 0
        %9104 = vmatmul.mubr.bf16.gmra.mxu0 %v8702
        %v9105 = vpop.f32.mrf.mxu0
        %v9106 = vadd.f32 %v8945, %v9105
        %v9107 = vpop.f32.mrf.mxu0
        %v9108 = vpop.f32.mrf.mxu0
        %v9109 = vadd.f32 %v8948, %v9108
        %v9110 = vpop.f32.mrf.mxu0
        %9111 = vmatprep.mubr.bf16.mxu0 0
        %9112 = vmatmul.mubr.bf16.gmra.mxu0 %v8705
        %v9113 = vpop.f32.mrf.mxu0
        %v9114 = vadd.f32 %v8953, %v9113
        %v9115 = vpop.f32.mrf.mxu0
        %v9116 = vpop.f32.mrf.mxu0
        %v9117 = vadd.f32 %v8956, %v9116
        %v9118 = vpop.f32.mrf.mxu0
        %9119 = vmatprep.mubr.bf16.mxu0 0
        %9120 = vmatmul.mubr.bf16.gmra.mxu0 %v8708
        %v9121 = vpop.f32.mrf.mxu0
        %v9122 = vadd.f32 %v8961, %v9121
        %v9123 = vpop.f32.mrf.mxu0
        %v9124 = vpop.f32.mrf.mxu0
        %v9125 = vadd.f32 %v8964, %v9124
        %v9126 = vpop.f32.mrf.mxu0
        %9127 = vmatprep.mubr.bf16.mxu0 0
        %9128 = vmatmul.mubr.bf16.gmra.mxu0 %v8711
        %v9129 = vpop.f32.mrf.mxu0
        %v9130 = vadd.f32 %v8969, %v9129
        %v9131 = vpop.f32.mrf.mxu0
        %v9132 = vpop.f32.mrf.mxu0
        %v9133 = vadd.f32 %v8972, %v9132
        %v9134 = vpop.f32.mrf.mxu0
        %9135 = vmatprep.mubr.bf16.mxu0 0
        %9136 = vmatmul.mubr.bf16.gmra.mxu0 %v8714
        %v9137 = vpop.f32.mrf.mxu0
        %v9138 = vadd.f32 %v8977, %v9137
        %v9139 = vpop.f32.mrf.mxu0
        %v9140 = vpop.f32.mrf.mxu0
        %v9141 = vadd.f32 %v8980, %v9140
        %v9142 = vpop.f32.mrf.mxu0
        %9143 = vmatprep.mubr.bf16.mxu0 0
        %9144 = vmatmul.mubr.bf16.gmra.mxu0 %v8717
        %v9145 = vpop.f32.mrf.mxu0
        %v9146 = vadd.f32 %v8985, %v9145
        %v9147 = vpop.f32.mrf.mxu0
        %v9148 = vpop.f32.mrf.mxu0
        %v9149 = vadd.f32 %v8988, %v9148
        %v9150 = vpop.f32.mrf.mxu0
        %9151 = vmatprep.mubr.bf16.mxu0 0
        %9152 = vmatmul.mubr.bf16.gmra.mxu0 %v8720
        %v9153 = vpop.f32.mrf.mxu0
        %v9154 = vadd.f32 %v8993, %v9153
        %v9155 = vpop.f32.mrf.mxu0
        %v9156 = vpop.f32.mrf.mxu0
        %v9157 = vadd.f32 %v8996, %v9156
        %v9158 = vpop.f32.mrf.mxu0
        %9159 = vmatprep.mubr.bf16.mxu0 0
        %9160 = vmatmul.mubr.bf16.gmra.mxu0 %v8723
        %v9161 = vpop.f32.mrf.mxu0
        %v9162 = vadd.f32 %v9001, %v9161
        %v9163 = vpop.f32.mrf.mxu0
        %v9164 = vpop.f32.mrf.mxu0
        %v9165 = vadd.f32 %v9004, %v9164
        %v9166 = vpop.f32.mrf.mxu0
        %9167 = vmatprep.mubr.bf16.mxu0 0
        %9168 = vmatmul.mubr.bf16.gmra.mxu0 %v8726
        %v9169 = vpop.f32.mrf.mxu0
        %v9170 = vadd.f32 %v9009, %v9169
        %v9171 = vpop.f32.mrf.mxu0
        %v9172 = vpop.f32.mrf.mxu0
        %v9173 = vadd.f32 %v9012, %v9172
        %v9174 = vpop.f32.mrf.mxu0
        %9175 = vmatprep.mubr.bf16.mxu0 0
        %9176 = vmatmul.mubr.bf16.gmra.mxu0 %v8729
        %v9177 = vpop.f32.mrf.mxu0
        %v9178 = vadd.f32 %v9017, %v9177
        %v9179 = vpop.f32.mrf.mxu0
        %v9180 = vpop.f32.mrf.mxu0
        %v9181 = vadd.f32 %v9020, %v9180
        %v9182 = vpop.f32.mrf.mxu0
        %9183 = vmatprep.mubr.bf16.mxu0 0
        %9184 = vmatmul.mubr.bf16.gmra.mxu0 %v8732
        %v9185 = vpop.f32.mrf.mxu0
        %v9186 = vadd.f32 %v9025, %v9185
        %v9187 = vpop.f32.mrf.mxu0
        %v9188 = vpop.f32.mrf.mxu0
        %v9189 = vadd.f32 %v9028, %v9188
        %v9190 = vpop.f32.mrf.mxu0
        %9191 = vmatprep.mubr.bf16.mxu0 0
        %9192 = vmatmul.mubr.bf16.gmra.mxu0 %v8735
        %v9193 = vpop.f32.mrf.mxu0
        %v9194 = vadd.f32 %v9033, %v9193
        %v9195 = vpop.f32.mrf.mxu0
        %v9196 = vpop.f32.mrf.mxu0
        %v9197 = vadd.f32 %v9036, %v9196
        %v9198 = vpop.f32.mrf.mxu0
        %9199 = vmatprep.mubr.bf16.mxu0 0
        %9200 = vmatmul.mubr.bf16.gmra.mxu0 %v8738
        %v9201 = vpop.f32.mrf.mxu0
        %v9202 = vadd.f32 %v9041, %v9201
        %v9203 = vpop.f32.mrf.mxu0
        %v9204 = vpop.f32.mrf.mxu0
        %v9205 = vadd.f32 %v9044, %v9204
        %v9206 = vpop.f32.mrf.mxu0
        %9207 = vmatprep.mubr.bf16.mxu0 0
        %9208 = vmatmul.mubr.bf16.gmra.mxu0 %v8741
        %v9209 = vpop.f32.mrf.mxu0
        %v9210 = vadd.f32 %v9049, %v9209
        %v9211 = vpop.f32.mrf.mxu0
        %v9212 = vpop.f32.mrf.mxu0
        %v9213 = vadd.f32 %v9052, %v9212
        %v9214 = vpop.f32.mrf.mxu0
        %9215 = vmatprep.mubr.bf16.mxu0 0
        %9216 = vmatmul.mubr.bf16.gmra.mxu0 %v8744
        %v9217 = vpop.f32.mrf.mxu0
        %v9218 = vadd.f32 %v9057, %v9217
        %v9219 = vpop.f32.mrf.mxu0
        %v9220 = vpop.f32.mrf.mxu0
        %v9221 = vadd.f32 %v9060, %v9220
        %v9222 = vpop.f32.mrf.mxu0
        %9223 = vmatprep.mubr.bf16.mxu0 0
        %9224 = vmatmul.mubr.bf16.gmra.mxu0 %v8747
        %v9225 = vpop.f32.mrf.mxu0
        %v9226 = vadd.f32 %v9065, %v9225
        %v9227 = vpop.f32.mrf.mxu0
        %v9228 = vpop.f32.mrf.mxu0
        %v9229 = vadd.f32 %v9068, %v9228
        %v9230 = vpop.f32.mrf.mxu0
        %9231 = vdwg.mxu0
        %v9232 = vsub.f32 0.0, %v9106
        %v9233 = vsub.f32 0.0, %v9109
        %v9234 = vsub.f32 0.0, %v9114
        %v9235 = vsub.f32 0.0, %v9117
        %v9236 = vsub.f32 0.0, %v9122
        %v9237 = vsub.f32 0.0, %v9125
        %v9238 = vsub.f32 0.0, %v9130
        %v9239 = vsub.f32 0.0, %v9133
        %v9240 = vsub.f32 0.0, %v9138
        %v9241 = vsub.f32 0.0, %v9141
        %v9242 = vsub.f32 0.0, %v9146
        %v9243 = vsub.f32 0.0, %v9149
        %v9244 = vsub.f32 0.0, %v9154
        %v9245 = vsub.f32 0.0, %v9157
        %v9246 = vsub.f32 0.0, %v9162
        %v9247 = vsub.f32 0.0, %v9165
        %v9248 = vsub.f32 0.0, %v9170
        %v9249 = vsub.f32 0.0, %v9173
        %v9250 = vsub.f32 0.0, %v9178
        %v9251 = vsub.f32 0.0, %v9181
        %v9252 = vsub.f32 0.0, %v9186
        %v9253 = vsub.f32 0.0, %v9189
        %v9254 = vsub.f32 0.0, %v9194
        %v9255 = vsub.f32 0.0, %v9197
        %v9256 = vsub.f32 0.0, %v9202
        %v9257 = vsub.f32 0.0, %v9205
        %v9258 = vsub.f32 0.0, %v9210
        %v9259 = vsub.f32 0.0, %v9213
        %v9260 = vsub.f32 0.0, %v9218
        %v9261 = vsub.f32 0.0, %v9221
        %v9262 = vsub.f32 0.0, %v9226
        %v9263 = vsub.f32 0.0, %v9229
        %v9264 = vmul.f32 %v9232, 1.442695
        %v9265 = vpow.pop %v9264
        %v9266 = vmul.f32 %v9233, 1.442695
        %v9267 = vpow.pop %v9266
        %v9268 = vmul.f32 %v9234, 1.442695
        %v9269 = vpow.pop %v9268
        %v9270 = vmul.f32 %v9235, 1.442695
        %v9271 = vpow.pop %v9270
        %v9272 = vmul.f32 %v9236, 1.442695
        %v9273 = vpow.pop %v9272
        %v9274 = vmul.f32 %v9237, 1.442695
        %v9275 = vpow.pop %v9274
        %v9276 = vmul.f32 %v9238, 1.442695
        %v9277 = vpow.pop %v9276
        %v9278 = vmul.f32 %v9239, 1.442695
        %v9279 = vpow.pop %v9278
        %v9280 = vmul.f32 %v9240, 1.442695
        %v9281 = vpow.pop %v9280
        %v9282 = vmul.f32 %v9241, 1.442695
        %v9283 = vpow.pop %v9282
        %v9284 = vmul.f32 %v9242, 1.442695
        %v9285 = vpow.pop %v9284
        %v9286 = vmul.f32 %v9243, 1.442695
        %v9287 = vpow.pop %v9286
        %v9288 = vmul.f32 %v9244, 1.442695
        %v9289 = vpow.pop %v9288
        %v9290 = vmul.f32 %v9245, 1.442695
        %v9291 = vpow.pop %v9290
        %v9292 = vmul.f32 %v9246, 1.442695
        %v9293 = vpow.pop %v9292
        %v9294 = vmul.f32 %v9247, 1.442695
        %v9295 = vpow.pop %v9294
        %v9296 = vmul.f32 %v9248, 1.442695
        %v9297 = vpow.pop %v9296
        %v9298 = vmul.f32 %v9249, 1.442695
        %v9299 = vpow.pop %v9298
        %v9300 = vmul.f32 %v9250, 1.442695
        %v9301 = vpow.pop %v9300
        %v9302 = vmul.f32 %v9251, 1.442695
        %v9303 = vpow.pop %v9302
        %v9304 = vmul.f32 %v9252, 1.442695
        %v9305 = vpow.pop %v9304
        %v9306 = vmul.f32 %v9253, 1.442695
        %v9307 = vpow.pop %v9306
        %v9308 = vmul.f32 %v9254, 1.442695
        %v9309 = vpow.pop %v9308
        %v9310 = vmul.f32 %v9255, 1.442695
        %v9311 = vpow.pop %v9310
        %v9312 = vmul.f32 %v9256, 1.442695
        %v9313 = vpow.pop %v9312
        %v9314 = vmul.f32 %v9257, 1.442695
        %v9315 = vpow.pop %v9314
        %v9316 = vmul.f32 %v9258, 1.442695
        %v9317 = vpow.pop %v9316
        %v9318 = vmul.f32 %v9259, 1.442695
        %v9319 = vpow.pop %v9318
        %v9320 = vmul.f32 %v9260, 1.442695
        %v9321 = vpow.pop %v9320
        %v9322 = vmul.f32 %v9261, 1.442695
        %v9323 = vpow.pop %v9322
        %v9324 = vmul.f32 %v9262, 1.442695
        %v9325 = vpow.pop %v9324
        %v9326 = vmul.f32 %v9263, 1.442695
        %v9327 = vpow.pop %v9326
        %v9328 = vadd.f32 %v9265, 1.0
        %v9329 = vadd.f32 %v9267, 1.0
        %v9330 = vadd.f32 %v9269, 1.0
        %v9331 = vadd.f32 %v9271, 1.0
        %v9332 = vadd.f32 %v9273, 1.0
        %v9333 = vadd.f32 %v9275, 1.0
        %v9334 = vadd.f32 %v9277, 1.0
        %v9335 = vadd.f32 %v9279, 1.0
        %v9336 = vadd.f32 %v9281, 1.0
        %v9337 = vadd.f32 %v9283, 1.0
        %v9338 = vadd.f32 %v9285, 1.0
        %v9339 = vadd.f32 %v9287, 1.0
        %v9340 = vadd.f32 %v9289, 1.0
        %v9341 = vadd.f32 %v9291, 1.0
        %v9342 = vadd.f32 %v9293, 1.0
        %v9343 = vadd.f32 %v9295, 1.0
        %v9344 = vadd.f32 %v9297, 1.0
        %v9345 = vadd.f32 %v9299, 1.0
        %v9346 = vadd.f32 %v9301, 1.0
        %v9347 = vadd.f32 %v9303, 1.0
        %v9348 = vadd.f32 %v9305, 1.0
        %v9349 = vadd.f32 %v9307, 1.0
        %v9350 = vadd.f32 %v9309, 1.0
        %v9351 = vadd.f32 %v9311, 1.0
        %v9352 = vadd.f32 %v9313, 1.0
        %v9353 = vadd.f32 %v9315, 1.0
        %v9354 = vadd.f32 %v9317, 1.0
        %v9355 = vadd.f32 %v9319, 1.0
        %v9356 = vadd.f32 %v9321, 1.0
        %v9357 = vadd.f32 %v9323, 1.0
        %v9358 = vadd.f32 %v9325, 1.0
        %v9359 = vadd.f32 %v9327, 1.0
        %v9360 = vrcp.pop %v9328
        %v9361 = vrcp.pop %v9329
        %v9362 = vrcp.pop %v9330
        %v9363 = vrcp.pop %v9331
        %v9364 = vrcp.pop %v9332
        %v9365 = vrcp.pop %v9333
        %v9366 = vrcp.pop %v9334
        %v9367 = vrcp.pop %v9335
        %v9368 = vrcp.pop %v9336
        %v9369 = vrcp.pop %v9337
        %v9370 = vrcp.pop %v9338
        %v9371 = vrcp.pop %v9339
        %v9372 = vrcp.pop %v9340
        %v9373 = vrcp.pop %v9341
        %v9374 = vrcp.pop %v9342
        %v9375 = vrcp.pop %v9343
        %v9376 = vrcp.pop %v9344
        %v9377 = vrcp.pop %v9345
        %v9378 = vrcp.pop %v9346
        %v9379 = vrcp.pop %v9347
        %v9380 = vrcp.pop %v9348
        %v9381 = vrcp.pop %v9349
        %v9382 = vrcp.pop %v9350
        %v9383 = vrcp.pop %v9351
        %v9384 = vrcp.pop %v9352
        %v9385 = vrcp.pop %v9353
        %v9386 = vrcp.pop %v9354
        %v9387 = vrcp.pop %v9355
        %v9388 = vrcp.pop %v9356
        %v9389 = vrcp.pop %v9357
        %v9390 = vrcp.pop %v9358
        %v9391 = vrcp.pop %v9359
        %v9392 = vmul.f32 %v9106, %v9360
        %v9393 = vmul.f32 %v9109, %v9361
        %v9394 = vmul.f32 %v9114, %v9362
        %v9395 = vmul.f32 %v9117, %v9363
        %v9396 = vmul.f32 %v9122, %v9364
        %v9397 = vmul.f32 %v9125, %v9365
        %v9398 = vmul.f32 %v9130, %v9366
        %v9399 = vmul.f32 %v9133, %v9367
        %v9400 = vmul.f32 %v9138, %v9368
        %v9401 = vmul.f32 %v9141, %v9369
        %v9402 = vmul.f32 %v9146, %v9370
        %v9403 = vmul.f32 %v9149, %v9371
        %v9404 = vmul.f32 %v9154, %v9372
        %v9405 = vmul.f32 %v9157, %v9373
        %v9406 = vmul.f32 %v9162, %v9374
        %v9407 = vmul.f32 %v9165, %v9375
        %v9408 = vmul.f32 %v9170, %v9376
        %v9409 = vmul.f32 %v9173, %v9377
        %v9410 = vmul.f32 %v9178, %v9378
        %v9411 = vmul.f32 %v9181, %v9379
        %v9412 = vmul.f32 %v9186, %v9380
        %v9413 = vmul.f32 %v9189, %v9381
        %v9414 = vmul.f32 %v9194, %v9382
        %v9415 = vmul.f32 %v9197, %v9383
        %v9416 = vmul.f32 %v9202, %v9384
        %v9417 = vmul.f32 %v9205, %v9385
        %v9418 = vmul.f32 %v9210, %v9386
        %v9419 = vmul.f32 %v9213, %v9387
        %v9420 = vmul.f32 %v9218, %v9388
        %v9421 = vmul.f32 %v9221, %v9389
        %v9422 = vmul.f32 %v9226, %v9390
        %v9423 = vmul.f32 %v9229, %v9391
        %v9424 = vld [vmem:[%s800 + $0x1] sm:$0xff]
        %v9425 = vld [vmem:[%s800 + $0x9] sm:$0xff]
        %v9426 = vld [vmem:[%s800 + $0x19] sm:$0xff]
        %v9427 = vld [vmem:[%s800 + $0x21] sm:$0xff]
        %v9428 = vld [vmem:[%s800 + $0x31] sm:$0xff]
        %v9429 = vld [vmem:[%s800 + $0x39] sm:$0xff]
        %v9430 = vld [vmem:[%s800 + $0x49] sm:$0xff]
        %v9431 = vld [vmem:[%s800 + $0x51] sm:$0xff]
        %v9432 = vld [vmem:[%s800 + $0x61] sm:$0xff]
        %v9433 = vld [vmem:[%s800 + $0x69] sm:$0xff]
        %v9434 = vld [vmem:[%s800 + $0x79] sm:$0xff]
        %v9435 = vld [vmem:[%s800 + $0x81] sm:$0xff]
        %v9436 = vld [vmem:[%s800 + $0x91] sm:$0xff]
        %v9437 = vld [vmem:[%s800 + $0x99] sm:$0xff]
        %v9438 = vld [vmem:[%s800 + $0xa9] sm:$0xff]
        %v9439 = vld [vmem:[%s800 + $0xb1] sm:$0xff]
        %v9440 = vld [vmem:[%s800 + $0xc1] sm:$0xff]
        %v9441 = vld [vmem:[%s800 + $0xc9] sm:$0xff]
        %v9442 = vld [vmem:[%s800 + $0xd9] sm:$0xff]
        %v9443 = vld [vmem:[%s800 + $0xe1] sm:$0xff]
        %v9444 = vld [vmem:[%s800 + $0xf1] sm:$0xff]
        %v9445 = vld [vmem:[%s800 + $0xf9] sm:$0xff]
        %v9446 = vld [vmem:[%s800 + $0x109] sm:$0xff]
        %v9447 = vld [vmem:[%s800 + $0x111] sm:$0xff]
        %v9448 = vld [vmem:[%s800 + $0x121] sm:$0xff]
        %v9449 = vld [vmem:[%s800 + $0x129] sm:$0xff]
        %v9450 = vld [vmem:[%s800 + $0x139] sm:$0xff]
        %v9451 = vld [vmem:[%s800 + $0x141] sm:$0xff]
        %v9452 = vld [vmem:[%s800 + $0x151] sm:$0xff]
        %v9453 = vld [vmem:[%s800 + $0x159] sm:$0xff]
        %v9454 = vld [vmem:[%s800 + $0x169] sm:$0xff]
        %v9455 = vld [vmem:[%s800 + $0x171] sm:$0xff]
        %v9456 = vadd.f32 %v9392, %v9424
        %v9457 = vadd.f32 %v9393, %v9425
        %v9458 = vadd.f32 %v9394, %v9426
        %v9459 = vadd.f32 %v9395, %v9427
        %v9460 = vadd.f32 %v9396, %v9428
        %v9461 = vadd.f32 %v9397, %v9429
        %v9462 = vadd.f32 %v9398, %v9430
        %v9463 = vadd.f32 %v9399, %v9431
        %v9464 = vadd.f32 %v9400, %v9432
        %v9465 = vadd.f32 %v9401, %v9433
        %v9466 = vadd.f32 %v9402, %v9434
        %v9467 = vadd.f32 %v9403, %v9435
        %v9468 = vadd.f32 %v9404, %v9436
        %v9469 = vadd.f32 %v9405, %v9437
        %v9470 = vadd.f32 %v9406, %v9438
        %v9471 = vadd.f32 %v9407, %v9439
        %v9472 = vadd.f32 %v9408, %v9440
        %v9473 = vadd.f32 %v9409, %v9441
        %v9474 = vadd.f32 %v9410, %v9442
        %v9475 = vadd.f32 %v9411, %v9443
        %v9476 = vadd.f32 %v9412, %v9444
        %v9477 = vadd.f32 %v9413, %v9445
        %v9478 = vadd.f32 %v9414, %v9446
        %v9479 = vadd.f32 %v9415, %v9447
        %v9480 = vadd.f32 %v9416, %v9448
        %v9481 = vadd.f32 %v9417, %v9449
        %v9482 = vadd.f32 %v9418, %v9450
        %v9483 = vadd.f32 %v9419, %v9451
        %v9484 = vadd.f32 %v9420, %v9452
        %v9485 = vadd.f32 %v9421, %v9453
        %v9486 = vadd.f32 %v9422, %v9454
        %v9487 = vadd.f32 %v9423, %v9455
        %9488 = vst [vmem:[%s217] sm:$0xff] %v9456
        %9489 = vst [vmem:[%s217 + $0x8] sm:$0xff] %v9457
        %9490 = vst [vmem:[%s217 + $0x10] sm:$0xff] %v9458
        %9491 = vst [vmem:[%s217 + $0x18] sm:$0xff] %v9459
        %9492 = vst [vmem:[%s217 + $0x20] sm:$0xff] %v9460
        %9493 = vst [vmem:[%s217 + $0x28] sm:$0xff] %v9461
        %9494 = vst [vmem:[%s217 + $0x30] sm:$0xff] %v9462
        %9495 = vst [vmem:[%s217 + $0x38] sm:$0xff] %v9463
        %9496 = vst [vmem:[%s217 + $0x40] sm:$0xff] %v9464
        %9497 = vst [vmem:[%s217 + $0x48] sm:$0xff] %v9465
        %9498 = vst [vmem:[%s217 + $0x50] sm:$0xff] %v9466
        %9499 = vst [vmem:[%s217 + $0x58] sm:$0xff] %v9467
        %9500 = vst [vmem:[%s217 + $0x60] sm:$0xff] %v9468
        %9501 = vst [vmem:[%s217 + $0x68] sm:$0xff] %v9469
        %9502 = vst [vmem:[%s217 + $0x70] sm:$0xff] %v9470
        %9503 = vst [vmem:[%s217 + $0x78] sm:$0xff] %v9471
        %9504 = vst [vmem:[%s217 + $0x80] sm:$0xff] %v9472
        %9505 = vst [vmem:[%s217 + $0x88] sm:$0xff] %v9473
        %9506 = vst [vmem:[%s217 + $0x90] sm:$0xff] %v9474
        %9507 = vst [vmem:[%s217 + $0x98] sm:$0xff] %v9475
        %9508 = vst [vmem:[%s217 + $0xa0] sm:$0xff] %v9476
        %9509 = vst [vmem:[%s217 + $0xa8] sm:$0xff] %v9477
        %9510 = vst [vmem:[%s217 + $0xb0] sm:$0xff] %v9478
        %9511 = vst [vmem:[%s217 + $0xb8] sm:$0xff] %v9479
        %9512 = vst [vmem:[%s217 + $0xc0] sm:$0xff] %v9480
        %9513 = vst [vmem:[%s217 + $0xc8] sm:$0xff] %v9481
        %9514 = vst [vmem:[%s217 + $0xd0] sm:$0xff] %v9482
        %9515 = vst [vmem:[%s217 + $0xd8] sm:$0xff] %v9483
        %9516 = vst [vmem:[%s217 + $0xe0] sm:$0xff] %v9484
        %9517 = vst [vmem:[%s217 + $0xe8] sm:$0xff] %v9485
        %9518 = vst [vmem:[%s217 + $0xf0] sm:$0xff] %v9486
        %9519 = vst [vmem:[%s217 + $0xf8] sm:$0xff] %v9487
        %s9520 = sand.u32 %s137, 1
        %s9521 = scalar_lea.sflag [#allocation6], %s9520
        %s9522 = sand.u32 %s137, 1
        %s9523 = smul.addr %s9522, 256
        %s9524 = scalar_lea.vmem [#allocation5], %s9523
        // Predicated region
        $region41: #{bottleneck_forward.1} parent=39 // pred_check
          %p9525 = pneg %p147
        $region42: #{bottleneck_forward.1} parent=39 // pred_check_branch
          %9527 = sbr.rel (%p9525) target = $region44
        $region43: #{bottleneck_forward.1} parent=39 // pred_region
          %s9529 = ssub.s32 4096, 4096
          %9530 = vsyncadd %s9521, %s9529
          %s9531 = smul.addr %s19, 32
          %s9532 = smul.addr %s9531, 128
          %s9533 = scalar_lea.hbm %s5, %s9532
          %s9534 = sshll.u32 %s9524, 4
          %s9535 = int_to_ptr.vmem [resolvable:$true] %s9534
          %9540 = dma.vmem_to_hbm [thread:$0]  %s9535, 4096, %s9533, %s9521, 128, 128, 8
        $region44: #{bottleneck_forward.1} parent=39 // pred_fallthru
          _
      $region40: #{bottleneck_forward.1} parent=5 // pred_fallthru
        _
      %p9541 = scmp.le.s32.totalorder 2, %s14
      // Predicated region
      $region45: #{bottleneck_forward.1} parent=5 // pred_check
        %p9542 = pneg %p9541
      $region46: #{bottleneck_forward.1} parent=5 // pred_check_branch
        %9544 = sbr.rel (%p9542) target = $region48
      $region47: #{bottleneck_forward.1} parent=5 // pred_region
        %s9545 = ssub.s32 %s14, 2
        // Predicated region
        $region49: #{bottleneck_forward.1} parent=47 // pred_check
          %p9546 = pneg %p153
        $region50: #{bottleneck_forward.1} parent=47 // pred_check_branch
          %9548 = sbr.rel (%p9546) target = $region52
        $region51: #{bottleneck_forward.1} parent=47 // pred_region
          %s9549 = sand.u32 %s138, 1
          %s9550 = scalar_lea.sflag [#allocation6], %s9549
          %s9551 = sand.u32 %s138, 1
          %s9552 = smul.addr %s9551, 256
          %s9553 = scalar_lea.vmem [#allocation5], %s9552
          %9554 = dma.done %s9550, 4096
        $region52: #{bottleneck_forward.1} parent=47 // pred_fallthru
          _
      $region48: #{bottleneck_forward.1} parent=5 // pred_fallthru
        _
    $region6: #{bottleneck_forward.1} parent=1 // loop_footer
      %s18 = sadd.s32 1, %s14
    $region7: #{bottleneck_forward.1} parent=1 // loop_footer_branch
      %13 = sbr.rel target = $region3
    $region8: #{bottleneck_forward.1} parent=1 // loop_exit
      _
    %9555 = vsyncpa [#allocation6], 1
    %s9556 = scalar_lea.sflag [#allocation6], 1
    %9557 = vsyncpa %s9556, 1

</llo_original>
